<compile_context>
chip_gen: v7x
topology: tpu7x:2x2x1
jax: 0.10.0
libtpu: 0.0.40
codegen_flags: <defaults>
</compile_context>

<pallas_src>
import functools

import jax
import jax.numpy as jnp
from jax.experimental import pallas as pl
from jax.experimental.pallas import tpu as pltpu

LN_EPS = 1e-5                     # torch.nn.LayerNorm default
_VMEM_LIMIT = 48 * 1024 * 1024    # explicit scoped-VMEM cap (safe on v5e/v6e/v7x)


def _round8(d):
    return ((d + 7) // 8) * 8


# ---------------------------------------------------------------------------
# In-kernel helpers
# ---------------------------------------------------------------------------
def _masked_layer_norm(x, gamma, beta, d_logical):
    """LayerNorm over the first d_logical lanes of a lane-padded activation."""
    lp = x.shape[-1]
    if d_logical == lp:
        mean = jnp.mean(x, axis=-1, keepdims=True)
        diff = x - mean
        var = jnp.mean(diff * diff, axis=-1, keepdims=True)
    else:
        mask = (jax.lax.broadcasted_iota(jnp.int32, (1, lp), 1) < d_logical
                ).astype(jnp.float32)
        inv_d = 1.0 / float(d_logical)
        mean = jnp.sum(x * mask, axis=-1, keepdims=True) * inv_d
        diff = (x - mean) * mask
        var = jnp.sum(diff * diff, axis=-1, keepdims=True) * inv_d
    # gamma/beta are zero in padded lanes -> padded lanes stay exactly zero.
    return diff * jax.lax.rsqrt(var + LN_EPS) * gamma + beta


# ---------------------------------------------------------------------------
# Generic fused MLP kernel (encoders + standalone decoder): packed slabs
# ---------------------------------------------------------------------------
def _mlp_kernel(x_ref, w_ref, v_ref, o_ref, *, k_pads, layer_norm, d_logical):
    nl = len(k_pads)
    x = x_ref[...]
    off = 0
    for i, k in enumerate(k_pads):
        w = w_ref[off:off + k, :]
        off += k
        x = jnp.dot(x, w, preferred_element_type=jnp.float32) + v_ref[i:i + 1, :]
        if i < nl - 1:
            x = jnp.maximum(x, 0.0)
    if layer_norm:
        x = _masked_layer_norm(x, v_ref[nl:nl + 1, :], v_ref[nl + 1:nl + 2, :],
                               d_logical)
    o_ref[...] = x.astype(o_ref.dtype)


def _choose_tm(m):
    """Row tile: multiple of 8, large enough to amortize per-step overhead,
    small enough that the 'parallel' grid has >= 2 programs (v7x megacore)."""
    if m < 16:
        return max(8, _round8(m))
    g = max(2, pl.cdiv(m, 512))
    return _round8(-(-m // g))


def mlp_pallas(x2d, slab, *, k_pads, layer_norm, d_logical, lp):
    m, din = x2d.shape
    assert din == k_pads[0]
    tm = _choose_tm(m)
    grid = pl.cdiv(m, tm)
    mp = grid * tm
    if mp != m:
        x2d = jnp.pad(x2d, ((0, mp - m), (0, 0)))

    kern = functools.partial(_mlp_kernel, k_pads=tuple(k_pads),
                             layer_norm=layer_norm, d_logical=d_logical)
    out = pl.pallas_call(
        kern,
        out_shape=jax.ShapeDtypeStruct((mp, lp), jnp.float32),
        grid_spec=pltpu.PrefetchScalarGridSpec(
            num_scalar_prefetch=0,
            grid=(grid,),
            in_specs=[
                pl.BlockSpec((tm, din), lambda i: (i, 0)),
                pl.BlockSpec(slab["w"].shape, lambda i: (0, 0)),
                pl.BlockSpec(slab["v"].shape, lambda i: (0, 0)),
            ],
            out_specs=pl.BlockSpec((tm, lp), lambda i: (i, 0)),
        ),
        compiler_params=pltpu.CompilerParams(
            dimension_semantics=("parallel",),
            vmem_limit_bytes=_VMEM_LIMIT),
    )(x2d, slab["w"], slab["v"])
    if mp != m:
        out = out[:m]
    return out


# ---------------------------------------------------------------------------
# Fused GraphNetBlock compute: gather + edge MLP + segment-sum + node MLP +
# residuals — shared between the plain block kernel and the block+decoder one.
# ---------------------------------------------------------------------------
def _block_compute(s_col, r_col, r_row, node, edge, ew_ref, ev_ref, nw_ref,
                   nv_ref, *, n_nodes, n_edges, lp, nl, d_logical):
    # One-hot gather / scatter matrices (VPU compares, consumed by the MXU).
    iota_en = jax.lax.broadcasted_iota(jnp.int32, (n_edges, n_nodes), 1)
    p_s = (jnp.broadcast_to(s_col, (n_edges, n_nodes)) == iota_en
           ).astype(jnp.float32)                                   # [E, N]
    p_r = (jnp.broadcast_to(r_col, (n_edges, n_nodes)) == iota_en
           ).astype(jnp.float32)                                   # [E, N]
    iota_ne = jax.lax.broadcasted_iota(jnp.int32, (n_nodes, n_edges), 0)
    p_rt = (jnp.broadcast_to(r_row, (n_nodes, n_edges)) == iota_ne
            ).astype(jnp.float32)                                  # [N, E]

    # --- edge MLP: first linear applied to the implicit concat [s|r|e] ------
    if n_edges >= n_nodes:
        # (P @ node) @ W == P @ (node @ W); projecting the N-row node latents
        # first is cheaper than projecting E-row gathered features.
        s_term = jnp.dot(
            p_s, jnp.dot(node, ew_ref[0:lp, :],
                         preferred_element_type=jnp.float32),
            preferred_element_type=jnp.float32)
        r_term = jnp.dot(
            p_r, jnp.dot(node, ew_ref[lp:2 * lp, :],
                         preferred_element_type=jnp.float32),
            preferred_element_type=jnp.float32)
    else:
        sfeat = jnp.dot(p_s, node, preferred_element_type=jnp.float32)
        rfeat = jnp.dot(p_r, node, preferred_element_type=jnp.float32)
        s_term = jnp.dot(sfeat, ew_ref[0:lp, :],
                         preferred_element_type=jnp.float32)
        r_term = jnp.dot(rfeat, ew_ref[lp:2 * lp, :],
                         preferred_element_type=jnp.float32)
    x = (s_term + r_term
         + jnp.dot(edge, ew_ref[2 * lp:3 * lp, :],
                   preferred_element_type=jnp.float32)
         + ev_ref[0:1, :])
    off = 3 * lp
    for i in range(1, nl):
        x = jnp.maximum(x, 0.0)
        x = jnp.dot(x, ew_ref[off:off + lp, :],
                    preferred_element_type=jnp.float32) + ev_ref[i:i + 1, :]
        off += lp
    x = _masked_layer_norm(x, ev_ref[nl:nl + 1, :], ev_ref[nl + 1:nl + 2, :],
                           d_logical)
    edge_new = edge + x                       # residual (edge)

    # --- receiver segment-sum (aggregates the pre-residual edge update) -----
    agg = jnp.dot(p_rt, x, preferred_element_type=jnp.float32)      # [N, Lp]

    # --- node MLP: first linear applied to the implicit concat [node|agg] ---
    y = (jnp.dot(node, nw_ref[0:lp, :], preferred_element_type=jnp.float32)
         + jnp.dot(agg, nw_ref[lp:2 * lp, :], preferred_element_type=jnp.float32)
         + nv_ref[0:1, :])
    off = 2 * lp
    for i in range(1, nl):
        y = jnp.maximum(y, 0.0)
        y = jnp.dot(y, nw_ref[off:off + lp, :],
                    preferred_element_type=jnp.float32) + nv_ref[i:i + 1, :]
        off += lp
    y = _masked_layer_norm(y, nv_ref[nl:nl + 1, :], nv_ref[nl + 1:nl + 2, :],
                           d_logical)
    node_new = node + y                        # residual (node)
    return node_new, edge_new


def _block_kernel(s_col_ref, r_col_ref, r_row_ref, node_ref, edge_ref,
                  ew_ref, ev_ref, nw_ref, nv_ref,
                  node_out_ref, edge_out_ref,
                  *, n_nodes, n_edges, lp, nl, d_logical):
    node_new, edge_new = _block_compute(
        s_col_ref[0], r_col_ref[0], r_row_ref[0], node_ref[0], edge_ref[0],
        ew_ref, ev_ref, nw_ref, nv_ref,
        n_nodes=n_nodes, n_edges=n_edges, lp=lp, nl=nl, d_logical=d_logical)
    node_out_ref[0] = node_new
    edge_out_ref[0] = edge_new


def _block_decoder_kernel(s_col_ref, r_col_ref, r_row_ref, node_ref, edge_ref,
                          ew_ref, ev_ref, nw_ref, nv_ref, dw_ref, dv_ref,
                          dec_out_ref,
                          *, n_nodes, n_edges, lp, nl, d_logical):
    """Last message-passing step fused with the decoder MLP: the final node /
    edge latents never leave VMEM; only the decoded output hits HBM."""
    node_new, _ = _block_compute(
        s_col_ref[0], r_col_ref[0], r_row_ref[0], node_ref[0], edge_ref[0],
        ew_ref, ev_ref, nw_ref, nv_ref,
        n_nodes=n_nodes, n_edges=n_edges, lp=lp, nl=nl, d_logical=d_logical)
    x = node_new
    off = 0
    for i in range(nl):
        x = jnp.dot(x, dw_ref[off:off + lp, :],
                    preferred_element_type=jnp.float32) + dv_ref[i:i + 1, :]
        if i < nl - 1:
            x = jnp.maximum(x, 0.0)
        off += lp
    dec_out_ref[0] = x                          # lane-dense; sliced in wrapper


def _block_specs(bp, n, e, lp):
    return [
        pl.BlockSpec((1, e, 1), lambda i: (i, 0, 0)),     # senders  [B,E,1]
        pl.BlockSpec((1, e, 1), lambda i: (i, 0, 0)),     # receivers[B,E,1]
        pl.BlockSpec((1, 1, e), lambda i: (i, 0, 0)),     # receivers[B,1,E]
        pl.BlockSpec((1, n, lp), lambda i: (i, 0, 0)),    # node latents
        pl.BlockSpec((1, e, lp), lambda i: (i, 0, 0)),    # edge latents
        pl.BlockSpec(bp["edge"]["w"].shape, lambda i: (0, 0)),
        pl.BlockSpec(bp["edge"]["v"].shape, lambda i: (0, 0)),
        pl.BlockSpec(bp["node"]["w"].shape, lambda i: (0, 0)),
        pl.BlockSpec(bp["node"]["v"].shape, lambda i: (0, 0)),
    ]


def graphnet_block_pallas(bp, node_lat, edge_lat, s_col, r_col, r_row,
                          *, lp, nl, d_logical):
    b, n, _ = node_lat.shape
    _, e, _ = edge_lat.shape
    kern = functools.partial(_block_kernel, n_nodes=n, n_edges=e, lp=lp, nl=nl,
                             d_logical=d_logical)
    new_node, new_edge = pl.pallas_call(
        kern,
        out_shape=(jax.ShapeDtypeStruct((b, n, lp), jnp.float32),
                   jax.ShapeDtypeStruct((b, e, lp), jnp.float32)),
        grid_spec=pltpu.PrefetchScalarGridSpec(
            num_scalar_prefetch=0,
            grid=(b,),
            in_specs=_block_specs(bp, n, e, lp),
            out_specs=(
                pl.BlockSpec((1, n, lp), lambda i: (i, 0, 0)),
                pl.BlockSpec((1, e, lp), lambda i: (i, 0, 0)),
            ),
        ),
        compiler_params=pltpu.CompilerParams(
            dimension_semantics=("parallel",),
            vmem_limit_bytes=_VMEM_LIMIT),
    )(s_col, r_col, r_row, node_lat, edge_lat,
      bp["edge"]["w"], bp["edge"]["v"], bp["node"]["w"], bp["node"]["v"])
    return new_node, new_edge


def graphnet_block_decode_pallas(bp, dec, node_lat, edge_lat, s_col, r_col,
                                 r_row, *, lp, nl, d_logical):
    b, n, _ = node_lat.shape
    _, e, _ = edge_lat.shape
    kern = functools.partial(_block_decoder_kernel, n_nodes=n, n_edges=e,
                             lp=lp, nl=nl, d_logical=d_logical)
    dec_out = pl.pallas_call(
        kern,
        out_shape=jax.ShapeDtypeStruct((b, n, lp), jnp.float32),
        grid_spec=pltpu.PrefetchScalarGridSpec(
            num_scalar_prefetch=0,
            grid=(b,),
            in_specs=_block_specs(bp, n, e, lp) + [
                pl.BlockSpec(dec["w"].shape, lambda i: (0, 0)),
                pl.BlockSpec(dec["v"].shape, lambda i: (0, 0)),
            ],
            out_specs=pl.BlockSpec((1, n, lp), lambda i: (i, 0, 0)),
        ),
        compiler_params=pltpu.CompilerParams(
            dimension_semantics=("parallel",),
            vmem_limit_bytes=_VMEM_LIMIT),
    )(s_col, r_col, r_row, node_lat, edge_lat,
      bp["edge"]["w"], bp["edge"]["v"], bp["node"]["w"], bp["node"]["v"],
      dec["w"], dec["v"])
    return dec_out


# ---------------------------------------------------------------------------
# Parameter init (logical widths) and packing into padded, fused slabs
# ---------------------------------------------------------------------------
def init_mlp(key, din, widths, layer_norm):
    ws, bs = [], []
    d_in = din
    for d_out in widths:
        key, kw, kb = jax.random.split(key, 3)
        scale = 1.0 / jnp.sqrt(jnp.float32(d_in))
        ws.append(jax.random.normal(kw, (d_in, d_out), jnp.float32) * scale)
        bs.append(jax.random.normal(kb, (d_out,), jnp.float32) * 0.01)
        d_in = d_out
    params = {"ws": ws, "bs": bs}
    if layer_norm:
        params["gamma"] = jnp.ones((widths[-1],), jnp.float32)
        params["beta"] = jnp.zeros((widths[-1],), jnp.float32)
    return params


def init_model(key, *, node_dim, edge_dim, output_size, latent_size, num_layers,
               message_passing_steps):
    widths_latent = [latent_size] * num_layers + [latent_size]
    widths_out = [latent_size] * num_layers + [output_size]
    keys = jax.random.split(key, 3 + 2 * message_passing_steps)
    params = {
        "encoder_node": init_mlp(keys[0], node_dim, widths_latent, True),
        "encoder_edge": init_mlp(keys[1], edge_dim, widths_latent, True),
        "decoder": init_mlp(keys[2], latent_size, widths_out, False),
        "blocks": [],
    }
    for s in range(message_passing_steps):
        params["blocks"].append({
            "edge": init_mlp(keys[3 + 2 * s], 3 * latent_size, widths_latent, True),
            "node": init_mlp(keys[4 + 2 * s], 2 * latent_size, widths_latent, True),
        })
    return params


def _pad_to(a, rows, cols):
    out = jnp.zeros((rows, cols), jnp.float32)
    return out.at[:a.shape[0], :a.shape[1]].set(a)


def pack_mlp(p, split_sizes, split_pads, lp):
    """Pack an MLP into one [sum_K_pad, lp] weight slab and one
    [num_linears+2, lp] vector slab (biases + gamma + beta, zero-padded)."""
    ws, bs = p["ws"], p["bs"]
    blocks = []
    r = 0
    w0 = ws[0]
    for k, kp in zip(split_sizes, split_pads):
        blocks.append(_pad_to(w0[r:r + k, :], kp, lp))
        r += k
    for w in ws[1:]:
        blocks.append(_pad_to(w, lp, lp))
    w_slab = jnp.concatenate(blocks, axis=0)

    rows = [_pad_to(b[None, :], 1, lp) for b in bs]
    if "gamma" in p:
        rows.append(_pad_to(p["gamma"][None, :], 1, lp))
        rows.append(_pad_to(p["beta"][None, :], 1, lp))
    else:
        rows.append(jnp.zeros((1, lp), jnp.float32))
        rows.append(jnp.zeros((1, lp), jnp.float32))
    v_slab = jnp.concatenate(rows, axis=0)
    return {"w": w_slab, "v": v_slab}


def pack_model(logical, *, node_dim, edge_dim, latent, lp):
    nd_pad, ed_pad = _round8(node_dim), _round8(edge_dim)
    return {
        "encoder_node": pack_mlp(logical["encoder_node"], (node_dim,), (nd_pad,), lp),
        "encoder_edge": pack_mlp(logical["encoder_edge"], (edge_dim,), (ed_pad,), lp),
        "decoder": pack_mlp(logical["decoder"], (latent,), (lp,), lp),
        "blocks": [
            {"edge": pack_mlp(b["edge"], (latent,) * 3, (lp,) * 3, lp),
             "node": pack_mlp(b["node"], (latent,) * 2, (lp,) * 2, lp)}
            for b in logical["blocks"]
        ],
    }


# ---------------------------------------------------------------------------
# Forward pass (all heavy lifting inside Pallas kernels)
# ---------------------------------------------------------------------------
def _pad_last(x, d_pad):
    d = x.shape[-1]
    if d == d_pad:
        return x
    return jnp.pad(x, ((0, 0), (0, 0), (0, d_pad - d)))


def encode_process_decode(packed, node_features, edge_features, senders, receivers,
                          *, node_dim_pad, edge_dim_pad, latent, lp, num_layers,
                          output_size):
    b, n, _ = node_features.shape
    _, e, _ = edge_features.shape
    nl = num_layers + 1

    # ---- Encoder (K padded at init; LayerNorm masked to latent lanes) ------
    nx = _pad_last(node_features, node_dim_pad).reshape(b * n, node_dim_pad)
    ex = _pad_last(edge_features, edge_dim_pad).reshape(b * e, edge_dim_pad)
    node_lat = mlp_pallas(nx, packed["encoder_node"],
                          k_pads=(node_dim_pad,) + (lp,) * num_layers,
                          layer_norm=True, d_logical=latent, lp=lp
                          ).reshape(b, n, lp)
    edge_lat = mlp_pallas(ex, packed["encoder_edge"],
                          k_pads=(edge_dim_pad,) + (lp,) * num_layers,
                          layer_norm=True, d_logical=latent, lp=lp
                          ).reshape(b, e, lp)

    # ---- Processor: fused graphnet blocks ----------------------------------
    s_col = senders[:, :, None]
    r_col = receivers[:, :, None]
    r_row = receivers[:, None, :]
    # TODO(synk): only the 'sum' aggregator is implemented (one-hot matmul);
    # max/min/mean aggregation would need a different in-kernel reduction.
    blocks = packed["blocks"]
    if blocks:
        for bp in blocks[:-1]:
            node_lat, edge_lat = graphnet_block_pallas(
                bp, node_lat, edge_lat, s_col, r_col, r_row,
                lp=lp, nl=nl, d_logical=latent)
        # Last step fused with the decoder (no HBM round-trip of final latents).
        dec = graphnet_block_decode_pallas(
            blocks[-1], packed["decoder"], node_lat, edge_lat,
            s_col, r_col, r_row, lp=lp, nl=nl, d_logical=latent)
        out = dec.reshape(b * n, lp)
    else:
        out = mlp_pallas(node_lat.reshape(b * n, lp), packed["decoder"],
                         k_pads=(lp,) * nl, layer_norm=False,
                         d_logical=latent, lp=lp)
    return out[:, :output_size].reshape(b, n, output_size)


# ---------------------------------------------------------------------------
# Pure-JAX reference (logical, unpadded widths) for correctness checking
# ---------------------------------------------------------------------------
def _ref_mlp(p, x, layer_norm):
    nl = len(p["ws"])
    for i, (w, bb) in enumerate(zip(p["ws"], p["bs"])):
        x = jnp.dot(x, w) + bb
        if i < nl - 1:
            x = jnp.maximum(x, 0.0)
    if layer_norm:
        mean = jnp.mean(x, axis=-1, keepdims=True)
        var = jnp.mean((x - mean) ** 2, axis=-1, keepdims=True)
        x = (x - mean) * jax.lax.rsqrt(var + LN_EPS) * p["gamma"] + p["beta"]
    return x


def reference_forward(params, node_features, edge_features, senders, receivers):
    n = node_features.shape[1]
    gather = jax.vmap(lambda f, i: f[i])
    seg_sum = jax.vmap(lambda f, r: jax.ops.segment_sum(f, r, num_segments=n))
    node_lat = _ref_mlp(params["encoder_node"], node_features, True)
    edge_lat = _ref_mlp(params["encoder_edge"], edge_features, True)
    for blk in params["blocks"]:
        sfeat = gather(node_lat, senders)
        rfeat = gather(node_lat, receivers)
        new_edge = _ref_mlp(blk["edge"],
                            jnp.concatenate([sfeat, rfeat, edge_lat], -1), True)
        agg = seg_sum(new_edge, receivers)
        new_node = _ref_mlp(blk["node"],
                            jnp.concatenate([node_lat, agg], -1), True)
        node_lat = node_lat + new_node
        edge_lat = edge_lat + new_edge
    return _ref_mlp(params["decoder"], node_lat, False)


# ---------------------------------------------------------------------------
if __name__ == "__main__":
    B, N, E = 2, 64, 128
    NODE_DIM, EDGE_DIM = 12, 7
    OUTPUT_SIZE, LATENT, NUM_LAYERS, MP_STEPS = 3, 32, 2, 2
    LP = 128                                 # lane-padded internal width
    NODE_DIM_PAD, EDGE_DIM_PAD = _round8(NODE_DIM), _round8(EDGE_DIM)

    key = jax.random.PRNGKey(0)
    k_node, k_edge, k_snd, k_rcv, k_par = jax.random.split(key, 5)

    node_features = jax.random.normal(k_node, (B, N, NODE_DIM), jnp.float32)
    edge_features = jax.random.normal(k_edge, (B, E, EDGE_DIM), jnp.float32)
    senders = jax.random.randint(k_snd, (B, E), 0, N, dtype=jnp.int32)
    receivers = jax.random.randint(k_rcv, (B, E), 0, N, dtype=jnp.int32)

    logical_params = init_model(
        k_par, node_dim=NODE_DIM, edge_dim=EDGE_DIM, output_size=OUTPUT_SIZE,
        latent_size=LATENT, num_layers=NUM_LAYERS,
        message_passing_steps=MP_STEPS)
    packed_params = pack_model(logical_params, node_dim=NODE_DIM,
                               edge_dim=EDGE_DIM, latent=LATENT, lp=LP)

    fwd = jax.jit(functools.partial(
        encode_process_decode,
        node_dim_pad=NODE_DIM_PAD, edge_dim_pad=EDGE_DIM_PAD,
        latent=LATENT, lp=LP, num_layers=NUM_LAYERS, output_size=OUTPUT_SIZE))

    out = fwd(packed_params, node_features, edge_features, senders, receivers)
    jax.block_until_ready(out)

    assert out.shape == (B, N, OUTPUT_SIZE), out.shape
    assert bool(jnp.all(jnp.isfinite(out)))

    ref = reference_forward(logical_params, node_features, edge_features,
                            senders, receivers)
    max_err = float(jnp.max(jnp.abs(out - ref)))
    assert max_err < 1e-1, f"mismatch vs reference: {max_err}"

    print("KERNEL_OK")
</pallas_src>

<mosaic_0001>
module attributes {stable_mosaic.version = 11 : i64} {
  func.func @_mlp_kernel(%arg0: i32, %arg1: memref<64x16xf32, #tpu.memory_space<vmem>>, %arg2: memref<272x128xf32, #tpu.memory_space<vmem>>, %arg3: memref<5x128xf32, #tpu.memory_space<vmem>>, %arg4: memref<64x128xf32, #tpu.memory_space<vmem>>) attributes {dimension_semantics = [#tpu.dimension_semantics<parallel>], iteration_bounds = array<i64: 2>, scalar_prefetch = 0 : i64, scratch_operands = 0 : i64, tpu.core_type = #tpu.core_type<tc>, window_params = [{transform_indices = @transform_0, window_bounds = array<i64: 64, 16>}, {pipeline_mode = #tpu.pipeline_mode<synchronous>, transform_indices = @transform_1, window_bounds = array<i64: 272, 128>}, {pipeline_mode = #tpu.pipeline_mode<synchronous>, transform_indices = @transform_2, window_bounds = array<i64: 5, 128>}, {transform_indices = @transform_3, window_bounds = array<i64: 64, 128>}]} {
    %c0 = arith.constant 0 : index
    %c0_0 = arith.constant 0 : index
    %0 = vector.load %arg1[%c0, %c0_0] : memref<64x16xf32, #tpu.memory_space<vmem>>, vector<64x16xf32>
    %c0_1 = arith.constant 0 : index
    %c0_2 = arith.constant 0 : index
    %1 = vector.load %arg2[%c0_1, %c0_2] : memref<272x128xf32, #tpu.memory_space<vmem>>, vector<16x128xf32>
    %cst = arith.constant dense<0.000000e+00> : vector<64x128xf32>
    %2 = tpu.matmul %0, %1, %cst {dimension_numbers = #tpu.dot_dimension_numbers<[1], [0], [0], [1], [0, 0, 1, 1], [], []>} : vector<64x16xf32>, vector<16x128xf32>, vector<64x128xf32> -> vector<64x128xf32>
    %c0_3 = arith.constant 0 : index
    %c0_4 = arith.constant 0 : index
    %3 = vector.load %arg3[%c0_3, %c0_4] : memref<5x128xf32, #tpu.memory_space<vmem>>, vector<1x128xf32>
    %4 = vector.broadcast %3 : vector<1x128xf32> to vector<64x128xf32>
    %5 = arith.addf %2, %4 : vector<64x128xf32>
    %cst_5 = arith.constant 0.000000e+00 : f32
    %6 = vector.broadcast %cst_5 : f32 to vector<64x128xf32>
    %7 = arith.maximumf %5, %6 : vector<64x128xf32>
    %c16 = arith.constant 16 : index
    %c0_6 = arith.constant 0 : index
    %8 = vector.load %arg2[%c16, %c0_6] : memref<272x128xf32, #tpu.memory_space<vmem>>, vector<128x128xf32>
    %cst_7 = arith.constant dense<0.000000e+00> : vector<64x128xf32>
    %9 = tpu.matmul %7, %8, %cst_7 {dimension_numbers = #tpu.dot_dimension_numbers<[1], [0], [0], [1], [0, 0, 1, 1], [], []>} : vector<64x128xf32>, vector<128x128xf32>, vector<64x128xf32> -> vector<64x128xf32>
    %c1 = arith.constant 1 : index
    %c0_8 = arith.constant 0 : index
    %10 = vector.load %arg3[%c1, %c0_8] : memref<5x128xf32, #tpu.memory_space<vmem>>, vector<1x128xf32>
    %11 = vector.broadcast %10 : vector<1x128xf32> to vector<64x128xf32>
    %12 = arith.addf %9, %11 : vector<64x128xf32>
    %cst_9 = arith.constant 0.000000e+00 : f32
    %13 = vector.broadcast %cst_9 : f32 to vector<64x128xf32>
    %14 = arith.maximumf %12, %13 : vector<64x128xf32>
    %c144 = arith.constant 144 : index
    %c0_10 = arith.constant 0 : index
    %15 = vector.load %arg2[%c144, %c0_10] : memref<272x128xf32, #tpu.memory_space<vmem>>, vector<128x128xf32>
    %cst_11 = arith.constant dense<0.000000e+00> : vector<64x128xf32>
    %16 = tpu.matmul %14, %15, %cst_11 {dimension_numbers = #tpu.dot_dimension_numbers<[1], [0], [0], [1], [0, 0, 1, 1], [], []>} : vector<64x128xf32>, vector<128x128xf32>, vector<64x128xf32> -> vector<64x128xf32>
    %c2 = arith.constant 2 : index
    %c0_12 = arith.constant 0 : index
    %17 = vector.load %arg3[%c2, %c0_12] : memref<5x128xf32, #tpu.memory_space<vmem>>, vector<1x128xf32>
    %18 = vector.broadcast %17 : vector<1x128xf32> to vector<64x128xf32>
    %19 = arith.addf %16, %18 : vector<64x128xf32>
    %c3 = arith.constant 3 : index
    %c0_13 = arith.constant 0 : index
    %20 = vector.load %arg3[%c3, %c0_13] : memref<5x128xf32, #tpu.memory_space<vmem>>, vector<1x128xf32>
    %c4 = arith.constant 4 : index
    %c0_14 = arith.constant 0 : index
    %21 = vector.load %arg3[%c4, %c0_14] : memref<5x128xf32, #tpu.memory_space<vmem>>, vector<1x128xf32>
    %22 = tpu.iota {dimensions = array<i32: 1>} : vector<1x128xi32>
    %c32_i32 = arith.constant 32 : i32
    %23 = vector.broadcast %c32_i32 : i32 to vector<1x128xi32>
    %24 = arith.cmpi slt, %22, %23 : vector<1x128xi32>
    %25 = arith.extui %24 : vector<1x128xi1> to vector<1x128xi32>
    %26 = arith.sitofp %25 : vector<1x128xi32> to vector<1x128xf32>
    %27 = vector.broadcast %26 : vector<1x128xf32> to vector<64x128xf32>
    %28 = arith.mulf %19, %27 : vector<64x128xf32>
    %cst_15 = arith.constant dense<0.000000e+00> : vector<64xf32>
    %29 = vector.multi_reduction <add>, %28, %cst_15 [1] : vector<64x128xf32> to vector<64xf32>
    %30 = vector.shape_cast %29 : vector<64xf32> to vector<64x1xf32>
    %cst_16 = arith.constant 3.125000e-02 : f32
    %31 = vector.broadcast %cst_16 : f32 to vector<64x1xf32>
    %32 = arith.mulf %30, %31 : vector<64x1xf32>
    %33 = vector.broadcast %32 : vector<64x1xf32> to vector<64x128xf32>
    %34 = arith.subf %19, %33 : vector<64x128xf32>
    %35 = vector.broadcast %26 : vector<1x128xf32> to vector<64x128xf32>
    %36 = arith.mulf %34, %35 : vector<64x128xf32>
    %37 = arith.mulf %36, %36 : vector<64x128xf32>
    %cst_17 = arith.constant dense<0.000000e+00> : vector<64xf32>
    %38 = vector.multi_reduction <add>, %37, %cst_17 [1] : vector<64x128xf32> to vector<64xf32>
    %39 = vector.shape_cast %38 : vector<64xf32> to vector<64x1xf32>
    %cst_18 = arith.constant 3.125000e-02 : f32
    %40 = vector.broadcast %cst_18 : f32 to vector<64x1xf32>
    %41 = arith.mulf %39, %40 : vector<64x1xf32>
    %cst_19 = arith.constant 9.99999974E-6 : f32
    %42 = vector.broadcast %cst_19 : f32 to vector<64x1xf32>
    %43 = arith.addf %41, %42 : vector<64x1xf32>
    %44 = math.rsqrt %43 : vector<64x1xf32>
    %45 = vector.broadcast %44 : vector<64x1xf32> to vector<64x128xf32>
    %46 = arith.mulf %36, %45 : vector<64x128xf32>
    %47 = vector.broadcast %20 : vector<1x128xf32> to vector<64x128xf32>
    %48 = arith.mulf %46, %47 : vector<64x128xf32>
    %49 = vector.broadcast %21 : vector<1x128xf32> to vector<64x128xf32>
    %50 = arith.addf %48, %49 : vector<64x128xf32>
    %c0_20 = arith.constant 0 : index
    %c0_21 = arith.constant 0 : index
    %51 = vector.load %arg4[%c0_20, %c0_21] : memref<64x128xf32, #tpu.memory_space<vmem>>, vector<64x128xf32>
    tpu.vector_store %arg4[%c0_20, %c0_21], %50 {strides = array<i32>} : memref<64x128xf32, #tpu.memory_space<vmem>>, vector<64x128xf32>,
    return
  }
  func.func @transform_0(%arg0: i32) -> (i32, i32) {
    %c0_i32 = arith.constant 0 : i32
    %c0_i32_0 = arith.constant 0 : i32
    return %arg0, %c0_i32 : i32, i32
  }
  func.func @transform_1(%arg0: i32) -> (i32, i32) {
    %c0_i32 = arith.constant 0 : i32
    %c0_i32_0 = arith.constant 0 : i32
    %c0_i32_1 = arith.constant 0 : i32
    return %c0_i32, %c0_i32_0 : i32, i32
  }
  func.func @transform_2(%arg0: i32) -> (i32, i32) {
    %c0_i32 = arith.constant 0 : i32
    %c0_i32_0 = arith.constant 0 : i32
    %c0_i32_1 = arith.constant 0 : i32
    return %c0_i32, %c0_i32_0 : i32, i32
  }
  func.func @transform_3(%arg0: i32) -> (i32, i32) {
    %c0_i32 = arith.constant 0 : i32
    %c0_i32_0 = arith.constant 0 : i32
    return %arg0, %c0_i32 : i32, i32
  }
}

module attributes {stable_mosaic.version = 11 : i64} {
  func.func @_mlp_kernel(%arg0: i32, %arg1: memref<128x8xf32, #tpu.memory_space<vmem>>, %arg2: memref<264x128xf32, #tpu.memory_space<vmem>>, %arg3: memref<5x128xf32, #tpu.memory_space<vmem>>, %arg4: memref<128x128xf32, #tpu.memory_space<vmem>>) attributes {dimension_semantics = [#tpu.dimension_semantics<parallel>], iteration_bounds = array<i64: 2>, scalar_prefetch = 0 : i64, scratch_operands = 0 : i64, tpu.core_type = #tpu.core_type<tc>, window_params = [{transform_indices = @transform_0, window_bounds = array<i64: 128, 8>}, {pipeline_mode = #tpu.pipeline_mode<synchronous>, transform_indices = @transform_1, window_bounds = array<i64: 264, 128>}, {pipeline_mode = #tpu.pipeline_mode<synchronous>, transform_indices = @transform_2, window_bounds = array<i64: 5, 128>}, {transform_indices = @transform_3, window_bounds = array<i64: 128, 128>}]} {
    %c0 = arith.constant 0 : index
    %c0_0 = arith.constant 0 : index
    %0 = vector.load %arg1[%c0, %c0_0] : memref<128x8xf32, #tpu.memory_space<vmem>>, vector<128x8xf32>
    %c0_1 = arith.constant 0 : index
    %c0_2 = arith.constant 0 : index
    %1 = vector.load %arg2[%c0_1, %c0_2] : memref<264x128xf32, #tpu.memory_space<vmem>>, vector<8x128xf32>
    %cst = arith.constant dense<0.000000e+00> : vector<128x128xf32>
    %2 = tpu.matmul %0, %1, %cst {dimension_numbers = #tpu.dot_dimension_numbers<[1], [0], [0], [1], [0, 0, 1, 1], [], []>} : vector<128x8xf32>, vector<8x128xf32>, vector<128x128xf32> -> vector<128x128xf32>
    %c0_3 = arith.constant 0 : index
    %c0_4 = arith.constant 0 : index
    %3 = vector.load %arg3[%c0_3, %c0_4] : memref<5x128xf32, #tpu.memory_space<vmem>>, vector<1x128xf32>
    %4 = vector.broadcast %3 : vector<1x128xf32> to vector<128x128xf32>
    %5 = arith.addf %2, %4 : vector<128x128xf32>
    %cst_5 = arith.constant 0.000000e+00 : f32
    %6 = vector.broadcast %cst_5 : f32 to vector<128x128xf32>
    %7 = arith.maximumf %5, %6 : vector<128x128xf32>
    %c8 = arith.constant 8 : index
    %c0_6 = arith.constant 0 : index
    %8 = vector.load %arg2[%c8, %c0_6] : memref<264x128xf32, #tpu.memory_space<vmem>>, vector<128x128xf32>
    %cst_7 = arith.constant dense<0.000000e+00> : vector<128x128xf32>
    %9 = tpu.matmul %7, %8, %cst_7 {dimension_numbers = #tpu.dot_dimension_numbers<[1], [0], [0], [1], [0, 0, 1, 1], [], []>} : vector<128x128xf32>, vector<128x128xf32>, vector<128x128xf32> -> vector<128x128xf32>
    %c1 = arith.constant 1 : index
    %c0_8 = arith.constant 0 : index
    %10 = vector.load %arg3[%c1, %c0_8] : memref<5x128xf32, #tpu.memory_space<vmem>>, vector<1x128xf32>
    %11 = vector.broadcast %10 : vector<1x128xf32> to vector<128x128xf32>
    %12 = arith.addf %9, %11 : vector<128x128xf32>
    %cst_9 = arith.constant 0.000000e+00 : f32
    %13 = vector.broadcast %cst_9 : f32 to vector<128x128xf32>
    %14 = arith.maximumf %12, %13 : vector<128x128xf32>
    %c136 = arith.constant 136 : index
    %c0_10 = arith.constant 0 : index
    %15 = vector.load %arg2[%c136, %c0_10] : memref<264x128xf32, #tpu.memory_space<vmem>>, vector<128x128xf32>
    %cst_11 = arith.constant dense<0.000000e+00> : vector<128x128xf32>
    %16 = tpu.matmul %14, %15, %cst_11 {dimension_numbers = #tpu.dot_dimension_numbers<[1], [0], [0], [1], [0, 0, 1, 1], [], []>} : vector<128x128xf32>, vector<128x128xf32>, vector<128x128xf32> -> vector<128x128xf32>
    %c2 = arith.constant 2 : index
    %c0_12 = arith.constant 0 : index
    %17 = vector.load %arg3[%c2, %c0_12] : memref<5x128xf32, #tpu.memory_space<vmem>>, vector<1x128xf32>
    %18 = vector.broadcast %17 : vector<1x128xf32> to vector<128x128xf32>
    %19 = arith.addf %16, %18 : vector<128x128xf32>
    %c3 = arith.constant 3 : index
    %c0_13 = arith.constant 0 : index
    %20 = vector.load %arg3[%c3, %c0_13] : memref<5x128xf32, #tpu.memory_space<vmem>>, vector<1x128xf32>
    %c4 = arith.constant 4 : index
    %c0_14 = arith.constant 0 : index
    %21 = vector.load %arg3[%c4, %c0_14] : memref<5x128xf32, #tpu.memory_space<vmem>>, vector<1x128xf32>
    %22 = tpu.iota {dimensions = array<i32: 1>} : vector<1x128xi32>
    %c32_i32 = arith.constant 32 : i32
    %23 = vector.broadcast %c32_i32 : i32 to vector<1x128xi32>
    %24 = arith.cmpi slt, %22, %23 : vector<1x128xi32>
    %25 = arith.extui %24 : vector<1x128xi1> to vector<1x128xi32>
    %26 = arith.sitofp %25 : vector<1x128xi32> to vector<1x128xf32>
    %27 = vector.broadcast %26 : vector<1x128xf32> to vector<128x128xf32>
    %28 = arith.mulf %19, %27 : vector<128x128xf32>
    %cst_15 = arith.constant dense<0.000000e+00> : vector<128xf32>
    %29 = vector.multi_reduction <add>, %28, %cst_15 [1] : vector<128x128xf32> to vector<128xf32>
    %30 = vector.shape_cast %29 : vector<128xf32> to vector<128x1xf32>
    %cst_16 = arith.constant 3.125000e-02 : f32
    %31 = vector.broadcast %cst_16 : f32 to vector<128x1xf32>
    %32 = arith.mulf %30, %31 : vector<128x1xf32>
    %33 = vector.broadcast %32 : vector<128x1xf32> to vector<128x128xf32>
    %34 = arith.subf %19, %33 : vector<128x128xf32>
    %35 = vector.broadcast %26 : vector<1x128xf32> to vector<128x128xf32>
    %36 = arith.mulf %34, %35 : vector<128x128xf32>
    %37 = arith.mulf %36, %36 : vector<128x128xf32>
    %cst_17 = arith.constant dense<0.000000e+00> : vector<128xf32>
    %38 = vector.multi_reduction <add>, %37, %cst_17 [1] : vector<128x128xf32> to vector<128xf32>
    %39 = vector.shape_cast %38 : vector<128xf32> to vector<128x1xf32>
    %cst_18 = arith.constant 3.125000e-02 : f32
    %40 = vector.broadcast %cst_18 : f32 to vector<128x1xf32>
    %41 = arith.mulf %39, %40 : vector<128x1xf32>
    %cst_19 = arith.constant 9.99999974E-6 : f32
    %42 = vector.broadcast %cst_19 : f32 to vector<128x1xf32>
    %43 = arith.addf %41, %42 : vector<128x1xf32>
    %44 = math.rsqrt %43 : vector<128x1xf32>
    %45 = vector.broadcast %44 : vector<128x1xf32> to vector<128x128xf32>
    %46 = arith.mulf %36, %45 : vector<128x128xf32>
    %47 = vector.broadcast %20 : vector<1x128xf32> to vector<128x128xf32>
    %48 = arith.mulf %46, %47 : vector<128x128xf32>
    %49 = vector.broadcast %21 : vector<1x128xf32> to vector<128x128xf32>
    %50 = arith.addf %48, %49 : vector<128x128xf32>
    %c0_20 = arith.constant 0 : index
    %c0_21 = arith.constant 0 : index
    %51 = vector.load %arg4[%c0_20, %c0_21] : memref<128x128xf32, #tpu.memory_space<vmem>>, vector<128x128xf32>
    tpu.vector_store %arg4[%c0_20, %c0_21], %50 {strides = array<i32>} : memref<128x128xf32, #tpu.memory_space<vmem>>, vector<128x128xf32>,
    return
  }
  func.func @transform_0(%arg0: i32) -> (i32, i32) {
    %c0_i32 = arith.constant 0 : i32
    %c0_i32_0 = arith.constant 0 : i32
    return %arg0, %c0_i32 : i32, i32
  }
  func.func @transform_1(%arg0: i32) -> (i32, i32) {
    %c0_i32 = arith.constant 0 : i32
    %c0_i32_0 = arith.constant 0 : i32
    %c0_i32_1 = arith.constant 0 : i32
    return %c0_i32, %c0_i32_0 : i32, i32
  }
  func.func @transform_2(%arg0: i32) -> (i32, i32) {
    %c0_i32 = arith.constant 0 : i32
    %c0_i32_0 = arith.constant 0 : i32
    %c0_i32_1 = arith.constant 0 : i32
    return %c0_i32, %c0_i32_0 : i32, i32
  }
  func.func @transform_3(%arg0: i32) -> (i32, i32) {
    %c0_i32 = arith.constant 0 : i32
    %c0_i32_0 = arith.constant 0 : i32
    return %arg0, %c0_i32 : i32, i32
  }
}

module attributes {stable_mosaic.version = 11 : i64} {
  func.func @_block_kernel(%arg0: i32, %arg1: memref<1x128x1xi32, #tpu.memory_space<vmem>>, %arg2: memref<1x128x1xi32, #tpu.memory_space<vmem>>, %arg3: memref<1x1x128xi32, #tpu.memory_space<vmem>>, %arg4: memref<1x64x128xf32, #tpu.memory_space<vmem>>, %arg5: memref<1x128x128xf32, #tpu.memory_space<vmem>>, %arg6: memref<640x128xf32, #tpu.memory_space<vmem>>, %arg7: memref<5x128xf32, #tpu.memory_space<vmem>>, %arg8: memref<512x128xf32, #tpu.memory_space<vmem>>, %arg9: memref<5x128xf32, #tpu.memory_space<vmem>>, %arg10: memref<1x64x128xf32, #tpu.memory_space<vmem>>, %arg11: memref<1x128x128xf32, #tpu.memory_space<vmem>>) attributes {dimension_semantics = [#tpu.dimension_semantics<parallel>], iteration_bounds = array<i64: 2>, scalar_prefetch = 0 : i64, scratch_operands = 0 : i64, tpu.core_type = #tpu.core_type<tc>, window_params = [{transform_indices = @transform_0, window_bounds = array<i64: 1, 128, 1>}, {transform_indices = @transform_1, window_bounds = array<i64: 1, 128, 1>}, {transform_indices = @transform_2, window_bounds = array<i64: 1, 1, 128>}, {transform_indices = @transform_3, window_bounds = array<i64: 1, 64, 128>}, {transform_indices = @transform_4, window_bounds = array<i64: 1, 128, 128>}, {pipeline_mode = #tpu.pipeline_mode<synchronous>, transform_indices = @transform_5, window_bounds = array<i64: 640, 128>}, {pipeline_mode = #tpu.pipeline_mode<synchronous>, transform_indices = @transform_6, window_bounds = array<i64: 5, 128>}, {pipeline_mode = #tpu.pipeline_mode<synchronous>, transform_indices = @transform_7, window_bounds = array<i64: 512, 128>}, {pipeline_mode = #tpu.pipeline_mode<synchronous>, transform_indices = @transform_8, window_bounds = array<i64: 5, 128>}, {transform_indices = @transform_9, window_bounds = array<i64: 1, 64, 128>}, {transform_indices = @transform_10, window_bounds = array<i64: 1, 128, 128>}]} {
    %c0 = arith.constant 0 : index
    %c0_0 = arith.constant 0 : index
    %c0_1 = arith.constant 0 : index
    %0 = vector.load %arg1[%c0, %c0_0, %c0_1] : memref<1x128x1xi32, #tpu.memory_space<vmem>>, vector<1x128x1xi32>
    %1 = vector.shape_cast %0 : vector<1x128x1xi32> to vector<128x1xi32>
    %c0_2 = arith.constant 0 : index
    %c0_3 = arith.constant 0 : index
    %c0_4 = arith.constant 0 : index
    %2 = vector.load %arg2[%c0_2, %c0_3, %c0_4] : memref<1x128x1xi32, #tpu.memory_space<vmem>>, vector<1x128x1xi32>
    %3 = vector.shape_cast %2 : vector<1x128x1xi32> to vector<128x1xi32>
    %c0_5 = arith.constant 0 : index
    %c0_6 = arith.constant 0 : index
    %c0_7 = arith.constant 0 : index
    %4 = vector.load %arg3[%c0_5, %c0_6, %c0_7] : memref<1x1x128xi32, #tpu.memory_space<vmem>>, vector<1x1x128xi32>
    %5 = vector.shape_cast %4 : vector<1x1x128xi32> to vector<1x128xi32>
    %c0_8 = arith.constant 0 : index
    %c0_9 = arith.constant 0 : index
    %c0_10 = arith.constant 0 : index
    %6 = vector.load %arg4[%c0_8, %c0_9, %c0_10] : memref<1x64x128xf32, #tpu.memory_space<vmem>>, vector<1x64x128xf32>
    %7 = vector.shape_cast %6 : vector<1x64x128xf32> to vector<64x128xf32>
    %c0_11 = arith.constant 0 : index
    %c0_12 = arith.constant 0 : index
    %c0_13 = arith.constant 0 : index
    %8 = vector.load %arg5[%c0_11, %c0_12, %c0_13] : memref<1x128x128xf32, #tpu.memory_space<vmem>>, vector<1x128x128xf32>
    %9 = vector.shape_cast %8 : vector<1x128x128xf32> to vector<128x128xf32>
    %10 = tpu.iota {dimensions = array<i32: 1>} : vector<128x64xi32>
    %11 = vector.shape_cast %1 : vector<128x1xi32> to vector<128x1xi32>
    %12 = vector.broadcast %11 : vector<128x1xi32> to vector<128x64xi32>
    %13 = arith.cmpi eq, %12, %10 : vector<128x64xi32>
    %14 = arith.extui %13 : vector<128x64xi1> to vector<128x64xi32>
    %15 = arith.sitofp %14 : vector<128x64xi32> to vector<128x64xf32>
    %16 = vector.shape_cast %3 : vector<128x1xi32> to vector<128x1xi32>
    %17 = vector.broadcast %16 : vector<128x1xi32> to vector<128x64xi32>
    %18 = arith.cmpi eq, %17, %10 : vector<128x64xi32>
    %19 = arith.extui %18 : vector<128x64xi1> to vector<128x64xi32>
    %20 = arith.sitofp %19 : vector<128x64xi32> to vector<128x64xf32>
    %21 = tpu.iota {dimensions = array<i32: 0>} : vector<64x128xi32>
    %22 = vector.shape_cast %5 : vector<1x128xi32> to vector<1x128xi32>
    %23 = vector.broadcast %22 : vector<1x128xi32> to vector<64x128xi32>
    %24 = arith.cmpi eq, %23, %21 : vector<64x128xi32>
    %25 = arith.extui %24 : vector<64x128xi1> to vector<64x128xi32>
    %26 = arith.sitofp %25 : vector<64x128xi32> to vector<64x128xf32>
    %c0_14 = arith.constant 0 : index
    %c0_15 = arith.constant 0 : index
    %27 = vector.load %arg6[%c0_14, %c0_15] : memref<640x128xf32, #tpu.memory_space<vmem>>, vector<128x128xf32>
    %cst = arith.constant dense<0.000000e+00> : vector<64x128xf32>
    %28 = tpu.matmul %7, %27, %cst {dimension_numbers = #tpu.dot_dimension_numbers<[1], [0], [0], [1], [0, 0, 1, 1], [], []>} : vector<64x128xf32>, vector<128x128xf32>, vector<64x128xf32> -> vector<64x128xf32>
    %cst_16 = arith.constant dense<0.000000e+00> : vector<128x128xf32>
    %29 = tpu.matmul %15, %28, %cst_16 {dimension_numbers = #tpu.dot_dimension_numbers<[1], [0], [0], [1], [0, 0, 1, 1], [], []>} : vector<128x64xf32>, vector<64x128xf32>, vector<128x128xf32> -> vector<128x128xf32>
    %c128 = arith.constant 128 : index
    %c0_17 = arith.constant 0 : index
    %30 = vector.load %arg6[%c128, %c0_17] : memref<640x128xf32, #tpu.memory_space<vmem>>, vector<128x128xf32>
    %cst_18 = arith.constant dense<0.000000e+00> : vector<64x128xf32>
    %31 = tpu.matmul %7, %30, %cst_18 {dimension_numbers = #tpu.dot_dimension_numbers<[1], [0], [0], [1], [0, 0, 1, 1], [], []>} : vector<64x128xf32>, vector<128x128xf32>, vector<64x128xf32> -> vector<64x128xf32>
    %cst_19 = arith.constant dense<0.000000e+00> : vector<128x128xf32>
    %32 = tpu.matmul %20, %31, %cst_19 {dimension_numbers = #tpu.dot_dimension_numbers<[1], [0], [0], [1], [0, 0, 1, 1], [], []>} : vector<128x64xf32>, vector<64x128xf32>, vector<128x128xf32> -> vector<128x128xf32>
    %33 = arith.addf %29, %32 : vector<128x128xf32>
    %c256 = arith.constant 256 : index
    %c0_20 = arith.constant 0 : index
    %34 = vector.load %arg6[%c256, %c0_20] : memref<640x128xf32, #tpu.memory_space<vmem>>, vector<128x128xf32>
    %cst_21 = arith.constant dense<0.000000e+00> : vector<128x128xf32>
    %35 = tpu.matmul %9, %34, %cst_21 {dimension_numbers = #tpu.dot_dimension_numbers<[1], [0], [0], [1], [0, 0, 1, 1], [], []>} : vector<128x128xf32>, vector<128x128xf32>, vector<128x128xf32> -> vector<128x128xf32>
    %36 = arith.addf %33, %35 : vector<128x128xf32>
    %c0_22 = arith.constant 0 : index
    %c0_23 = arith.constant 0 : index
    %37 = vector.load %arg7[%c0_22, %c0_23] : memref<5x128xf32, #tpu.memory_space<vmem>>, vector<1x128xf32>
    %38 = vector.broadcast %37 : vector<1x128xf32> to vector<128x128xf32>
    %39 = arith.addf %36, %38 : vector<128x128xf32>
    %cst_24 = arith.constant 0.000000e+00 : f32
    %40 = vector.broadcast %cst_24 : f32 to vector<128x128xf32>
    %41 = arith.maximumf %39, %40 : vector<128x128xf32>
    %c384 = arith.constant 384 : index
    %c0_25 = arith.constant 0 : index
    %42 = vector.load %arg6[%c384, %c0_25] : memref<640x128xf32, #tpu.memory_space<vmem>>, vector<128x128xf32>
    %cst_26 = arith.constant dense<0.000000e+00> : vector<128x128xf32>
    %43 = tpu.matmul %41, %42, %cst_26 {dimension_numbers = #tpu.dot_dimension_numbers<[1], [0], [0], [1], [0, 0, 1, 1], [], []>} : vector<128x128xf32>, vector<128x128xf32>, vector<128x128xf32> -> vector<128x128xf32>
    %c1 = arith.constant 1 : index
    %c0_27 = arith.constant 0 : index
    %44 = vector.load %arg7[%c1, %c0_27] : memref<5x128xf32, #tpu.memory_space<vmem>>, vector<1x128xf32>
    %45 = vector.broadcast %44 : vector<1x128xf32> to vector<128x128xf32>
    %46 = arith.addf %43, %45 : vector<128x128xf32>
    %cst_28 = arith.constant 0.000000e+00 : f32
    %47 = vector.broadcast %cst_28 : f32 to vector<128x128xf32>
    %48 = arith.maximumf %46, %47 : vector<128x128xf32>
    %c512 = arith.constant 512 : index
    %c0_29 = arith.constant 0 : index
    %49 = vector.load %arg6[%c512, %c0_29] : memref<640x128xf32, #tpu.memory_space<vmem>>, vector<128x128xf32>
    %cst_30 = arith.constant dense<0.000000e+00> : vector<128x128xf32>
    %50 = tpu.matmul %48, %49, %cst_30 {dimension_numbers = #tpu.dot_dimension_numbers<[1], [0], [0], [1], [0, 0, 1, 1], [], []>} : vector<128x128xf32>, vector<128x128xf32>, vector<128x128xf32> -> vector<128x128xf32>
    %c2 = arith.constant 2 : index
    %c0_31 = arith.constant 0 : index
    %51 = vector.load %arg7[%c2, %c0_31] : memref<5x128xf32, #tpu.memory_space<vmem>>, vector<1x128xf32>
    %52 = vector.broadcast %51 : vector<1x128xf32> to vector<128x128xf32>
    %53 = arith.addf %50, %52 : vector<128x128xf32>
    %c3 = arith.constant 3 : index
    %c0_32 = arith.constant 0 : index
    %54 = vector.load %arg7[%c3, %c0_32] : memref<5x128xf32, #tpu.memory_space<vmem>>, vector<1x128xf32>
    %c4 = arith.constant 4 : index
    %c0_33 = arith.constant 0 : index
    %55 = vector.load %arg7[%c4, %c0_33] : memref<5x128xf32, #tpu.memory_space<vmem>>, vector<1x128xf32>
    %56 = tpu.iota {dimensions = array<i32: 1>} : vector<1x128xi32>
    %c32_i32 = arith.constant 32 : i32
    %57 = vector.broadcast %c32_i32 : i32 to vector<1x128xi32>
    %58 = arith.cmpi slt, %56, %57 : vector<1x128xi32>
    %59 = arith.extui %58 : vector<1x128xi1> to vector<1x128xi32>
    %60 = arith.sitofp %59 : vector<1x128xi32> to vector<1x128xf32>
    %61 = vector.broadcast %60 : vector<1x128xf32> to vector<128x128xf32>
    %62 = arith.mulf %53, %61 : vector<128x128xf32>
    %cst_34 = arith.constant dense<0.000000e+00> : vector<128xf32>
    %63 = vector.multi_reduction <add>, %62, %cst_34 [1] : vector<128x128xf32> to vector<128xf32>
    %64 = vector.shape_cast %63 : vector<128xf32> to vector<128x1xf32>
    %cst_35 = arith.constant 3.125000e-02 : f32
    %65 = vector.broadcast %cst_35 : f32 to vector<128x1xf32>
    %66 = arith.mulf %64, %65 : vector<128x1xf32>
    %67 = vector.broadcast %66 : vector<128x1xf32> to vector<128x128xf32>
    %68 = arith.subf %53, %67 : vector<128x128xf32>
    %69 = vector.broadcast %60 : vector<1x128xf32> to vector<128x128xf32>
    %70 = arith.mulf %68, %69 : vector<128x128xf32>
    %71 = arith.mulf %70, %70 : vector<128x128xf32>
    %cst_36 = arith.constant dense<0.000000e+00> : vector<128xf32>
    %72 = vector.multi_reduction <add>, %71, %cst_36 [1] : vector<128x128xf32> to vector<128xf32>
    %73 = vector.shape_cast %72 : vector<128xf32> to vector<128x1xf32>
    %cst_37 = arith.constant 3.125000e-02 : f32
    %74 = vector.broadcast %cst_37 : f32 to vector<128x1xf32>
    %75 = arith.mulf %73, %74 : vector<128x1xf32>
    %cst_38 = arith.constant 9.99999974E-6 : f32
    %76 = vector.broadcast %cst_38 : f32 to vector<128x1xf32>
    %77 = arith.addf %75, %76 : vector<128x1xf32>
    %78 = math.rsqrt %77 : vector<128x1xf32>
    %79 = vector.broadcast %78 : vector<128x1xf32> to vector<128x128xf32>
    %80 = arith.mulf %70, %79 : vector<128x128xf32>
    %81 = vector.broadcast %54 : vector<1x128xf32> to vector<128x128xf32>
    %82 = arith.mulf %80, %81 : vector<128x128xf32>
    %83 = vector.broadcast %55 : vector<1x128xf32> to vector<128x128xf32>
    %84 = arith.addf %82, %83 : vector<128x128xf32>
    %85 = arith.addf %9, %84 : vector<128x128xf32>
    %cst_39 = arith.constant dense<0.000000e+00> : vector<64x128xf32>
    %86 = tpu.matmul %26, %84, %cst_39 {dimension_numbers = #tpu.dot_dimension_numbers<[1], [0], [0], [1], [0, 0, 1, 1], [], []>} : vector<64x128xf32>, vector<128x128xf32>, vector<64x128xf32> -> vector<64x128xf32>
    %c0_40 = arith.constant 0 : index
    %c0_41 = arith.constant 0 : index
    %87 = vector.load %arg8[%c0_40, %c0_41] : memref<512x128xf32, #tpu.memory_space<vmem>>, vector<128x128xf32>
    %cst_42 = arith.constant dense<0.000000e+00> : vector<64x128xf32>
    %88 = tpu.matmul %7, %87, %cst_42 {dimension_numbers = #tpu.dot_dimension_numbers<[1], [0], [0], [1], [0, 0, 1, 1], [], []>} : vector<64x128xf32>, vector<128x128xf32>, vector<64x128xf32> -> vector<64x128xf32>
    %c128_43 = arith.constant 128 : index
    %c0_44 = arith.constant 0 : index
    %89 = vector.load %arg8[%c128_43, %c0_44] : memref<512x128xf32, #tpu.memory_space<vmem>>, vector<128x128xf32>
    %cst_45 = arith.constant dense<0.000000e+00> : vector<64x128xf32>
    %90 = tpu.matmul %86, %89, %cst_45 {dimension_numbers = #tpu.dot_dimension_numbers<[1], [0], [0], [1], [0, 0, 1, 1], [], []>} : vector<64x128xf32>, vector<128x128xf32>, vector<64x128xf32> -> vector<64x128xf32>
    %91 = arith.addf %88, %90 : vector<64x128xf32>
    %c0_46 = arith.constant 0 : index
    %c0_47 = arith.constant 0 : index
    %92 = vector.load %arg9[%c0_46, %c0_47] : memref<5x128xf32, #tpu.memory_space<vmem>>, vector<1x128xf32>
    %93 = vector.broadcast %92 : vector<1x128xf32> to vector<64x128xf32>
    %94 = arith.addf %91, %93 : vector<64x128xf32>
    %cst_48 = arith.constant 0.000000e+00 : f32
    %95 = vector.broadcast %cst_48 : f32 to vector<64x128xf32>
    %96 = arith.maximumf %94, %95 : vector<64x128xf32>
    %c256_49 = arith.constant 256 : index
    %c0_50 = arith.constant 0 : index
    %97 = vector.load %arg8[%c256_49, %c0_50] : memref<512x128xf32, #tpu.memory_space<vmem>>, vector<128x128xf32>
    %cst_51 = arith.constant dense<0.000000e+00> : vector<64x128xf32>
    %98 = tpu.matmul %96, %97, %cst_51 {dimension_numbers = #tpu.dot_dimension_numbers<[1], [0], [0], [1], [0, 0, 1, 1], [], []>} : vector<64x128xf32>, vector<128x128xf32>, vector<64x128xf32> -> vector<64x128xf32>
    %c1_52 = arith.constant 1 : index
    %c0_53 = arith.constant 0 : index
    %99 = vector.load %arg9[%c1_52, %c0_53] : memref<5x128xf32, #tpu.memory_space<vmem>>, vector<1x128xf32>
    %100 = vector.broadcast %99 : vector<1x128xf32> to vector<64x128xf32>
    %101 = arith.addf %98, %100 : vector<64x128xf32>
    %cst_54 = arith.constant 0.000000e+00 : f32
    %102 = vector.broadcast %cst_54 : f32 to vector<64x128xf32>
    %103 = arith.maximumf %101, %102 : vector<64x128xf32>
    %c384_55 = arith.constant 384 : index
    %c0_56 = arith.constant 0 : index
    %104 = vector.load %arg8[%c384_55, %c0_56] : memref<512x128xf32, #tpu.memory_space<vmem>>, vector<128x128xf32>
    %cst_57 = arith.constant dense<0.000000e+00> : vector<64x128xf32>
    %105 = tpu.matmul %103, %104, %cst_57 {dimension_numbers = #tpu.dot_dimension_numbers<[1], [0], [0], [1], [0, 0, 1, 1], [], []>} : vector<64x128xf32>, vector<128x128xf32>, vector<64x128xf32> -> vector<64x128xf32>
    %c2_58 = arith.constant 2 : index
    %c0_59 = arith.constant 0 : index
    %106 = vector.load %arg9[%c2_58, %c0_59] : memref<5x128xf32, #tpu.memory_space<vmem>>, vector<1x128xf32>
    %107 = vector.broadcast %106 : vector<1x128xf32> to vector<64x128xf32>
    %108 = arith.addf %105, %107 : vector<64x128xf32>
    %c3_60 = arith.constant 3 : index
    %c0_61 = arith.constant 0 : index
    %109 = vector.load %arg9[%c3_60, %c0_61] : memref<5x128xf32, #tpu.memory_space<vmem>>, vector<1x128xf32>
    %c4_62 = arith.constant 4 : index
    %c0_63 = arith.constant 0 : index
    %110 = vector.load %arg9[%c4_62, %c0_63] : memref<5x128xf32, #tpu.memory_space<vmem>>, vector<1x128xf32>
    %111 = tpu.iota {dimensions = array<i32: 1>} : vector<1x128xi32>
    %c32_i32_64 = arith.constant 32 : i32
    %112 = vector.broadcast %c32_i32_64 : i32 to vector<1x128xi32>
    %113 = arith.cmpi slt, %111, %112 : vector<1x128xi32>
    %114 = arith.extui %113 : vector<1x128xi1> to vector<1x128xi32>
    %115 = arith.sitofp %114 : vector<1x128xi32> to vector<1x128xf32>
    %116 = vector.broadcast %115 : vector<1x128xf32> to vector<64x128xf32>
    %117 = arith.mulf %108, %116 : vector<64x128xf32>
    %cst_65 = arith.constant dense<0.000000e+00> : vector<64xf32>
    %118 = vector.multi_reduction <add>, %117, %cst_65 [1] : vector<64x128xf32> to vector<64xf32>
    %119 = vector.shape_cast %118 : vector<64xf32> to vector<64x1xf32>
    %cst_66 = arith.constant 3.125000e-02 : f32
    %120 = vector.broadcast %cst_66 : f32 to vector<64x1xf32>
    %121 = arith.mulf %119, %120 : vector<64x1xf32>
    %122 = vector.broadcast %121 : vector<64x1xf32> to vector<64x128xf32>
    %123 = arith.subf %108, %122 : vector<64x128xf32>
    %124 = vector.broadcast %115 : vector<1x128xf32> to vector<64x128xf32>
    %125 = arith.mulf %123, %124 : vector<64x128xf32>
    %126 = arith.mulf %125, %125 : vector<64x128xf32>
    %cst_67 = arith.constant dense<0.000000e+00> : vector<64xf32>
    %127 = vector.multi_reduction <add>, %126, %cst_67 [1] : vector<64x128xf32> to vector<64xf32>
    %128 = vector.shape_cast %127 : vector<64xf32> to vector<64x1xf32>
    %cst_68 = arith.constant 3.125000e-02 : f32
    %129 = vector.broadcast %cst_68 : f32 to vector<64x1xf32>
    %130 = arith.mulf %128, %129 : vector<64x1xf32>
    %cst_69 = arith.constant 9.99999974E-6 : f32
    %131 = vector.broadcast %cst_69 : f32 to vector<64x1xf32>
    %132 = arith.addf %130, %131 : vector<64x1xf32>
    %133 = math.rsqrt %132 : vector<64x1xf32>
    %134 = vector.broadcast %133 : vector<64x1xf32> to vector<64x128xf32>
    %135 = arith.mulf %125, %134 : vector<64x128xf32>
    %136 = vector.broadcast %109 : vector<1x128xf32> to vector<64x128xf32>
    %137 = arith.mulf %135, %136 : vector<64x128xf32>
    %138 = vector.broadcast %110 : vector<1x128xf32> to vector<64x128xf32>
    %139 = arith.addf %137, %138 : vector<64x128xf32>
    %140 = arith.addf %7, %139 : vector<64x128xf32>
    %c0_70 = arith.constant 0 : index
    %c0_71 = arith.constant 0 : index
    %c0_72 = arith.constant 0 : index
    %141 = vector.load %arg10[%c0_70, %c0_71, %c0_72] : memref<1x64x128xf32, #tpu.memory_space<vmem>>, vector<1x64x128xf32>
    %142 = vector.shape_cast %141 : vector<1x64x128xf32> to vector<64x128xf32>
    %143 = vector.shape_cast %140 : vector<64x128xf32> to vector<1x64x128xf32>
    tpu.vector_store %arg10[%c0_70, %c0_71, %c0_72], %143 {strides = array<i32>} : memref<1x64x128xf32, #tpu.memory_space<vmem>>, vector<1x64x128xf32>,
    %c0_73 = arith.constant 0 : index
    %c0_74 = arith.constant 0 : index
    %c0_75 = arith.constant 0 : index
    %144 = vector.load %arg11[%c0_73, %c0_74, %c0_75] : memref<1x128x128xf32, #tpu.memory_space<vmem>>, vector<1x128x128xf32>
    %145 = vector.shape_cast %144 : vector<1x128x128xf32> to vector<128x128xf32>
    %146 = vector.shape_cast %85 : vector<128x128xf32> to vector<1x128x128xf32>
    tpu.vector_store %arg11[%c0_73, %c0_74, %c0_75], %146 {strides = array<i32>} : memref<1x128x128xf32, #tpu.memory_space<vmem>>, vector<1x128x128xf32>,
    return
  }
  func.func @transform_0(%arg0: i32) -> (i32, i32, i32) {
    %c0_i32 = arith.constant 0 : i32
    %c0_i32_0 = arith.constant 0 : i32
    %c0_i32_1 = arith.constant 0 : i32
    return %arg0, %c0_i32, %c0_i32_0 : i32, i32, i32
  }
  func.func @transform_1(%arg0: i32) -> (i32, i32, i32) {
    %c0_i32 = arith.constant 0 : i32
    %c0_i32_0 = arith.constant 0 : i32
    %c0_i32_1 = arith.constant 0 : i32
    return %arg0, %c0_i32, %c0_i32_0 : i32, i32, i32
  }
  func.func @transform_2(%arg0: i32) -> (i32, i32, i32) {
    %c0_i32 = arith.constant 0 : i32
    %c0_i32_0 = arith.constant 0 : i32
    %c0_i32_1 = arith.constant 0 : i32
    return %arg0, %c0_i32, %c0_i32_0 : i32, i32, i32
  }
  func.func @transform_3(%arg0: i32) -> (i32, i32, i32) {
    %c0_i32 = arith.constant 0 : i32
    %c0_i32_0 = arith.constant 0 : i32
    %c0_i32_1 = arith.constant 0 : i32
    return %arg0, %c0_i32, %c0_i32_0 : i32, i32, i32
  }
  func.func @transform_4(%arg0: i32) -> (i32, i32, i32) {
    %c0_i32 = arith.constant 0 : i32
    %c0_i32_0 = arith.constant 0 : i32
    %c0_i32_1 = arith.constant 0 : i32
    return %arg0, %c0_i32, %c0_i32_0 : i32, i32, i32
  }
  func.func @transform_5(%arg0: i32) -> (i32, i32) {
    %c0_i32 = arith.constant 0 : i32
    %c0_i32_0 = arith.constant 0 : i32
    %c0_i32_1 = arith.constant 0 : i32
    return %c0_i32, %c0_i32_0 : i32, i32
  }
  func.func @transform_6(%arg0: i32) -> (i32, i32) {
    %c0_i32 = arith.constant 0 : i32
    %c0_i32_0 = arith.constant 0 : i32
    %c0_i32_1 = arith.constant 0 : i32
    return %c0_i32, %c0_i32_0 : i32, i32
  }
  func.func @transform_7(%arg0: i32) -> (i32, i32) {
    %c0_i32 = arith.constant 0 : i32
    %c0_i32_0 = arith.constant 0 : i32
    %c0_i32_1 = arith.constant 0 : i32
    return %c0_i32, %c0_i32_0 : i32, i32
  }
  func.func @transform_8(%arg0: i32) -> (i32, i32) {
    %c0_i32 = arith.constant 0 : i32
    %c0_i32_0 = arith.constant 0 : i32
    %c0_i32_1 = arith.constant 0 : i32
    return %c0_i32, %c0_i32_0 : i32, i32
  }
  func.func @transform_9(%arg0: i32) -> (i32, i32, i32) {
    %c0_i32 = arith.constant 0 : i32
    %c0_i32_0 = arith.constant 0 : i32
    %c0_i32_1 = arith.constant 0 : i32
    return %arg0, %c0_i32, %c0_i32_0 : i32, i32, i32
  }
  func.func @transform_10(%arg0: i32) -> (i32, i32, i32) {
    %c0_i32 = arith.constant 0 : i32
    %c0_i32_0 = arith.constant 0 : i32
    %c0_i32_1 = arith.constant 0 : i32
    return %arg0, %c0_i32, %c0_i32_0 : i32, i32, i32
  }
}

module attributes {stable_mosaic.version = 11 : i64} {
  func.func @_block_decoder_kernel(%arg0: i32, %arg1: memref<1x128x1xi32, #tpu.memory_space<vmem>>, %arg2: memref<1x128x1xi32, #tpu.memory_space<vmem>>, %arg3: memref<1x1x128xi32, #tpu.memory_space<vmem>>, %arg4: memref<1x64x128xf32, #tpu.memory_space<vmem>>, %arg5: memref<1x128x128xf32, #tpu.memory_space<vmem>>, %arg6: memref<640x128xf32, #tpu.memory_space<vmem>>, %arg7: memref<5x128xf32, #tpu.memory_space<vmem>>, %arg8: memref<512x128xf32, #tpu.memory_space<vmem>>, %arg9: memref<5x128xf32, #tpu.memory_space<vmem>>, %arg10: memref<384x128xf32, #tpu.memory_space<vmem>>, %arg11: memref<5x128xf32, #tpu.memory_space<vmem>>, %arg12: memref<1x64x128xf32, #tpu.memory_space<vmem>>) attributes {dimension_semantics = [#tpu.dimension_semantics<parallel>], iteration_bounds = array<i64: 2>, scalar_prefetch = 0 : i64, scratch_operands = 0 : i64, tpu.core_type = #tpu.core_type<tc>, window_params = [{transform_indices = @transform_0, window_bounds = array<i64: 1, 128, 1>}, {transform_indices = @transform_1, window_bounds = array<i64: 1, 128, 1>}, {transform_indices = @transform_2, window_bounds = array<i64: 1, 1, 128>}, {transform_indices = @transform_3, window_bounds = array<i64: 1, 64, 128>}, {transform_indices = @transform_4, window_bounds = array<i64: 1, 128, 128>}, {pipeline_mode = #tpu.pipeline_mode<synchronous>, transform_indices = @transform_5, window_bounds = array<i64: 640, 128>}, {pipeline_mode = #tpu.pipeline_mode<synchronous>, transform_indices = @transform_6, window_bounds = array<i64: 5, 128>}, {pipeline_mode = #tpu.pipeline_mode<synchronous>, transform_indices = @transform_7, window_bounds = array<i64: 512, 128>}, {pipeline_mode = #tpu.pipeline_mode<synchronous>, transform_indices = @transform_8, window_bounds = array<i64: 5, 128>}, {pipeline_mode = #tpu.pipeline_mode<synchronous>, transform_indices = @transform_9, window_bounds = array<i64: 384, 128>}, {pipeline_mode = #tpu.pipeline_mode<synchronous>, transform_indices = @transform_10, window_bounds = array<i64: 5, 128>}, {transform_indices = @transform_11, window_bounds = array<i64: 1, 64, 128>}]} {
    %c0 = arith.constant 0 : index
    %c0_0 = arith.constant 0 : index
    %c0_1 = arith.constant 0 : index
    %0 = vector.load %arg1[%c0, %c0_0, %c0_1] : memref<1x128x1xi32, #tpu.memory_space<vmem>>, vector<1x128x1xi32>
    %1 = vector.shape_cast %0 : vector<1x128x1xi32> to vector<128x1xi32>
    %c0_2 = arith.constant 0 : index
    %c0_3 = arith.constant 0 : index
    %c0_4 = arith.constant 0 : index
    %2 = vector.load %arg2[%c0_2, %c0_3, %c0_4] : memref<1x128x1xi32, #tpu.memory_space<vmem>>, vector<1x128x1xi32>
    %3 = vector.shape_cast %2 : vector<1x128x1xi32> to vector<128x1xi32>
    %c0_5 = arith.constant 0 : index
    %c0_6 = arith.constant 0 : index
    %c0_7 = arith.constant 0 : index
    %4 = vector.load %arg3[%c0_5, %c0_6, %c0_7] : memref<1x1x128xi32, #tpu.memory_space<vmem>>, vector<1x1x128xi32>
    %5 = vector.shape_cast %4 : vector<1x1x128xi32> to vector<1x128xi32>
    %c0_8 = arith.constant 0 : index
    %c0_9 = arith.constant 0 : index
    %c0_10 = arith.constant 0 : index
    %6 = vector.load %arg4[%c0_8, %c0_9, %c0_10] : memref<1x64x128xf32, #tpu.memory_space<vmem>>, vector<1x64x128xf32>
    %7 = vector.shape_cast %6 : vector<1x64x128xf32> to vector<64x128xf32>
    %c0_11 = arith.constant 0 : index
    %c0_12 = arith.constant 0 : index
    %c0_13 = arith.constant 0 : index
    %8 = vector.load %arg5[%c0_11, %c0_12, %c0_13] : memref<1x128x128xf32, #tpu.memory_space<vmem>>, vector<1x128x128xf32>
    %9 = vector.shape_cast %8 : vector<1x128x128xf32> to vector<128x128xf32>
    %10 = tpu.iota {dimensions = array<i32: 1>} : vector<128x64xi32>
    %11 = vector.shape_cast %1 : vector<128x1xi32> to vector<128x1xi32>
    %12 = vector.broadcast %11 : vector<128x1xi32> to vector<128x64xi32>
    %13 = arith.cmpi eq, %12, %10 : vector<128x64xi32>
    %14 = arith.extui %13 : vector<128x64xi1> to vector<128x64xi32>
    %15 = arith.sitofp %14 : vector<128x64xi32> to vector<128x64xf32>
    %16 = vector.shape_cast %3 : vector<128x1xi32> to vector<128x1xi32>
    %17 = vector.broadcast %16 : vector<128x1xi32> to vector<128x64xi32>
    %18 = arith.cmpi eq, %17, %10 : vector<128x64xi32>
    %19 = arith.extui %18 : vector<128x64xi1> to vector<128x64xi32>
    %20 = arith.sitofp %19 : vector<128x64xi32> to vector<128x64xf32>
    %21 = tpu.iota {dimensions = array<i32: 0>} : vector<64x128xi32>
    %22 = vector.shape_cast %5 : vector<1x128xi32> to vector<1x128xi32>
    %23 = vector.broadcast %22 : vector<1x128xi32> to vector<64x128xi32>
    %24 = arith.cmpi eq, %23, %21 : vector<64x128xi32>
    %25 = arith.extui %24 : vector<64x128xi1> to vector<64x128xi32>
    %26 = arith.sitofp %25 : vector<64x128xi32> to vector<64x128xf32>
    %c0_14 = arith.constant 0 : index
    %c0_15 = arith.constant 0 : index
    %27 = vector.load %arg6[%c0_14, %c0_15] : memref<640x128xf32, #tpu.memory_space<vmem>>, vector<128x128xf32>
    %cst = arith.constant dense<0.000000e+00> : vector<64x128xf32>
    %28 = tpu.matmul %7, %27, %cst {dimension_numbers = #tpu.dot_dimension_numbers<[1], [0], [0], [1], [0, 0, 1, 1], [], []>} : vector<64x128xf32>, vector<128x128xf32>, vector<64x128xf32> -> vector<64x128xf32>
    %cst_16 = arith.constant dense<0.000000e+00> : vector<128x128xf32>
    %29 = tpu.matmul %15, %28, %cst_16 {dimension_numbers = #tpu.dot_dimension_numbers<[1], [0], [0], [1], [0, 0, 1, 1], [], []>} : vector<128x64xf32>, vector<64x128xf32>, vector<128x128xf32> -> vector<128x128xf32>
    %c128 = arith.constant 128 : index
    %c0_17 = arith.constant 0 : index
    %30 = vector.load %arg6[%c128, %c0_17] : memref<640x128xf32, #tpu.memory_space<vmem>>, vector<128x128xf32>
    %cst_18 = arith.constant dense<0.000000e+00> : vector<64x128xf32>
    %31 = tpu.matmul %7, %30, %cst_18 {dimension_numbers = #tpu.dot_dimension_numbers<[1], [0], [0], [1], [0, 0, 1, 1], [], []>} : vector<64x128xf32>, vector<128x128xf32>, vector<64x128xf32> -> vector<64x128xf32>
    %cst_19 = arith.constant dense<0.000000e+00> : vector<128x128xf32>
    %32 = tpu.matmul %20, %31, %cst_19 {dimension_numbers = #tpu.dot_dimension_numbers<[1], [0], [0], [1], [0, 0, 1, 1], [], []>} : vector<128x64xf32>, vector<64x128xf32>, vector<128x128xf32> -> vector<128x128xf32>
    %33 = arith.addf %29, %32 : vector<128x128xf32>
    %c256 = arith.constant 256 : index
    %c0_20 = arith.constant 0 : index
    %34 = vector.load %arg6[%c256, %c0_20] : memref<640x128xf32, #tpu.memory_space<vmem>>, vector<128x128xf32>
    %cst_21 = arith.constant dense<0.000000e+00> : vector<128x128xf32>
    %35 = tpu.matmul %9, %34, %cst_21 {dimension_numbers = #tpu.dot_dimension_numbers<[1], [0], [0], [1], [0, 0, 1, 1], [], []>} : vector<128x128xf32>, vector<128x128xf32>, vector<128x128xf32> -> vector<128x128xf32>
    %36 = arith.addf %33, %35 : vector<128x128xf32>
    %c0_22 = arith.constant 0 : index
    %c0_23 = arith.constant 0 : index
    %37 = vector.load %arg7[%c0_22, %c0_23] : memref<5x128xf32, #tpu.memory_space<vmem>>, vector<1x128xf32>
    %38 = vector.broadcast %37 : vector<1x128xf32> to vector<128x128xf32>
    %39 = arith.addf %36, %38 : vector<128x128xf32>
    %cst_24 = arith.constant 0.000000e+00 : f32
    %40 = vector.broadcast %cst_24 : f32 to vector<128x128xf32>
    %41 = arith.maximumf %39, %40 : vector<128x128xf32>
    %c384 = arith.constant 384 : index
    %c0_25 = arith.constant 0 : index
    %42 = vector.load %arg6[%c384, %c0_25] : memref<640x128xf32, #tpu.memory_space<vmem>>, vector<128x128xf32>
    %cst_26 = arith.constant dense<0.000000e+00> : vector<128x128xf32>
    %43 = tpu.matmul %41, %42, %cst_26 {dimension_numbers = #tpu.dot_dimension_numbers<[1], [0], [0], [1], [0, 0, 1, 1], [], []>} : vector<128x128xf32>, vector<128x128xf32>, vector<128x128xf32> -> vector<128x128xf32>
    %c1 = arith.constant 1 : index
    %c0_27 = arith.constant 0 : index
    %44 = vector.load %arg7[%c1, %c0_27] : memref<5x128xf32, #tpu.memory_space<vmem>>, vector<1x128xf32>
    %45 = vector.broadcast %44 : vector<1x128xf32> to vector<128x128xf32>
    %46 = arith.addf %43, %45 : vector<128x128xf32>
    %cst_28 = arith.constant 0.000000e+00 : f32
    %47 = vector.broadcast %cst_28 : f32 to vector<128x128xf32>
    %48 = arith.maximumf %46, %47 : vector<128x128xf32>
    %c512 = arith.constant 512 : index
    %c0_29 = arith.constant 0 : index
    %49 = vector.load %arg6[%c512, %c0_29] : memref<640x128xf32, #tpu.memory_space<vmem>>, vector<128x128xf32>
    %cst_30 = arith.constant dense<0.000000e+00> : vector<128x128xf32>
    %50 = tpu.matmul %48, %49, %cst_30 {dimension_numbers = #tpu.dot_dimension_numbers<[1], [0], [0], [1], [0, 0, 1, 1], [], []>} : vector<128x128xf32>, vector<128x128xf32>, vector<128x128xf32> -> vector<128x128xf32>
    %c2 = arith.constant 2 : index
    %c0_31 = arith.constant 0 : index
    %51 = vector.load %arg7[%c2, %c0_31] : memref<5x128xf32, #tpu.memory_space<vmem>>, vector<1x128xf32>
    %52 = vector.broadcast %51 : vector<1x128xf32> to vector<128x128xf32>
    %53 = arith.addf %50, %52 : vector<128x128xf32>
    %c3 = arith.constant 3 : index
    %c0_32 = arith.constant 0 : index
    %54 = vector.load %arg7[%c3, %c0_32] : memref<5x128xf32, #tpu.memory_space<vmem>>, vector<1x128xf32>
    %c4 = arith.constant 4 : index
    %c0_33 = arith.constant 0 : index
    %55 = vector.load %arg7[%c4, %c0_33] : memref<5x128xf32, #tpu.memory_space<vmem>>, vector<1x128xf32>
    %56 = tpu.iota {dimensions = array<i32: 1>} : vector<1x128xi32>
    %c32_i32 = arith.constant 32 : i32
    %57 = vector.broadcast %c32_i32 : i32 to vector<1x128xi32>
    %58 = arith.cmpi slt, %56, %57 : vector<1x128xi32>
    %59 = arith.extui %58 : vector<1x128xi1> to vector<1x128xi32>
    %60 = arith.sitofp %59 : vector<1x128xi32> to vector<1x128xf32>
    %61 = vector.broadcast %60 : vector<1x128xf32> to vector<128x128xf32>
    %62 = arith.mulf %53, %61 : vector<128x128xf32>
    %cst_34 = arith.constant dense<0.000000e+00> : vector<128xf32>
    %63 = vector.multi_reduction <add>, %62, %cst_34 [1] : vector<128x128xf32> to vector<128xf32>
    %64 = vector.shape_cast %63 : vector<128xf32> to vector<128x1xf32>
    %cst_35 = arith.constant 3.125000e-02 : f32
    %65 = vector.broadcast %cst_35 : f32 to vector<128x1xf32>
    %66 = arith.mulf %64, %65 : vector<128x1xf32>
    %67 = vector.broadcast %66 : vector<128x1xf32> to vector<128x128xf32>
    %68 = arith.subf %53, %67 : vector<128x128xf32>
    %69 = vector.broadcast %60 : vector<1x128xf32> to vector<128x128xf32>
    %70 = arith.mulf %68, %69 : vector<128x128xf32>
    %71 = arith.mulf %70, %70 : vector<128x128xf32>
    %cst_36 = arith.constant dense<0.000000e+00> : vector<128xf32>
    %72 = vector.multi_reduction <add>, %71, %cst_36 [1] : vector<128x128xf32> to vector<128xf32>
    %73 = vector.shape_cast %72 : vector<128xf32> to vector<128x1xf32>
    %cst_37 = arith.constant 3.125000e-02 : f32
    %74 = vector.broadcast %cst_37 : f32 to vector<128x1xf32>
    %75 = arith.mulf %73, %74 : vector<128x1xf32>
    %cst_38 = arith.constant 9.99999974E-6 : f32
    %76 = vector.broadcast %cst_38 : f32 to vector<128x1xf32>
    %77 = arith.addf %75, %76 : vector<128x1xf32>
    %78 = math.rsqrt %77 : vector<128x1xf32>
    %79 = vector.broadcast %78 : vector<128x1xf32> to vector<128x128xf32>
    %80 = arith.mulf %70, %79 : vector<128x128xf32>
    %81 = vector.broadcast %54 : vector<1x128xf32> to vector<128x128xf32>
    %82 = arith.mulf %80, %81 : vector<128x128xf32>
    %83 = vector.broadcast %55 : vector<1x128xf32> to vector<128x128xf32>
    %84 = arith.addf %82, %83 : vector<128x128xf32>
    %cst_39 = arith.constant dense<0.000000e+00> : vector<64x128xf32>
    %85 = tpu.matmul %26, %84, %cst_39 {dimension_numbers = #tpu.dot_dimension_numbers<[1], [0], [0], [1], [0, 0, 1, 1], [], []>} : vector<64x128xf32>, vector<128x128xf32>, vector<64x128xf32> -> vector<64x128xf32>
    %c0_40 = arith.constant 0 : index
    %c0_41 = arith.constant 0 : index
    %86 = vector.load %arg8[%c0_40, %c0_41] : memref<512x128xf32, #tpu.memory_space<vmem>>, vector<128x128xf32>
    %cst_42 = arith.constant dense<0.000000e+00> : vector<64x128xf32>
    %87 = tpu.matmul %7, %86, %cst_42 {dimension_numbers = #tpu.dot_dimension_numbers<[1], [0], [0], [1], [0, 0, 1, 1], [], []>} : vector<64x128xf32>, vector<128x128xf32>, vector<64x128xf32> -> vector<64x128xf32>
    %c128_43 = arith.constant 128 : index
    %c0_44 = arith.constant 0 : index
    %88 = vector.load %arg8[%c128_43, %c0_44] : memref<512x128xf32, #tpu.memory_space<vmem>>, vector<128x128xf32>
    %cst_45 = arith.constant dense<0.000000e+00> : vector<64x128xf32>
    %89 = tpu.matmul %85, %88, %cst_45 {dimension_numbers = #tpu.dot_dimension_numbers<[1], [0], [0], [1], [0, 0, 1, 1], [], []>} : vector<64x128xf32>, vector<128x128xf32>, vector<64x128xf32> -> vector<64x128xf32>
    %90 = arith.addf %87, %89 : vector<64x128xf32>
    %c0_46 = arith.constant 0 : index
    %c0_47 = arith.constant 0 : index
    %91 = vector.load %arg9[%c0_46, %c0_47] : memref<5x128xf32, #tpu.memory_space<vmem>>, vector<1x128xf32>
    %92 = vector.broadcast %91 : vector<1x128xf32> to vector<64x128xf32>
    %93 = arith.addf %90, %92 : vector<64x128xf32>
    %cst_48 = arith.constant 0.000000e+00 : f32
    %94 = vector.broadcast %cst_48 : f32 to vector<64x128xf32>
    %95 = arith.maximumf %93, %94 : vector<64x128xf32>
    %c256_49 = arith.constant 256 : index
    %c0_50 = arith.constant 0 : index
    %96 = vector.load %arg8[%c256_49, %c0_50] : memref<512x128xf32, #tpu.memory_space<vmem>>, vector<128x128xf32>
    %cst_51 = arith.constant dense<0.000000e+00> : vector<64x128xf32>
    %97 = tpu.matmul %95, %96, %cst_51 {dimension_numbers = #tpu.dot_dimension_numbers<[1], [0], [0], [1], [0, 0, 1, 1], [], []>} : vector<64x128xf32>, vector<128x128xf32>, vector<64x128xf32> -> vector<64x128xf32>
    %c1_52 = arith.constant 1 : index
    %c0_53 = arith.constant 0 : index
    %98 = vector.load %arg9[%c1_52, %c0_53] : memref<5x128xf32, #tpu.memory_space<vmem>>, vector<1x128xf32>
    %99 = vector.broadcast %98 : vector<1x128xf32> to vector<64x128xf32>
    %100 = arith.addf %97, %99 : vector<64x128xf32>
    %cst_54 = arith.constant 0.000000e+00 : f32
    %101 = vector.broadcast %cst_54 : f32 to vector<64x128xf32>
    %102 = arith.maximumf %100, %101 : vector<64x128xf32>
    %c384_55 = arith.constant 384 : index
    %c0_56 = arith.constant 0 : index
    %103 = vector.load %arg8[%c384_55, %c0_56] : memref<512x128xf32, #tpu.memory_space<vmem>>, vector<128x128xf32>
    %cst_57 = arith.constant dense<0.000000e+00> : vector<64x128xf32>
    %104 = tpu.matmul %102, %103, %cst_57 {dimension_numbers = #tpu.dot_dimension_numbers<[1], [0], [0], [1], [0, 0, 1, 1], [], []>} : vector<64x128xf32>, vector<128x128xf32>, vector<64x128xf32> -> vector<64x128xf32>
    %c2_58 = arith.constant 2 : index
    %c0_59 = arith.constant 0 : index
    %105 = vector.load %arg9[%c2_58, %c0_59] : memref<5x128xf32, #tpu.memory_space<vmem>>, vector<1x128xf32>
    %106 = vector.broadcast %105 : vector<1x128xf32> to vector<64x128xf32>
    %107 = arith.addf %104, %106 : vector<64x128xf32>
    %c3_60 = arith.constant 3 : index
    %c0_61 = arith.constant 0 : index
    %108 = vector.load %arg9[%c3_60, %c0_61] : memref<5x128xf32, #tpu.memory_space<vmem>>, vector<1x128xf32>
    %c4_62 = arith.constant 4 : index
    %c0_63 = arith.constant 0 : index
    %109 = vector.load %arg9[%c4_62, %c0_63] : memref<5x128xf32, #tpu.memory_space<vmem>>, vector<1x128xf32>
    %110 = tpu.iota {dimensions = array<i32: 1>} : vector<1x128xi32>
    %c32_i32_64 = arith.constant 32 : i32
    %111 = vector.broadcast %c32_i32_64 : i32 to vector<1x128xi32>
    %112 = arith.cmpi slt, %110, %111 : vector<1x128xi32>
    %113 = arith.extui %112 : vector<1x128xi1> to vector<1x128xi32>
    %114 = arith.sitofp %113 : vector<1x128xi32> to vector<1x128xf32>
    %115 = vector.broadcast %114 : vector<1x128xf32> to vector<64x128xf32>
    %116 = arith.mulf %107, %115 : vector<64x128xf32>
    %cst_65 = arith.constant dense<0.000000e+00> : vector<64xf32>
    %117 = vector.multi_reduction <add>, %116, %cst_65 [1] : vector<64x128xf32> to vector<64xf32>
    %118 = vector.shape_cast %117 : vector<64xf32> to vector<64x1xf32>
    %cst_66 = arith.constant 3.125000e-02 : f32
    %119 = vector.broadcast %cst_66 : f32 to vector<64x1xf32>
    %120 = arith.mulf %118, %119 : vector<64x1xf32>
    %121 = vector.broadcast %120 : vector<64x1xf32> to vector<64x128xf32>
    %122 = arith.subf %107, %121 : vector<64x128xf32>
    %123 = vector.broadcast %114 : vector<1x128xf32> to vector<64x128xf32>
    %124 = arith.mulf %122, %123 : vector<64x128xf32>
    %125 = arith.mulf %124, %124 : vector<64x128xf32>
    %cst_67 = arith.constant dense<0.000000e+00> : vector<64xf32>
    %126 = vector.multi_reduction <add>, %125, %cst_67 [1] : vector<64x128xf32> to vector<64xf32>
    %127 = vector.shape_cast %126 : vector<64xf32> to vector<64x1xf32>
    %cst_68 = arith.constant 3.125000e-02 : f32
    %128 = vector.broadcast %cst_68 : f32 to vector<64x1xf32>
    %129 = arith.mulf %127, %128 : vector<64x1xf32>
    %cst_69 = arith.constant 9.99999974E-6 : f32
    %130 = vector.broadcast %cst_69 : f32 to vector<64x1xf32>
    %131 = arith.addf %129, %130 : vector<64x1xf32>
    %132 = math.rsqrt %131 : vector<64x1xf32>
    %133 = vector.broadcast %132 : vector<64x1xf32> to vector<64x128xf32>
    %134 = arith.mulf %124, %133 : vector<64x128xf32>
    %135 = vector.broadcast %108 : vector<1x128xf32> to vector<64x128xf32>
    %136 = arith.mulf %134, %135 : vector<64x128xf32>
    %137 = vector.broadcast %109 : vector<1x128xf32> to vector<64x128xf32>
    %138 = arith.addf %136, %137 : vector<64x128xf32>
    %139 = arith.addf %7, %138 : vector<64x128xf32>
    %c0_70 = arith.constant 0 : index
    %c0_71 = arith.constant 0 : index
    %140 = vector.load %arg10[%c0_70, %c0_71] : memref<384x128xf32, #tpu.memory_space<vmem>>, vector<128x128xf32>
    %cst_72 = arith.constant dense<0.000000e+00> : vector<64x128xf32>
    %141 = tpu.matmul %139, %140, %cst_72 {dimension_numbers = #tpu.dot_dimension_numbers<[1], [0], [0], [1], [0, 0, 1, 1], [], []>} : vector<64x128xf32>, vector<128x128xf32>, vector<64x128xf32> -> vector<64x128xf32>
    %c0_73 = arith.constant 0 : index
    %c0_74 = arith.constant 0 : index
    %142 = vector.load %arg11[%c0_73, %c0_74] : memref<5x128xf32, #tpu.memory_space<vmem>>, vector<1x128xf32>
    %143 = vector.broadcast %142 : vector<1x128xf32> to vector<64x128xf32>
    %144 = arith.addf %141, %143 : vector<64x128xf32>
    %cst_75 = arith.constant 0.000000e+00 : f32
    %145 = vector.broadcast %cst_75 : f32 to vector<64x128xf32>
    %146 = arith.maximumf %144, %145 : vector<64x128xf32>
    %c128_76 = arith.constant 128 : index
    %c0_77 = arith.constant 0 : index
    %147 = vector.load %arg10[%c128_76, %c0_77] : memref<384x128xf32, #tpu.memory_space<vmem>>, vector<128x128xf32>
    %cst_78 = arith.constant dense<0.000000e+00> : vector<64x128xf32>
    %148 = tpu.matmul %146, %147, %cst_78 {dimension_numbers = #tpu.dot_dimension_numbers<[1], [0], [0], [1], [0, 0, 1, 1], [], []>} : vector<64x128xf32>, vector<128x128xf32>, vector<64x128xf32> -> vector<64x128xf32>
    %c1_79 = arith.constant 1 : index
    %c0_80 = arith.constant 0 : index
    %149 = vector.load %arg11[%c1_79, %c0_80] : memref<5x128xf32, #tpu.memory_space<vmem>>, vector<1x128xf32>
    %150 = vector.broadcast %149 : vector<1x128xf32> to vector<64x128xf32>
    %151 = arith.addf %148, %150 : vector<64x128xf32>
    %cst_81 = arith.constant 0.000000e+00 : f32
    %152 = vector.broadcast %cst_81 : f32 to vector<64x128xf32>
    %153 = arith.maximumf %151, %152 : vector<64x128xf32>
    %c256_82 = arith.constant 256 : index
    %c0_83 = arith.constant 0 : index
    %154 = vector.load %arg10[%c256_82, %c0_83] : memref<384x128xf32, #tpu.memory_space<vmem>>, vector<128x128xf32>
    %cst_84 = arith.constant dense<0.000000e+00> : vector<64x128xf32>
    %155 = tpu.matmul %153, %154, %cst_84 {dimension_numbers = #tpu.dot_dimension_numbers<[1], [0], [0], [1], [0, 0, 1, 1], [], []>} : vector<64x128xf32>, vector<128x128xf32>, vector<64x128xf32> -> vector<64x128xf32>
    %c2_85 = arith.constant 2 : index
    %c0_86 = arith.constant 0 : index
    %156 = vector.load %arg11[%c2_85, %c0_86] : memref<5x128xf32, #tpu.memory_space<vmem>>, vector<1x128xf32>
    %157 = vector.broadcast %156 : vector<1x128xf32> to vector<64x128xf32>
    %158 = arith.addf %155, %157 : vector<64x128xf32>
    %c0_87 = arith.constant 0 : index
    %c0_88 = arith.constant 0 : index
    %c0_89 = arith.constant 0 : index
    %159 = vector.load %arg12[%c0_87, %c0_88, %c0_89] : memref<1x64x128xf32, #tpu.memory_space<vmem>>, vector<1x64x128xf32>
    %160 = vector.shape_cast %159 : vector<1x64x128xf32> to vector<64x128xf32>
    %161 = vector.shape_cast %158 : vector<64x128xf32> to vector<1x64x128xf32>
    tpu.vector_store %arg12[%c0_87, %c0_88, %c0_89], %161 {strides = array<i32>} : memref<1x64x128xf32, #tpu.memory_space<vmem>>, vector<1x64x128xf32>,
    return
  }
  func.func @transform_0(%arg0: i32) -> (i32, i32, i32) {
    %c0_i32 = arith.constant 0 : i32
    %c0_i32_0 = arith.constant 0 : i32
    %c0_i32_1 = arith.constant 0 : i32
    return %arg0, %c0_i32, %c0_i32_0 : i32, i32, i32
  }
  func.func @transform_1(%arg0: i32) -> (i32, i32, i32) {
    %c0_i32 = arith.constant 0 : i32
    %c0_i32_0 = arith.constant 0 : i32
    %c0_i32_1 = arith.constant 0 : i32
    return %arg0, %c0_i32, %c0_i32_0 : i32, i32, i32
  }
  func.func @transform_2(%arg0: i32) -> (i32, i32, i32) {
    %c0_i32 = arith.constant 0 : i32
    %c0_i32_0 = arith.constant 0 : i32
    %c0_i32_1 = arith.constant 0 : i32
    return %arg0, %c0_i32, %c0_i32_0 : i32, i32, i32
  }
  func.func @transform_3(%arg0: i32) -> (i32, i32, i32) {
    %c0_i32 = arith.constant 0 : i32
    %c0_i32_0 = arith.constant 0 : i32
    %c0_i32_1 = arith.constant 0 : i32
    return %arg0, %c0_i32, %c0_i32_0 : i32, i32, i32
  }
  func.func @transform_4(%arg0: i32) -> (i32, i32, i32) {
    %c0_i32 = arith.constant 0 : i32
    %c0_i32_0 = arith.constant 0 : i32
    %c0_i32_1 = arith.constant 0 : i32
    return %arg0, %c0_i32, %c0_i32_0 : i32, i32, i32
  }
  func.func @transform_5(%arg0: i32) -> (i32, i32) {
    %c0_i32 = arith.constant 0 : i32
    %c0_i32_0 = arith.constant 0 : i32
    %c0_i32_1 = arith.constant 0 : i32
    return %c0_i32, %c0_i32_0 : i32, i32
  }
  func.func @transform_6(%arg0: i32) -> (i32, i32) {
    %c0_i32 = arith.constant 0 : i32
    %c0_i32_0 = arith.constant 0 : i32
    %c0_i32_1 = arith.constant 0 : i32
    return %c0_i32, %c0_i32_0 : i32, i32
  }
  func.func @transform_7(%arg0: i32) -> (i32, i32) {
    %c0_i32 = arith.constant 0 : i32
    %c0_i32_0 = arith.constant 0 : i32
    %c0_i32_1 = arith.constant 0 : i32
    return %c0_i32, %c0_i32_0 : i32, i32
  }
  func.func @transform_8(%arg0: i32) -> (i32, i32) {
    %c0_i32 = arith.constant 0 : i32
    %c0_i32_0 = arith.constant 0 : i32
    %c0_i32_1 = arith.constant 0 : i32
    return %c0_i32, %c0_i32_0 : i32, i32
  }
  func.func @transform_9(%arg0: i32) -> (i32, i32) {
    %c0_i32 = arith.constant 0 : i32
    %c0_i32_0 = arith.constant 0 : i32
    %c0_i32_1 = arith.constant 0 : i32
    return %c0_i32, %c0_i32_0 : i32, i32
  }
  func.func @transform_10(%arg0: i32) -> (i32, i32) {
    %c0_i32 = arith.constant 0 : i32
    %c0_i32_0 = arith.constant 0 : i32
    %c0_i32_1 = arith.constant 0 : i32
    return %c0_i32, %c0_i32_0 : i32, i32
  }
  func.func @transform_11(%arg0: i32) -> (i32, i32, i32) {
    %c0_i32 = arith.constant 0 : i32
    %c0_i32_0 = arith.constant 0 : i32
    %c0_i32_1 = arith.constant 0 : i32
    return %arg0, %c0_i32, %c0_i32_0 : i32, i32, i32
  }
}

</mosaic_0001>

<llo_original>
// kernel: encode_process_decode.5
$region0: #{encode_process_decode.5}
  #allocation0 [shape = 'u32[]', space=smem, size = 0x4, offset = 0x4, fixed_abs, tag = 'smem constant byte address 0x4 - core index']
  #allocation1 [shape = 'u32[144,128]{1,0:T(1,128)}', space=vmem, size = 0x12000, scoped, tag = 'internal scratch']
  %s0 = inlined_call_operand.vmem [shape: f32[256,8], index: 0, kind: input, shape index: {}]
  %s1 = inlined_call_operand.vmem [shape: f32[264,128], index: 1, kind: input, shape index: {}]
  %s2 = inlined_call_operand.vmem [shape: f32[5,128], index: 2, kind: input, shape index: {}]
  %s3 = inlined_call_operand.vmem [shape: f32[256,128], index: 3, kind: output, shape index: {}]
  %s4 = sld [smem:[#allocation0]]
  $region45: #{encode_process_decode.5} parent=0
    _
  %s6 = ssub.s32 1, %s4
  %s7 = scalar_select 0, %s6, %s4
  loop: start=0, step=1, limit=4
  $region2: #{encode_process_decode.5} parent=0 // loop_pre_header
    _
  $region3: #{encode_process_decode.5} parent=0 // loop_header
    %s9 = sphi 0, %s13
    %p10 = scmp.ge.s32.totalorder %s9, 4
    %s19 = sphi 0, %s21
    %s22 = sphi 0, %s19
    %s23 = sphi 0, %s22
    %s39 = sphi 0, %s23
    %s43 = sphi 0, %s43
    %s45 = sphi 0, %s43
    %s46 = sphi 0, %s45
    %s60 = sphi 0, %s46
    %s64 = sphi 0, %s64
    %s66 = sphi 0, %s64
    %s67 = sphi 0, %s66
    %s81 = sphi 0, %s67
    %s87 = sphi 0, %s89
    %s90 = sphi 0, %s87
    %s91 = sphi 0, %s90
    %s107 = sphi 0, %s91
  $region4: #{encode_process_decode.5} parent=0 // loop_header_branch
    %12 = sbr.rel (%p10) target = $region8
  $region5: #{encode_process_decode.5} parent=0 // loop_body
    %s14 = ssub.s32 %s9, 1
    %s15 = ssub.s32 %s9, 2
    %s16 = sadd.s32 %s9, 1
    %s17 = ssub.s32 %s9, %s16
    %p18 = scmp.eq.s32.totalorder %s17, 0
    %s20 = sadd.s32 %s19, 1
    %s21 = scalar_select %p18, %s19, %s20
    %p24 = pneg %p18
    %p25 = scmp.eq.s32.totalorder %s9, 1
    %p26 = por %p24, %p25
    %p27 = scmp.ne.s32.totalorder %s19, %s22
    %p28 = scmp.eq.s32.totalorder %s9, 0
    %p29 = por %p27, %p28
    %p30 = scmp.ne.s32.totalorder %s19, %s22
    %p31 = scmp.eq.s32.totalorder %s14, 1
    %p32 = por %p30, %p31
    %p33 = scmp.ne.s32.totalorder %s22, %s23
    %p34 = scmp.eq.s32.totalorder %s14, 0
    %p35 = por %p33, %p34
    %p36 = scmp.ne.s32.totalorder %s22, %s23
    %p37 = scmp.eq.s32.totalorder %s15, 1
    %p38 = por %p36, %p37
    %p40 = scmp.ne.s32.totalorder %s23, %s39
    %p41 = scmp.eq.s32.totalorder %s15, 0
    %p42 = por %p40, %p41
    %s44 = sadd.s32 %s43, 1
    %p47 = scmp.eq.s32.totalorder %s9, 1
    %p48 = scmp.ne.s32.totalorder %s43, %s45
    %p49 = scmp.eq.s32.totalorder %s9, 0
    %p50 = por %p48, %p49
    %p51 = scmp.ne.s32.totalorder %s43, %s45
    %p52 = scmp.eq.s32.totalorder %s14, 1
    %p53 = por %p51, %p52
    %p54 = scmp.ne.s32.totalorder %s45, %s46
    %p55 = scmp.eq.s32.totalorder %s14, 0
    %p56 = por %p54, %p55
    %p57 = scmp.ne.s32.totalorder %s45, %s46
    %p58 = scmp.eq.s32.totalorder %s15, 1
    %p59 = por %p57, %p58
    %p61 = scmp.ne.s32.totalorder %s46, %s60
    %p62 = scmp.eq.s32.totalorder %s15, 0
    %p63 = por %p61, %p62
    %s65 = sadd.s32 %s64, 1
    %p68 = scmp.eq.s32.totalorder %s9, 1
    %p69 = scmp.ne.s32.totalorder %s64, %s66
    %p70 = scmp.eq.s32.totalorder %s9, 0
    %p71 = por %p69, %p70
    %p72 = scmp.ne.s32.totalorder %s64, %s66
    %p73 = scmp.eq.s32.totalorder %s14, 1
    %p74 = por %p72, %p73
    %p75 = scmp.ne.s32.totalorder %s66, %s67
    %p76 = scmp.eq.s32.totalorder %s14, 0
    %p77 = por %p75, %p76
    %p78 = scmp.ne.s32.totalorder %s66, %s67
    %p79 = scmp.eq.s32.totalorder %s15, 1
    %p80 = por %p78, %p79
    %p82 = scmp.ne.s32.totalorder %s67, %s81
    %p83 = scmp.eq.s32.totalorder %s15, 0
    %p84 = por %p82, %p83
    %s85 = ssub.s32 %s9, %s16
    %p86 = scmp.eq.s32.totalorder %s85, 0
    %s88 = sadd.s32 %s87, 1
    %s89 = scalar_select %p86, %s87, %s88
    %p92 = pneg %p86
    %p93 = scmp.eq.s32.totalorder %s9, 1
    %p94 = por %p92, %p93
    %p95 = scmp.ne.s32.totalorder %s87, %s90
    %p96 = scmp.eq.s32.totalorder %s9, 0
    %p97 = por %p95, %p96
    %p98 = scmp.ne.s32.totalorder %s87, %s90
    %p99 = scmp.eq.s32.totalorder %s14, 1
    %p100 = por %p98, %p99
    %p101 = scmp.ne.s32.totalorder %s90, %s91
    %p102 = scmp.eq.s32.totalorder %s14, 0
    %p103 = por %p101, %p102
    %p104 = scmp.ne.s32.totalorder %s90, %s91
    %p105 = scmp.eq.s32.totalorder %s15, 1
    %p106 = por %p104, %p105
    %p108 = scmp.ne.s32.totalorder %s91, %s107
    %p109 = scmp.eq.s32.totalorder %s15, 0
    %p110 = por %p108, %p109
    %p111 = scmp.le.s32.totalorder 1, %s9
    %p112 = scmp.lt.s32.totalorder %s9, 3
    %p113 = pnand %p111, %p112
    %p114 = pneg %p113
    // Predicated region
    $region9: #{encode_process_decode.5} parent=5 // pred_check
      _
    $region10: #{encode_process_decode.5} parent=5 // pred_check_branch
      %116 = sbr.rel (%p113) target = $region12
    $region11: #{encode_process_decode.5} parent=5 // pred_region
      %s117 = ssub.s32 %s9, 1
      // Predicated region
      $region13: #{encode_process_decode.5} parent=11 // pred_check
        %p118 = pneg %p56
      $region14: #{encode_process_decode.5} parent=11 // pred_check_branch
        %120 = sbr.rel (%p118) target = $region16
      $region15: #{encode_process_decode.5} parent=11 // pred_region
        _
      $region16: #{encode_process_decode.5} parent=11 // pred_fallthru
        _
      // Predicated region
      $region17: #{encode_process_decode.5} parent=11 // pred_check
        %p121 = pneg %p77
      $region18: #{encode_process_decode.5} parent=11 // pred_check_branch
        %123 = sbr.rel (%p121) target = $region20
      $region19: #{encode_process_decode.5} parent=11 // pred_region
        _
      $region20: #{encode_process_decode.5} parent=11 // pred_fallthru
        _
    $region12: #{encode_process_decode.5} parent=5 // pred_fallthru
      _
    %p124 = scmp.lt.s32.totalorder %s9, 2
    // Predicated region
    $region21: #{encode_process_decode.5} parent=5 // pred_check
      %p125 = pneg %p124
    $region22: #{encode_process_decode.5} parent=5 // pred_check_branch
      %127 = sbr.rel (%p125) target = $region24
    $region23: #{encode_process_decode.5} parent=5 // pred_region
      // Predicated region
      $region25: #{encode_process_decode.5} parent=23 // pred_check
        %p128 = pneg %p29
      $region26: #{encode_process_decode.5} parent=23 // pred_check_branch
        %130 = sbr.rel (%p128) target = $region28
      $region27: #{encode_process_decode.5} parent=23 // pred_region
        %s131 = smul.u32 16, %s9
        %p132 = scmp.lt.s32.totalorder %s131, 31
        %s133 = scalar_select %p132, %s131, 31
        %s134 = smul.addr %s133, 8
        %s135 = scalar_lea.vmem %s0, %s134
        %s136 = smul.u32 16, %s9
      $region28: #{encode_process_decode.5} parent=23 // pred_fallthru
        _
    $region24: #{encode_process_decode.5} parent=5 // pred_fallthru
      _
    %p137 = scmp.le.s32.totalorder 1, %s9
    %p138 = scmp.lt.s32.totalorder %s9, 3
    %p139 = pnand %p137, %p138
    %p140 = pneg %p139
    // Predicated region
    $region29: #{encode_process_decode.5} parent=5 // pred_check
      _
    $region30: #{encode_process_decode.5} parent=5 // pred_check_branch
      %142 = sbr.rel (%p139) target = $region32
    $region31: #{encode_process_decode.5} parent=5 // pred_region
      %s143 = ssub.s32 %s9, 1
      %s144 = smul.u32 16, %s14
      %p145 = scmp.lt.s32.totalorder %s144, 31
      %s146 = scalar_select %p145, %s144, 31
      %s147 = smul.addr %s146, 8
      %s148 = scalar_lea.vmem %s0, %s147
      %p149 = pneg %p35
      %p150 = pneg %p32
      %p151 = pneg %p56
      %p152 = pneg %p53
      %p153 = pneg %p77
      %p154 = pneg %p74
      %p155 = pneg %p103
      %p156 = pneg %p100
      %s157 = smul.u32 16, %s14
      %p158 = scmp.lt.s32.totalorder %s157, 31
      %s159 = scalar_select %p158, %s157, 31
      %s160 = smul.addr %s159, 8
      %s161 = scalar_lea.vmem %s3, %s160
      %s162 = smul.u32 16, %s14
      %p163 = scmp.lt.s32.totalorder %s162, 31
      %s164 = scalar_select %p163, %s162, 31
      %s165 = smul.addr %s164, 8
      %s166 = scalar_lea.vmem %s0, %s165
      %s167 = smul.u32 16, %s14
      %s168 = smul.u32 16, %s14
      %p169 = scmp.lt.s32.totalorder %s168, 31
      %s170 = scalar_select %p169, %s168, 31
      %s171 = smul.addr %s170, 8
      %s172 = scalar_lea.vmem %s3, %s171
      %s173 = smul.u32 16, %s14
      %v174 = vld [vmem:[%s166] sm:$0xff]
      %v175 = vld [vmem:[%s166 + $0x8] sm:$0xff]
      %v176 = vld [vmem:[%s166 + $0x10] sm:$0xff]
      %v177 = vld [vmem:[%s166 + $0x18] sm:$0xff]
      %v178 = vld [vmem:[%s166 + $0x20] sm:$0xff]
      %v179 = vld [vmem:[%s166 + $0x28] sm:$0xff]
      %v180 = vld [vmem:[%s166 + $0x30] sm:$0xff]
      %v181 = vld [vmem:[%s166 + $0x38] sm:$0xff]
      %v182 = vld [vmem:[%s166 + $0x40] sm:$0xff]
      %v183 = vld [vmem:[%s166 + $0x48] sm:$0xff]
      %v184 = vld [vmem:[%s166 + $0x50] sm:$0xff]
      %v185 = vld [vmem:[%s166 + $0x58] sm:$0xff]
      %v186 = vld [vmem:[%s166 + $0x60] sm:$0xff]
      %v187 = vld [vmem:[%s166 + $0x68] sm:$0xff]
      %v188 = vld [vmem:[%s166 + $0x70] sm:$0xff]
      %v189 = vld [vmem:[%s166 + $0x78] sm:$0xff]
      %v190 = vld [vmem:[%s1] sm:$0xff]
      %v191 = vld [vmem:[%s2] sm:$0x1]
      %v192 = vlaneseq
      %v193 = vshrl.u32 %v192, 7
      %v194 = vsub.s32 0, %v193
      %v195 = vrot.slane %v191, %v194
      %vm196 = vcmask 64512
      %v198 = vsel %vm196, %v174, 0
      %v201 = vsel %vm196, %v175, 0
      %v204 = vsel %vm196, %v176, 0
      %v207 = vsel %vm196, %v177, 0
      %v210 = vsel %vm196, %v178, 0
      %v213 = vsel %vm196, %v179, 0
      %v216 = vsel %vm196, %v180, 0
      %v219 = vsel %vm196, %v181, 0
      %v222 = vsel %vm196, %v182, 0
      %v225 = vsel %vm196, %v183, 0
      %v228 = vsel %vm196, %v184, 0
      %v231 = vsel %vm196, %v185, 0
      %v234 = vsel %vm196, %v186, 0
      %v237 = vsel %vm196, %v187, 0
      %v240 = vsel %vm196, %v188, 0
      %v243 = vsel %vm196, %v189, 0
      %245 = vmatprep.subr.mxu0 0.0
      %246 = vmatpush1.msra.mxu0 %v190
      %247 = vmatprep.subr.mxu0 0.0
      %248 = vmatpush1.msra.mxu0 0.0
      %249 = vmatprep.subr.mxu0 0.0
      %250 = vmatpush1.msra.mxu0 0.0
      %251 = vmatprep.subr.mxu0 0.0
      %252 = vmatpush1.msra.mxu0 0.0
      %253 = vmatprep.subr.mxu0 0.0
      %254 = vmatpush1.msra.mxu0 0.0
      %255 = vmatprep.subr.mxu0 0.0
      %256 = vmatpush1.msra.mxu0 0.0
      %257 = vmatprep.subr.mxu0 0.0
      %258 = vmatpush1.msra.mxu0 0.0
      %259 = vmatprep.subr.mxu0 0.0
      %260 = vmatpush1.msra.mxu0 0.0
      %261 = vmatprep.subr.mxu0 0.0
      %262 = vmatpush1.msra.mxu0 0.0
      %263 = vmatprep.subr.mxu0 0.0
      %264 = vmatpush1.msra.mxu0 0.0
      %265 = vmatprep.subr.mxu0 0.0
      %266 = vmatpush1.msra.mxu0 0.0
      %267 = vmatprep.subr.mxu0 0.0
      %268 = vmatpush1.msra.mxu0 0.0
      %269 = vmatprep.subr.mxu0 0.0
      %270 = vmatpush1.msra.mxu0 0.0
      %271 = vmatprep.subr.mxu0 0.0
      %272 = vmatpush1.msra.mxu0 0.0
      %273 = vmatprep.subr.mxu0 0.0
      %274 = vmatpush1.msra.mxu0 0.0
      %275 = vmatprep.subr.mxu0 0.0
      %276 = vmatpush1.msra.mxu0 0.0
      %277 = vmatprep.subr.mxu0 0.0
      %278 = vmatpush1.msra.mxu0 0.0
      %279 = vmatprep.subr.mxu0 0.0
      %280 = vmatpush1.msra.mxu0 0.0
      %281 = vmatprep.subr.mxu0 0.0
      %282 = vmatpush1.msra.mxu0 0.0
      %283 = vmatprep.subr.mxu0 0.0
      %284 = vmatpush1.msra.mxu0 0.0
      %285 = vmatprep.subr.mxu0 0.0
      %286 = vmatpush1.msra.mxu0 0.0
      %287 = vmatprep.subr.mxu0 0.0
      %288 = vmatpush1.msra.mxu0 0.0
      %289 = vmatprep.subr.mxu0 0.0
      %290 = vmatpush1.msra.mxu0 0.0
      %291 = vmatprep.subr.mxu0 0.0
      %292 = vmatpush1.msra.mxu0 0.0
      %293 = vmatprep.subr.mxu0 0.0
      %294 = vmatpush1.msra.mxu0 0.0
      %295 = vmatprep.subr.mxu0 0.0
      %296 = vmatpush1.msra.mxu0 0.0
      %297 = vmatprep.subr.mxu0 0.0
      %298 = vmatpush1.msra.mxu0 0.0
      %299 = vmatprep.subr.mxu0 0.0
      %300 = vmatpush1.msra.mxu0 0.0
      %301 = vmatprep.subr.mxu0 0.0
      %302 = vmatpush1.msra.mxu0 0.0
      %303 = vmatprep.subr.mxu0 0.0
      %304 = vmatpush1.msra.mxu0 0.0
      %305 = vmatprep.subr.mxu0 0.0
      %306 = vmatpush1.msra.mxu0 0.0
      %307 = vmatprep.subr.mxu0 0.0
      %308 = vmatpush1.msra.mxu0 0.0
      %309 = vmatprep.mubr.f32.mxu0 0.0
      %310 = vmatmul.mubr.f32.gmra.mrb[0].mxu0 %v198
      %v311 = vpop.f32.mrb[0].mxu0
      %v312 = vadd.f32 %v195, %v311
      %v313 = vpop.f32.mrb[0].mxu0
      %314 = vmatprep.mubr.f32.mxu0 0.0
      %315 = vmatmul.mubr.f32.gmra.mrb[0].mxu0 %v201
      %v316 = vpop.f32.mrb[0].mxu0
      %v317 = vadd.f32 %v195, %v316
      %v318 = vpop.f32.mrb[0].mxu0
      %319 = vmatprep.mubr.f32.mxu0 0.0
      %320 = vmatmul.mubr.f32.gmra.mrb[0].mxu0 %v204
      %v321 = vpop.f32.mrb[0].mxu0
      %v322 = vadd.f32 %v195, %v321
      %v323 = vpop.f32.mrb[0].mxu0
      %324 = vmatprep.mubr.f32.mxu0 0.0
      %325 = vmatmul.mubr.f32.gmra.mrb[0].mxu0 %v207
      %v326 = vpop.f32.mrb[0].mxu0
      %v327 = vadd.f32 %v195, %v326
      %v328 = vpop.f32.mrb[0].mxu0
      %329 = vmatprep.mubr.f32.mxu0 0.0
      %330 = vmatmul.mubr.f32.gmra.mrb[0].mxu0 %v210
      %v331 = vpop.f32.mrb[0].mxu0
      %v332 = vadd.f32 %v195, %v331
      %v333 = vpop.f32.mrb[0].mxu0
      %334 = vmatprep.mubr.f32.mxu0 0.0
      %335 = vmatmul.mubr.f32.gmra.mrb[0].mxu0 %v213
      %v336 = vpop.f32.mrb[0].mxu0
      %v337 = vadd.f32 %v195, %v336
      %v338 = vpop.f32.mrb[0].mxu0
      %339 = vmatprep.mubr.f32.mxu0 0.0
      %340 = vmatmul.mubr.f32.gmra.mrb[0].mxu0 %v216
      %v341 = vpop.f32.mrb[0].mxu0
      %v342 = vadd.f32 %v195, %v341
      %v343 = vpop.f32.mrb[0].mxu0
      %344 = vmatprep.mubr.f32.mxu0 0.0
      %345 = vmatmul.mubr.f32.gmra.mrb[0].mxu0 %v219
      %v346 = vpop.f32.mrb[0].mxu0
      %v347 = vadd.f32 %v195, %v346
      %v348 = vpop.f32.mrb[0].mxu0
      %349 = vmatprep.mubr.f32.mxu0 0.0
      %350 = vmatmul.mubr.f32.gmra.mrb[0].mxu0 %v222
      %v351 = vpop.f32.mrb[0].mxu0
      %v352 = vadd.f32 %v195, %v351
      %v353 = vpop.f32.mrb[0].mxu0
      %354 = vmatprep.mubr.f32.mxu0 0.0
      %355 = vmatmul.mubr.f32.gmra.mrb[0].mxu0 %v225
      %v356 = vpop.f32.mrb[0].mxu0
      %v357 = vadd.f32 %v195, %v356
      %v358 = vpop.f32.mrb[0].mxu0
      %359 = vmatprep.mubr.f32.mxu0 0.0
      %360 = vmatmul.mubr.f32.gmra.mrb[0].mxu0 %v228
      %v361 = vpop.f32.mrb[0].mxu0
      %v362 = vadd.f32 %v195, %v361
      %v363 = vpop.f32.mrb[0].mxu0
      %364 = vmatprep.mubr.f32.mxu0 0.0
      %365 = vmatmul.mubr.f32.gmra.mrb[0].mxu0 %v231
      %v366 = vpop.f32.mrb[0].mxu0
      %v367 = vadd.f32 %v195, %v366
      %v368 = vpop.f32.mrb[0].mxu0
      %369 = vmatprep.mubr.f32.mxu0 0.0
      %370 = vmatmul.mubr.f32.gmra.mrb[0].mxu0 %v234
      %v371 = vpop.f32.mrb[0].mxu0
      %v372 = vadd.f32 %v195, %v371
      %v373 = vpop.f32.mrb[0].mxu0
      %374 = vmatprep.mubr.f32.mxu0 0.0
      %375 = vmatmul.mubr.f32.gmra.mrb[0].mxu0 %v237
      %v376 = vpop.f32.mrb[0].mxu0
      %v377 = vadd.f32 %v195, %v376
      %v378 = vpop.f32.mrb[0].mxu0
      %379 = vmatprep.mubr.f32.mxu0 0.0
      %380 = vmatmul.mubr.f32.gmra.mrb[0].mxu0 %v240
      %v381 = vpop.f32.mrb[0].mxu0
      %v382 = vadd.f32 %v195, %v381
      %v383 = vpop.f32.mrb[0].mxu0
      %384 = vmatprep.mubr.f32.mxu0 0.0
      %385 = vmatmul.mubr.f32.gmra.mrb[0].mxu0 %v243
      %v386 = vpop.f32.mrb[0].mxu0
      %v387 = vadd.f32 %v195, %v386
      %v388 = vpop.f32.mrb[0].mxu0
      %389 = vdwg.mxu0
      %v390 = vmax.f32 %v312, 0.0
      %v391 = vmax.f32 %v317, 0.0
      %v392 = vmax.f32 %v322, 0.0
      %v393 = vmax.f32 %v327, 0.0
      %v394 = vmax.f32 %v332, 0.0
      %v395 = vmax.f32 %v337, 0.0
      %v396 = vmax.f32 %v342, 0.0
      %v397 = vmax.f32 %v347, 0.0
      %v398 = vmax.f32 %v352, 0.0
      %v399 = vmax.f32 %v357, 0.0
      %v400 = vmax.f32 %v362, 0.0
      %v401 = vmax.f32 %v367, 0.0
      %v402 = vmax.f32 %v372, 0.0
      %v403 = vmax.f32 %v377, 0.0
      %v404 = vmax.f32 %v382, 0.0
      %v405 = vmax.f32 %v387, 0.0
      %v406 = vld [vmem:[%s1 + $0x8] sm:$0xff]
      %v407 = vld [vmem:[%s1 + $0x10] sm:$0xff]
      %v408 = vld [vmem:[%s1 + $0x18] sm:$0xff]
      %v409 = vld [vmem:[%s1 + $0x20] sm:$0xff]
      %v410 = vld [vmem:[%s1 + $0x28] sm:$0xff]
      %v411 = vld [vmem:[%s1 + $0x30] sm:$0xff]
      %v412 = vld [vmem:[%s1 + $0x38] sm:$0xff]
      %v413 = vld [vmem:[%s1 + $0x40] sm:$0xff]
      %v414 = vld [vmem:[%s1 + $0x48] sm:$0xff]
      %v415 = vld [vmem:[%s1 + $0x50] sm:$0xff]
      %v416 = vld [vmem:[%s1 + $0x58] sm:$0xff]
      %v417 = vld [vmem:[%s1 + $0x60] sm:$0xff]
      %v418 = vld [vmem:[%s1 + $0x68] sm:$0xff]
      %v419 = vld [vmem:[%s1 + $0x70] sm:$0xff]
      %v420 = vld [vmem:[%s1 + $0x78] sm:$0xff]
      %v421 = vld [vmem:[%s1 + $0x80] sm:$0xff]
      %v422 = vld [vmem:[%s2 + $0x1] sm:$0x1]
      %v423 = vlaneseq
      %v424 = vshrl.u32 %v423, 7
      %v425 = vsub.s32 0, %v424
      %v426 = vrot.slane %v422, %v425
      %427 = vmatprep.subr.mxu0 0.0
      %428 = vmatpush1.msra.mxu0 %v406
      %429 = vmatprep.subr.mxu0 0.0
      %430 = vmatpush1.msra.mxu0 %v407
      %431 = vmatprep.subr.mxu0 0.0
      %432 = vmatpush1.msra.mxu0 %v408
      %433 = vmatprep.subr.mxu0 0.0
      %434 = vmatpush1.msra.mxu0 %v409
      %435 = vmatprep.subr.mxu0 0.0
      %436 = vmatpush1.msra.mxu0 %v410
      %437 = vmatprep.subr.mxu0 0.0
      %438 = vmatpush1.msra.mxu0 %v411
      %439 = vmatprep.subr.mxu0 0.0
      %440 = vmatpush1.msra.mxu0 %v412
      %441 = vmatprep.subr.mxu0 0.0
      %442 = vmatpush1.msra.mxu0 %v413
      %443 = vmatprep.subr.mxu0 0.0
      %444 = vmatpush1.msra.mxu0 %v414
      %445 = vmatprep.subr.mxu0 0.0
      %446 = vmatpush1.msra.mxu0 %v415
      %447 = vmatprep.subr.mxu0 0.0
      %448 = vmatpush1.msra.mxu0 %v416
      %449 = vmatprep.subr.mxu0 0.0
      %450 = vmatpush1.msra.mxu0 %v417
      %451 = vmatprep.subr.mxu0 0.0
      %452 = vmatpush1.msra.mxu0 %v418
      %453 = vmatprep.subr.mxu0 0.0
      %454 = vmatpush1.msra.mxu0 %v419
      %455 = vmatprep.subr.mxu0 0.0
      %456 = vmatpush1.msra.mxu0 %v420
      %457 = vmatprep.subr.mxu0 0.0
      %458 = vmatpush1.msra.mxu0 %v421
      %459 = vmatprep.subr.mxu0 0.0
      %460 = vmatpush1.msra.mxu0 0.0
      %461 = vmatprep.subr.mxu0 0.0
      %462 = vmatpush1.msra.mxu0 0.0
      %463 = vmatprep.subr.mxu0 0.0
      %464 = vmatpush1.msra.mxu0 0.0
      %465 = vmatprep.subr.mxu0 0.0
      %466 = vmatpush1.msra.mxu0 0.0
      %467 = vmatprep.subr.mxu0 0.0
      %468 = vmatpush1.msra.mxu0 0.0
      %469 = vmatprep.subr.mxu0 0.0
      %470 = vmatpush1.msra.mxu0 0.0
      %471 = vmatprep.subr.mxu0 0.0
      %472 = vmatpush1.msra.mxu0 0.0
      %473 = vmatprep.subr.mxu0 0.0
      %474 = vmatpush1.msra.mxu0 0.0
      %475 = vmatprep.subr.mxu0 0.0
      %476 = vmatpush1.msra.mxu0 0.0
      %477 = vmatprep.subr.mxu0 0.0
      %478 = vmatpush1.msra.mxu0 0.0
      %479 = vmatprep.subr.mxu0 0.0
      %480 = vmatpush1.msra.mxu0 0.0
      %481 = vmatprep.subr.mxu0 0.0
      %482 = vmatpush1.msra.mxu0 0.0
      %483 = vmatprep.subr.mxu0 0.0
      %484 = vmatpush1.msra.mxu0 0.0
      %485 = vmatprep.subr.mxu0 0.0
      %486 = vmatpush1.msra.mxu0 0.0
      %487 = vmatprep.subr.mxu0 0.0
      %488 = vmatpush1.msra.mxu0 0.0
      %489 = vmatprep.subr.mxu0 0.0
      %490 = vmatpush1.msra.mxu0 0.0
      %491 = vmatprep.mubr.f32.mxu0 0.0
      %492 = vmatmul.mubr.f32.gmra.mrb[0].mxu0 %v390
      %v493 = vpop.f32.mrb[0].mxu0
      %v494 = vadd.f32 %v426, %v493
      %v495 = vpop.f32.mrb[0].mxu0
      %496 = vmatprep.mubr.f32.mxu0 0.0
      %497 = vmatmul.mubr.f32.gmra.mrb[0].mxu0 %v391
      %v498 = vpop.f32.mrb[0].mxu0
      %v499 = vadd.f32 %v426, %v498
      %v500 = vpop.f32.mrb[0].mxu0
      %501 = vmatprep.mubr.f32.mxu0 0.0
      %502 = vmatmul.mubr.f32.gmra.mrb[0].mxu0 %v392
      %v503 = vpop.f32.mrb[0].mxu0
      %v504 = vadd.f32 %v426, %v503
      %v505 = vpop.f32.mrb[0].mxu0
      %506 = vmatprep.mubr.f32.mxu0 0.0
      %507 = vmatmul.mubr.f32.gmra.mrb[0].mxu0 %v393
      %v508 = vpop.f32.mrb[0].mxu0
      %v509 = vadd.f32 %v426, %v508
      %v510 = vpop.f32.mrb[0].mxu0
      %511 = vmatprep.mubr.f32.mxu0 0.0
      %512 = vmatmul.mubr.f32.gmra.mrb[0].mxu0 %v394
      %v513 = vpop.f32.mrb[0].mxu0
      %v514 = vadd.f32 %v426, %v513
      %v515 = vpop.f32.mrb[0].mxu0
      %516 = vmatprep.mubr.f32.mxu0 0.0
      %517 = vmatmul.mubr.f32.gmra.mrb[0].mxu0 %v395
      %v518 = vpop.f32.mrb[0].mxu0
      %v519 = vadd.f32 %v426, %v518
      %v520 = vpop.f32.mrb[0].mxu0
      %521 = vmatprep.mubr.f32.mxu0 0.0
      %522 = vmatmul.mubr.f32.gmra.mrb[0].mxu0 %v396
      %v523 = vpop.f32.mrb[0].mxu0
      %v524 = vadd.f32 %v426, %v523
      %v525 = vpop.f32.mrb[0].mxu0
      %526 = vmatprep.mubr.f32.mxu0 0.0
      %527 = vmatmul.mubr.f32.gmra.mrb[0].mxu0 %v397
      %v528 = vpop.f32.mrb[0].mxu0
      %v529 = vadd.f32 %v426, %v528
      %v530 = vpop.f32.mrb[0].mxu0
      %531 = vmatprep.mubr.f32.mxu0 0.0
      %532 = vmatmul.mubr.f32.gmra.mrb[0].mxu0 %v398
      %v533 = vpop.f32.mrb[0].mxu0
      %v534 = vadd.f32 %v426, %v533
      %v535 = vpop.f32.mrb[0].mxu0
      %536 = vmatprep.mubr.f32.mxu0 0.0
      %537 = vmatmul.mubr.f32.gmra.mrb[0].mxu0 %v399
      %v538 = vpop.f32.mrb[0].mxu0
      %v539 = vadd.f32 %v426, %v538
      %v540 = vpop.f32.mrb[0].mxu0
      %541 = vmatprep.mubr.f32.mxu0 0.0
      %542 = vmatmul.mubr.f32.gmra.mrb[0].mxu0 %v400
      %v543 = vpop.f32.mrb[0].mxu0
      %v544 = vadd.f32 %v426, %v543
      %v545 = vpop.f32.mrb[0].mxu0
      %546 = vmatprep.mubr.f32.mxu0 0.0
      %547 = vmatmul.mubr.f32.gmra.mrb[0].mxu0 %v401
      %v548 = vpop.f32.mrb[0].mxu0
      %v549 = vadd.f32 %v426, %v548
      %v550 = vpop.f32.mrb[0].mxu0
      %551 = vmatprep.mubr.f32.mxu0 0.0
      %552 = vmatmul.mubr.f32.gmra.mrb[0].mxu0 %v402
      %v553 = vpop.f32.mrb[0].mxu0
      %v554 = vadd.f32 %v426, %v553
      %v555 = vpop.f32.mrb[0].mxu0
      %556 = vmatprep.mubr.f32.mxu0 0.0
      %557 = vmatmul.mubr.f32.gmra.mrb[0].mxu0 %v403
      %v558 = vpop.f32.mrb[0].mxu0
      %v559 = vadd.f32 %v426, %v558
      %v560 = vpop.f32.mrb[0].mxu0
      %561 = vmatprep.mubr.f32.mxu0 0.0
      %562 = vmatmul.mubr.f32.gmra.mrb[0].mxu0 %v404
      %v563 = vpop.f32.mrb[0].mxu0
      %v564 = vadd.f32 %v426, %v563
      %v565 = vpop.f32.mrb[0].mxu0
      %566 = vmatprep.mubr.f32.mxu0 0.0
      %567 = vmatmul.mubr.f32.gmra.mrb[0].mxu0 %v405
      %v568 = vpop.f32.mrb[0].mxu0
      %v569 = vadd.f32 %v426, %v568
      %v570 = vpop.f32.mrb[0].mxu0
      %571 = vdwg.mxu0
      %v572 = vmax.f32 %v494, 0.0
      %v573 = vmax.f32 %v499, 0.0
      %v574 = vmax.f32 %v504, 0.0
      %v575 = vmax.f32 %v509, 0.0
      %v576 = vmax.f32 %v514, 0.0
      %v577 = vmax.f32 %v519, 0.0
      %v578 = vmax.f32 %v524, 0.0
      %v579 = vmax.f32 %v529, 0.0
      %v580 = vmax.f32 %v534, 0.0
      %v581 = vmax.f32 %v539, 0.0
      %v582 = vmax.f32 %v544, 0.0
      %v583 = vmax.f32 %v549, 0.0
      %v584 = vmax.f32 %v554, 0.0
      %v585 = vmax.f32 %v559, 0.0
      %v586 = vmax.f32 %v564, 0.0
      %v587 = vmax.f32 %v569, 0.0
      %v588 = vld [vmem:[%s1 + $0x88] sm:$0xff]
      %v589 = vld [vmem:[%s1 + $0x90] sm:$0xff]
      %v590 = vld [vmem:[%s1 + $0x98] sm:$0xff]
      %v591 = vld [vmem:[%s1 + $0xa0] sm:$0xff]
      %v592 = vld [vmem:[%s1 + $0xa8] sm:$0xff]
      %v593 = vld [vmem:[%s1 + $0xb0] sm:$0xff]
      %v594 = vld [vmem:[%s1 + $0xb8] sm:$0xff]
      %v595 = vld [vmem:[%s1 + $0xc0] sm:$0xff]
      %v596 = vld [vmem:[%s1 + $0xc8] sm:$0xff]
      %v597 = vld [vmem:[%s1 + $0xd0] sm:$0xff]
      %v598 = vld [vmem:[%s1 + $0xd8] sm:$0xff]
      %v599 = vld [vmem:[%s1 + $0xe0] sm:$0xff]
      %v600 = vld [vmem:[%s1 + $0xe8] sm:$0xff]
      %v601 = vld [vmem:[%s1 + $0xf0] sm:$0xff]
      %v602 = vld [vmem:[%s1 + $0xf8] sm:$0xff]
      %v603 = vld [vmem:[%s1 + $0x100] sm:$0xff]
      %v604 = vld [vmem:[%s2 + $0x2] sm:$0x1]
      %v605 = vlaneseq
      %v606 = vshrl.u32 %v605, 7
      %v607 = vsub.s32 0, %v606
      %v608 = vrot.slane %v604, %v607
      %609 = vmatprep.subr.mxu0 0.0
      %610 = vmatpush1.msra.mxu0 %v588
      %611 = vmatprep.subr.mxu0 0.0
      %612 = vmatpush1.msra.mxu0 %v589
      %613 = vmatprep.subr.mxu0 0.0
      %614 = vmatpush1.msra.mxu0 %v590
      %615 = vmatprep.subr.mxu0 0.0
      %616 = vmatpush1.msra.mxu0 %v591
      %617 = vmatprep.subr.mxu0 0.0
      %618 = vmatpush1.msra.mxu0 %v592
      %619 = vmatprep.subr.mxu0 0.0
      %620 = vmatpush1.msra.mxu0 %v593
      %621 = vmatprep.subr.mxu0 0.0
      %622 = vmatpush1.msra.mxu0 %v594
      %623 = vmatprep.subr.mxu0 0.0
      %624 = vmatpush1.msra.mxu0 %v595
      %625 = vmatprep.subr.mxu0 0.0
      %626 = vmatpush1.msra.mxu0 %v596
      %627 = vmatprep.subr.mxu0 0.0
      %628 = vmatpush1.msra.mxu0 %v597
      %629 = vmatprep.subr.mxu0 0.0
      %630 = vmatpush1.msra.mxu0 %v598
      %631 = vmatprep.subr.mxu0 0.0
      %632 = vmatpush1.msra.mxu0 %v599
      %633 = vmatprep.subr.mxu0 0.0
      %634 = vmatpush1.msra.mxu0 %v600
      %635 = vmatprep.subr.mxu0 0.0
      %636 = vmatpush1.msra.mxu0 %v601
      %637 = vmatprep.subr.mxu0 0.0
      %638 = vmatpush1.msra.mxu0 %v602
      %639 = vmatprep.subr.mxu0 0.0
      %640 = vmatpush1.msra.mxu0 %v603
      %641 = vmatprep.subr.mxu0 0.0
      %642 = vmatpush1.msra.mxu0 0.0
      %643 = vmatprep.subr.mxu0 0.0
      %644 = vmatpush1.msra.mxu0 0.0
      %645 = vmatprep.subr.mxu0 0.0
      %646 = vmatpush1.msra.mxu0 0.0
      %647 = vmatprep.subr.mxu0 0.0
      %648 = vmatpush1.msra.mxu0 0.0
      %649 = vmatprep.subr.mxu0 0.0
      %650 = vmatpush1.msra.mxu0 0.0
      %651 = vmatprep.subr.mxu0 0.0
      %652 = vmatpush1.msra.mxu0 0.0
      %653 = vmatprep.subr.mxu0 0.0
      %654 = vmatpush1.msra.mxu0 0.0
      %655 = vmatprep.subr.mxu0 0.0
      %656 = vmatpush1.msra.mxu0 0.0
      %657 = vmatprep.subr.mxu0 0.0
      %658 = vmatpush1.msra.mxu0 0.0
      %659 = vmatprep.subr.mxu0 0.0
      %660 = vmatpush1.msra.mxu0 0.0
      %661 = vmatprep.subr.mxu0 0.0
      %662 = vmatpush1.msra.mxu0 0.0
      %663 = vmatprep.subr.mxu0 0.0
      %664 = vmatpush1.msra.mxu0 0.0
      %665 = vmatprep.subr.mxu0 0.0
      %666 = vmatpush1.msra.mxu0 0.0
      %667 = vmatprep.subr.mxu0 0.0
      %668 = vmatpush1.msra.mxu0 0.0
      %669 = vmatprep.subr.mxu0 0.0
      %670 = vmatpush1.msra.mxu0 0.0
      %671 = vmatprep.subr.mxu0 0.0
      %672 = vmatpush1.msra.mxu0 0.0
      %673 = vmatprep.mubr.f32.mxu0 0.0
      %674 = vmatmul.mubr.f32.gmra.mrb[0].mxu0 %v572
      %v675 = vpop.f32.mrb[0].mxu0
      %v676 = vadd.f32 %v608, %v675
      %v677 = vpop.f32.mrb[0].mxu0
      %678 = vmatprep.mubr.f32.mxu0 0.0
      %679 = vmatmul.mubr.f32.gmra.mrb[0].mxu0 %v573
      %v680 = vpop.f32.mrb[0].mxu0
      %v681 = vadd.f32 %v608, %v680
      %v682 = vpop.f32.mrb[0].mxu0
      %683 = vmatprep.mubr.f32.mxu0 0.0
      %684 = vmatmul.mubr.f32.gmra.mrb[0].mxu0 %v574
      %v685 = vpop.f32.mrb[0].mxu0
      %v686 = vadd.f32 %v608, %v685
      %v687 = vpop.f32.mrb[0].mxu0
      %688 = vmatprep.mubr.f32.mxu0 0.0
      %689 = vmatmul.mubr.f32.gmra.mrb[0].mxu0 %v575
      %v690 = vpop.f32.mrb[0].mxu0
      %v691 = vadd.f32 %v608, %v690
      %v692 = vpop.f32.mrb[0].mxu0
      %693 = vmatprep.mubr.f32.mxu0 0.0
      %694 = vmatmul.mubr.f32.gmra.mrb[0].mxu0 %v576
      %v695 = vpop.f32.mrb[0].mxu0
      %v696 = vadd.f32 %v608, %v695
      %v697 = vpop.f32.mrb[0].mxu0
      %698 = vmatprep.mubr.f32.mxu0 0.0
      %699 = vmatmul.mubr.f32.gmra.mrb[0].mxu0 %v577
      %v700 = vpop.f32.mrb[0].mxu0
      %v701 = vadd.f32 %v608, %v700
      %v702 = vpop.f32.mrb[0].mxu0
      %703 = vmatprep.mubr.f32.mxu0 0.0
      %704 = vmatmul.mubr.f32.gmra.mrb[0].mxu0 %v578
      %v705 = vpop.f32.mrb[0].mxu0
      %v706 = vadd.f32 %v608, %v705
      %v707 = vpop.f32.mrb[0].mxu0
      %708 = vmatprep.mubr.f32.mxu0 0.0
      %709 = vmatmul.mubr.f32.gmra.mrb[0].mxu0 %v579
      %v710 = vpop.f32.mrb[0].mxu0
      %v711 = vadd.f32 %v608, %v710
      %v712 = vpop.f32.mrb[0].mxu0
      %713 = vmatprep.mubr.f32.mxu0 0.0
      %714 = vmatmul.mubr.f32.gmra.mrb[0].mxu0 %v580
      %v715 = vpop.f32.mrb[0].mxu0
      %v716 = vadd.f32 %v608, %v715
      %v717 = vpop.f32.mrb[0].mxu0
      %718 = vmatprep.mubr.f32.mxu0 0.0
      %719 = vmatmul.mubr.f32.gmra.mrb[0].mxu0 %v581
      %v720 = vpop.f32.mrb[0].mxu0
      %v721 = vadd.f32 %v608, %v720
      %v722 = vpop.f32.mrb[0].mxu0
      %723 = vmatprep.mubr.f32.mxu0 0.0
      %724 = vmatmul.mubr.f32.gmra.mrb[0].mxu0 %v582
      %v725 = vpop.f32.mrb[0].mxu0
      %v726 = vadd.f32 %v608, %v725
      %v727 = vpop.f32.mrb[0].mxu0
      %728 = vmatprep.mubr.f32.mxu0 0.0
      %729 = vmatmul.mubr.f32.gmra.mrb[0].mxu0 %v583
      %v730 = vpop.f32.mrb[0].mxu0
      %v731 = vadd.f32 %v608, %v730
      %v732 = vpop.f32.mrb[0].mxu0
      %733 = vmatprep.mubr.f32.mxu0 0.0
      %734 = vmatmul.mubr.f32.gmra.mrb[0].mxu0 %v584
      %v735 = vpop.f32.mrb[0].mxu0
      %v736 = vadd.f32 %v608, %v735
      %v737 = vpop.f32.mrb[0].mxu0
      %738 = vmatprep.mubr.f32.mxu0 0.0
      %739 = vmatmul.mubr.f32.gmra.mrb[0].mxu0 %v585
      %v740 = vpop.f32.mrb[0].mxu0
      %v741 = vadd.f32 %v608, %v740
      %v742 = vpop.f32.mrb[0].mxu0
      %743 = vmatprep.mubr.f32.mxu0 0.0
      %744 = vmatmul.mubr.f32.gmra.mrb[0].mxu0 %v586
      %v745 = vpop.f32.mrb[0].mxu0
      %v746 = vadd.f32 %v608, %v745
      %v747 = vpop.f32.mrb[0].mxu0
      %748 = vmatprep.mubr.f32.mxu0 0.0
      %749 = vmatmul.mubr.f32.gmra.mrb[0].mxu0 %v587
      %v750 = vpop.f32.mrb[0].mxu0
      %v751 = vadd.f32 %v608, %v750
      %v752 = vpop.f32.mrb[0].mxu0
      %753 = vdwg.mxu0
      %v754 = vld [vmem:[%s2 + $0x3] sm:$0x1]
      %v755 = vld [vmem:[%s2 + $0x4] sm:$0x1]
      %v756 = vlaneseq
      %v757 = vand.u32 %v756, 127
      %vm758 = vcmp.lt.s32.totalorder %v757, 32
      %v759 = vsel %vm758, 1, 0
      %v760 = vcvt.s32.f32 %v759
      %v761 = vmul.f32 %v676, %v760
      %v762 = vmul.f32 %v681, %v760
      %v763 = vmul.f32 %v686, %v760
      %v764 = vmul.f32 %v691, %v760
      %v765 = vmul.f32 %v696, %v760
      %v766 = vmul.f32 %v701, %v760
      %v767 = vmul.f32 %v706, %v760
      %v768 = vmul.f32 %v711, %v760
      %v769 = vmul.f32 %v716, %v760
      %v770 = vmul.f32 %v721, %v760
      %v771 = vmul.f32 %v726, %v760
      %v772 = vmul.f32 %v731, %v760
      %v773 = vmul.f32 %v736, %v760
      %v774 = vmul.f32 %v741, %v760
      %v775 = vmul.f32 %v746, %v760
      %v776 = vmul.f32 %v751, %v760
      %777 = vadd.xlane.f32.xlu0 %v761
      %v778 = vpop.xlane.xlu0 %777
      %779 = vadd.xlane.f32.xlu0 %v762
      %v780 = vpop.xlane.xlu0 %779
      %781 = vadd.xlane.f32.xlu0 %v763
      %v782 = vpop.xlane.xlu0 %781
      %783 = vadd.xlane.f32.xlu0 %v764
      %v784 = vpop.xlane.xlu0 %783
      %785 = vadd.xlane.f32.xlu0 %v765
      %v786 = vpop.xlane.xlu0 %785
      %787 = vadd.xlane.f32.xlu0 %v766
      %v788 = vpop.xlane.xlu0 %787
      %789 = vadd.xlane.f32.xlu0 %v767
      %v790 = vpop.xlane.xlu0 %789
      %791 = vadd.xlane.f32.xlu0 %v768
      %v792 = vpop.xlane.xlu0 %791
      %793 = vadd.xlane.f32.xlu0 %v769
      %v794 = vpop.xlane.xlu0 %793
      %795 = vadd.xlane.f32.xlu0 %v770
      %v796 = vpop.xlane.xlu0 %795
      %797 = vadd.xlane.f32.xlu0 %v771
      %v798 = vpop.xlane.xlu0 %797
      %799 = vadd.xlane.f32.xlu0 %v772
      %v800 = vpop.xlane.xlu0 %799
      %801 = vadd.xlane.f32.xlu0 %v773
      %v802 = vpop.xlane.xlu0 %801
      %803 = vadd.xlane.f32.xlu0 %v774
      %v804 = vpop.xlane.xlu0 %803
      %805 = vadd.xlane.f32.xlu0 %v775
      %v806 = vpop.xlane.xlu0 %805
      %807 = vadd.xlane.f32.xlu0 %v776
      %v808 = vpop.xlane.xlu0 %807
      %v809 = vmul.f32 %v778, 0.03125
      %v810 = vmul.f32 %v780, 0.03125
      %v811 = vmul.f32 %v782, 0.03125
      %v812 = vmul.f32 %v784, 0.03125
      %v813 = vmul.f32 %v786, 0.03125
      %v814 = vmul.f32 %v788, 0.03125
      %v815 = vmul.f32 %v790, 0.03125
      %v816 = vmul.f32 %v792, 0.03125
      %v817 = vmul.f32 %v794, 0.03125
      %v818 = vmul.f32 %v796, 0.03125
      %v819 = vmul.f32 %v798, 0.03125
      %v820 = vmul.f32 %v800, 0.03125
      %v821 = vmul.f32 %v802, 0.03125
      %v822 = vmul.f32 %v804, 0.03125
      %v823 = vmul.f32 %v806, 0.03125
      %v824 = vmul.f32 %v808, 0.03125
      %v825 = vsub.f32 %v676, %v809
      %v826 = vsub.f32 %v681, %v810
      %v827 = vsub.f32 %v686, %v811
      %v828 = vsub.f32 %v691, %v812
      %v829 = vsub.f32 %v696, %v813
      %v830 = vsub.f32 %v701, %v814
      %v831 = vsub.f32 %v706, %v815
      %v832 = vsub.f32 %v711, %v816
      %v833 = vsub.f32 %v716, %v817
      %v834 = vsub.f32 %v721, %v818
      %v835 = vsub.f32 %v726, %v819
      %v836 = vsub.f32 %v731, %v820
      %v837 = vsub.f32 %v736, %v821
      %v838 = vsub.f32 %v741, %v822
      %v839 = vsub.f32 %v746, %v823
      %v840 = vsub.f32 %v751, %v824
      %v841 = vmul.f32 %v825, %v760
      %v842 = vmul.f32 %v826, %v760
      %v843 = vmul.f32 %v827, %v760
      %v844 = vmul.f32 %v828, %v760
      %v845 = vmul.f32 %v829, %v760
      %v846 = vmul.f32 %v830, %v760
      %v847 = vmul.f32 %v831, %v760
      %v848 = vmul.f32 %v832, %v760
      %v849 = vmul.f32 %v833, %v760
      %v850 = vmul.f32 %v834, %v760
      %v851 = vmul.f32 %v835, %v760
      %v852 = vmul.f32 %v836, %v760
      %v853 = vmul.f32 %v837, %v760
      %v854 = vmul.f32 %v838, %v760
      %v855 = vmul.f32 %v839, %v760
      %v856 = vmul.f32 %v840, %v760
      %v857 = vmul.f32 %v841, %v841
      %v858 = vmul.f32 %v842, %v842
      %v859 = vmul.f32 %v843, %v843
      %v860 = vmul.f32 %v844, %v844
      %v861 = vmul.f32 %v845, %v845
      %v862 = vmul.f32 %v846, %v846
      %v863 = vmul.f32 %v847, %v847
      %v864 = vmul.f32 %v848, %v848
      %v865 = vmul.f32 %v849, %v849
      %v866 = vmul.f32 %v850, %v850
      %v867 = vmul.f32 %v851, %v851
      %v868 = vmul.f32 %v852, %v852
      %v869 = vmul.f32 %v853, %v853
      %v870 = vmul.f32 %v854, %v854
      %v871 = vmul.f32 %v855, %v855
      %v872 = vmul.f32 %v856, %v856
      %873 = vadd.xlane.f32.xlu0 %v857
      %v874 = vpop.xlane.xlu0 %873
      %875 = vadd.xlane.f32.xlu0 %v858
      %v876 = vpop.xlane.xlu0 %875
      %877 = vadd.xlane.f32.xlu0 %v859
      %v878 = vpop.xlane.xlu0 %877
      %879 = vadd.xlane.f32.xlu0 %v860
      %v880 = vpop.xlane.xlu0 %879
      %881 = vadd.xlane.f32.xlu0 %v861
      %v882 = vpop.xlane.xlu0 %881
      %883 = vadd.xlane.f32.xlu0 %v862
      %v884 = vpop.xlane.xlu0 %883
      %885 = vadd.xlane.f32.xlu0 %v863
      %v886 = vpop.xlane.xlu0 %885
      %887 = vadd.xlane.f32.xlu0 %v864
      %v888 = vpop.xlane.xlu0 %887
      %889 = vadd.xlane.f32.xlu0 %v865
      %v890 = vpop.xlane.xlu0 %889
      %891 = vadd.xlane.f32.xlu0 %v866
      %v892 = vpop.xlane.xlu0 %891
      %893 = vadd.xlane.f32.xlu0 %v867
      %v894 = vpop.xlane.xlu0 %893
      %895 = vadd.xlane.f32.xlu0 %v868
      %v896 = vpop.xlane.xlu0 %895
      %897 = vadd.xlane.f32.xlu0 %v869
      %v898 = vpop.xlane.xlu0 %897
      %899 = vadd.xlane.f32.xlu0 %v870
      %v900 = vpop.xlane.xlu0 %899
      %901 = vadd.xlane.f32.xlu0 %v871
      %v902 = vpop.xlane.xlu0 %901
      %903 = vadd.xlane.f32.xlu0 %v872
      %v904 = vpop.xlane.xlu0 %903
      %v905 = vmul.f32 %v874, 0.03125
      %v906 = vmul.f32 %v876, 0.03125
      %v907 = vmul.f32 %v878, 0.03125
      %v908 = vmul.f32 %v880, 0.03125
      %v909 = vmul.f32 %v882, 0.03125
      %v910 = vmul.f32 %v884, 0.03125
      %v911 = vmul.f32 %v886, 0.03125
      %v912 = vmul.f32 %v888, 0.03125
      %v913 = vmul.f32 %v890, 0.03125
      %v914 = vmul.f32 %v892, 0.03125
      %v915 = vmul.f32 %v894, 0.03125
      %v916 = vmul.f32 %v896, 0.03125
      %v917 = vmul.f32 %v898, 0.03125
      %v918 = vmul.f32 %v900, 0.03125
      %v919 = vmul.f32 %v902, 0.03125
      %v920 = vmul.f32 %v904, 0.03125
      %v921 = vadd.f32 %v905, 1e-05
      %v922 = vadd.f32 %v906, 1e-05
      %v923 = vadd.f32 %v907, 1e-05
      %v924 = vadd.f32 %v908, 1e-05
      %v925 = vadd.f32 %v909, 1e-05
      %v926 = vadd.f32 %v910, 1e-05
      %v927 = vadd.f32 %v911, 1e-05
      %v928 = vadd.f32 %v912, 1e-05
      %v929 = vadd.f32 %v913, 1e-05
      %v930 = vadd.f32 %v914, 1e-05
      %v931 = vadd.f32 %v915, 1e-05
      %v932 = vadd.f32 %v916, 1e-05
      %v933 = vadd.f32 %v917, 1e-05
      %v934 = vadd.f32 %v918, 1e-05
      %v935 = vadd.f32 %v919, 1e-05
      %v936 = vadd.f32 %v920, 1e-05
      %v937 = vrsqrt.pop %v921
      %v938 = vrsqrt.pop %v922
      %v939 = vrsqrt.pop %v923
      %v940 = vrsqrt.pop %v924
      %v941 = vrsqrt.pop %v925
      %v942 = vrsqrt.pop %v926
      %v943 = vrsqrt.pop %v927
      %v944 = vrsqrt.pop %v928
      %v945 = vrsqrt.pop %v929
      %v946 = vrsqrt.pop %v930
      %v947 = vrsqrt.pop %v931
      %v948 = vrsqrt.pop %v932
      %v949 = vrsqrt.pop %v933
      %v950 = vrsqrt.pop %v934
      %v951 = vrsqrt.pop %v935
      %v952 = vrsqrt.pop %v936
      %v953 = vmul.f32 %v841, %v937
      %v954 = vmul.f32 %v842, %v938
      %v955 = vmul.f32 %v843, %v939
      %v956 = vmul.f32 %v844, %v940
      %v957 = vmul.f32 %v845, %v941
      %v958 = vmul.f32 %v846, %v942
      %v959 = vmul.f32 %v847, %v943
      %v960 = vmul.f32 %v848, %v944
      %v961 = vmul.f32 %v849, %v945
      %v962 = vmul.f32 %v850, %v946
      %v963 = vmul.f32 %v851, %v947
      %v964 = vmul.f32 %v852, %v948
      %v965 = vmul.f32 %v853, %v949
      %v966 = vmul.f32 %v854, %v950
      %v967 = vmul.f32 %v855, %v951
      %v968 = vmul.f32 %v856, %v952
      %v969 = vlaneseq
      %v970 = vshrl.u32 %v969, 7
      %v971 = vsub.s32 0, %v970
      %v972 = vrot.slane %v754, %v971
      %v973 = vmul.f32 %v953, %v972
      %v974 = vmul.f32 %v954, %v972
      %v975 = vmul.f32 %v955, %v972
      %v976 = vmul.f32 %v956, %v972
      %v977 = vmul.f32 %v957, %v972
      %v978 = vmul.f32 %v958, %v972
      %v979 = vmul.f32 %v959, %v972
      %v980 = vmul.f32 %v960, %v972
      %v981 = vmul.f32 %v961, %v972
      %v982 = vmul.f32 %v962, %v972
      %v983 = vmul.f32 %v963, %v972
      %v984 = vmul.f32 %v964, %v972
      %v985 = vmul.f32 %v965, %v972
      %v986 = vmul.f32 %v966, %v972
      %v987 = vmul.f32 %v967, %v972
      %v988 = vmul.f32 %v968, %v972
      %v989 = vlaneseq
      %v990 = vshrl.u32 %v989, 7
      %v991 = vsub.s32 0, %v990
      %v992 = vrot.slane %v755, %v991
      %v993 = vadd.f32 %v973, %v992
      %v994 = vadd.f32 %v974, %v992
      %v995 = vadd.f32 %v975, %v992
      %v996 = vadd.f32 %v976, %v992
      %v997 = vadd.f32 %v977, %v992
      %v998 = vadd.f32 %v978, %v992
      %v999 = vadd.f32 %v979, %v992
      %v1000 = vadd.f32 %v980, %v992
      %v1001 = vadd.f32 %v981, %v992
      %v1002 = vadd.f32 %v982, %v992
      %v1003 = vadd.f32 %v983, %v992
      %v1004 = vadd.f32 %v984, %v992
      %v1005 = vadd.f32 %v985, %v992
      %v1006 = vadd.f32 %v986, %v992
      %v1007 = vadd.f32 %v987, %v992
      %v1008 = vadd.f32 %v988, %v992
      %1009 = vst [vmem:[%s172] sm:$0xff] %v993
      %1010 = vst [vmem:[%s172 + $0x8] sm:$0xff] %v994
      %1011 = vst [vmem:[%s172 + $0x10] sm:$0xff] %v995
      %1012 = vst [vmem:[%s172 + $0x18] sm:$0xff] %v996
      %1013 = vst [vmem:[%s172 + $0x20] sm:$0xff] %v997
      %1014 = vst [vmem:[%s172 + $0x28] sm:$0xff] %v998
      %1015 = vst [vmem:[%s172 + $0x30] sm:$0xff] %v999
      %1016 = vst [vmem:[%s172 + $0x38] sm:$0xff] %v1000
      %1017 = vst [vmem:[%s172 + $0x40] sm:$0xff] %v1001
      %1018 = vst [vmem:[%s172 + $0x48] sm:$0xff] %v1002
      %1019 = vst [vmem:[%s172 + $0x50] sm:$0xff] %v1003
      %1020 = vst [vmem:[%s172 + $0x58] sm:$0xff] %v1004
      %1021 = vst [vmem:[%s172 + $0x60] sm:$0xff] %v1005
      %1022 = vst [vmem:[%s172 + $0x68] sm:$0xff] %v1006
      %1023 = vst [vmem:[%s172 + $0x70] sm:$0xff] %v1007
      %1024 = vst [vmem:[%s172 + $0x78] sm:$0xff] %v1008
      %s1025 = smul.u32 16, %s14
      %p1026 = scmp.lt.s32.totalorder %s1025, 31
      %s1027 = scalar_select %p1026, %s1025, 31
      %s1028 = smul.addr %s1027, 8
      %s1029 = scalar_lea.vmem %s3, %s1028
      // Predicated region
      $region33: #{encode_process_decode.5} parent=31 // pred_check
        %p1030 = pneg %p100
      $region34: #{encode_process_decode.5} parent=31 // pred_check_branch
        %1032 = sbr.rel (%p1030) target = $region36
      $region35: #{encode_process_decode.5} parent=31 // pred_region
        %s1033 = smul.u32 16, %s14
      $region36: #{encode_process_decode.5} parent=31 // pred_fallthru
        _
    $region32: #{encode_process_decode.5} parent=5 // pred_fallthru
      _
    %p1034 = scmp.le.s32.totalorder 2, %s9
    // Predicated region
    $region37: #{encode_process_decode.5} parent=5 // pred_check
      %p1035 = pneg %p1034
    $region38: #{encode_process_decode.5} parent=5 // pred_check_branch
      %1037 = sbr.rel (%p1035) target = $region40
    $region39: #{encode_process_decode.5} parent=5 // pred_region
      %s1038 = ssub.s32 %s9, 2
      // Predicated region
      $region41: #{encode_process_decode.5} parent=39 // pred_check
        %p1039 = pneg %p106
      $region42: #{encode_process_decode.5} parent=39 // pred_check_branch
        %1041 = sbr.rel (%p1039) target = $region44
      $region43: #{encode_process_decode.5} parent=39 // pred_region
        %s1042 = smul.u32 16, %s15
        %p1043 = scmp.lt.s32.totalorder %s1042, 31
        %s1044 = scalar_select %p1043, %s1042, 31
        %s1045 = smul.addr %s1044, 8
        %s1046 = scalar_lea.vmem %s3, %s1045
      $region44: #{encode_process_decode.5} parent=39 // pred_fallthru
        _
    $region40: #{encode_process_decode.5} parent=5 // pred_fallthru
      _
  $region6: #{encode_process_decode.5} parent=0 // loop_footer
    %s13 = sadd.s32 1, %s9
  $region7: #{encode_process_decode.5} parent=0 // loop_footer_branch
    %8 = sbr.rel target = $region3
  $region8: #{encode_process_decode.5} parent=0 // loop_exit
    _

// kernel: encode_process_decode.4
$region0: #{encode_process_decode.4}
  #allocation0 [shape = 'u32[]', space=smem, size = 0x4, offset = 0x4, fixed_abs, tag = 'smem constant byte address 0x4 - core index']
  #allocation1 [shape = 'u32[144,128]{1,0:T(1,128)}', space=vmem, size = 0x12000, scoped, tag = 'internal scratch']
  %s0 = inlined_call_operand.vmem [shape: f32[128,16], index: 0, kind: input, shape index: {}]
  %s1 = inlined_call_operand.vmem [shape: f32[272,128], index: 1, kind: input, shape index: {}]
  %s2 = inlined_call_operand.vmem [shape: f32[5,128], index: 2, kind: input, shape index: {}]
  %s3 = inlined_call_operand.vmem [shape: f32[128,128], index: 3, kind: output, shape index: {}]
  %s4 = sld [smem:[#allocation0]]
  $region45: #{encode_process_decode.4} parent=0
    _
  %s6 = ssub.s32 1, %s4
  %s7 = scalar_select 0, %s6, %s4
  loop: start=0, step=1, limit=4
  $region2: #{encode_process_decode.4} parent=0 // loop_pre_header
    _
  $region3: #{encode_process_decode.4} parent=0 // loop_header
    %s9 = sphi 0, %s13
    %p10 = scmp.ge.s32.totalorder %s9, 4
    %s19 = sphi 0, %s21
    %s22 = sphi 0, %s19
    %s23 = sphi 0, %s22
    %s39 = sphi 0, %s23
    %s43 = sphi 0, %s43
    %s45 = sphi 0, %s43
    %s46 = sphi 0, %s45
    %s60 = sphi 0, %s46
    %s64 = sphi 0, %s64
    %s66 = sphi 0, %s64
    %s67 = sphi 0, %s66
    %s81 = sphi 0, %s67
    %s87 = sphi 0, %s89
    %s90 = sphi 0, %s87
    %s91 = sphi 0, %s90
    %s107 = sphi 0, %s91
  $region4: #{encode_process_decode.4} parent=0 // loop_header_branch
    %12 = sbr.rel (%p10) target = $region8
  $region5: #{encode_process_decode.4} parent=0 // loop_body
    %s14 = ssub.s32 %s9, 1
    %s15 = ssub.s32 %s9, 2
    %s16 = sadd.s32 %s9, 1
    %s17 = ssub.s32 %s9, %s16
    %p18 = scmp.eq.s32.totalorder %s17, 0
    %s20 = sadd.s32 %s19, 1
    %s21 = scalar_select %p18, %s19, %s20
    %p24 = pneg %p18
    %p25 = scmp.eq.s32.totalorder %s9, 1
    %p26 = por %p24, %p25
    %p27 = scmp.ne.s32.totalorder %s19, %s22
    %p28 = scmp.eq.s32.totalorder %s9, 0
    %p29 = por %p27, %p28
    %p30 = scmp.ne.s32.totalorder %s19, %s22
    %p31 = scmp.eq.s32.totalorder %s14, 1
    %p32 = por %p30, %p31
    %p33 = scmp.ne.s32.totalorder %s22, %s23
    %p34 = scmp.eq.s32.totalorder %s14, 0
    %p35 = por %p33, %p34
    %p36 = scmp.ne.s32.totalorder %s22, %s23
    %p37 = scmp.eq.s32.totalorder %s15, 1
    %p38 = por %p36, %p37
    %p40 = scmp.ne.s32.totalorder %s23, %s39
    %p41 = scmp.eq.s32.totalorder %s15, 0
    %p42 = por %p40, %p41
    %s44 = sadd.s32 %s43, 1
    %p47 = scmp.eq.s32.totalorder %s9, 1
    %p48 = scmp.ne.s32.totalorder %s43, %s45
    %p49 = scmp.eq.s32.totalorder %s9, 0
    %p50 = por %p48, %p49
    %p51 = scmp.ne.s32.totalorder %s43, %s45
    %p52 = scmp.eq.s32.totalorder %s14, 1
    %p53 = por %p51, %p52
    %p54 = scmp.ne.s32.totalorder %s45, %s46
    %p55 = scmp.eq.s32.totalorder %s14, 0
    %p56 = por %p54, %p55
    %p57 = scmp.ne.s32.totalorder %s45, %s46
    %p58 = scmp.eq.s32.totalorder %s15, 1
    %p59 = por %p57, %p58
    %p61 = scmp.ne.s32.totalorder %s46, %s60
    %p62 = scmp.eq.s32.totalorder %s15, 0
    %p63 = por %p61, %p62
    %s65 = sadd.s32 %s64, 1
    %p68 = scmp.eq.s32.totalorder %s9, 1
    %p69 = scmp.ne.s32.totalorder %s64, %s66
    %p70 = scmp.eq.s32.totalorder %s9, 0
    %p71 = por %p69, %p70
    %p72 = scmp.ne.s32.totalorder %s64, %s66
    %p73 = scmp.eq.s32.totalorder %s14, 1
    %p74 = por %p72, %p73
    %p75 = scmp.ne.s32.totalorder %s66, %s67
    %p76 = scmp.eq.s32.totalorder %s14, 0
    %p77 = por %p75, %p76
    %p78 = scmp.ne.s32.totalorder %s66, %s67
    %p79 = scmp.eq.s32.totalorder %s15, 1
    %p80 = por %p78, %p79
    %p82 = scmp.ne.s32.totalorder %s67, %s81
    %p83 = scmp.eq.s32.totalorder %s15, 0
    %p84 = por %p82, %p83
    %s85 = ssub.s32 %s9, %s16
    %p86 = scmp.eq.s32.totalorder %s85, 0
    %s88 = sadd.s32 %s87, 1
    %s89 = scalar_select %p86, %s87, %s88
    %p92 = pneg %p86
    %p93 = scmp.eq.s32.totalorder %s9, 1
    %p94 = por %p92, %p93
    %p95 = scmp.ne.s32.totalorder %s87, %s90
    %p96 = scmp.eq.s32.totalorder %s9, 0
    %p97 = por %p95, %p96
    %p98 = scmp.ne.s32.totalorder %s87, %s90
    %p99 = scmp.eq.s32.totalorder %s14, 1
    %p100 = por %p98, %p99
    %p101 = scmp.ne.s32.totalorder %s90, %s91
    %p102 = scmp.eq.s32.totalorder %s14, 0
    %p103 = por %p101, %p102
    %p104 = scmp.ne.s32.totalorder %s90, %s91
    %p105 = scmp.eq.s32.totalorder %s15, 1
    %p106 = por %p104, %p105
    %p108 = scmp.ne.s32.totalorder %s91, %s107
    %p109 = scmp.eq.s32.totalorder %s15, 0
    %p110 = por %p108, %p109
    %p111 = scmp.le.s32.totalorder 1, %s9
    %p112 = scmp.lt.s32.totalorder %s9, 3
    %p113 = pnand %p111, %p112
    %p114 = pneg %p113
    // Predicated region
    $region9: #{encode_process_decode.4} parent=5 // pred_check
      _
    $region10: #{encode_process_decode.4} parent=5 // pred_check_branch
      %116 = sbr.rel (%p113) target = $region12
    $region11: #{encode_process_decode.4} parent=5 // pred_region
      %s117 = ssub.s32 %s9, 1
      // Predicated region
      $region13: #{encode_process_decode.4} parent=11 // pred_check
        %p118 = pneg %p56
      $region14: #{encode_process_decode.4} parent=11 // pred_check_branch
        %120 = sbr.rel (%p118) target = $region16
      $region15: #{encode_process_decode.4} parent=11 // pred_region
        _
      $region16: #{encode_process_decode.4} parent=11 // pred_fallthru
        _
      // Predicated region
      $region17: #{encode_process_decode.4} parent=11 // pred_check
        %p121 = pneg %p77
      $region18: #{encode_process_decode.4} parent=11 // pred_check_branch
        %123 = sbr.rel (%p121) target = $region20
      $region19: #{encode_process_decode.4} parent=11 // pred_region
        _
      $region20: #{encode_process_decode.4} parent=11 // pred_fallthru
        _
    $region12: #{encode_process_decode.4} parent=5 // pred_fallthru
      _
    %p124 = scmp.lt.s32.totalorder %s9, 2
    // Predicated region
    $region21: #{encode_process_decode.4} parent=5 // pred_check
      %p125 = pneg %p124
    $region22: #{encode_process_decode.4} parent=5 // pred_check_branch
      %127 = sbr.rel (%p125) target = $region24
    $region23: #{encode_process_decode.4} parent=5 // pred_region
      // Predicated region
      $region25: #{encode_process_decode.4} parent=23 // pred_check
        %p128 = pneg %p29
      $region26: #{encode_process_decode.4} parent=23 // pred_check_branch
        %130 = sbr.rel (%p128) target = $region28
      $region27: #{encode_process_decode.4} parent=23 // pred_region
        %s131 = smul.u32 8, %s9
        %p132 = scmp.lt.s32.totalorder %s131, 15
        %s133 = scalar_select %p132, %s131, 15
        %s134 = smul.addr %s133, 8
        %s135 = scalar_lea.vmem %s0, %s134
        %s136 = smul.u32 8, %s9
      $region28: #{encode_process_decode.4} parent=23 // pred_fallthru
        _
    $region24: #{encode_process_decode.4} parent=5 // pred_fallthru
      _
    %p137 = scmp.le.s32.totalorder 1, %s9
    %p138 = scmp.lt.s32.totalorder %s9, 3
    %p139 = pnand %p137, %p138
    %p140 = pneg %p139
    // Predicated region
    $region29: #{encode_process_decode.4} parent=5 // pred_check
      _
    $region30: #{encode_process_decode.4} parent=5 // pred_check_branch
      %142 = sbr.rel (%p139) target = $region32
    $region31: #{encode_process_decode.4} parent=5 // pred_region
      %s143 = ssub.s32 %s9, 1
      %s144 = smul.u32 8, %s14
      %p145 = scmp.lt.s32.totalorder %s144, 15
      %s146 = scalar_select %p145, %s144, 15
      %s147 = smul.addr %s146, 8
      %s148 = scalar_lea.vmem %s0, %s147
      %p149 = pneg %p35
      %p150 = pneg %p32
      %p151 = pneg %p56
      %p152 = pneg %p53
      %p153 = pneg %p77
      %p154 = pneg %p74
      %p155 = pneg %p103
      %p156 = pneg %p100
      %s157 = smul.u32 8, %s14
      %p158 = scmp.lt.s32.totalorder %s157, 15
      %s159 = scalar_select %p158, %s157, 15
      %s160 = smul.addr %s159, 8
      %s161 = scalar_lea.vmem %s3, %s160
      %s162 = smul.u32 8, %s14
      %p163 = scmp.lt.s32.totalorder %s162, 15
      %s164 = scalar_select %p163, %s162, 15
      %s165 = smul.addr %s164, 8
      %s166 = scalar_lea.vmem %s0, %s165
      %s167 = smul.u32 8, %s14
      %s168 = smul.u32 8, %s14
      %p169 = scmp.lt.s32.totalorder %s168, 15
      %s170 = scalar_select %p169, %s168, 15
      %s171 = smul.addr %s170, 8
      %s172 = scalar_lea.vmem %s3, %s171
      %s173 = smul.u32 8, %s14
      %v174 = vld [vmem:[%s166] sm:$0xff]
      %v175 = vld [vmem:[%s166 + $0x8] sm:$0xff]
      %v176 = vld [vmem:[%s166 + $0x10] sm:$0xff]
      %v177 = vld [vmem:[%s166 + $0x18] sm:$0xff]
      %v178 = vld [vmem:[%s166 + $0x20] sm:$0xff]
      %v179 = vld [vmem:[%s166 + $0x28] sm:$0xff]
      %v180 = vld [vmem:[%s166 + $0x30] sm:$0xff]
      %v181 = vld [vmem:[%s166 + $0x38] sm:$0xff]
      %v182 = vld [vmem:[%s1] sm:$0xff]
      %v183 = vld [vmem:[%s1 + $0x8] sm:$0xff]
      %v184 = vld [vmem:[%s2] sm:$0x1]
      %v185 = vlaneseq
      %v186 = vshrl.u32 %v185, 7
      %v187 = vsub.s32 0, %v186
      %v188 = vrot.slane %v184, %v187
      %vm189 = vcmask 130048
      %v191 = vsel %vm189, %v174, 0
      %v194 = vsel %vm189, %v175, 0
      %v197 = vsel %vm189, %v176, 0
      %v200 = vsel %vm189, %v177, 0
      %v203 = vsel %vm189, %v178, 0
      %v206 = vsel %vm189, %v179, 0
      %v209 = vsel %vm189, %v180, 0
      %v212 = vsel %vm189, %v181, 0
      %214 = vmatprep.subr.mxu0 0.0
      %215 = vmatpush1.msra.mxu0 %v182
      %216 = vmatprep.subr.mxu0 0.0
      %217 = vmatpush1.msra.mxu0 %v183
      %218 = vmatprep.subr.mxu0 0.0
      %219 = vmatpush1.msra.mxu0 0.0
      %220 = vmatprep.subr.mxu0 0.0
      %221 = vmatpush1.msra.mxu0 0.0
      %222 = vmatprep.subr.mxu0 0.0
      %223 = vmatpush1.msra.mxu0 0.0
      %224 = vmatprep.subr.mxu0 0.0
      %225 = vmatpush1.msra.mxu0 0.0
      %226 = vmatprep.subr.mxu0 0.0
      %227 = vmatpush1.msra.mxu0 0.0
      %228 = vmatprep.subr.mxu0 0.0
      %229 = vmatpush1.msra.mxu0 0.0
      %230 = vmatprep.subr.mxu0 0.0
      %231 = vmatpush1.msra.mxu0 0.0
      %232 = vmatprep.subr.mxu0 0.0
      %233 = vmatpush1.msra.mxu0 0.0
      %234 = vmatprep.subr.mxu0 0.0
      %235 = vmatpush1.msra.mxu0 0.0
      %236 = vmatprep.subr.mxu0 0.0
      %237 = vmatpush1.msra.mxu0 0.0
      %238 = vmatprep.subr.mxu0 0.0
      %239 = vmatpush1.msra.mxu0 0.0
      %240 = vmatprep.subr.mxu0 0.0
      %241 = vmatpush1.msra.mxu0 0.0
      %242 = vmatprep.subr.mxu0 0.0
      %243 = vmatpush1.msra.mxu0 0.0
      %244 = vmatprep.subr.mxu0 0.0
      %245 = vmatpush1.msra.mxu0 0.0
      %246 = vmatprep.subr.mxu0 0.0
      %247 = vmatpush1.msra.mxu0 0.0
      %248 = vmatprep.subr.mxu0 0.0
      %249 = vmatpush1.msra.mxu0 0.0
      %250 = vmatprep.subr.mxu0 0.0
      %251 = vmatpush1.msra.mxu0 0.0
      %252 = vmatprep.subr.mxu0 0.0
      %253 = vmatpush1.msra.mxu0 0.0
      %254 = vmatprep.subr.mxu0 0.0
      %255 = vmatpush1.msra.mxu0 0.0
      %256 = vmatprep.subr.mxu0 0.0
      %257 = vmatpush1.msra.mxu0 0.0
      %258 = vmatprep.subr.mxu0 0.0
      %259 = vmatpush1.msra.mxu0 0.0
      %260 = vmatprep.subr.mxu0 0.0
      %261 = vmatpush1.msra.mxu0 0.0
      %262 = vmatprep.subr.mxu0 0.0
      %263 = vmatpush1.msra.mxu0 0.0
      %264 = vmatprep.subr.mxu0 0.0
      %265 = vmatpush1.msra.mxu0 0.0
      %266 = vmatprep.subr.mxu0 0.0
      %267 = vmatpush1.msra.mxu0 0.0
      %268 = vmatprep.subr.mxu0 0.0
      %269 = vmatpush1.msra.mxu0 0.0
      %270 = vmatprep.subr.mxu0 0.0
      %271 = vmatpush1.msra.mxu0 0.0
      %272 = vmatprep.subr.mxu0 0.0
      %273 = vmatpush1.msra.mxu0 0.0
      %274 = vmatprep.subr.mxu0 0.0
      %275 = vmatpush1.msra.mxu0 0.0
      %276 = vmatprep.subr.mxu0 0.0
      %277 = vmatpush1.msra.mxu0 0.0
      %278 = vmatprep.mubr.f32.mxu0 0.0
      %279 = vmatmul.mubr.f32.gmra.mrb[0].mxu0 %v191
      %v280 = vpop.f32.mrb[0].mxu0
      %v281 = vadd.f32 %v188, %v280
      %v282 = vpop.f32.mrb[0].mxu0
      %283 = vmatprep.mubr.f32.mxu0 0.0
      %284 = vmatmul.mubr.f32.gmra.mrb[0].mxu0 %v194
      %v285 = vpop.f32.mrb[0].mxu0
      %v286 = vadd.f32 %v188, %v285
      %v287 = vpop.f32.mrb[0].mxu0
      %288 = vmatprep.mubr.f32.mxu0 0.0
      %289 = vmatmul.mubr.f32.gmra.mrb[0].mxu0 %v197
      %v290 = vpop.f32.mrb[0].mxu0
      %v291 = vadd.f32 %v188, %v290
      %v292 = vpop.f32.mrb[0].mxu0
      %293 = vmatprep.mubr.f32.mxu0 0.0
      %294 = vmatmul.mubr.f32.gmra.mrb[0].mxu0 %v200
      %v295 = vpop.f32.mrb[0].mxu0
      %v296 = vadd.f32 %v188, %v295
      %v297 = vpop.f32.mrb[0].mxu0
      %298 = vmatprep.mubr.f32.mxu0 0.0
      %299 = vmatmul.mubr.f32.gmra.mrb[0].mxu0 %v203
      %v300 = vpop.f32.mrb[0].mxu0
      %v301 = vadd.f32 %v188, %v300
      %v302 = vpop.f32.mrb[0].mxu0
      %303 = vmatprep.mubr.f32.mxu0 0.0
      %304 = vmatmul.mubr.f32.gmra.mrb[0].mxu0 %v206
      %v305 = vpop.f32.mrb[0].mxu0
      %v306 = vadd.f32 %v188, %v305
      %v307 = vpop.f32.mrb[0].mxu0
      %308 = vmatprep.mubr.f32.mxu0 0.0
      %309 = vmatmul.mubr.f32.gmra.mrb[0].mxu0 %v209
      %v310 = vpop.f32.mrb[0].mxu0
      %v311 = vadd.f32 %v188, %v310
      %v312 = vpop.f32.mrb[0].mxu0
      %313 = vmatprep.mubr.f32.mxu0 0.0
      %314 = vmatmul.mubr.f32.gmra.mrb[0].mxu0 %v212
      %v315 = vpop.f32.mrb[0].mxu0
      %v316 = vadd.f32 %v188, %v315
      %v317 = vpop.f32.mrb[0].mxu0
      %318 = vdwg.mxu0
      %v319 = vmax.f32 %v281, 0.0
      %v320 = vmax.f32 %v286, 0.0
      %v321 = vmax.f32 %v291, 0.0
      %v322 = vmax.f32 %v296, 0.0
      %v323 = vmax.f32 %v301, 0.0
      %v324 = vmax.f32 %v306, 0.0
      %v325 = vmax.f32 %v311, 0.0
      %v326 = vmax.f32 %v316, 0.0
      %v327 = vld [vmem:[%s1 + $0x10] sm:$0xff]
      %v328 = vld [vmem:[%s1 + $0x18] sm:$0xff]
      %v329 = vld [vmem:[%s1 + $0x20] sm:$0xff]
      %v330 = vld [vmem:[%s1 + $0x28] sm:$0xff]
      %v331 = vld [vmem:[%s1 + $0x30] sm:$0xff]
      %v332 = vld [vmem:[%s1 + $0x38] sm:$0xff]
      %v333 = vld [vmem:[%s1 + $0x40] sm:$0xff]
      %v334 = vld [vmem:[%s1 + $0x48] sm:$0xff]
      %v335 = vld [vmem:[%s1 + $0x50] sm:$0xff]
      %v336 = vld [vmem:[%s1 + $0x58] sm:$0xff]
      %v337 = vld [vmem:[%s1 + $0x60] sm:$0xff]
      %v338 = vld [vmem:[%s1 + $0x68] sm:$0xff]
      %v339 = vld [vmem:[%s1 + $0x70] sm:$0xff]
      %v340 = vld [vmem:[%s1 + $0x78] sm:$0xff]
      %v341 = vld [vmem:[%s1 + $0x80] sm:$0xff]
      %v342 = vld [vmem:[%s1 + $0x88] sm:$0xff]
      %v343 = vld [vmem:[%s2 + $0x1] sm:$0x1]
      %v344 = vlaneseq
      %v345 = vshrl.u32 %v344, 7
      %v346 = vsub.s32 0, %v345
      %v347 = vrot.slane %v343, %v346
      %348 = vmatprep.subr.mxu0 0.0
      %349 = vmatpush1.msra.mxu0 %v327
      %350 = vmatprep.subr.mxu0 0.0
      %351 = vmatpush1.msra.mxu0 %v328
      %352 = vmatprep.subr.mxu0 0.0
      %353 = vmatpush1.msra.mxu0 %v329
      %354 = vmatprep.subr.mxu0 0.0
      %355 = vmatpush1.msra.mxu0 %v330
      %356 = vmatprep.subr.mxu0 0.0
      %357 = vmatpush1.msra.mxu0 %v331
      %358 = vmatprep.subr.mxu0 0.0
      %359 = vmatpush1.msra.mxu0 %v332
      %360 = vmatprep.subr.mxu0 0.0
      %361 = vmatpush1.msra.mxu0 %v333
      %362 = vmatprep.subr.mxu0 0.0
      %363 = vmatpush1.msra.mxu0 %v334
      %364 = vmatprep.subr.mxu0 0.0
      %365 = vmatpush1.msra.mxu0 %v335
      %366 = vmatprep.subr.mxu0 0.0
      %367 = vmatpush1.msra.mxu0 %v336
      %368 = vmatprep.subr.mxu0 0.0
      %369 = vmatpush1.msra.mxu0 %v337
      %370 = vmatprep.subr.mxu0 0.0
      %371 = vmatpush1.msra.mxu0 %v338
      %372 = vmatprep.subr.mxu0 0.0
      %373 = vmatpush1.msra.mxu0 %v339
      %374 = vmatprep.subr.mxu0 0.0
      %375 = vmatpush1.msra.mxu0 %v340
      %376 = vmatprep.subr.mxu0 0.0
      %377 = vmatpush1.msra.mxu0 %v341
      %378 = vmatprep.subr.mxu0 0.0
      %379 = vmatpush1.msra.mxu0 %v342
      %380 = vmatprep.subr.mxu0 0.0
      %381 = vmatpush1.msra.mxu0 0.0
      %382 = vmatprep.subr.mxu0 0.0
      %383 = vmatpush1.msra.mxu0 0.0
      %384 = vmatprep.subr.mxu0 0.0
      %385 = vmatpush1.msra.mxu0 0.0
      %386 = vmatprep.subr.mxu0 0.0
      %387 = vmatpush1.msra.mxu0 0.0
      %388 = vmatprep.subr.mxu0 0.0
      %389 = vmatpush1.msra.mxu0 0.0
      %390 = vmatprep.subr.mxu0 0.0
      %391 = vmatpush1.msra.mxu0 0.0
      %392 = vmatprep.subr.mxu0 0.0
      %393 = vmatpush1.msra.mxu0 0.0
      %394 = vmatprep.subr.mxu0 0.0
      %395 = vmatpush1.msra.mxu0 0.0
      %396 = vmatprep.subr.mxu0 0.0
      %397 = vmatpush1.msra.mxu0 0.0
      %398 = vmatprep.subr.mxu0 0.0
      %399 = vmatpush1.msra.mxu0 0.0
      %400 = vmatprep.subr.mxu0 0.0
      %401 = vmatpush1.msra.mxu0 0.0
      %402 = vmatprep.subr.mxu0 0.0
      %403 = vmatpush1.msra.mxu0 0.0
      %404 = vmatprep.subr.mxu0 0.0
      %405 = vmatpush1.msra.mxu0 0.0
      %406 = vmatprep.subr.mxu0 0.0
      %407 = vmatpush1.msra.mxu0 0.0
      %408 = vmatprep.subr.mxu0 0.0
      %409 = vmatpush1.msra.mxu0 0.0
      %410 = vmatprep.subr.mxu0 0.0
      %411 = vmatpush1.msra.mxu0 0.0
      %412 = vmatprep.mubr.f32.mxu0 0.0
      %413 = vmatmul.mubr.f32.gmra.mrb[0].mxu0 %v319
      %v414 = vpop.f32.mrb[0].mxu0
      %v415 = vadd.f32 %v347, %v414
      %v416 = vpop.f32.mrb[0].mxu0
      %417 = vmatprep.mubr.f32.mxu0 0.0
      %418 = vmatmul.mubr.f32.gmra.mrb[0].mxu0 %v320
      %v419 = vpop.f32.mrb[0].mxu0
      %v420 = vadd.f32 %v347, %v419
      %v421 = vpop.f32.mrb[0].mxu0
      %422 = vmatprep.mubr.f32.mxu0 0.0
      %423 = vmatmul.mubr.f32.gmra.mrb[0].mxu0 %v321
      %v424 = vpop.f32.mrb[0].mxu0
      %v425 = vadd.f32 %v347, %v424
      %v426 = vpop.f32.mrb[0].mxu0
      %427 = vmatprep.mubr.f32.mxu0 0.0
      %428 = vmatmul.mubr.f32.gmra.mrb[0].mxu0 %v322
      %v429 = vpop.f32.mrb[0].mxu0
      %v430 = vadd.f32 %v347, %v429
      %v431 = vpop.f32.mrb[0].mxu0
      %432 = vmatprep.mubr.f32.mxu0 0.0
      %433 = vmatmul.mubr.f32.gmra.mrb[0].mxu0 %v323
      %v434 = vpop.f32.mrb[0].mxu0
      %v435 = vadd.f32 %v347, %v434
      %v436 = vpop.f32.mrb[0].mxu0
      %437 = vmatprep.mubr.f32.mxu0 0.0
      %438 = vmatmul.mubr.f32.gmra.mrb[0].mxu0 %v324
      %v439 = vpop.f32.mrb[0].mxu0
      %v440 = vadd.f32 %v347, %v439
      %v441 = vpop.f32.mrb[0].mxu0
      %442 = vmatprep.mubr.f32.mxu0 0.0
      %443 = vmatmul.mubr.f32.gmra.mrb[0].mxu0 %v325
      %v444 = vpop.f32.mrb[0].mxu0
      %v445 = vadd.f32 %v347, %v444
      %v446 = vpop.f32.mrb[0].mxu0
      %447 = vmatprep.mubr.f32.mxu0 0.0
      %448 = vmatmul.mubr.f32.gmra.mrb[0].mxu0 %v326
      %v449 = vpop.f32.mrb[0].mxu0
      %v450 = vadd.f32 %v347, %v449
      %v451 = vpop.f32.mrb[0].mxu0
      %452 = vdwg.mxu0
      %v453 = vmax.f32 %v415, 0.0
      %v454 = vmax.f32 %v420, 0.0
      %v455 = vmax.f32 %v425, 0.0
      %v456 = vmax.f32 %v430, 0.0
      %v457 = vmax.f32 %v435, 0.0
      %v458 = vmax.f32 %v440, 0.0
      %v459 = vmax.f32 %v445, 0.0
      %v460 = vmax.f32 %v450, 0.0
      %v461 = vld [vmem:[%s1 + $0x90] sm:$0xff]
      %v462 = vld [vmem:[%s1 + $0x98] sm:$0xff]
      %v463 = vld [vmem:[%s1 + $0xa0] sm:$0xff]
      %v464 = vld [vmem:[%s1 + $0xa8] sm:$0xff]
      %v465 = vld [vmem:[%s1 + $0xb0] sm:$0xff]
      %v466 = vld [vmem:[%s1 + $0xb8] sm:$0xff]
      %v467 = vld [vmem:[%s1 + $0xc0] sm:$0xff]
      %v468 = vld [vmem:[%s1 + $0xc8] sm:$0xff]
      %v469 = vld [vmem:[%s1 + $0xd0] sm:$0xff]
      %v470 = vld [vmem:[%s1 + $0xd8] sm:$0xff]
      %v471 = vld [vmem:[%s1 + $0xe0] sm:$0xff]
      %v472 = vld [vmem:[%s1 + $0xe8] sm:$0xff]
      %v473 = vld [vmem:[%s1 + $0xf0] sm:$0xff]
      %v474 = vld [vmem:[%s1 + $0xf8] sm:$0xff]
      %v475 = vld [vmem:[%s1 + $0x100] sm:$0xff]
      %v476 = vld [vmem:[%s1 + $0x108] sm:$0xff]
      %v477 = vld [vmem:[%s2 + $0x2] sm:$0x1]
      %v478 = vlaneseq
      %v479 = vshrl.u32 %v478, 7
      %v480 = vsub.s32 0, %v479
      %v481 = vrot.slane %v477, %v480
      %482 = vmatprep.subr.mxu0 0.0
      %483 = vmatpush1.msra.mxu0 %v461
      %484 = vmatprep.subr.mxu0 0.0
      %485 = vmatpush1.msra.mxu0 %v462
      %486 = vmatprep.subr.mxu0 0.0
      %487 = vmatpush1.msra.mxu0 %v463
      %488 = vmatprep.subr.mxu0 0.0
      %489 = vmatpush1.msra.mxu0 %v464
      %490 = vmatprep.subr.mxu0 0.0
      %491 = vmatpush1.msra.mxu0 %v465
      %492 = vmatprep.subr.mxu0 0.0
      %493 = vmatpush1.msra.mxu0 %v466
      %494 = vmatprep.subr.mxu0 0.0
      %495 = vmatpush1.msra.mxu0 %v467
      %496 = vmatprep.subr.mxu0 0.0
      %497 = vmatpush1.msra.mxu0 %v468
      %498 = vmatprep.subr.mxu0 0.0
      %499 = vmatpush1.msra.mxu0 %v469
      %500 = vmatprep.subr.mxu0 0.0
      %501 = vmatpush1.msra.mxu0 %v470
      %502 = vmatprep.subr.mxu0 0.0
      %503 = vmatpush1.msra.mxu0 %v471
      %504 = vmatprep.subr.mxu0 0.0
      %505 = vmatpush1.msra.mxu0 %v472
      %506 = vmatprep.subr.mxu0 0.0
      %507 = vmatpush1.msra.mxu0 %v473
      %508 = vmatprep.subr.mxu0 0.0
      %509 = vmatpush1.msra.mxu0 %v474
      %510 = vmatprep.subr.mxu0 0.0
      %511 = vmatpush1.msra.mxu0 %v475
      %512 = vmatprep.subr.mxu0 0.0
      %513 = vmatpush1.msra.mxu0 %v476
      %514 = vmatprep.subr.mxu0 0.0
      %515 = vmatpush1.msra.mxu0 0.0
      %516 = vmatprep.subr.mxu0 0.0
      %517 = vmatpush1.msra.mxu0 0.0
      %518 = vmatprep.subr.mxu0 0.0
      %519 = vmatpush1.msra.mxu0 0.0
      %520 = vmatprep.subr.mxu0 0.0
      %521 = vmatpush1.msra.mxu0 0.0
      %522 = vmatprep.subr.mxu0 0.0
      %523 = vmatpush1.msra.mxu0 0.0
      %524 = vmatprep.subr.mxu0 0.0
      %525 = vmatpush1.msra.mxu0 0.0
      %526 = vmatprep.subr.mxu0 0.0
      %527 = vmatpush1.msra.mxu0 0.0
      %528 = vmatprep.subr.mxu0 0.0
      %529 = vmatpush1.msra.mxu0 0.0
      %530 = vmatprep.subr.mxu0 0.0
      %531 = vmatpush1.msra.mxu0 0.0
      %532 = vmatprep.subr.mxu0 0.0
      %533 = vmatpush1.msra.mxu0 0.0
      %534 = vmatprep.subr.mxu0 0.0
      %535 = vmatpush1.msra.mxu0 0.0
      %536 = vmatprep.subr.mxu0 0.0
      %537 = vmatpush1.msra.mxu0 0.0
      %538 = vmatprep.subr.mxu0 0.0
      %539 = vmatpush1.msra.mxu0 0.0
      %540 = vmatprep.subr.mxu0 0.0
      %541 = vmatpush1.msra.mxu0 0.0
      %542 = vmatprep.subr.mxu0 0.0
      %543 = vmatpush1.msra.mxu0 0.0
      %544 = vmatprep.subr.mxu0 0.0
      %545 = vmatpush1.msra.mxu0 0.0
      %546 = vmatprep.mubr.f32.mxu0 0.0
      %547 = vmatmul.mubr.f32.gmra.mrb[0].mxu0 %v453
      %v548 = vpop.f32.mrb[0].mxu0
      %v549 = vadd.f32 %v481, %v548
      %v550 = vpop.f32.mrb[0].mxu0
      %551 = vmatprep.mubr.f32.mxu0 0.0
      %552 = vmatmul.mubr.f32.gmra.mrb[0].mxu0 %v454
      %v553 = vpop.f32.mrb[0].mxu0
      %v554 = vadd.f32 %v481, %v553
      %v555 = vpop.f32.mrb[0].mxu0
      %556 = vmatprep.mubr.f32.mxu0 0.0
      %557 = vmatmul.mubr.f32.gmra.mrb[0].mxu0 %v455
      %v558 = vpop.f32.mrb[0].mxu0
      %v559 = vadd.f32 %v481, %v558
      %v560 = vpop.f32.mrb[0].mxu0
      %561 = vmatprep.mubr.f32.mxu0 0.0
      %562 = vmatmul.mubr.f32.gmra.mrb[0].mxu0 %v456
      %v563 = vpop.f32.mrb[0].mxu0
      %v564 = vadd.f32 %v481, %v563
      %v565 = vpop.f32.mrb[0].mxu0
      %566 = vmatprep.mubr.f32.mxu0 0.0
      %567 = vmatmul.mubr.f32.gmra.mrb[0].mxu0 %v457
      %v568 = vpop.f32.mrb[0].mxu0
      %v569 = vadd.f32 %v481, %v568
      %v570 = vpop.f32.mrb[0].mxu0
      %571 = vmatprep.mubr.f32.mxu0 0.0
      %572 = vmatmul.mubr.f32.gmra.mrb[0].mxu0 %v458
      %v573 = vpop.f32.mrb[0].mxu0
      %v574 = vadd.f32 %v481, %v573
      %v575 = vpop.f32.mrb[0].mxu0
      %576 = vmatprep.mubr.f32.mxu0 0.0
      %577 = vmatmul.mubr.f32.gmra.mrb[0].mxu0 %v459
      %v578 = vpop.f32.mrb[0].mxu0
      %v579 = vadd.f32 %v481, %v578
      %v580 = vpop.f32.mrb[0].mxu0
      %581 = vmatprep.mubr.f32.mxu0 0.0
      %582 = vmatmul.mubr.f32.gmra.mrb[0].mxu0 %v460
      %v583 = vpop.f32.mrb[0].mxu0
      %v584 = vadd.f32 %v481, %v583
      %v585 = vpop.f32.mrb[0].mxu0
      %586 = vdwg.mxu0
      %v587 = vld [vmem:[%s2 + $0x3] sm:$0x1]
      %v588 = vld [vmem:[%s2 + $0x4] sm:$0x1]
      %v589 = vlaneseq
      %v590 = vand.u32 %v589, 127
      %vm591 = vcmp.lt.s32.totalorder %v590, 32
      %v592 = vsel %vm591, 1, 0
      %v593 = vcvt.s32.f32 %v592
      %v594 = vmul.f32 %v549, %v593
      %v595 = vmul.f32 %v554, %v593
      %v596 = vmul.f32 %v559, %v593
      %v597 = vmul.f32 %v564, %v593
      %v598 = vmul.f32 %v569, %v593
      %v599 = vmul.f32 %v574, %v593
      %v600 = vmul.f32 %v579, %v593
      %v601 = vmul.f32 %v584, %v593
      %602 = vadd.xlane.f32.xlu0 %v594
      %v603 = vpop.xlane.xlu0 %602
      %604 = vadd.xlane.f32.xlu0 %v595
      %v605 = vpop.xlane.xlu0 %604
      %606 = vadd.xlane.f32.xlu0 %v596
      %v607 = vpop.xlane.xlu0 %606
      %608 = vadd.xlane.f32.xlu0 %v597
      %v609 = vpop.xlane.xlu0 %608
      %610 = vadd.xlane.f32.xlu0 %v598
      %v611 = vpop.xlane.xlu0 %610
      %612 = vadd.xlane.f32.xlu0 %v599
      %v613 = vpop.xlane.xlu0 %612
      %614 = vadd.xlane.f32.xlu0 %v600
      %v615 = vpop.xlane.xlu0 %614
      %616 = vadd.xlane.f32.xlu0 %v601
      %v617 = vpop.xlane.xlu0 %616
      %v618 = vmul.f32 %v603, 0.03125
      %v619 = vmul.f32 %v605, 0.03125
      %v620 = vmul.f32 %v607, 0.03125
      %v621 = vmul.f32 %v609, 0.03125
      %v622 = vmul.f32 %v611, 0.03125
      %v623 = vmul.f32 %v613, 0.03125
      %v624 = vmul.f32 %v615, 0.03125
      %v625 = vmul.f32 %v617, 0.03125
      %v626 = vsub.f32 %v549, %v618
      %v627 = vsub.f32 %v554, %v619
      %v628 = vsub.f32 %v559, %v620
      %v629 = vsub.f32 %v564, %v621
      %v630 = vsub.f32 %v569, %v622
      %v631 = vsub.f32 %v574, %v623
      %v632 = vsub.f32 %v579, %v624
      %v633 = vsub.f32 %v584, %v625
      %v634 = vmul.f32 %v626, %v593
      %v635 = vmul.f32 %v627, %v593
      %v636 = vmul.f32 %v628, %v593
      %v637 = vmul.f32 %v629, %v593
      %v638 = vmul.f32 %v630, %v593
      %v639 = vmul.f32 %v631, %v593
      %v640 = vmul.f32 %v632, %v593
      %v641 = vmul.f32 %v633, %v593
      %v642 = vmul.f32 %v634, %v634
      %v643 = vmul.f32 %v635, %v635
      %v644 = vmul.f32 %v636, %v636
      %v645 = vmul.f32 %v637, %v637
      %v646 = vmul.f32 %v638, %v638
      %v647 = vmul.f32 %v639, %v639
      %v648 = vmul.f32 %v640, %v640
      %v649 = vmul.f32 %v641, %v641
      %650 = vadd.xlane.f32.xlu0 %v642
      %v651 = vpop.xlane.xlu0 %650
      %652 = vadd.xlane.f32.xlu0 %v643
      %v653 = vpop.xlane.xlu0 %652
      %654 = vadd.xlane.f32.xlu0 %v644
      %v655 = vpop.xlane.xlu0 %654
      %656 = vadd.xlane.f32.xlu0 %v645
      %v657 = vpop.xlane.xlu0 %656
      %658 = vadd.xlane.f32.xlu0 %v646
      %v659 = vpop.xlane.xlu0 %658
      %660 = vadd.xlane.f32.xlu0 %v647
      %v661 = vpop.xlane.xlu0 %660
      %662 = vadd.xlane.f32.xlu0 %v648
      %v663 = vpop.xlane.xlu0 %662
      %664 = vadd.xlane.f32.xlu0 %v649
      %v665 = vpop.xlane.xlu0 %664
      %v666 = vmul.f32 %v651, 0.03125
      %v667 = vmul.f32 %v653, 0.03125
      %v668 = vmul.f32 %v655, 0.03125
      %v669 = vmul.f32 %v657, 0.03125
      %v670 = vmul.f32 %v659, 0.03125
      %v671 = vmul.f32 %v661, 0.03125
      %v672 = vmul.f32 %v663, 0.03125
      %v673 = vmul.f32 %v665, 0.03125
      %v674 = vadd.f32 %v666, 1e-05
      %v675 = vadd.f32 %v667, 1e-05
      %v676 = vadd.f32 %v668, 1e-05
      %v677 = vadd.f32 %v669, 1e-05
      %v678 = vadd.f32 %v670, 1e-05
      %v679 = vadd.f32 %v671, 1e-05
      %v680 = vadd.f32 %v672, 1e-05
      %v681 = vadd.f32 %v673, 1e-05
      %v682 = vrsqrt.pop %v674
      %v683 = vrsqrt.pop %v675
      %v684 = vrsqrt.pop %v676
      %v685 = vrsqrt.pop %v677
      %v686 = vrsqrt.pop %v678
      %v687 = vrsqrt.pop %v679
      %v688 = vrsqrt.pop %v680
      %v689 = vrsqrt.pop %v681
      %v690 = vmul.f32 %v634, %v682
      %v691 = vmul.f32 %v635, %v683
      %v692 = vmul.f32 %v636, %v684
      %v693 = vmul.f32 %v637, %v685
      %v694 = vmul.f32 %v638, %v686
      %v695 = vmul.f32 %v639, %v687
      %v696 = vmul.f32 %v640, %v688
      %v697 = vmul.f32 %v641, %v689
      %v698 = vlaneseq
      %v699 = vshrl.u32 %v698, 7
      %v700 = vsub.s32 0, %v699
      %v701 = vrot.slane %v587, %v700
      %v702 = vmul.f32 %v690, %v701
      %v703 = vmul.f32 %v691, %v701
      %v704 = vmul.f32 %v692, %v701
      %v705 = vmul.f32 %v693, %v701
      %v706 = vmul.f32 %v694, %v701
      %v707 = vmul.f32 %v695, %v701
      %v708 = vmul.f32 %v696, %v701
      %v709 = vmul.f32 %v697, %v701
      %v710 = vlaneseq
      %v711 = vshrl.u32 %v710, 7
      %v712 = vsub.s32 0, %v711
      %v713 = vrot.slane %v588, %v712
      %v714 = vadd.f32 %v702, %v713
      %v715 = vadd.f32 %v703, %v713
      %v716 = vadd.f32 %v704, %v713
      %v717 = vadd.f32 %v705, %v713
      %v718 = vadd.f32 %v706, %v713
      %v719 = vadd.f32 %v707, %v713
      %v720 = vadd.f32 %v708, %v713
      %v721 = vadd.f32 %v709, %v713
      %722 = vst [vmem:[%s172] sm:$0xff] %v714
      %723 = vst [vmem:[%s172 + $0x8] sm:$0xff] %v715
      %724 = vst [vmem:[%s172 + $0x10] sm:$0xff] %v716
      %725 = vst [vmem:[%s172 + $0x18] sm:$0xff] %v717
      %726 = vst [vmem:[%s172 + $0x20] sm:$0xff] %v718
      %727 = vst [vmem:[%s172 + $0x28] sm:$0xff] %v719
      %728 = vst [vmem:[%s172 + $0x30] sm:$0xff] %v720
      %729 = vst [vmem:[%s172 + $0x38] sm:$0xff] %v721
      %s730 = smul.u32 8, %s14
      %p731 = scmp.lt.s32.totalorder %s730, 15
      %s732 = scalar_select %p731, %s730, 15
      %s733 = smul.addr %s732, 8
      %s734 = scalar_lea.vmem %s3, %s733
      // Predicated region
      $region33: #{encode_process_decode.4} parent=31 // pred_check
        %p735 = pneg %p100
      $region34: #{encode_process_decode.4} parent=31 // pred_check_branch
        %737 = sbr.rel (%p735) target = $region36
      $region35: #{encode_process_decode.4} parent=31 // pred_region
        %s738 = smul.u32 8, %s14
      $region36: #{encode_process_decode.4} parent=31 // pred_fallthru
        _
    $region32: #{encode_process_decode.4} parent=5 // pred_fallthru
      _
    %p739 = scmp.le.s32.totalorder 2, %s9
    // Predicated region
    $region37: #{encode_process_decode.4} parent=5 // pred_check
      %p740 = pneg %p739
    $region38: #{encode_process_decode.4} parent=5 // pred_check_branch
      %742 = sbr.rel (%p740) target = $region40
    $region39: #{encode_process_decode.4} parent=5 // pred_region
      %s743 = ssub.s32 %s9, 2
      // Predicated region
      $region41: #{encode_process_decode.4} parent=39 // pred_check
        %p744 = pneg %p106
      $region42: #{encode_process_decode.4} parent=39 // pred_check_branch
        %746 = sbr.rel (%p744) target = $region44
      $region43: #{encode_process_decode.4} parent=39 // pred_region
        %s747 = smul.u32 8, %s15
        %p748 = scmp.lt.s32.totalorder %s747, 15
        %s749 = scalar_select %p748, %s747, 15
        %s750 = smul.addr %s749, 8
        %s751 = scalar_lea.vmem %s3, %s750
      $region44: #{encode_process_decode.4} parent=39 // pred_fallthru
        _
    $region40: #{encode_process_decode.4} parent=5 // pred_fallthru
      _
  $region6: #{encode_process_decode.4} parent=0 // loop_footer
    %s13 = sadd.s32 1, %s9
  $region7: #{encode_process_decode.4} parent=0 // loop_footer_branch
    %8 = sbr.rel target = $region3
  $region8: #{encode_process_decode.4} parent=0 // loop_exit
    _

// kernel: encode_process_decode.6
$region0: #{encode_process_decode.6}
  #allocation0 [shape = 'u32[]', space=smem, size = 0x4, offset = 0x4, fixed_abs, tag = 'smem constant byte address 0x4 - core index']
  #allocation1 [shape = 'u32[144,128]{1,0:T(1,128)}', space=vmem, size = 0x12000, scoped, tag = 'internal scratch']
  %s0 = inlined_call_operand.vmem [shape: s32[2,128,1], index: 0, kind: input, shape index: {}]
  %s1 = inlined_call_operand.vmem [shape: s32[2,128,1], index: 1, kind: input, shape index: {}]
  %s2 = inlined_call_operand.vmem [shape: s32[2,1,128], index: 2, kind: input, shape index: {}]
  %s3 = inlined_call_operand.vmem [shape: f32[2,64,128], index: 3, kind: input, shape index: {}]
  %s4 = inlined_call_operand.vmem [shape: f32[2,128,128], index: 4, kind: input, shape index: {}]
  %s5 = inlined_call_operand.vmem [shape: f32[640,128], index: 5, kind: input, shape index: {}]
  %s6 = inlined_call_operand.vmem [shape: f32[5,128], index: 6, kind: input, shape index: {}]
  %s7 = inlined_call_operand.vmem [shape: f32[512,128], index: 7, kind: input, shape index: {}]
  %s8 = inlined_call_operand.vmem [shape: f32[5,128], index: 8, kind: input, shape index: {}]
  %s9 = inlined_call_operand.vmem [shape: f32[2,64,128], index: 9, kind: output, shape index: {0}]
  %s10 = inlined_call_operand.vmem [shape: f32[2,128,128], index: 10, kind: output, shape index: {1}]
  %11 = xla_tuple %s9, %s10
  %s12 = sld [smem:[#allocation0]]
  $region77: #{encode_process_decode.6} parent=0
    _
  %s14 = ssub.s32 1, %s12
  %s15 = scalar_select 0, %s14, %s12
  loop: start=0, step=1, limit=4
  $region2: #{encode_process_decode.6} parent=0 // loop_pre_header
    _
  $region3: #{encode_process_decode.6} parent=0 // loop_header
    %s17 = sphi 0, %s21
    %p18 = scmp.ge.s32.totalorder %s17, 4
    %s27 = sphi 0, %s29
    %s30 = sphi 0, %s27
    %s31 = sphi 0, %s30
    %s47 = sphi 0, %s31
    %s53 = sphi 0, %s55
    %s56 = sphi 0, %s53
    %s57 = sphi 0, %s56
    %s73 = sphi 0, %s57
    %s79 = sphi 0, %s81
    %s82 = sphi 0, %s79
    %s83 = sphi 0, %s82
    %s99 = sphi 0, %s83
    %s105 = sphi 0, %s107
    %s108 = sphi 0, %s105
    %s109 = sphi 0, %s108
    %s125 = sphi 0, %s109
    %s131 = sphi 0, %s133
    %s134 = sphi 0, %s131
    %s135 = sphi 0, %s134
    %s151 = sphi 0, %s135
    %s155 = sphi 0, %s155
    %s157 = sphi 0, %s155
    %s158 = sphi 0, %s157
    %s172 = sphi 0, %s158
    %s176 = sphi 0, %s176
    %s178 = sphi 0, %s176
    %s179 = sphi 0, %s178
    %s193 = sphi 0, %s179
    %s197 = sphi 0, %s197
    %s199 = sphi 0, %s197
    %s200 = sphi 0, %s199
    %s214 = sphi 0, %s200
    %s218 = sphi 0, %s218
    %s220 = sphi 0, %s218
    %s221 = sphi 0, %s220
    %s235 = sphi 0, %s221
    %s241 = sphi 0, %s243
    %s244 = sphi 0, %s241
    %s245 = sphi 0, %s244
    %s261 = sphi 0, %s245
    %s267 = sphi 0, %s269
    %s270 = sphi 0, %s267
    %s271 = sphi 0, %s270
    %s287 = sphi 0, %s271
  $region4: #{encode_process_decode.6} parent=0 // loop_header_branch
    %20 = sbr.rel (%p18) target = $region8
  $region5: #{encode_process_decode.6} parent=0 // loop_body
    %s22 = ssub.s32 %s17, 1
    %s23 = ssub.s32 %s17, 2
    %s24 = sadd.s32 %s17, 1
    %s25 = ssub.s32 %s17, %s24
    %p26 = scmp.eq.s32.totalorder %s25, 0
    %s28 = sadd.s32 %s27, 1
    %s29 = scalar_select %p26, %s27, %s28
    %p32 = pneg %p26
    %p33 = scmp.eq.s32.totalorder %s17, 1
    %p34 = por %p32, %p33
    %p35 = scmp.ne.s32.totalorder %s27, %s30
    %p36 = scmp.eq.s32.totalorder %s17, 0
    %p37 = por %p35, %p36
    %p38 = scmp.ne.s32.totalorder %s27, %s30
    %p39 = scmp.eq.s32.totalorder %s22, 1
    %p40 = por %p38, %p39
    %p41 = scmp.ne.s32.totalorder %s30, %s31
    %p42 = scmp.eq.s32.totalorder %s22, 0
    %p43 = por %p41, %p42
    %p44 = scmp.ne.s32.totalorder %s30, %s31
    %p45 = scmp.eq.s32.totalorder %s23, 1
    %p46 = por %p44, %p45
    %p48 = scmp.ne.s32.totalorder %s31, %s47
    %p49 = scmp.eq.s32.totalorder %s23, 0
    %p50 = por %p48, %p49
    %s51 = ssub.s32 %s17, %s24
    %p52 = scmp.eq.s32.totalorder %s51, 0
    %s54 = sadd.s32 %s53, 1
    %s55 = scalar_select %p52, %s53, %s54
    %p58 = pneg %p52
    %p59 = scmp.eq.s32.totalorder %s17, 1
    %p60 = por %p58, %p59
    %p61 = scmp.ne.s32.totalorder %s53, %s56
    %p62 = scmp.eq.s32.totalorder %s17, 0
    %p63 = por %p61, %p62
    %p64 = scmp.ne.s32.totalorder %s53, %s56
    %p65 = scmp.eq.s32.totalorder %s22, 1
    %p66 = por %p64, %p65
    %p67 = scmp.ne.s32.totalorder %s56, %s57
    %p68 = scmp.eq.s32.totalorder %s22, 0
    %p69 = por %p67, %p68
    %p70 = scmp.ne.s32.totalorder %s56, %s57
    %p71 = scmp.eq.s32.totalorder %s23, 1
    %p72 = por %p70, %p71
    %p74 = scmp.ne.s32.totalorder %s57, %s73
    %p75 = scmp.eq.s32.totalorder %s23, 0
    %p76 = por %p74, %p75
    %s77 = ssub.s32 %s17, %s24
    %p78 = scmp.eq.s32.totalorder %s77, 0
    %s80 = sadd.s32 %s79, 1
    %s81 = scalar_select %p78, %s79, %s80
    %p84 = pneg %p78
    %p85 = scmp.eq.s32.totalorder %s17, 1
    %p86 = por %p84, %p85
    %p87 = scmp.ne.s32.totalorder %s79, %s82
    %p88 = scmp.eq.s32.totalorder %s17, 0
    %p89 = por %p87, %p88
    %p90 = scmp.ne.s32.totalorder %s79, %s82
    %p91 = scmp.eq.s32.totalorder %s22, 1
    %p92 = por %p90, %p91
    %p93 = scmp.ne.s32.totalorder %s82, %s83
    %p94 = scmp.eq.s32.totalorder %s22, 0
    %p95 = por %p93, %p94
    %p96 = scmp.ne.s32.totalorder %s82, %s83
    %p97 = scmp.eq.s32.totalorder %s23, 1
    %p98 = por %p96, %p97
    %p100 = scmp.ne.s32.totalorder %s83, %s99
    %p101 = scmp.eq.s32.totalorder %s23, 0
    %p102 = por %p100, %p101
    %s103 = ssub.s32 %s17, %s24
    %p104 = scmp.eq.s32.totalorder %s103, 0
    %s106 = sadd.s32 %s105, 1
    %s107 = scalar_select %p104, %s105, %s106
    %p110 = pneg %p104
    %p111 = scmp.eq.s32.totalorder %s17, 1
    %p112 = por %p110, %p111
    %p113 = scmp.ne.s32.totalorder %s105, %s108
    %p114 = scmp.eq.s32.totalorder %s17, 0
    %p115 = por %p113, %p114
    %p116 = scmp.ne.s32.totalorder %s105, %s108
    %p117 = scmp.eq.s32.totalorder %s22, 1
    %p118 = por %p116, %p117
    %p119 = scmp.ne.s32.totalorder %s108, %s109
    %p120 = scmp.eq.s32.totalorder %s22, 0
    %p121 = por %p119, %p120
    %p122 = scmp.ne.s32.totalorder %s108, %s109
    %p123 = scmp.eq.s32.totalorder %s23, 1
    %p124 = por %p122, %p123
    %p126 = scmp.ne.s32.totalorder %s109, %s125
    %p127 = scmp.eq.s32.totalorder %s23, 0
    %p128 = por %p126, %p127
    %s129 = ssub.s32 %s17, %s24
    %p130 = scmp.eq.s32.totalorder %s129, 0
    %s132 = sadd.s32 %s131, 1
    %s133 = scalar_select %p130, %s131, %s132
    %p136 = pneg %p130
    %p137 = scmp.eq.s32.totalorder %s17, 1
    %p138 = por %p136, %p137
    %p139 = scmp.ne.s32.totalorder %s131, %s134
    %p140 = scmp.eq.s32.totalorder %s17, 0
    %p141 = por %p139, %p140
    %p142 = scmp.ne.s32.totalorder %s131, %s134
    %p143 = scmp.eq.s32.totalorder %s22, 1
    %p144 = por %p142, %p143
    %p145 = scmp.ne.s32.totalorder %s134, %s135
    %p146 = scmp.eq.s32.totalorder %s22, 0
    %p147 = por %p145, %p146
    %p148 = scmp.ne.s32.totalorder %s134, %s135
    %p149 = scmp.eq.s32.totalorder %s23, 1
    %p150 = por %p148, %p149
    %p152 = scmp.ne.s32.totalorder %s135, %s151
    %p153 = scmp.eq.s32.totalorder %s23, 0
    %p154 = por %p152, %p153
    %s156 = sadd.s32 %s155, 1
    %p159 = scmp.eq.s32.totalorder %s17, 1
    %p160 = scmp.ne.s32.totalorder %s155, %s157
    %p161 = scmp.eq.s32.totalorder %s17, 0
    %p162 = por %p160, %p161
    %p163 = scmp.ne.s32.totalorder %s155, %s157
    %p164 = scmp.eq.s32.totalorder %s22, 1
    %p165 = por %p163, %p164
    %p166 = scmp.ne.s32.totalorder %s157, %s158
    %p167 = scmp.eq.s32.totalorder %s22, 0
    %p168 = por %p166, %p167
    %p169 = scmp.ne.s32.totalorder %s157, %s158
    %p170 = scmp.eq.s32.totalorder %s23, 1
    %p171 = por %p169, %p170
    %p173 = scmp.ne.s32.totalorder %s158, %s172
    %p174 = scmp.eq.s32.totalorder %s23, 0
    %p175 = por %p173, %p174
    %s177 = sadd.s32 %s176, 1
    %p180 = scmp.eq.s32.totalorder %s17, 1
    %p181 = scmp.ne.s32.totalorder %s176, %s178
    %p182 = scmp.eq.s32.totalorder %s17, 0
    %p183 = por %p181, %p182
    %p184 = scmp.ne.s32.totalorder %s176, %s178
    %p185 = scmp.eq.s32.totalorder %s22, 1
    %p186 = por %p184, %p185
    %p187 = scmp.ne.s32.totalorder %s178, %s179
    %p188 = scmp.eq.s32.totalorder %s22, 0
    %p189 = por %p187, %p188
    %p190 = scmp.ne.s32.totalorder %s178, %s179
    %p191 = scmp.eq.s32.totalorder %s23, 1
    %p192 = por %p190, %p191
    %p194 = scmp.ne.s32.totalorder %s179, %s193
    %p195 = scmp.eq.s32.totalorder %s23, 0
    %p196 = por %p194, %p195
    %s198 = sadd.s32 %s197, 1
    %p201 = scmp.eq.s32.totalorder %s17, 1
    %p202 = scmp.ne.s32.totalorder %s197, %s199
    %p203 = scmp.eq.s32.totalorder %s17, 0
    %p204 = por %p202, %p203
    %p205 = scmp.ne.s32.totalorder %s197, %s199
    %p206 = scmp.eq.s32.totalorder %s22, 1
    %p207 = por %p205, %p206
    %p208 = scmp.ne.s32.totalorder %s199, %s200
    %p209 = scmp.eq.s32.totalorder %s22, 0
    %p210 = por %p208, %p209
    %p211 = scmp.ne.s32.totalorder %s199, %s200
    %p212 = scmp.eq.s32.totalorder %s23, 1
    %p213 = por %p211, %p212
    %p215 = scmp.ne.s32.totalorder %s200, %s214
    %p216 = scmp.eq.s32.totalorder %s23, 0
    %p217 = por %p215, %p216
    %s219 = sadd.s32 %s218, 1
    %p222 = scmp.eq.s32.totalorder %s17, 1
    %p223 = scmp.ne.s32.totalorder %s218, %s220
    %p224 = scmp.eq.s32.totalorder %s17, 0
    %p225 = por %p223, %p224
    %p226 = scmp.ne.s32.totalorder %s218, %s220
    %p227 = scmp.eq.s32.totalorder %s22, 1
    %p228 = por %p226, %p227
    %p229 = scmp.ne.s32.totalorder %s220, %s221
    %p230 = scmp.eq.s32.totalorder %s22, 0
    %p231 = por %p229, %p230
    %p232 = scmp.ne.s32.totalorder %s220, %s221
    %p233 = scmp.eq.s32.totalorder %s23, 1
    %p234 = por %p232, %p233
    %p236 = scmp.ne.s32.totalorder %s221, %s235
    %p237 = scmp.eq.s32.totalorder %s23, 0
    %p238 = por %p236, %p237
    %s239 = ssub.s32 %s17, %s24
    %p240 = scmp.eq.s32.totalorder %s239, 0
    %s242 = sadd.s32 %s241, 1
    %s243 = scalar_select %p240, %s241, %s242
    %p246 = pneg %p240
    %p247 = scmp.eq.s32.totalorder %s17, 1
    %p248 = por %p246, %p247
    %p249 = scmp.ne.s32.totalorder %s241, %s244
    %p250 = scmp.eq.s32.totalorder %s17, 0
    %p251 = por %p249, %p250
    %p252 = scmp.ne.s32.totalorder %s241, %s244
    %p253 = scmp.eq.s32.totalorder %s22, 1
    %p254 = por %p252, %p253
    %p255 = scmp.ne.s32.totalorder %s244, %s245
    %p256 = scmp.eq.s32.totalorder %s22, 0
    %p257 = por %p255, %p256
    %p258 = scmp.ne.s32.totalorder %s244, %s245
    %p259 = scmp.eq.s32.totalorder %s23, 1
    %p260 = por %p258, %p259
    %p262 = scmp.ne.s32.totalorder %s245, %s261
    %p263 = scmp.eq.s32.totalorder %s23, 0
    %p264 = por %p262, %p263
    %s265 = ssub.s32 %s17, %s24
    %p266 = scmp.eq.s32.totalorder %s265, 0
    %s268 = sadd.s32 %s267, 1
    %s269 = scalar_select %p266, %s267, %s268
    %p272 = pneg %p266
    %p273 = scmp.eq.s32.totalorder %s17, 1
    %p274 = por %p272, %p273
    %p275 = scmp.ne.s32.totalorder %s267, %s270
    %p276 = scmp.eq.s32.totalorder %s17, 0
    %p277 = por %p275, %p276
    %p278 = scmp.ne.s32.totalorder %s267, %s270
    %p279 = scmp.eq.s32.totalorder %s22, 1
    %p280 = por %p278, %p279
    %p281 = scmp.ne.s32.totalorder %s270, %s271
    %p282 = scmp.eq.s32.totalorder %s22, 0
    %p283 = por %p281, %p282
    %p284 = scmp.ne.s32.totalorder %s270, %s271
    %p285 = scmp.eq.s32.totalorder %s23, 1
    %p286 = por %p284, %p285
    %p288 = scmp.ne.s32.totalorder %s271, %s287
    %p289 = scmp.eq.s32.totalorder %s23, 0
    %p290 = por %p288, %p289
    %p291 = scmp.le.s32.totalorder 1, %s17
    %p292 = scmp.lt.s32.totalorder %s17, 3
    %p293 = pnand %p291, %p292
    %p294 = pneg %p293
    // Predicated region
    $region9: #{encode_process_decode.6} parent=5 // pred_check
      _
    $region10: #{encode_process_decode.6} parent=5 // pred_check_branch
      %296 = sbr.rel (%p293) target = $region12
    $region11: #{encode_process_decode.6} parent=5 // pred_region
      %s297 = ssub.s32 %s17, 1
      // Predicated region
      $region13: #{encode_process_decode.6} parent=11 // pred_check
        %p298 = pneg %p168
      $region14: #{encode_process_decode.6} parent=11 // pred_check_branch
        %300 = sbr.rel (%p298) target = $region16
      $region15: #{encode_process_decode.6} parent=11 // pred_region
        _
      $region16: #{encode_process_decode.6} parent=11 // pred_fallthru
        _
      // Predicated region
      $region17: #{encode_process_decode.6} parent=11 // pred_check
        %p301 = pneg %p189
      $region18: #{encode_process_decode.6} parent=11 // pred_check_branch
        %303 = sbr.rel (%p301) target = $region20
      $region19: #{encode_process_decode.6} parent=11 // pred_region
        _
      $region20: #{encode_process_decode.6} parent=11 // pred_fallthru
        _
      // Predicated region
      $region21: #{encode_process_decode.6} parent=11 // pred_check
        %p304 = pneg %p210
      $region22: #{encode_process_decode.6} parent=11 // pred_check_branch
        %306 = sbr.rel (%p304) target = $region24
      $region23: #{encode_process_decode.6} parent=11 // pred_region
        _
      $region24: #{encode_process_decode.6} parent=11 // pred_fallthru
        _
      // Predicated region
      $region25: #{encode_process_decode.6} parent=11 // pred_check
        %p307 = pneg %p231
      $region26: #{encode_process_decode.6} parent=11 // pred_check_branch
        %309 = sbr.rel (%p307) target = $region28
      $region27: #{encode_process_decode.6} parent=11 // pred_region
        _
      $region28: #{encode_process_decode.6} parent=11 // pred_fallthru
        _
    $region12: #{encode_process_decode.6} parent=5 // pred_fallthru
      _
    %p310 = scmp.lt.s32.totalorder %s17, 2
    // Predicated region
    $region29: #{encode_process_decode.6} parent=5 // pred_check
      %p311 = pneg %p310
    $region30: #{encode_process_decode.6} parent=5 // pred_check_branch
      %313 = sbr.rel (%p311) target = $region32
    $region31: #{encode_process_decode.6} parent=5 // pred_region
      // Predicated region
      $region33: #{encode_process_decode.6} parent=31 // pred_check
        %p314 = pneg %p37
      $region34: #{encode_process_decode.6} parent=31 // pred_check_branch
        %316 = sbr.rel (%p314) target = $region36
      $region35: #{encode_process_decode.6} parent=31 // pred_region
        %p317 = scmp.lt.s32.totalorder %s17, 1
        %s318 = scalar_select %p317, %s17, 1
        %s319 = smul.addr %s318, 16
        %s320 = smul.addr %s319, 8
        %s321 = scalar_lea.vmem %s0, %s320
      $region36: #{encode_process_decode.6} parent=31 // pred_fallthru
        _
      // Predicated region
      $region37: #{encode_process_decode.6} parent=31 // pred_check
        %p322 = pneg %p63
      $region38: #{encode_process_decode.6} parent=31 // pred_check_branch
        %324 = sbr.rel (%p322) target = $region40
      $region39: #{encode_process_decode.6} parent=31 // pred_region
        %p325 = scmp.lt.s32.totalorder %s17, 1
        %s326 = scalar_select %p325, %s17, 1
        %s327 = smul.addr %s326, 16
        %s328 = smul.addr %s327, 8
        %s329 = scalar_lea.vmem %s1, %s328
      $region40: #{encode_process_decode.6} parent=31 // pred_fallthru
        _
      // Predicated region
      $region41: #{encode_process_decode.6} parent=31 // pred_check
        %p330 = pneg %p89
      $region42: #{encode_process_decode.6} parent=31 // pred_check_branch
        %332 = sbr.rel (%p330) target = $region44
      $region43: #{encode_process_decode.6} parent=31 // pred_region
        %p333 = scmp.lt.s32.totalorder %s17, 1
        %s334 = scalar_select %p333, %s17, 1
        %s335 = scalar_lea.vmem %s2, %s334
      $region44: #{encode_process_decode.6} parent=31 // pred_fallthru
        _
      // Predicated region
      $region45: #{encode_process_decode.6} parent=31 // pred_check
        %p336 = pneg %p115
      $region46: #{encode_process_decode.6} parent=31 // pred_check_branch
        %338 = sbr.rel (%p336) target = $region48
      $region47: #{encode_process_decode.6} parent=31 // pred_region
        %p339 = scmp.lt.s32.totalorder %s17, 1
        %s340 = scalar_select %p339, %s17, 1
        %s341 = smul.addr %s340, 8
        %s342 = smul.addr %s341, 8
        %s343 = scalar_lea.vmem %s3, %s342
      $region48: #{encode_process_decode.6} parent=31 // pred_fallthru
        _
      // Predicated region
      $region49: #{encode_process_decode.6} parent=31 // pred_check
        %p344 = pneg %p141
      $region50: #{encode_process_decode.6} parent=31 // pred_check_branch
        %346 = sbr.rel (%p344) target = $region52
      $region51: #{encode_process_decode.6} parent=31 // pred_region
        %p347 = scmp.lt.s32.totalorder %s17, 1
        %s348 = scalar_select %p347, %s17, 1
        %s349 = smul.addr %s348, 16
        %s350 = smul.addr %s349, 8
        %s351 = scalar_lea.vmem %s4, %s350
      $region52: #{encode_process_decode.6} parent=31 // pred_fallthru
        _
    $region32: #{encode_process_decode.6} parent=5 // pred_fallthru
      _
    %p352 = scmp.le.s32.totalorder 1, %s17
    %p353 = scmp.lt.s32.totalorder %s17, 3
    %p354 = pnand %p352, %p353
    %p355 = pneg %p354
    // Predicated region
    $region53: #{encode_process_decode.6} parent=5 // pred_check
      _
    $region54: #{encode_process_decode.6} parent=5 // pred_check_branch
      %357 = sbr.rel (%p354) target = $region56
    $region55: #{encode_process_decode.6} parent=5 // pred_region
      %s358 = ssub.s32 %s17, 1
      %p359 = scmp.lt.s32.totalorder %s22, 1
      %s360 = scalar_select %p359, %s22, 1
      %s361 = smul.addr %s360, 16
      %s362 = smul.addr %s361, 8
      %s363 = scalar_lea.vmem %s0, %s362
      %p364 = pneg %p43
      %p365 = pneg %p40
      %p366 = scmp.lt.s32.totalorder %s22, 1
      %s367 = scalar_select %p366, %s22, 1
      %s368 = smul.addr %s367, 16
      %s369 = smul.addr %s368, 8
      %s370 = scalar_lea.vmem %s1, %s369
      %p371 = pneg %p69
      %p372 = pneg %p66
      %p373 = scmp.lt.s32.totalorder %s22, 1
      %s374 = scalar_select %p373, %s22, 1
      %s375 = scalar_lea.vmem %s2, %s374
      %p376 = pneg %p95
      %p377 = pneg %p92
      %p378 = scmp.lt.s32.totalorder %s22, 1
      %s379 = scalar_select %p378, %s22, 1
      %s380 = smul.addr %s379, 8
      %s381 = smul.addr %s380, 8
      %s382 = scalar_lea.vmem %s3, %s381
      %p383 = pneg %p121
      %p384 = pneg %p118
      %p385 = scmp.lt.s32.totalorder %s22, 1
      %s386 = scalar_select %p385, %s22, 1
      %s387 = smul.addr %s386, 16
      %s388 = smul.addr %s387, 8
      %s389 = scalar_lea.vmem %s4, %s388
      %p390 = pneg %p147
      %p391 = pneg %p144
      %p392 = pneg %p168
      %p393 = pneg %p165
      %p394 = pneg %p189
      %p395 = pneg %p186
      %p396 = pneg %p210
      %p397 = pneg %p207
      %p398 = pneg %p231
      %p399 = pneg %p228
      %p400 = pneg %p257
      %p401 = pneg %p254
      %p402 = scmp.lt.s32.totalorder %s22, 1
      %s403 = scalar_select %p402, %s22, 1
      %s404 = smul.addr %s403, 8
      %s405 = smul.addr %s404, 8
      %s406 = scalar_lea.vmem %s9, %s405
      %p407 = pneg %p283
      %p408 = pneg %p280
      %p409 = scmp.lt.s32.totalorder %s22, 1
      %s410 = scalar_select %p409, %s22, 1
      %s411 = smul.addr %s410, 16
      %s412 = smul.addr %s411, 8
      %s413 = scalar_lea.vmem %s10, %s412
      %p414 = scmp.lt.s32.totalorder %s22, 1
      %s415 = scalar_select %p414, %s22, 1
      %s416 = smul.addr %s415, 16
      %s417 = smul.addr %s416, 8
      %s418 = scalar_lea.vmem %s0, %s417
      %p419 = scmp.lt.s32.totalorder %s22, 1
      %s420 = scalar_select %p419, %s22, 1
      %s421 = smul.addr %s420, 16
      %s422 = smul.addr %s421, 8
      %s423 = scalar_lea.vmem %s1, %s422
      %p424 = scmp.lt.s32.totalorder %s22, 1
      %s425 = scalar_select %p424, %s22, 1
      %s426 = scalar_lea.vmem %s2, %s425
      %p427 = scmp.lt.s32.totalorder %s22, 1
      %s428 = scalar_select %p427, %s22, 1
      %s429 = smul.addr %s428, 8
      %s430 = smul.addr %s429, 8
      %s431 = scalar_lea.vmem %s3, %s430
      %p432 = scmp.lt.s32.totalorder %s22, 1
      %s433 = scalar_select %p432, %s22, 1
      %s434 = smul.addr %s433, 16
      %s435 = smul.addr %s434, 8
      %s436 = scalar_lea.vmem %s4, %s435
      %p437 = scmp.lt.s32.totalorder %s22, 1
      %s438 = scalar_select %p437, %s22, 1
      %s439 = smul.addr %s438, 8
      %s440 = smul.addr %s439, 8
      %s441 = scalar_lea.vmem %s9, %s440
      %p442 = scmp.lt.s32.totalorder %s22, 1
      %s443 = scalar_select %p442, %s22, 1
      %s444 = smul.addr %s443, 16
      %s445 = smul.addr %s444, 8
      %s446 = scalar_lea.vmem %s10, %s445
      %v447 = vld [vmem:[%s418] sm:$0xff]
      %v448 = vld [vmem:[%s418 + $0x8] sm:$0xff]
      %v449 = vld [vmem:[%s418 + $0x10] sm:$0xff]
      %v450 = vld [vmem:[%s418 + $0x18] sm:$0xff]
      %v451 = vld [vmem:[%s418 + $0x20] sm:$0xff]
      %v452 = vld [vmem:[%s418 + $0x28] sm:$0xff]
      %v453 = vld [vmem:[%s418 + $0x30] sm:$0xff]
      %v454 = vld [vmem:[%s418 + $0x38] sm:$0xff]
      %v455 = vld [vmem:[%s418 + $0x40] sm:$0xff]
      %v456 = vld [vmem:[%s418 + $0x48] sm:$0xff]
      %v457 = vld [vmem:[%s418 + $0x50] sm:$0xff]
      %v458 = vld [vmem:[%s418 + $0x58] sm:$0xff]
      %v459 = vld [vmem:[%s418 + $0x60] sm:$0xff]
      %v460 = vld [vmem:[%s418 + $0x68] sm:$0xff]
      %v461 = vld [vmem:[%s418 + $0x70] sm:$0xff]
      %v462 = vld [vmem:[%s418 + $0x78] sm:$0xff]
      %v463 = vld [vmem:[%s423] sm:$0xff]
      %v464 = vld [vmem:[%s423 + $0x8] sm:$0xff]
      %v465 = vld [vmem:[%s423 + $0x10] sm:$0xff]
      %v466 = vld [vmem:[%s423 + $0x18] sm:$0xff]
      %v467 = vld [vmem:[%s423 + $0x20] sm:$0xff]
      %v468 = vld [vmem:[%s423 + $0x28] sm:$0xff]
      %v469 = vld [vmem:[%s423 + $0x30] sm:$0xff]
      %v470 = vld [vmem:[%s423 + $0x38] sm:$0xff]
      %v471 = vld [vmem:[%s423 + $0x40] sm:$0xff]
      %v472 = vld [vmem:[%s423 + $0x48] sm:$0xff]
      %v473 = vld [vmem:[%s423 + $0x50] sm:$0xff]
      %v474 = vld [vmem:[%s423 + $0x58] sm:$0xff]
      %v475 = vld [vmem:[%s423 + $0x60] sm:$0xff]
      %v476 = vld [vmem:[%s423 + $0x68] sm:$0xff]
      %v477 = vld [vmem:[%s423 + $0x70] sm:$0xff]
      %v478 = vld [vmem:[%s423 + $0x78] sm:$0xff]
      %v479 = vld [vmem:[%s426] sm:$0x1]
      %v480 = vld [vmem:[%s431] sm:$0xff]
      %v481 = vld [vmem:[%s431 + $0x8] sm:$0xff]
      %v482 = vld [vmem:[%s431 + $0x10] sm:$0xff]
      %v483 = vld [vmem:[%s431 + $0x18] sm:$0xff]
      %v484 = vld [vmem:[%s431 + $0x20] sm:$0xff]
      %v485 = vld [vmem:[%s431 + $0x28] sm:$0xff]
      %v486 = vld [vmem:[%s431 + $0x30] sm:$0xff]
      %v487 = vld [vmem:[%s431 + $0x38] sm:$0xff]
      %v488 = vld [vmem:[%s436] sm:$0xff]
      %v489 = vld [vmem:[%s436 + $0x8] sm:$0xff]
      %v490 = vld [vmem:[%s436 + $0x10] sm:$0xff]
      %v491 = vld [vmem:[%s436 + $0x18] sm:$0xff]
      %v492 = vld [vmem:[%s436 + $0x20] sm:$0xff]
      %v493 = vld [vmem:[%s436 + $0x28] sm:$0xff]
      %v494 = vld [vmem:[%s436 + $0x30] sm:$0xff]
      %v495 = vld [vmem:[%s436 + $0x38] sm:$0xff]
      %v496 = vld [vmem:[%s436 + $0x40] sm:$0xff]
      %v497 = vld [vmem:[%s436 + $0x48] sm:$0xff]
      %v498 = vld [vmem:[%s436 + $0x50] sm:$0xff]
      %v499 = vld [vmem:[%s436 + $0x58] sm:$0xff]
      %v500 = vld [vmem:[%s436 + $0x60] sm:$0xff]
      %v501 = vld [vmem:[%s436 + $0x68] sm:$0xff]
      %v502 = vld [vmem:[%s436 + $0x70] sm:$0xff]
      %v503 = vld [vmem:[%s436 + $0x78] sm:$0xff]
      %v504 = vlaneseq
      %v505 = vand.u32 %v504, 127
      %506 = vset.pattern.permute.xlu0 0
      %507 = vperm.xlu0 %506, %v447
      %v508 = vpop.permute.xlu0 %507
      %509 = vset.pattern.permute.xlu0 0
      %510 = vperm.xlu0 %509, %v448
      %v511 = vpop.permute.xlu0 %510
      %512 = vset.pattern.permute.xlu0 0
      %513 = vperm.xlu0 %512, %v449
      %v514 = vpop.permute.xlu0 %513
      %515 = vset.pattern.permute.xlu0 0
      %516 = vperm.xlu0 %515, %v450
      %v517 = vpop.permute.xlu0 %516
      %518 = vset.pattern.permute.xlu0 0
      %519 = vperm.xlu0 %518, %v451
      %v520 = vpop.permute.xlu0 %519
      %521 = vset.pattern.permute.xlu0 0
      %522 = vperm.xlu0 %521, %v452
      %v523 = vpop.permute.xlu0 %522
      %524 = vset.pattern.permute.xlu0 0
      %525 = vperm.xlu0 %524, %v453
      %v526 = vpop.permute.xlu0 %525
      %527 = vset.pattern.permute.xlu0 0
      %528 = vperm.xlu0 %527, %v454
      %v529 = vpop.permute.xlu0 %528
      %530 = vset.pattern.permute.xlu0 0
      %531 = vperm.xlu0 %530, %v455
      %v532 = vpop.permute.xlu0 %531
      %533 = vset.pattern.permute.xlu0 0
      %534 = vperm.xlu0 %533, %v456
      %v535 = vpop.permute.xlu0 %534
      %536 = vset.pattern.permute.xlu0 0
      %537 = vperm.xlu0 %536, %v457
      %v538 = vpop.permute.xlu0 %537
      %539 = vset.pattern.permute.xlu0 0
      %540 = vperm.xlu0 %539, %v458
      %v541 = vpop.permute.xlu0 %540
      %542 = vset.pattern.permute.xlu0 0
      %543 = vperm.xlu0 %542, %v459
      %v544 = vpop.permute.xlu0 %543
      %545 = vset.pattern.permute.xlu0 0
      %546 = vperm.xlu0 %545, %v460
      %v547 = vpop.permute.xlu0 %546
      %548 = vset.pattern.permute.xlu0 0
      %549 = vperm.xlu0 %548, %v461
      %v550 = vpop.permute.xlu0 %549
      %551 = vset.pattern.permute.xlu0 0
      %552 = vperm.xlu0 %551, %v462
      %v553 = vpop.permute.xlu0 %552
      %vm554 = vcmp.eq.s32.totalorder %v508, %v505
      %vm555 = vcmp.eq.s32.totalorder %v511, %v505
      %vm556 = vcmp.eq.s32.totalorder %v514, %v505
      %vm557 = vcmp.eq.s32.totalorder %v517, %v505
      %vm558 = vcmp.eq.s32.totalorder %v520, %v505
      %vm559 = vcmp.eq.s32.totalorder %v523, %v505
      %vm560 = vcmp.eq.s32.totalorder %v526, %v505
      %vm561 = vcmp.eq.s32.totalorder %v529, %v505
      %vm562 = vcmp.eq.s32.totalorder %v532, %v505
      %vm563 = vcmp.eq.s32.totalorder %v535, %v505
      %vm564 = vcmp.eq.s32.totalorder %v538, %v505
      %vm565 = vcmp.eq.s32.totalorder %v541, %v505
      %vm566 = vcmp.eq.s32.totalorder %v544, %v505
      %vm567 = vcmp.eq.s32.totalorder %v547, %v505
      %vm568 = vcmp.eq.s32.totalorder %v550, %v505
      %vm569 = vcmp.eq.s32.totalorder %v553, %v505
      %v570 = vsel %vm554, 1, 0
      %v571 = vsel %vm555, 1, 0
      %v572 = vsel %vm556, 1, 0
      %v573 = vsel %vm557, 1, 0
      %v574 = vsel %vm558, 1, 0
      %v575 = vsel %vm559, 1, 0
      %v576 = vsel %vm560, 1, 0
      %v577 = vsel %vm561, 1, 0
      %v578 = vsel %vm562, 1, 0
      %v579 = vsel %vm563, 1, 0
      %v580 = vsel %vm564, 1, 0
      %v581 = vsel %vm565, 1, 0
      %v582 = vsel %vm566, 1, 0
      %v583 = vsel %vm567, 1, 0
      %v584 = vsel %vm568, 1, 0
      %v585 = vsel %vm569, 1, 0
      %v586 = vcvt.s32.f32 %v570
      %v587 = vcvt.s32.f32 %v571
      %v588 = vcvt.s32.f32 %v572
      %v589 = vcvt.s32.f32 %v573
      %v590 = vcvt.s32.f32 %v574
      %v591 = vcvt.s32.f32 %v575
      %v592 = vcvt.s32.f32 %v576
      %v593 = vcvt.s32.f32 %v577
      %v594 = vcvt.s32.f32 %v578
      %v595 = vcvt.s32.f32 %v579
      %v596 = vcvt.s32.f32 %v580
      %v597 = vcvt.s32.f32 %v581
      %v598 = vcvt.s32.f32 %v582
      %v599 = vcvt.s32.f32 %v583
      %v600 = vcvt.s32.f32 %v584
      %v601 = vcvt.s32.f32 %v585
      %602 = vset.pattern.permute.xlu0 0
      %603 = vperm.xlu0 %602, %v463
      %v604 = vpop.permute.xlu0 %603
      %605 = vset.pattern.permute.xlu0 0
      %606 = vperm.xlu0 %605, %v464
      %v607 = vpop.permute.xlu0 %606
      %608 = vset.pattern.permute.xlu0 0
      %609 = vperm.xlu0 %608, %v465
      %v610 = vpop.permute.xlu0 %609
      %611 = vset.pattern.permute.xlu0 0
      %612 = vperm.xlu0 %611, %v466
      %v613 = vpop.permute.xlu0 %612
      %614 = vset.pattern.permute.xlu0 0
      %615 = vperm.xlu0 %614, %v467
      %v616 = vpop.permute.xlu0 %615
      %617 = vset.pattern.permute.xlu0 0
      %618 = vperm.xlu0 %617, %v468
      %v619 = vpop.permute.xlu0 %618
      %620 = vset.pattern.permute.xlu0 0
      %621 = vperm.xlu0 %620, %v469
      %v622 = vpop.permute.xlu0 %621
      %623 = vset.pattern.permute.xlu0 0
      %624 = vperm.xlu0 %623, %v470
      %v625 = vpop.permute.xlu0 %624
      %626 = vset.pattern.permute.xlu0 0
      %627 = vperm.xlu0 %626, %v471
      %v628 = vpop.permute.xlu0 %627
      %629 = vset.pattern.permute.xlu0 0
      %630 = vperm.xlu0 %629, %v472
      %v631 = vpop.permute.xlu0 %630
      %632 = vset.pattern.permute.xlu0 0
      %633 = vperm.xlu0 %632, %v473
      %v634 = vpop.permute.xlu0 %633
      %635 = vset.pattern.permute.xlu0 0
      %636 = vperm.xlu0 %635, %v474
      %v637 = vpop.permute.xlu0 %636
      %638 = vset.pattern.permute.xlu0 0
      %639 = vperm.xlu0 %638, %v475
      %v640 = vpop.permute.xlu0 %639
      %641 = vset.pattern.permute.xlu0 0
      %642 = vperm.xlu0 %641, %v476
      %v643 = vpop.permute.xlu0 %642
      %644 = vset.pattern.permute.xlu0 0
      %645 = vperm.xlu0 %644, %v477
      %v646 = vpop.permute.xlu0 %645
      %647 = vset.pattern.permute.xlu0 0
      %648 = vperm.xlu0 %647, %v478
      %v649 = vpop.permute.xlu0 %648
      %vm650 = vcmp.eq.s32.totalorder %v604, %v505
      %vm651 = vcmp.eq.s32.totalorder %v607, %v505
      %vm652 = vcmp.eq.s32.totalorder %v610, %v505
      %vm653 = vcmp.eq.s32.totalorder %v613, %v505
      %vm654 = vcmp.eq.s32.totalorder %v616, %v505
      %vm655 = vcmp.eq.s32.totalorder %v619, %v505
      %vm656 = vcmp.eq.s32.totalorder %v622, %v505
      %vm657 = vcmp.eq.s32.totalorder %v625, %v505
      %vm658 = vcmp.eq.s32.totalorder %v628, %v505
      %vm659 = vcmp.eq.s32.totalorder %v631, %v505
      %vm660 = vcmp.eq.s32.totalorder %v634, %v505
      %vm661 = vcmp.eq.s32.totalorder %v637, %v505
      %vm662 = vcmp.eq.s32.totalorder %v640, %v505
      %vm663 = vcmp.eq.s32.totalorder %v643, %v505
      %vm664 = vcmp.eq.s32.totalorder %v646, %v505
      %vm665 = vcmp.eq.s32.totalorder %v649, %v505
      %v666 = vsel %vm650, 1, 0
      %v667 = vsel %vm651, 1, 0
      %v668 = vsel %vm652, 1, 0
      %v669 = vsel %vm653, 1, 0
      %v670 = vsel %vm654, 1, 0
      %v671 = vsel %vm655, 1, 0
      %v672 = vsel %vm656, 1, 0
      %v673 = vsel %vm657, 1, 0
      %v674 = vsel %vm658, 1, 0
      %v675 = vsel %vm659, 1, 0
      %v676 = vsel %vm660, 1, 0
      %v677 = vsel %vm661, 1, 0
      %v678 = vsel %vm662, 1, 0
      %v679 = vsel %vm663, 1, 0
      %v680 = vsel %vm664, 1, 0
      %v681 = vsel %vm665, 1, 0
      %v682 = vcvt.s32.f32 %v666
      %v683 = vcvt.s32.f32 %v667
      %v684 = vcvt.s32.f32 %v668
      %v685 = vcvt.s32.f32 %v669
      %v686 = vcvt.s32.f32 %v670
      %v687 = vcvt.s32.f32 %v671
      %v688 = vcvt.s32.f32 %v672
      %v689 = vcvt.s32.f32 %v673
      %v690 = vcvt.s32.f32 %v674
      %v691 = vcvt.s32.f32 %v675
      %v692 = vcvt.s32.f32 %v676
      %v693 = vcvt.s32.f32 %v677
      %v694 = vcvt.s32.f32 %v678
      %v695 = vcvt.s32.f32 %v679
      %v696 = vcvt.s32.f32 %v680
      %v697 = vcvt.s32.f32 %v681
      %v698 = vlaneseq
      %v699 = vshrl.u32 %v698, 7
      %v700 = vadd.s32 %v699, 8
      %v701 = vadd.s32 %v699, 16
      %v702 = vadd.s32 %v699, 24
      %v703 = vadd.s32 %v699, 32
      %v704 = vadd.s32 %v699, 40
      %v705 = vadd.s32 %v699, 48
      %v706 = vadd.s32 %v699, 56
      %v707 = vlaneseq
      %v708 = vshrl.u32 %v707, 7
      %v709 = vsub.s32 0, %v708
      %v710 = vrot.slane %v479, %v709
      %vm711 = vcmp.eq.s32.totalorder %v710, %v699
      %vm712 = vcmp.eq.s32.totalorder %v710, %v700
      %vm713 = vcmp.eq.s32.totalorder %v710, %v701
      %vm714 = vcmp.eq.s32.totalorder %v710, %v702
      %vm715 = vcmp.eq.s32.totalorder %v710, %v703
      %vm716 = vcmp.eq.s32.totalorder %v710, %v704
      %vm717 = vcmp.eq.s32.totalorder %v710, %v705
      %vm718 = vcmp.eq.s32.totalorder %v710, %v706
      %v719 = vsel %vm711, 1, 0
      %v720 = vsel %vm712, 1, 0
      %v721 = vsel %vm713, 1, 0
      %v722 = vsel %vm714, 1, 0
      %v723 = vsel %vm715, 1, 0
      %v724 = vsel %vm716, 1, 0
      %v725 = vsel %vm717, 1, 0
      %v726 = vsel %vm718, 1, 0
      %v727 = vcvt.s32.f32 %v719
      %v728 = vcvt.s32.f32 %v720
      %v729 = vcvt.s32.f32 %v721
      %v730 = vcvt.s32.f32 %v722
      %v731 = vcvt.s32.f32 %v723
      %v732 = vcvt.s32.f32 %v724
      %v733 = vcvt.s32.f32 %v725
      %v734 = vcvt.s32.f32 %v726
      %v735 = vld [vmem:[%s5] sm:$0xff]
      %v736 = vld [vmem:[%s5 + $0x8] sm:$0xff]
      %v737 = vld [vmem:[%s5 + $0x10] sm:$0xff]
      %v738 = vld [vmem:[%s5 + $0x18] sm:$0xff]
      %v739 = vld [vmem:[%s5 + $0x20] sm:$0xff]
      %v740 = vld [vmem:[%s5 + $0x28] sm:$0xff]
      %v741 = vld [vmem:[%s5 + $0x30] sm:$0xff]
      %v742 = vld [vmem:[%s5 + $0x38] sm:$0xff]
      %v743 = vld [vmem:[%s5 + $0x40] sm:$0xff]
      %v744 = vld [vmem:[%s5 + $0x48] sm:$0xff]
      %v745 = vld [vmem:[%s5 + $0x50] sm:$0xff]
      %v746 = vld [vmem:[%s5 + $0x58] sm:$0xff]
      %v747 = vld [vmem:[%s5 + $0x60] sm:$0xff]
      %v748 = vld [vmem:[%s5 + $0x68] sm:$0xff]
      %v749 = vld [vmem:[%s5 + $0x70] sm:$0xff]
      %v750 = vld [vmem:[%s5 + $0x78] sm:$0xff]
      %751 = vmatprep.subr.mxu0 0.0
      %752 = vmatpush1.msra.mxu0 %v735
      %753 = vmatprep.subr.mxu0 0.0
      %754 = vmatpush1.msra.mxu0 %v736
      %755 = vmatprep.subr.mxu0 0.0
      %756 = vmatpush1.msra.mxu0 %v737
      %757 = vmatprep.subr.mxu0 0.0
      %758 = vmatpush1.msra.mxu0 %v738
      %759 = vmatprep.subr.mxu0 0.0
      %760 = vmatpush1.msra.mxu0 %v739
      %761 = vmatprep.subr.mxu0 0.0
      %762 = vmatpush1.msra.mxu0 %v740
      %763 = vmatprep.subr.mxu0 0.0
      %764 = vmatpush1.msra.mxu0 %v741
      %765 = vmatprep.subr.mxu0 0.0
      %766 = vmatpush1.msra.mxu0 %v742
      %767 = vmatprep.subr.mxu0 0.0
      %768 = vmatpush1.msra.mxu0 %v743
      %769 = vmatprep.subr.mxu0 0.0
      %770 = vmatpush1.msra.mxu0 %v744
      %771 = vmatprep.subr.mxu0 0.0
      %772 = vmatpush1.msra.mxu0 %v745
      %773 = vmatprep.subr.mxu0 0.0
      %774 = vmatpush1.msra.mxu0 %v746
      %775 = vmatprep.subr.mxu0 0.0
      %776 = vmatpush1.msra.mxu0 %v747
      %777 = vmatprep.subr.mxu0 0.0
      %778 = vmatpush1.msra.mxu0 %v748
      %779 = vmatprep.subr.mxu0 0.0
      %780 = vmatpush1.msra.mxu0 %v749
      %781 = vmatprep.subr.mxu0 0.0
      %782 = vmatpush1.msra.mxu0 %v750
      %783 = vmatprep.subr.mxu0 0.0
      %784 = vmatpush1.msra.mxu0 0.0
      %785 = vmatprep.subr.mxu0 0.0
      %786 = vmatpush1.msra.mxu0 0.0
      %787 = vmatprep.subr.mxu0 0.0
      %788 = vmatpush1.msra.mxu0 0.0
      %789 = vmatprep.subr.mxu0 0.0
      %790 = vmatpush1.msra.mxu0 0.0
      %791 = vmatprep.subr.mxu0 0.0
      %792 = vmatpush1.msra.mxu0 0.0
      %793 = vmatprep.subr.mxu0 0.0
      %794 = vmatpush1.msra.mxu0 0.0
      %795 = vmatprep.subr.mxu0 0.0
      %796 = vmatpush1.msra.mxu0 0.0
      %797 = vmatprep.subr.mxu0 0.0
      %798 = vmatpush1.msra.mxu0 0.0
      %799 = vmatprep.subr.mxu0 0.0
      %800 = vmatpush1.msra.mxu0 0.0
      %801 = vmatprep.subr.mxu0 0.0
      %802 = vmatpush1.msra.mxu0 0.0
      %803 = vmatprep.subr.mxu0 0.0
      %804 = vmatpush1.msra.mxu0 0.0
      %805 = vmatprep.subr.mxu0 0.0
      %806 = vmatpush1.msra.mxu0 0.0
      %807 = vmatprep.subr.mxu0 0.0
      %808 = vmatpush1.msra.mxu0 0.0
      %809 = vmatprep.subr.mxu0 0.0
      %810 = vmatpush1.msra.mxu0 0.0
      %811 = vmatprep.subr.mxu0 0.0
      %812 = vmatpush1.msra.mxu0 0.0
      %813 = vmatprep.subr.mxu0 0.0
      %814 = vmatpush1.msra.mxu0 0.0
      %815 = vmatprep.mubr.f32.mxu0 0.0
      %816 = vmatmul.mubr.f32.gmra.mrb[0].mxu0 %v480
      %v817 = vpop.f32.mrb[0].mxu0
      %v818 = vadd.f32 0.0, %v817
      %v819 = vpop.f32.mrb[0].mxu0
      %820 = vmatprep.mubr.f32.mxu0 0.0
      %821 = vmatmul.mubr.f32.gmra.mrb[0].mxu0 %v481
      %v822 = vpop.f32.mrb[0].mxu0
      %v823 = vadd.f32 0.0, %v822
      %v824 = vpop.f32.mrb[0].mxu0
      %825 = vmatprep.mubr.f32.mxu0 0.0
      %826 = vmatmul.mubr.f32.gmra.mrb[0].mxu0 %v482
      %v827 = vpop.f32.mrb[0].mxu0
      %v828 = vadd.f32 0.0, %v827
      %v829 = vpop.f32.mrb[0].mxu0
      %830 = vmatprep.mubr.f32.mxu0 0.0
      %831 = vmatmul.mubr.f32.gmra.mrb[0].mxu0 %v483
      %v832 = vpop.f32.mrb[0].mxu0
      %v833 = vadd.f32 0.0, %v832
      %v834 = vpop.f32.mrb[0].mxu0
      %835 = vmatprep.mubr.f32.mxu0 0.0
      %836 = vmatmul.mubr.f32.gmra.mrb[0].mxu0 %v484
      %v837 = vpop.f32.mrb[0].mxu0
      %v838 = vadd.f32 0.0, %v837
      %v839 = vpop.f32.mrb[0].mxu0
      %840 = vmatprep.mubr.f32.mxu0 0.0
      %841 = vmatmul.mubr.f32.gmra.mrb[0].mxu0 %v485
      %v842 = vpop.f32.mrb[0].mxu0
      %v843 = vadd.f32 0.0, %v842
      %v844 = vpop.f32.mrb[0].mxu0
      %845 = vmatprep.mubr.f32.mxu0 0.0
      %846 = vmatmul.mubr.f32.gmra.mrb[0].mxu0 %v486
      %v847 = vpop.f32.mrb[0].mxu0
      %v848 = vadd.f32 0.0, %v847
      %v849 = vpop.f32.mrb[0].mxu0
      %850 = vmatprep.mubr.f32.mxu0 0.0
      %851 = vmatmul.mubr.f32.gmra.mrb[0].mxu0 %v487
      %v852 = vpop.f32.mrb[0].mxu0
      %v853 = vadd.f32 0.0, %v852
      %v854 = vpop.f32.mrb[0].mxu0
      %855 = vdwg.mxu0
      %v856 = vld [vmem:[%s5 + $0x80] sm:$0xff]
      %v857 = vld [vmem:[%s5 + $0x88] sm:$0xff]
      %v858 = vld [vmem:[%s5 + $0x90] sm:$0xff]
      %v859 = vld [vmem:[%s5 + $0x98] sm:$0xff]
      %v860 = vld [vmem:[%s5 + $0xa0] sm:$0xff]
      %v861 = vld [vmem:[%s5 + $0xa8] sm:$0xff]
      %v862 = vld [vmem:[%s5 + $0xb0] sm:$0xff]
      %v863 = vld [vmem:[%s5 + $0xb8] sm:$0xff]
      %v864 = vld [vmem:[%s5 + $0xc0] sm:$0xff]
      %v865 = vld [vmem:[%s5 + $0xc8] sm:$0xff]
      %v866 = vld [vmem:[%s5 + $0xd0] sm:$0xff]
      %v867 = vld [vmem:[%s5 + $0xd8] sm:$0xff]
      %v868 = vld [vmem:[%s5 + $0xe0] sm:$0xff]
      %v869 = vld [vmem:[%s5 + $0xe8] sm:$0xff]
      %v870 = vld [vmem:[%s5 + $0xf0] sm:$0xff]
      %v871 = vld [vmem:[%s5 + $0xf8] sm:$0xff]
      %872 = vmatprep.subr.mxu0 0.0
      %873 = vmatpush1.msra.mxu0 %v856
      %874 = vmatprep.subr.mxu0 0.0
      %875 = vmatpush1.msra.mxu0 %v857
      %876 = vmatprep.subr.mxu0 0.0
      %877 = vmatpush1.msra.mxu0 %v858
      %878 = vmatprep.subr.mxu0 0.0
      %879 = vmatpush1.msra.mxu0 %v859
      %880 = vmatprep.subr.mxu0 0.0
      %881 = vmatpush1.msra.mxu0 %v860
      %882 = vmatprep.subr.mxu0 0.0
      %883 = vmatpush1.msra.mxu0 %v861
      %884 = vmatprep.subr.mxu0 0.0
      %885 = vmatpush1.msra.mxu0 %v862
      %886 = vmatprep.subr.mxu0 0.0
      %887 = vmatpush1.msra.mxu0 %v863
      %888 = vmatprep.subr.mxu0 0.0
      %889 = vmatpush1.msra.mxu0 %v864
      %890 = vmatprep.subr.mxu0 0.0
      %891 = vmatpush1.msra.mxu0 %v865
      %892 = vmatprep.subr.mxu0 0.0
      %893 = vmatpush1.msra.mxu0 %v866
      %894 = vmatprep.subr.mxu0 0.0
      %895 = vmatpush1.msra.mxu0 %v867
      %896 = vmatprep.subr.mxu0 0.0
      %897 = vmatpush1.msra.mxu0 %v868
      %898 = vmatprep.subr.mxu0 0.0
      %899 = vmatpush1.msra.mxu0 %v869
      %900 = vmatprep.subr.mxu0 0.0
      %901 = vmatpush1.msra.mxu0 %v870
      %902 = vmatprep.subr.mxu0 0.0
      %903 = vmatpush1.msra.mxu0 %v871
      %904 = vmatprep.subr.mxu0 0.0
      %905 = vmatpush1.msra.mxu0 0.0
      %906 = vmatprep.subr.mxu0 0.0
      %907 = vmatpush1.msra.mxu0 0.0
      %908 = vmatprep.subr.mxu0 0.0
      %909 = vmatpush1.msra.mxu0 0.0
      %910 = vmatprep.subr.mxu0 0.0
      %911 = vmatpush1.msra.mxu0 0.0
      %912 = vmatprep.subr.mxu0 0.0
      %913 = vmatpush1.msra.mxu0 0.0
      %914 = vmatprep.subr.mxu0 0.0
      %915 = vmatpush1.msra.mxu0 0.0
      %916 = vmatprep.subr.mxu0 0.0
      %917 = vmatpush1.msra.mxu0 0.0
      %918 = vmatprep.subr.mxu0 0.0
      %919 = vmatpush1.msra.mxu0 0.0
      %920 = vmatprep.subr.mxu0 0.0
      %921 = vmatpush1.msra.mxu0 0.0
      %922 = vmatprep.subr.mxu0 0.0
      %923 = vmatpush1.msra.mxu0 0.0
      %924 = vmatprep.subr.mxu0 0.0
      %925 = vmatpush1.msra.mxu0 0.0
      %926 = vmatprep.subr.mxu0 0.0
      %927 = vmatpush1.msra.mxu0 0.0
      %928 = vmatprep.subr.mxu0 0.0
      %929 = vmatpush1.msra.mxu0 0.0
      %930 = vmatprep.subr.mxu0 0.0
      %931 = vmatpush1.msra.mxu0 0.0
      %932 = vmatprep.subr.mxu0 0.0
      %933 = vmatpush1.msra.mxu0 0.0
      %934 = vmatprep.subr.mxu0 0.0
      %935 = vmatpush1.msra.mxu0 0.0
      %936 = vmatprep.mubr.f32.mxu0 0.0
      %937 = vmatmul.mubr.f32.gmra.mrb[0].mxu0 %v480
      %v938 = vpop.f32.mrb[0].mxu0
      %v939 = vadd.f32 0.0, %v938
      %v940 = vpop.f32.mrb[0].mxu0
      %941 = vmatprep.mubr.f32.mxu0 0.0
      %942 = vmatmul.mubr.f32.gmra.mrb[0].mxu0 %v481
      %v943 = vpop.f32.mrb[0].mxu0
      %v944 = vadd.f32 0.0, %v943
      %v945 = vpop.f32.mrb[0].mxu0
      %946 = vmatprep.mubr.f32.mxu0 0.0
      %947 = vmatmul.mubr.f32.gmra.mrb[0].mxu0 %v482
      %v948 = vpop.f32.mrb[0].mxu0
      %v949 = vadd.f32 0.0, %v948
      %v950 = vpop.f32.mrb[0].mxu0
      %951 = vmatprep.mubr.f32.mxu0 0.0
      %952 = vmatmul.mubr.f32.gmra.mrb[0].mxu0 %v483
      %v953 = vpop.f32.mrb[0].mxu0
      %v954 = vadd.f32 0.0, %v953
      %v955 = vpop.f32.mrb[0].mxu0
      %956 = vmatprep.mubr.f32.mxu0 0.0
      %957 = vmatmul.mubr.f32.gmra.mrb[0].mxu0 %v484
      %v958 = vpop.f32.mrb[0].mxu0
      %v959 = vadd.f32 0.0, %v958
      %v960 = vpop.f32.mrb[0].mxu0
      %961 = vmatprep.mubr.f32.mxu0 0.0
      %962 = vmatmul.mubr.f32.gmra.mrb[0].mxu0 %v485
      %v963 = vpop.f32.mrb[0].mxu0
      %v964 = vadd.f32 0.0, %v963
      %v965 = vpop.f32.mrb[0].mxu0
      %966 = vmatprep.mubr.f32.mxu0 0.0
      %967 = vmatmul.mubr.f32.gmra.mrb[0].mxu0 %v486
      %v968 = vpop.f32.mrb[0].mxu0
      %v969 = vadd.f32 0.0, %v968
      %v970 = vpop.f32.mrb[0].mxu0
      %971 = vmatprep.mubr.f32.mxu0 0.0
      %972 = vmatmul.mubr.f32.gmra.mrb[0].mxu0 %v487
      %v973 = vpop.f32.mrb[0].mxu0
      %v974 = vadd.f32 0.0, %v973
      %v975 = vpop.f32.mrb[0].mxu0
      %976 = vdwg.mxu0
      %vm977 = vcmask 523264
      %v979 = vsel %vm977, %v682, 0
      %v982 = vsel %vm977, %v683, 0
      %v985 = vsel %vm977, %v684, 0
      %v988 = vsel %vm977, %v685, 0
      %v991 = vsel %vm977, %v686, 0
      %v994 = vsel %vm977, %v687, 0
      %v997 = vsel %vm977, %v688, 0
      %v1000 = vsel %vm977, %v689, 0
      %v1003 = vsel %vm977, %v690, 0
      %v1006 = vsel %vm977, %v691, 0
      %v1009 = vsel %vm977, %v692, 0
      %v1012 = vsel %vm977, %v693, 0
      %v1015 = vsel %vm977, %v694, 0
      %v1018 = vsel %vm977, %v695, 0
      %v1021 = vsel %vm977, %v696, 0
      %v1024 = vsel %vm977, %v697, 0
      %1026 = vmatprep.subr.mxu0 0.0
      %1027 = vmatpush1.msra.mxu0 %v939
      %1028 = vmatprep.subr.mxu0 0.0
      %1029 = vmatpush1.msra.mxu0 %v944
      %1030 = vmatprep.subr.mxu0 0.0
      %1031 = vmatpush1.msra.mxu0 %v949
      %1032 = vmatprep.subr.mxu0 0.0
      %1033 = vmatpush1.msra.mxu0 %v954
      %1034 = vmatprep.subr.mxu0 0.0
      %1035 = vmatpush1.msra.mxu0 %v959
      %1036 = vmatprep.subr.mxu0 0.0
      %1037 = vmatpush1.msra.mxu0 %v964
      %1038 = vmatprep.subr.mxu0 0.0
      %1039 = vmatpush1.msra.mxu0 %v969
      %1040 = vmatprep.subr.mxu0 0.0
      %1041 = vmatpush1.msra.mxu0 %v974
      %1042 = vmatprep.subr.mxu0 0.0
      %1043 = vmatpush1.msra.mxu0 0.0
      %1044 = vmatprep.subr.mxu0 0.0
      %1045 = vmatpush1.msra.mxu0 0.0
      %1046 = vmatprep.subr.mxu0 0.0
      %1047 = vmatpush1.msra.mxu0 0.0
      %1048 = vmatprep.subr.mxu0 0.0
      %1049 = vmatpush1.msra.mxu0 0.0
      %1050 = vmatprep.subr.mxu0 0.0
      %1051 = vmatpush1.msra.mxu0 0.0
      %1052 = vmatprep.subr.mxu0 0.0
      %1053 = vmatpush1.msra.mxu0 0.0
      %1054 = vmatprep.subr.mxu0 0.0
      %1055 = vmatpush1.msra.mxu0 0.0
      %1056 = vmatprep.subr.mxu0 0.0
      %1057 = vmatpush1.msra.mxu0 0.0
      %1058 = vmatprep.subr.mxu0 0.0
      %1059 = vmatpush1.msra.mxu0 0.0
      %1060 = vmatprep.subr.mxu0 0.0
      %1061 = vmatpush1.msra.mxu0 0.0
      %1062 = vmatprep.subr.mxu0 0.0
      %1063 = vmatpush1.msra.mxu0 0.0
      %1064 = vmatprep.subr.mxu0 0.0
      %1065 = vmatpush1.msra.mxu0 0.0
      %1066 = vmatprep.subr.mxu0 0.0
      %1067 = vmatpush1.msra.mxu0 0.0
      %1068 = vmatprep.subr.mxu0 0.0
      %1069 = vmatpush1.msra.mxu0 0.0
      %1070 = vmatprep.subr.mxu0 0.0
      %1071 = vmatpush1.msra.mxu0 0.0
      %1072 = vmatprep.subr.mxu0 0.0
      %1073 = vmatpush1.msra.mxu0 0.0
      %1074 = vmatprep.subr.mxu0 0.0
      %1075 = vmatpush1.msra.mxu0 0.0
      %1076 = vmatprep.subr.mxu0 0.0
      %1077 = vmatpush1.msra.mxu0 0.0
      %1078 = vmatprep.subr.mxu0 0.0
      %1079 = vmatpush1.msra.mxu0 0.0
      %1080 = vmatprep.subr.mxu0 0.0
      %1081 = vmatpush1.msra.mxu0 0.0
      %1082 = vmatprep.subr.mxu0 0.0
      %1083 = vmatpush1.msra.mxu0 0.0
      %1084 = vmatprep.subr.mxu0 0.0
      %1085 = vmatpush1.msra.mxu0 0.0
      %1086 = vmatprep.subr.mxu0 0.0
      %1087 = vmatpush1.msra.mxu0 0.0
      %1088 = vmatprep.subr.mxu0 0.0
      %1089 = vmatpush1.msra.mxu0 0.0
      %1090 = vmatprep.mubr.f32.mxu0 0.0
      %1091 = vmatmul.mubr.f32.gmra.mrb[0].mxu0 %v979
      %v1092 = vpop.f32.mrb[0].mxu0
      %v1093 = vadd.f32 0.0, %v1092
      %v1094 = vpop.f32.mrb[0].mxu0
      %1095 = vmatprep.mubr.f32.mxu0 0.0
      %1096 = vmatmul.mubr.f32.gmra.mrb[0].mxu0 %v982
      %v1097 = vpop.f32.mrb[0].mxu0
      %v1098 = vadd.f32 0.0, %v1097
      %v1099 = vpop.f32.mrb[0].mxu0
      %1100 = vmatprep.mubr.f32.mxu0 0.0
      %1101 = vmatmul.mubr.f32.gmra.mrb[0].mxu0 %v985
      %v1102 = vpop.f32.mrb[0].mxu0
      %v1103 = vadd.f32 0.0, %v1102
      %v1104 = vpop.f32.mrb[0].mxu0
      %1105 = vmatprep.mubr.f32.mxu0 0.0
      %1106 = vmatmul.mubr.f32.gmra.mrb[0].mxu0 %v988
      %v1107 = vpop.f32.mrb[0].mxu0
      %v1108 = vadd.f32 0.0, %v1107
      %v1109 = vpop.f32.mrb[0].mxu0
      %1110 = vmatprep.mubr.f32.mxu0 0.0
      %1111 = vmatmul.mubr.f32.gmra.mrb[0].mxu0 %v991
      %v1112 = vpop.f32.mrb[0].mxu0
      %v1113 = vadd.f32 0.0, %v1112
      %v1114 = vpop.f32.mrb[0].mxu0
      %1115 = vmatprep.mubr.f32.mxu0 0.0
      %1116 = vmatmul.mubr.f32.gmra.mrb[0].mxu0 %v994
      %v1117 = vpop.f32.mrb[0].mxu0
      %v1118 = vadd.f32 0.0, %v1117
      %v1119 = vpop.f32.mrb[0].mxu0
      %1120 = vmatprep.mubr.f32.mxu0 0.0
      %1121 = vmatmul.mubr.f32.gmra.mrb[0].mxu0 %v997
      %v1122 = vpop.f32.mrb[0].mxu0
      %v1123 = vadd.f32 0.0, %v1122
      %v1124 = vpop.f32.mrb[0].mxu0
      %1125 = vmatprep.mubr.f32.mxu0 0.0
      %1126 = vmatmul.mubr.f32.gmra.mrb[0].mxu0 %v1000
      %v1127 = vpop.f32.mrb[0].mxu0
      %v1128 = vadd.f32 0.0, %v1127
      %v1129 = vpop.f32.mrb[0].mxu0
      %1130 = vmatprep.mubr.f32.mxu0 0.0
      %1131 = vmatmul.mubr.f32.gmra.mrb[0].mxu0 %v1003
      %v1132 = vpop.f32.mrb[0].mxu0
      %v1133 = vadd.f32 0.0, %v1132
      %v1134 = vpop.f32.mrb[0].mxu0
      %1135 = vmatprep.mubr.f32.mxu0 0.0
      %1136 = vmatmul.mubr.f32.gmra.mrb[0].mxu0 %v1006
      %v1137 = vpop.f32.mrb[0].mxu0
      %v1138 = vadd.f32 0.0, %v1137
      %v1139 = vpop.f32.mrb[0].mxu0
      %1140 = vmatprep.mubr.f32.mxu0 0.0
      %1141 = vmatmul.mubr.f32.gmra.mrb[0].mxu0 %v1009
      %v1142 = vpop.f32.mrb[0].mxu0
      %v1143 = vadd.f32 0.0, %v1142
      %v1144 = vpop.f32.mrb[0].mxu0
      %1145 = vmatprep.mubr.f32.mxu0 0.0
      %1146 = vmatmul.mubr.f32.gmra.mrb[0].mxu0 %v1012
      %v1147 = vpop.f32.mrb[0].mxu0
      %v1148 = vadd.f32 0.0, %v1147
      %v1149 = vpop.f32.mrb[0].mxu0
      %1150 = vmatprep.mubr.f32.mxu0 0.0
      %1151 = vmatmul.mubr.f32.gmra.mrb[0].mxu0 %v1015
      %v1152 = vpop.f32.mrb[0].mxu0
      %v1153 = vadd.f32 0.0, %v1152
      %v1154 = vpop.f32.mrb[0].mxu0
      %1155 = vmatprep.mubr.f32.mxu0 0.0
      %1156 = vmatmul.mubr.f32.gmra.mrb[0].mxu0 %v1018
      %v1157 = vpop.f32.mrb[0].mxu0
      %v1158 = vadd.f32 0.0, %v1157
      %v1159 = vpop.f32.mrb[0].mxu0
      %1160 = vmatprep.mubr.f32.mxu0 0.0
      %1161 = vmatmul.mubr.f32.gmra.mrb[0].mxu0 %v1021
      %v1162 = vpop.f32.mrb[0].mxu0
      %v1163 = vadd.f32 0.0, %v1162
      %v1164 = vpop.f32.mrb[0].mxu0
      %1165 = vmatprep.mubr.f32.mxu0 0.0
      %1166 = vmatmul.mubr.f32.gmra.mrb[0].mxu0 %v1024
      %v1167 = vpop.f32.mrb[0].mxu0
      %v1168 = vadd.f32 0.0, %v1167
      %v1169 = vpop.f32.mrb[0].mxu0
      %1170 = vdwg.mxu0
      %v1172 = vsel %vm977, %v586, 0
      %v1175 = vsel %vm977, %v587, 0
      %v1178 = vsel %vm977, %v588, 0
      %v1181 = vsel %vm977, %v589, 0
      %v1184 = vsel %vm977, %v590, 0
      %v1187 = vsel %vm977, %v591, 0
      %v1190 = vsel %vm977, %v592, 0
      %v1193 = vsel %vm977, %v593, 0
      %v1196 = vsel %vm977, %v594, 0
      %v1199 = vsel %vm977, %v595, 0
      %v1202 = vsel %vm977, %v596, 0
      %v1205 = vsel %vm977, %v597, 0
      %v1208 = vsel %vm977, %v598, 0
      %v1211 = vsel %vm977, %v599, 0
      %v1214 = vsel %vm977, %v600, 0
      %v1217 = vsel %vm977, %v601, 0
      %1219 = vmatprep.subr.mxu0 0.0
      %1220 = vmatpush1.msra.mxu0 %v818
      %1221 = vmatprep.subr.mxu0 0.0
      %1222 = vmatpush1.msra.mxu0 %v823
      %1223 = vmatprep.subr.mxu0 0.0
      %1224 = vmatpush1.msra.mxu0 %v828
      %1225 = vmatprep.subr.mxu0 0.0
      %1226 = vmatpush1.msra.mxu0 %v833
      %1227 = vmatprep.subr.mxu0 0.0
      %1228 = vmatpush1.msra.mxu0 %v838
      %1229 = vmatprep.subr.mxu0 0.0
      %1230 = vmatpush1.msra.mxu0 %v843
      %1231 = vmatprep.subr.mxu0 0.0
      %1232 = vmatpush1.msra.mxu0 %v848
      %1233 = vmatprep.subr.mxu0 0.0
      %1234 = vmatpush1.msra.mxu0 %v853
      %1235 = vmatprep.subr.mxu0 0.0
      %1236 = vmatpush1.msra.mxu0 0.0
      %1237 = vmatprep.subr.mxu0 0.0
      %1238 = vmatpush1.msra.mxu0 0.0
      %1239 = vmatprep.subr.mxu0 0.0
      %1240 = vmatpush1.msra.mxu0 0.0
      %1241 = vmatprep.subr.mxu0 0.0
      %1242 = vmatpush1.msra.mxu0 0.0
      %1243 = vmatprep.subr.mxu0 0.0
      %1244 = vmatpush1.msra.mxu0 0.0
      %1245 = vmatprep.subr.mxu0 0.0
      %1246 = vmatpush1.msra.mxu0 0.0
      %1247 = vmatprep.subr.mxu0 0.0
      %1248 = vmatpush1.msra.mxu0 0.0
      %1249 = vmatprep.subr.mxu0 0.0
      %1250 = vmatpush1.msra.mxu0 0.0
      %1251 = vmatprep.subr.mxu0 0.0
      %1252 = vmatpush1.msra.mxu0 0.0
      %1253 = vmatprep.subr.mxu0 0.0
      %1254 = vmatpush1.msra.mxu0 0.0
      %1255 = vmatprep.subr.mxu0 0.0
      %1256 = vmatpush1.msra.mxu0 0.0
      %1257 = vmatprep.subr.mxu0 0.0
      %1258 = vmatpush1.msra.mxu0 0.0
      %1259 = vmatprep.subr.mxu0 0.0
      %1260 = vmatpush1.msra.mxu0 0.0
      %1261 = vmatprep.subr.mxu0 0.0
      %1262 = vmatpush1.msra.mxu0 0.0
      %1263 = vmatprep.subr.mxu0 0.0
      %1264 = vmatpush1.msra.mxu0 0.0
      %1265 = vmatprep.subr.mxu0 0.0
      %1266 = vmatpush1.msra.mxu0 0.0
      %1267 = vmatprep.subr.mxu0 0.0
      %1268 = vmatpush1.msra.mxu0 0.0
      %1269 = vmatprep.subr.mxu0 0.0
      %1270 = vmatpush1.msra.mxu0 0.0
      %1271 = vmatprep.subr.mxu0 0.0
      %1272 = vmatpush1.msra.mxu0 0.0
      %1273 = vmatprep.subr.mxu0 0.0
      %1274 = vmatpush1.msra.mxu0 0.0
      %1275 = vmatprep.subr.mxu0 0.0
      %1276 = vmatpush1.msra.mxu0 0.0
      %1277 = vmatprep.subr.mxu0 0.0
      %1278 = vmatpush1.msra.mxu0 0.0
      %1279 = vmatprep.subr.mxu0 0.0
      %1280 = vmatpush1.msra.mxu0 0.0
      %1281 = vmatprep.subr.mxu0 0.0
      %1282 = vmatpush1.msra.mxu0 0.0
      %1283 = vmatprep.mubr.f32.mxu0 0.0
      %1284 = vmatmul.mubr.f32.gmra.mrb[0].mxu0 %v1172
      %v1285 = vpop.f32.mrb[0].mxu0
      %v1286 = vadd.f32 %v1093, %v1285
      %v1287 = vpop.f32.mrb[0].mxu0
      %1288 = vmatprep.mubr.f32.mxu0 0.0
      %1289 = vmatmul.mubr.f32.gmra.mrb[0].mxu0 %v1175
      %v1290 = vpop.f32.mrb[0].mxu0
      %v1291 = vadd.f32 %v1098, %v1290
      %v1292 = vpop.f32.mrb[0].mxu0
      %1293 = vmatprep.mubr.f32.mxu0 0.0
      %1294 = vmatmul.mubr.f32.gmra.mrb[0].mxu0 %v1178
      %v1295 = vpop.f32.mrb[0].mxu0
      %v1296 = vadd.f32 %v1103, %v1295
      %v1297 = vpop.f32.mrb[0].mxu0
      %1298 = vmatprep.mubr.f32.mxu0 0.0
      %1299 = vmatmul.mubr.f32.gmra.mrb[0].mxu0 %v1181
      %v1300 = vpop.f32.mrb[0].mxu0
      %v1301 = vadd.f32 %v1108, %v1300
      %v1302 = vpop.f32.mrb[0].mxu0
      %1303 = vmatprep.mubr.f32.mxu0 0.0
      %1304 = vmatmul.mubr.f32.gmra.mrb[0].mxu0 %v1184
      %v1305 = vpop.f32.mrb[0].mxu0
      %v1306 = vadd.f32 %v1113, %v1305
      %v1307 = vpop.f32.mrb[0].mxu0
      %1308 = vmatprep.mubr.f32.mxu0 0.0
      %1309 = vmatmul.mubr.f32.gmra.mrb[0].mxu0 %v1187
      %v1310 = vpop.f32.mrb[0].mxu0
      %v1311 = vadd.f32 %v1118, %v1310
      %v1312 = vpop.f32.mrb[0].mxu0
      %1313 = vmatprep.mubr.f32.mxu0 0.0
      %1314 = vmatmul.mubr.f32.gmra.mrb[0].mxu0 %v1190
      %v1315 = vpop.f32.mrb[0].mxu0
      %v1316 = vadd.f32 %v1123, %v1315
      %v1317 = vpop.f32.mrb[0].mxu0
      %1318 = vmatprep.mubr.f32.mxu0 0.0
      %1319 = vmatmul.mubr.f32.gmra.mrb[0].mxu0 %v1193
      %v1320 = vpop.f32.mrb[0].mxu0
      %v1321 = vadd.f32 %v1128, %v1320
      %v1322 = vpop.f32.mrb[0].mxu0
      %1323 = vmatprep.mubr.f32.mxu0 0.0
      %1324 = vmatmul.mubr.f32.gmra.mrb[0].mxu0 %v1196
      %v1325 = vpop.f32.mrb[0].mxu0
      %v1326 = vadd.f32 %v1133, %v1325
      %v1327 = vpop.f32.mrb[0].mxu0
      %1328 = vmatprep.mubr.f32.mxu0 0.0
      %1329 = vmatmul.mubr.f32.gmra.mrb[0].mxu0 %v1199
      %v1330 = vpop.f32.mrb[0].mxu0
      %v1331 = vadd.f32 %v1138, %v1330
      %v1332 = vpop.f32.mrb[0].mxu0
      %1333 = vmatprep.mubr.f32.mxu0 0.0
      %1334 = vmatmul.mubr.f32.gmra.mrb[0].mxu0 %v1202
      %v1335 = vpop.f32.mrb[0].mxu0
      %v1336 = vadd.f32 %v1143, %v1335
      %v1337 = vpop.f32.mrb[0].mxu0
      %1338 = vmatprep.mubr.f32.mxu0 0.0
      %1339 = vmatmul.mubr.f32.gmra.mrb[0].mxu0 %v1205
      %v1340 = vpop.f32.mrb[0].mxu0
      %v1341 = vadd.f32 %v1148, %v1340
      %v1342 = vpop.f32.mrb[0].mxu0
      %1343 = vmatprep.mubr.f32.mxu0 0.0
      %1344 = vmatmul.mubr.f32.gmra.mrb[0].mxu0 %v1208
      %v1345 = vpop.f32.mrb[0].mxu0
      %v1346 = vadd.f32 %v1153, %v1345
      %v1347 = vpop.f32.mrb[0].mxu0
      %1348 = vmatprep.mubr.f32.mxu0 0.0
      %1349 = vmatmul.mubr.f32.gmra.mrb[0].mxu0 %v1211
      %v1350 = vpop.f32.mrb[0].mxu0
      %v1351 = vadd.f32 %v1158, %v1350
      %v1352 = vpop.f32.mrb[0].mxu0
      %1353 = vmatprep.mubr.f32.mxu0 0.0
      %1354 = vmatmul.mubr.f32.gmra.mrb[0].mxu0 %v1214
      %v1355 = vpop.f32.mrb[0].mxu0
      %v1356 = vadd.f32 %v1163, %v1355
      %v1357 = vpop.f32.mrb[0].mxu0
      %1358 = vmatprep.mubr.f32.mxu0 0.0
      %1359 = vmatmul.mubr.f32.gmra.mrb[0].mxu0 %v1217
      %v1360 = vpop.f32.mrb[0].mxu0
      %v1361 = vadd.f32 %v1168, %v1360
      %v1362 = vpop.f32.mrb[0].mxu0
      %1363 = vdwg.mxu0
      %v1364 = vld [vmem:[%s5 + $0x100] sm:$0xff]
      %v1365 = vld [vmem:[%s5 + $0x108] sm:$0xff]
      %v1366 = vld [vmem:[%s5 + $0x110] sm:$0xff]
      %v1367 = vld [vmem:[%s5 + $0x118] sm:$0xff]
      %v1368 = vld [vmem:[%s5 + $0x120] sm:$0xff]
      %v1369 = vld [vmem:[%s5 + $0x128] sm:$0xff]
      %v1370 = vld [vmem:[%s5 + $0x130] sm:$0xff]
      %v1371 = vld [vmem:[%s5 + $0x138] sm:$0xff]
      %v1372 = vld [vmem:[%s5 + $0x140] sm:$0xff]
      %v1373 = vld [vmem:[%s5 + $0x148] sm:$0xff]
      %v1374 = vld [vmem:[%s5 + $0x150] sm:$0xff]
      %v1375 = vld [vmem:[%s5 + $0x158] sm:$0xff]
      %v1376 = vld [vmem:[%s5 + $0x160] sm:$0xff]
      %v1377 = vld [vmem:[%s5 + $0x168] sm:$0xff]
      %v1378 = vld [vmem:[%s5 + $0x170] sm:$0xff]
      %v1379 = vld [vmem:[%s5 + $0x178] sm:$0xff]
      %1380 = vmatprep.subr.mxu0 0.0
      %1381 = vmatpush1.msra.mxu0 %v1364
      %1382 = vmatprep.subr.mxu0 0.0
      %1383 = vmatpush1.msra.mxu0 %v1365
      %1384 = vmatprep.subr.mxu0 0.0
      %1385 = vmatpush1.msra.mxu0 %v1366
      %1386 = vmatprep.subr.mxu0 0.0
      %1387 = vmatpush1.msra.mxu0 %v1367
      %1388 = vmatprep.subr.mxu0 0.0
      %1389 = vmatpush1.msra.mxu0 %v1368
      %1390 = vmatprep.subr.mxu0 0.0
      %1391 = vmatpush1.msra.mxu0 %v1369
      %1392 = vmatprep.subr.mxu0 0.0
      %1393 = vmatpush1.msra.mxu0 %v1370
      %1394 = vmatprep.subr.mxu0 0.0
      %1395 = vmatpush1.msra.mxu0 %v1371
      %1396 = vmatprep.subr.mxu0 0.0
      %1397 = vmatpush1.msra.mxu0 %v1372
      %1398 = vmatprep.subr.mxu0 0.0
      %1399 = vmatpush1.msra.mxu0 %v1373
      %1400 = vmatprep.subr.mxu0 0.0
      %1401 = vmatpush1.msra.mxu0 %v1374
      %1402 = vmatprep.subr.mxu0 0.0
      %1403 = vmatpush1.msra.mxu0 %v1375
      %1404 = vmatprep.subr.mxu0 0.0
      %1405 = vmatpush1.msra.mxu0 %v1376
      %1406 = vmatprep.subr.mxu0 0.0
      %1407 = vmatpush1.msra.mxu0 %v1377
      %1408 = vmatprep.subr.mxu0 0.0
      %1409 = vmatpush1.msra.mxu0 %v1378
      %1410 = vmatprep.subr.mxu0 0.0
      %1411 = vmatpush1.msra.mxu0 %v1379
      %1412 = vmatprep.subr.mxu0 0.0
      %1413 = vmatpush1.msra.mxu0 0.0
      %1414 = vmatprep.subr.mxu0 0.0
      %1415 = vmatpush1.msra.mxu0 0.0
      %1416 = vmatprep.subr.mxu0 0.0
      %1417 = vmatpush1.msra.mxu0 0.0
      %1418 = vmatprep.subr.mxu0 0.0
      %1419 = vmatpush1.msra.mxu0 0.0
      %1420 = vmatprep.subr.mxu0 0.0
      %1421 = vmatpush1.msra.mxu0 0.0
      %1422 = vmatprep.subr.mxu0 0.0
      %1423 = vmatpush1.msra.mxu0 0.0
      %1424 = vmatprep.subr.mxu0 0.0
      %1425 = vmatpush1.msra.mxu0 0.0
      %1426 = vmatprep.subr.mxu0 0.0
      %1427 = vmatpush1.msra.mxu0 0.0
      %1428 = vmatprep.subr.mxu0 0.0
      %1429 = vmatpush1.msra.mxu0 0.0
      %1430 = vmatprep.subr.mxu0 0.0
      %1431 = vmatpush1.msra.mxu0 0.0
      %1432 = vmatprep.subr.mxu0 0.0
      %1433 = vmatpush1.msra.mxu0 0.0
      %1434 = vmatprep.subr.mxu0 0.0
      %1435 = vmatpush1.msra.mxu0 0.0
      %1436 = vmatprep.subr.mxu0 0.0
      %1437 = vmatpush1.msra.mxu0 0.0
      %1438 = vmatprep.subr.mxu0 0.0
      %1439 = vmatpush1.msra.mxu0 0.0
      %1440 = vmatprep.subr.mxu0 0.0
      %1441 = vmatpush1.msra.mxu0 0.0
      %1442 = vmatprep.subr.mxu0 0.0
      %1443 = vmatpush1.msra.mxu0 0.0
      %1444 = vmatprep.mubr.f32.mxu0 0.0
      %1445 = vmatmul.mubr.f32.gmra.mrb[0].mxu0 %v488
      %v1446 = vpop.f32.mrb[0].mxu0
      %v1447 = vadd.f32 0.0, %v1446
      %v1448 = vpop.f32.mrb[0].mxu0
      %1449 = vmatprep.mubr.f32.mxu0 0.0
      %1450 = vmatmul.mubr.f32.gmra.mrb[0].mxu0 %v489
      %v1451 = vpop.f32.mrb[0].mxu0
      %v1452 = vadd.f32 0.0, %v1451
      %v1453 = vpop.f32.mrb[0].mxu0
      %1454 = vmatprep.mubr.f32.mxu0 0.0
      %1455 = vmatmul.mubr.f32.gmra.mrb[0].mxu0 %v490
      %v1456 = vpop.f32.mrb[0].mxu0
      %v1457 = vadd.f32 0.0, %v1456
      %v1458 = vpop.f32.mrb[0].mxu0
      %1459 = vmatprep.mubr.f32.mxu0 0.0
      %1460 = vmatmul.mubr.f32.gmra.mrb[0].mxu0 %v491
      %v1461 = vpop.f32.mrb[0].mxu0
      %v1462 = vadd.f32 0.0, %v1461
      %v1463 = vpop.f32.mrb[0].mxu0
      %1464 = vmatprep.mubr.f32.mxu0 0.0
      %1465 = vmatmul.mubr.f32.gmra.mrb[0].mxu0 %v492
      %v1466 = vpop.f32.mrb[0].mxu0
      %v1467 = vadd.f32 0.0, %v1466
      %v1468 = vpop.f32.mrb[0].mxu0
      %1469 = vmatprep.mubr.f32.mxu0 0.0
      %1470 = vmatmul.mubr.f32.gmra.mrb[0].mxu0 %v493
      %v1471 = vpop.f32.mrb[0].mxu0
      %v1472 = vadd.f32 0.0, %v1471
      %v1473 = vpop.f32.mrb[0].mxu0
      %1474 = vmatprep.mubr.f32.mxu0 0.0
      %1475 = vmatmul.mubr.f32.gmra.mrb[0].mxu0 %v494
      %v1476 = vpop.f32.mrb[0].mxu0
      %v1477 = vadd.f32 0.0, %v1476
      %v1478 = vpop.f32.mrb[0].mxu0
      %1479 = vmatprep.mubr.f32.mxu0 0.0
      %1480 = vmatmul.mubr.f32.gmra.mrb[0].mxu0 %v495
      %v1481 = vpop.f32.mrb[0].mxu0
      %v1482 = vadd.f32 0.0, %v1481
      %v1483 = vpop.f32.mrb[0].mxu0
      %1484 = vmatprep.mubr.f32.mxu0 0.0
      %1485 = vmatmul.mubr.f32.gmra.mrb[0].mxu0 %v496
      %v1486 = vpop.f32.mrb[0].mxu0
      %v1487 = vadd.f32 0.0, %v1486
      %v1488 = vpop.f32.mrb[0].mxu0
      %1489 = vmatprep.mubr.f32.mxu0 0.0
      %1490 = vmatmul.mubr.f32.gmra.mrb[0].mxu0 %v497
      %v1491 = vpop.f32.mrb[0].mxu0
      %v1492 = vadd.f32 0.0, %v1491
      %v1493 = vpop.f32.mrb[0].mxu0
      %1494 = vmatprep.mubr.f32.mxu0 0.0
      %1495 = vmatmul.mubr.f32.gmra.mrb[0].mxu0 %v498
      %v1496 = vpop.f32.mrb[0].mxu0
      %v1497 = vadd.f32 0.0, %v1496
      %v1498 = vpop.f32.mrb[0].mxu0
      %1499 = vmatprep.mubr.f32.mxu0 0.0
      %1500 = vmatmul.mubr.f32.gmra.mrb[0].mxu0 %v499
      %v1501 = vpop.f32.mrb[0].mxu0
      %v1502 = vadd.f32 0.0, %v1501
      %v1503 = vpop.f32.mrb[0].mxu0
      %1504 = vmatprep.mubr.f32.mxu0 0.0
      %1505 = vmatmul.mubr.f32.gmra.mrb[0].mxu0 %v500
      %v1506 = vpop.f32.mrb[0].mxu0
      %v1507 = vadd.f32 0.0, %v1506
      %v1508 = vpop.f32.mrb[0].mxu0
      %1509 = vmatprep.mubr.f32.mxu0 0.0
      %1510 = vmatmul.mubr.f32.gmra.mrb[0].mxu0 %v501
      %v1511 = vpop.f32.mrb[0].mxu0
      %v1512 = vadd.f32 0.0, %v1511
      %v1513 = vpop.f32.mrb[0].mxu0
      %1514 = vmatprep.mubr.f32.mxu0 0.0
      %1515 = vmatmul.mubr.f32.gmra.mrb[0].mxu0 %v502
      %v1516 = vpop.f32.mrb[0].mxu0
      %v1517 = vadd.f32 0.0, %v1516
      %v1518 = vpop.f32.mrb[0].mxu0
      %1519 = vmatprep.mubr.f32.mxu0 0.0
      %1520 = vmatmul.mubr.f32.gmra.mrb[0].mxu0 %v503
      %v1521 = vpop.f32.mrb[0].mxu0
      %v1522 = vadd.f32 0.0, %v1521
      %v1523 = vpop.f32.mrb[0].mxu0
      %1524 = vdwg.mxu0
      %v1525 = vadd.f32 %v1286, %v1447
      %v1526 = vadd.f32 %v1291, %v1452
      %v1527 = vadd.f32 %v1296, %v1457
      %v1528 = vadd.f32 %v1301, %v1462
      %v1529 = vadd.f32 %v1306, %v1467
      %v1530 = vadd.f32 %v1311, %v1472
      %v1531 = vadd.f32 %v1316, %v1477
      %v1532 = vadd.f32 %v1321, %v1482
      %v1533 = vadd.f32 %v1326, %v1487
      %v1534 = vadd.f32 %v1331, %v1492
      %v1535 = vadd.f32 %v1336, %v1497
      %v1536 = vadd.f32 %v1341, %v1502
      %v1537 = vadd.f32 %v1346, %v1507
      %v1538 = vadd.f32 %v1351, %v1512
      %v1539 = vadd.f32 %v1356, %v1517
      %v1540 = vadd.f32 %v1361, %v1522
      %v1541 = vld [vmem:[%s6] sm:$0x1]
      %v1542 = vlaneseq
      %v1543 = vshrl.u32 %v1542, 7
      %v1544 = vsub.s32 0, %v1543
      %v1545 = vrot.slane %v1541, %v1544
      %v1546 = vadd.f32 %v1525, %v1545
      %v1547 = vadd.f32 %v1526, %v1545
      %v1548 = vadd.f32 %v1527, %v1545
      %v1549 = vadd.f32 %v1528, %v1545
      %v1550 = vadd.f32 %v1529, %v1545
      %v1551 = vadd.f32 %v1530, %v1545
      %v1552 = vadd.f32 %v1531, %v1545
      %v1553 = vadd.f32 %v1532, %v1545
      %v1554 = vadd.f32 %v1533, %v1545
      %v1555 = vadd.f32 %v1534, %v1545
      %v1556 = vadd.f32 %v1535, %v1545
      %v1557 = vadd.f32 %v1536, %v1545
      %v1558 = vadd.f32 %v1537, %v1545
      %v1559 = vadd.f32 %v1538, %v1545
      %v1560 = vadd.f32 %v1539, %v1545
      %v1561 = vadd.f32 %v1540, %v1545
      %v1562 = vmax.f32 %v1546, 0.0
      %v1563 = vmax.f32 %v1547, 0.0
      %v1564 = vmax.f32 %v1548, 0.0
      %v1565 = vmax.f32 %v1549, 0.0
      %v1566 = vmax.f32 %v1550, 0.0
      %v1567 = vmax.f32 %v1551, 0.0
      %v1568 = vmax.f32 %v1552, 0.0
      %v1569 = vmax.f32 %v1553, 0.0
      %v1570 = vmax.f32 %v1554, 0.0
      %v1571 = vmax.f32 %v1555, 0.0
      %v1572 = vmax.f32 %v1556, 0.0
      %v1573 = vmax.f32 %v1557, 0.0
      %v1574 = vmax.f32 %v1558, 0.0
      %v1575 = vmax.f32 %v1559, 0.0
      %v1576 = vmax.f32 %v1560, 0.0
      %v1577 = vmax.f32 %v1561, 0.0
      %v1578 = vld [vmem:[%s5 + $0x180] sm:$0xff]
      %v1579 = vld [vmem:[%s5 + $0x188] sm:$0xff]
      %v1580 = vld [vmem:[%s5 + $0x190] sm:$0xff]
      %v1581 = vld [vmem:[%s5 + $0x198] sm:$0xff]
      %v1582 = vld [vmem:[%s5 + $0x1a0] sm:$0xff]
      %v1583 = vld [vmem:[%s5 + $0x1a8] sm:$0xff]
      %v1584 = vld [vmem:[%s5 + $0x1b0] sm:$0xff]
      %v1585 = vld [vmem:[%s5 + $0x1b8] sm:$0xff]
      %v1586 = vld [vmem:[%s5 + $0x1c0] sm:$0xff]
      %v1587 = vld [vmem:[%s5 + $0x1c8] sm:$0xff]
      %v1588 = vld [vmem:[%s5 + $0x1d0] sm:$0xff]
      %v1589 = vld [vmem:[%s5 + $0x1d8] sm:$0xff]
      %v1590 = vld [vmem:[%s5 + $0x1e0] sm:$0xff]
      %v1591 = vld [vmem:[%s5 + $0x1e8] sm:$0xff]
      %v1592 = vld [vmem:[%s5 + $0x1f0] sm:$0xff]
      %v1593 = vld [vmem:[%s5 + $0x1f8] sm:$0xff]
      %v1594 = vld [vmem:[%s6 + $0x1] sm:$0x1]
      %v1595 = vlaneseq
      %v1596 = vshrl.u32 %v1595, 7
      %v1597 = vsub.s32 0, %v1596
      %v1598 = vrot.slane %v1594, %v1597
      %1599 = vmatprep.subr.mxu0 0.0
      %1600 = vmatpush1.msra.mxu0 %v1578
      %1601 = vmatprep.subr.mxu0 0.0
      %1602 = vmatpush1.msra.mxu0 %v1579
      %1603 = vmatprep.subr.mxu0 0.0
      %1604 = vmatpush1.msra.mxu0 %v1580
      %1605 = vmatprep.subr.mxu0 0.0
      %1606 = vmatpush1.msra.mxu0 %v1581
      %1607 = vmatprep.subr.mxu0 0.0
      %1608 = vmatpush1.msra.mxu0 %v1582
      %1609 = vmatprep.subr.mxu0 0.0
      %1610 = vmatpush1.msra.mxu0 %v1583
      %1611 = vmatprep.subr.mxu0 0.0
      %1612 = vmatpush1.msra.mxu0 %v1584
      %1613 = vmatprep.subr.mxu0 0.0
      %1614 = vmatpush1.msra.mxu0 %v1585
      %1615 = vmatprep.subr.mxu0 0.0
      %1616 = vmatpush1.msra.mxu0 %v1586
      %1617 = vmatprep.subr.mxu0 0.0
      %1618 = vmatpush1.msra.mxu0 %v1587
      %1619 = vmatprep.subr.mxu0 0.0
      %1620 = vmatpush1.msra.mxu0 %v1588
      %1621 = vmatprep.subr.mxu0 0.0
      %1622 = vmatpush1.msra.mxu0 %v1589
      %1623 = vmatprep.subr.mxu0 0.0
      %1624 = vmatpush1.msra.mxu0 %v1590
      %1625 = vmatprep.subr.mxu0 0.0
      %1626 = vmatpush1.msra.mxu0 %v1591
      %1627 = vmatprep.subr.mxu0 0.0
      %1628 = vmatpush1.msra.mxu0 %v1592
      %1629 = vmatprep.subr.mxu0 0.0
      %1630 = vmatpush1.msra.mxu0 %v1593
      %1631 = vmatprep.subr.mxu0 0.0
      %1632 = vmatpush1.msra.mxu0 0.0
      %1633 = vmatprep.subr.mxu0 0.0
      %1634 = vmatpush1.msra.mxu0 0.0
      %1635 = vmatprep.subr.mxu0 0.0
      %1636 = vmatpush1.msra.mxu0 0.0
      %1637 = vmatprep.subr.mxu0 0.0
      %1638 = vmatpush1.msra.mxu0 0.0
      %1639 = vmatprep.subr.mxu0 0.0
      %1640 = vmatpush1.msra.mxu0 0.0
      %1641 = vmatprep.subr.mxu0 0.0
      %1642 = vmatpush1.msra.mxu0 0.0
      %1643 = vmatprep.subr.mxu0 0.0
      %1644 = vmatpush1.msra.mxu0 0.0
      %1645 = vmatprep.subr.mxu0 0.0
      %1646 = vmatpush1.msra.mxu0 0.0
      %1647 = vmatprep.subr.mxu0 0.0
      %1648 = vmatpush1.msra.mxu0 0.0
      %1649 = vmatprep.subr.mxu0 0.0
      %1650 = vmatpush1.msra.mxu0 0.0
      %1651 = vmatprep.subr.mxu0 0.0
      %1652 = vmatpush1.msra.mxu0 0.0
      %1653 = vmatprep.subr.mxu0 0.0
      %1654 = vmatpush1.msra.mxu0 0.0
      %1655 = vmatprep.subr.mxu0 0.0
      %1656 = vmatpush1.msra.mxu0 0.0
      %1657 = vmatprep.subr.mxu0 0.0
      %1658 = vmatpush1.msra.mxu0 0.0
      %1659 = vmatprep.subr.mxu0 0.0
      %1660 = vmatpush1.msra.mxu0 0.0
      %1661 = vmatprep.subr.mxu0 0.0
      %1662 = vmatpush1.msra.mxu0 0.0
      %1663 = vmatprep.mubr.f32.mxu0 0.0
      %1664 = vmatmul.mubr.f32.gmra.mrb[0].mxu0 %v1562
      %v1665 = vpop.f32.mrb[0].mxu0
      %v1666 = vadd.f32 %v1598, %v1665
      %v1667 = vpop.f32.mrb[0].mxu0
      %1668 = vmatprep.mubr.f32.mxu0 0.0
      %1669 = vmatmul.mubr.f32.gmra.mrb[0].mxu0 %v1563
      %v1670 = vpop.f32.mrb[0].mxu0
      %v1671 = vadd.f32 %v1598, %v1670
      %v1672 = vpop.f32.mrb[0].mxu0
      %1673 = vmatprep.mubr.f32.mxu0 0.0
      %1674 = vmatmul.mubr.f32.gmra.mrb[0].mxu0 %v1564
      %v1675 = vpop.f32.mrb[0].mxu0
      %v1676 = vadd.f32 %v1598, %v1675
      %v1677 = vpop.f32.mrb[0].mxu0
      %1678 = vmatprep.mubr.f32.mxu0 0.0
      %1679 = vmatmul.mubr.f32.gmra.mrb[0].mxu0 %v1565
      %v1680 = vpop.f32.mrb[0].mxu0
      %v1681 = vadd.f32 %v1598, %v1680
      %v1682 = vpop.f32.mrb[0].mxu0
      %1683 = vmatprep.mubr.f32.mxu0 0.0
      %1684 = vmatmul.mubr.f32.gmra.mrb[0].mxu0 %v1566
      %v1685 = vpop.f32.mrb[0].mxu0
      %v1686 = vadd.f32 %v1598, %v1685
      %v1687 = vpop.f32.mrb[0].mxu0
      %1688 = vmatprep.mubr.f32.mxu0 0.0
      %1689 = vmatmul.mubr.f32.gmra.mrb[0].mxu0 %v1567
      %v1690 = vpop.f32.mrb[0].mxu0
      %v1691 = vadd.f32 %v1598, %v1690
      %v1692 = vpop.f32.mrb[0].mxu0
      %1693 = vmatprep.mubr.f32.mxu0 0.0
      %1694 = vmatmul.mubr.f32.gmra.mrb[0].mxu0 %v1568
      %v1695 = vpop.f32.mrb[0].mxu0
      %v1696 = vadd.f32 %v1598, %v1695
      %v1697 = vpop.f32.mrb[0].mxu0
      %1698 = vmatprep.mubr.f32.mxu0 0.0
      %1699 = vmatmul.mubr.f32.gmra.mrb[0].mxu0 %v1569
      %v1700 = vpop.f32.mrb[0].mxu0
      %v1701 = vadd.f32 %v1598, %v1700
      %v1702 = vpop.f32.mrb[0].mxu0
      %1703 = vmatprep.mubr.f32.mxu0 0.0
      %1704 = vmatmul.mubr.f32.gmra.mrb[0].mxu0 %v1570
      %v1705 = vpop.f32.mrb[0].mxu0
      %v1706 = vadd.f32 %v1598, %v1705
      %v1707 = vpop.f32.mrb[0].mxu0
      %1708 = vmatprep.mubr.f32.mxu0 0.0
      %1709 = vmatmul.mubr.f32.gmra.mrb[0].mxu0 %v1571
      %v1710 = vpop.f32.mrb[0].mxu0
      %v1711 = vadd.f32 %v1598, %v1710
      %v1712 = vpop.f32.mrb[0].mxu0
      %1713 = vmatprep.mubr.f32.mxu0 0.0
      %1714 = vmatmul.mubr.f32.gmra.mrb[0].mxu0 %v1572
      %v1715 = vpop.f32.mrb[0].mxu0
      %v1716 = vadd.f32 %v1598, %v1715
      %v1717 = vpop.f32.mrb[0].mxu0
      %1718 = vmatprep.mubr.f32.mxu0 0.0
      %1719 = vmatmul.mubr.f32.gmra.mrb[0].mxu0 %v1573
      %v1720 = vpop.f32.mrb[0].mxu0
      %v1721 = vadd.f32 %v1598, %v1720
      %v1722 = vpop.f32.mrb[0].mxu0
      %1723 = vmatprep.mubr.f32.mxu0 0.0
      %1724 = vmatmul.mubr.f32.gmra.mrb[0].mxu0 %v1574
      %v1725 = vpop.f32.mrb[0].mxu0
      %v1726 = vadd.f32 %v1598, %v1725
      %v1727 = vpop.f32.mrb[0].mxu0
      %1728 = vmatprep.mubr.f32.mxu0 0.0
      %1729 = vmatmul.mubr.f32.gmra.mrb[0].mxu0 %v1575
      %v1730 = vpop.f32.mrb[0].mxu0
      %v1731 = vadd.f32 %v1598, %v1730
      %v1732 = vpop.f32.mrb[0].mxu0
      %1733 = vmatprep.mubr.f32.mxu0 0.0
      %1734 = vmatmul.mubr.f32.gmra.mrb[0].mxu0 %v1576
      %v1735 = vpop.f32.mrb[0].mxu0
      %v1736 = vadd.f32 %v1598, %v1735
      %v1737 = vpop.f32.mrb[0].mxu0
      %1738 = vmatprep.mubr.f32.mxu0 0.0
      %1739 = vmatmul.mubr.f32.gmra.mrb[0].mxu0 %v1577
      %v1740 = vpop.f32.mrb[0].mxu0
      %v1741 = vadd.f32 %v1598, %v1740
      %v1742 = vpop.f32.mrb[0].mxu0
      %1743 = vdwg.mxu0
      %v1744 = vmax.f32 %v1666, 0.0
      %v1745 = vmax.f32 %v1671, 0.0
      %v1746 = vmax.f32 %v1676, 0.0
      %v1747 = vmax.f32 %v1681, 0.0
      %v1748 = vmax.f32 %v1686, 0.0
      %v1749 = vmax.f32 %v1691, 0.0
      %v1750 = vmax.f32 %v1696, 0.0
      %v1751 = vmax.f32 %v1701, 0.0
      %v1752 = vmax.f32 %v1706, 0.0
      %v1753 = vmax.f32 %v1711, 0.0
      %v1754 = vmax.f32 %v1716, 0.0
      %v1755 = vmax.f32 %v1721, 0.0
      %v1756 = vmax.f32 %v1726, 0.0
      %v1757 = vmax.f32 %v1731, 0.0
      %v1758 = vmax.f32 %v1736, 0.0
      %v1759 = vmax.f32 %v1741, 0.0
      %v1760 = vld [vmem:[%s5 + $0x200] sm:$0xff]
      %v1761 = vld [vmem:[%s5 + $0x208] sm:$0xff]
      %v1762 = vld [vmem:[%s5 + $0x210] sm:$0xff]
      %v1763 = vld [vmem:[%s5 + $0x218] sm:$0xff]
      %v1764 = vld [vmem:[%s5 + $0x220] sm:$0xff]
      %v1765 = vld [vmem:[%s5 + $0x228] sm:$0xff]
      %v1766 = vld [vmem:[%s5 + $0x230] sm:$0xff]
      %v1767 = vld [vmem:[%s5 + $0x238] sm:$0xff]
      %v1768 = vld [vmem:[%s5 + $0x240] sm:$0xff]
      %v1769 = vld [vmem:[%s5 + $0x248] sm:$0xff]
      %v1770 = vld [vmem:[%s5 + $0x250] sm:$0xff]
      %v1771 = vld [vmem:[%s5 + $0x258] sm:$0xff]
      %v1772 = vld [vmem:[%s5 + $0x260] sm:$0xff]
      %v1773 = vld [vmem:[%s5 + $0x268] sm:$0xff]
      %v1774 = vld [vmem:[%s5 + $0x270] sm:$0xff]
      %v1775 = vld [vmem:[%s5 + $0x278] sm:$0xff]
      %v1776 = vld [vmem:[%s6 + $0x2] sm:$0x1]
      %v1777 = vlaneseq
      %v1778 = vshrl.u32 %v1777, 7
      %v1779 = vsub.s32 0, %v1778
      %v1780 = vrot.slane %v1776, %v1779
      %1781 = vmatprep.subr.mxu0 0.0
      %1782 = vmatpush1.msra.mxu0 %v1760
      %1783 = vmatprep.subr.mxu0 0.0
      %1784 = vmatpush1.msra.mxu0 %v1761
      %1785 = vmatprep.subr.mxu0 0.0
      %1786 = vmatpush1.msra.mxu0 %v1762
      %1787 = vmatprep.subr.mxu0 0.0
      %1788 = vmatpush1.msra.mxu0 %v1763
      %1789 = vmatprep.subr.mxu0 0.0
      %1790 = vmatpush1.msra.mxu0 %v1764
      %1791 = vmatprep.subr.mxu0 0.0
      %1792 = vmatpush1.msra.mxu0 %v1765
      %1793 = vmatprep.subr.mxu0 0.0
      %1794 = vmatpush1.msra.mxu0 %v1766
      %1795 = vmatprep.subr.mxu0 0.0
      %1796 = vmatpush1.msra.mxu0 %v1767
      %1797 = vmatprep.subr.mxu0 0.0
      %1798 = vmatpush1.msra.mxu0 %v1768
      %1799 = vmatprep.subr.mxu0 0.0
      %1800 = vmatpush1.msra.mxu0 %v1769
      %1801 = vmatprep.subr.mxu0 0.0
      %1802 = vmatpush1.msra.mxu0 %v1770
      %1803 = vmatprep.subr.mxu0 0.0
      %1804 = vmatpush1.msra.mxu0 %v1771
      %1805 = vmatprep.subr.mxu0 0.0
      %1806 = vmatpush1.msra.mxu0 %v1772
      %1807 = vmatprep.subr.mxu0 0.0
      %1808 = vmatpush1.msra.mxu0 %v1773
      %1809 = vmatprep.subr.mxu0 0.0
      %1810 = vmatpush1.msra.mxu0 %v1774
      %1811 = vmatprep.subr.mxu0 0.0
      %1812 = vmatpush1.msra.mxu0 %v1775
      %1813 = vmatprep.subr.mxu0 0.0
      %1814 = vmatpush1.msra.mxu0 0.0
      %1815 = vmatprep.subr.mxu0 0.0
      %1816 = vmatpush1.msra.mxu0 0.0
      %1817 = vmatprep.subr.mxu0 0.0
      %1818 = vmatpush1.msra.mxu0 0.0
      %1819 = vmatprep.subr.mxu0 0.0
      %1820 = vmatpush1.msra.mxu0 0.0
      %1821 = vmatprep.subr.mxu0 0.0
      %1822 = vmatpush1.msra.mxu0 0.0
      %1823 = vmatprep.subr.mxu0 0.0
      %1824 = vmatpush1.msra.mxu0 0.0
      %1825 = vmatprep.subr.mxu0 0.0
      %1826 = vmatpush1.msra.mxu0 0.0
      %1827 = vmatprep.subr.mxu0 0.0
      %1828 = vmatpush1.msra.mxu0 0.0
      %1829 = vmatprep.subr.mxu0 0.0
      %1830 = vmatpush1.msra.mxu0 0.0
      %1831 = vmatprep.subr.mxu0 0.0
      %1832 = vmatpush1.msra.mxu0 0.0
      %1833 = vmatprep.subr.mxu0 0.0
      %1834 = vmatpush1.msra.mxu0 0.0
      %1835 = vmatprep.subr.mxu0 0.0
      %1836 = vmatpush1.msra.mxu0 0.0
      %1837 = vmatprep.subr.mxu0 0.0
      %1838 = vmatpush1.msra.mxu0 0.0
      %1839 = vmatprep.subr.mxu0 0.0
      %1840 = vmatpush1.msra.mxu0 0.0
      %1841 = vmatprep.subr.mxu0 0.0
      %1842 = vmatpush1.msra.mxu0 0.0
      %1843 = vmatprep.subr.mxu0 0.0
      %1844 = vmatpush1.msra.mxu0 0.0
      %1845 = vmatprep.mubr.f32.mxu0 0.0
      %1846 = vmatmul.mubr.f32.gmra.mrb[0].mxu0 %v1744
      %v1847 = vpop.f32.mrb[0].mxu0
      %v1848 = vadd.f32 %v1780, %v1847
      %v1849 = vpop.f32.mrb[0].mxu0
      %1850 = vmatprep.mubr.f32.mxu0 0.0
      %1851 = vmatmul.mubr.f32.gmra.mrb[0].mxu0 %v1745
      %v1852 = vpop.f32.mrb[0].mxu0
      %v1853 = vadd.f32 %v1780, %v1852
      %v1854 = vpop.f32.mrb[0].mxu0
      %1855 = vmatprep.mubr.f32.mxu0 0.0
      %1856 = vmatmul.mubr.f32.gmra.mrb[0].mxu0 %v1746
      %v1857 = vpop.f32.mrb[0].mxu0
      %v1858 = vadd.f32 %v1780, %v1857
      %v1859 = vpop.f32.mrb[0].mxu0
      %1860 = vmatprep.mubr.f32.mxu0 0.0
      %1861 = vmatmul.mubr.f32.gmra.mrb[0].mxu0 %v1747
      %v1862 = vpop.f32.mrb[0].mxu0
      %v1863 = vadd.f32 %v1780, %v1862
      %v1864 = vpop.f32.mrb[0].mxu0
      %1865 = vmatprep.mubr.f32.mxu0 0.0
      %1866 = vmatmul.mubr.f32.gmra.mrb[0].mxu0 %v1748
      %v1867 = vpop.f32.mrb[0].mxu0
      %v1868 = vadd.f32 %v1780, %v1867
      %v1869 = vpop.f32.mrb[0].mxu0
      %1870 = vmatprep.mubr.f32.mxu0 0.0
      %1871 = vmatmul.mubr.f32.gmra.mrb[0].mxu0 %v1749
      %v1872 = vpop.f32.mrb[0].mxu0
      %v1873 = vadd.f32 %v1780, %v1872
      %v1874 = vpop.f32.mrb[0].mxu0
      %1875 = vmatprep.mubr.f32.mxu0 0.0
      %1876 = vmatmul.mubr.f32.gmra.mrb[0].mxu0 %v1750
      %v1877 = vpop.f32.mrb[0].mxu0
      %v1878 = vadd.f32 %v1780, %v1877
      %v1879 = vpop.f32.mrb[0].mxu0
      %1880 = vmatprep.mubr.f32.mxu0 0.0
      %1881 = vmatmul.mubr.f32.gmra.mrb[0].mxu0 %v1751
      %v1882 = vpop.f32.mrb[0].mxu0
      %v1883 = vadd.f32 %v1780, %v1882
      %v1884 = vpop.f32.mrb[0].mxu0
      %1885 = vmatprep.mubr.f32.mxu0 0.0
      %1886 = vmatmul.mubr.f32.gmra.mrb[0].mxu0 %v1752
      %v1887 = vpop.f32.mrb[0].mxu0
      %v1888 = vadd.f32 %v1780, %v1887
      %v1889 = vpop.f32.mrb[0].mxu0
      %1890 = vmatprep.mubr.f32.mxu0 0.0
      %1891 = vmatmul.mubr.f32.gmra.mrb[0].mxu0 %v1753
      %v1892 = vpop.f32.mrb[0].mxu0
      %v1893 = vadd.f32 %v1780, %v1892
      %v1894 = vpop.f32.mrb[0].mxu0
      %1895 = vmatprep.mubr.f32.mxu0 0.0
      %1896 = vmatmul.mubr.f32.gmra.mrb[0].mxu0 %v1754
      %v1897 = vpop.f32.mrb[0].mxu0
      %v1898 = vadd.f32 %v1780, %v1897
      %v1899 = vpop.f32.mrb[0].mxu0
      %1900 = vmatprep.mubr.f32.mxu0 0.0
      %1901 = vmatmul.mubr.f32.gmra.mrb[0].mxu0 %v1755
      %v1902 = vpop.f32.mrb[0].mxu0
      %v1903 = vadd.f32 %v1780, %v1902
      %v1904 = vpop.f32.mrb[0].mxu0
      %1905 = vmatprep.mubr.f32.mxu0 0.0
      %1906 = vmatmul.mubr.f32.gmra.mrb[0].mxu0 %v1756
      %v1907 = vpop.f32.mrb[0].mxu0
      %v1908 = vadd.f32 %v1780, %v1907
      %v1909 = vpop.f32.mrb[0].mxu0
      %1910 = vmatprep.mubr.f32.mxu0 0.0
      %1911 = vmatmul.mubr.f32.gmra.mrb[0].mxu0 %v1757
      %v1912 = vpop.f32.mrb[0].mxu0
      %v1913 = vadd.f32 %v1780, %v1912
      %v1914 = vpop.f32.mrb[0].mxu0
      %1915 = vmatprep.mubr.f32.mxu0 0.0
      %1916 = vmatmul.mubr.f32.gmra.mrb[0].mxu0 %v1758
      %v1917 = vpop.f32.mrb[0].mxu0
      %v1918 = vadd.f32 %v1780, %v1917
      %v1919 = vpop.f32.mrb[0].mxu0
      %1920 = vmatprep.mubr.f32.mxu0 0.0
      %1921 = vmatmul.mubr.f32.gmra.mrb[0].mxu0 %v1759
      %v1922 = vpop.f32.mrb[0].mxu0
      %v1923 = vadd.f32 %v1780, %v1922
      %v1924 = vpop.f32.mrb[0].mxu0
      %1925 = vdwg.mxu0
      %v1926 = vld [vmem:[%s6 + $0x3] sm:$0x1]
      %v1927 = vld [vmem:[%s6 + $0x4] sm:$0x1]
      %vm1928 = vcmp.lt.s32.totalorder %v505, 32
      %v1929 = vsel %vm1928, 1, 0
      %v1930 = vcvt.s32.f32 %v1929
      %v1931 = vmul.f32 %v1848, %v1930
      %v1932 = vmul.f32 %v1853, %v1930
      %v1933 = vmul.f32 %v1858, %v1930
      %v1934 = vmul.f32 %v1863, %v1930
      %v1935 = vmul.f32 %v1868, %v1930
      %v1936 = vmul.f32 %v1873, %v1930
      %v1937 = vmul.f32 %v1878, %v1930
      %v1938 = vmul.f32 %v1883, %v1930
      %v1939 = vmul.f32 %v1888, %v1930
      %v1940 = vmul.f32 %v1893, %v1930
      %v1941 = vmul.f32 %v1898, %v1930
      %v1942 = vmul.f32 %v1903, %v1930
      %v1943 = vmul.f32 %v1908, %v1930
      %v1944 = vmul.f32 %v1913, %v1930
      %v1945 = vmul.f32 %v1918, %v1930
      %v1946 = vmul.f32 %v1923, %v1930
      %1947 = vadd.xlane.f32.xlu0 %v1931
      %v1948 = vpop.xlane.xlu0 %1947
      %1949 = vadd.xlane.f32.xlu0 %v1932
      %v1950 = vpop.xlane.xlu0 %1949
      %1951 = vadd.xlane.f32.xlu0 %v1933
      %v1952 = vpop.xlane.xlu0 %1951
      %1953 = vadd.xlane.f32.xlu0 %v1934
      %v1954 = vpop.xlane.xlu0 %1953
      %1955 = vadd.xlane.f32.xlu0 %v1935
      %v1956 = vpop.xlane.xlu0 %1955
      %1957 = vadd.xlane.f32.xlu0 %v1936
      %v1958 = vpop.xlane.xlu0 %1957
      %1959 = vadd.xlane.f32.xlu0 %v1937
      %v1960 = vpop.xlane.xlu0 %1959
      %1961 = vadd.xlane.f32.xlu0 %v1938
      %v1962 = vpop.xlane.xlu0 %1961
      %1963 = vadd.xlane.f32.xlu0 %v1939
      %v1964 = vpop.xlane.xlu0 %1963
      %1965 = vadd.xlane.f32.xlu0 %v1940
      %v1966 = vpop.xlane.xlu0 %1965
      %1967 = vadd.xlane.f32.xlu0 %v1941
      %v1968 = vpop.xlane.xlu0 %1967
      %1969 = vadd.xlane.f32.xlu0 %v1942
      %v1970 = vpop.xlane.xlu0 %1969
      %1971 = vadd.xlane.f32.xlu0 %v1943
      %v1972 = vpop.xlane.xlu0 %1971
      %1973 = vadd.xlane.f32.xlu0 %v1944
      %v1974 = vpop.xlane.xlu0 %1973
      %1975 = vadd.xlane.f32.xlu0 %v1945
      %v1976 = vpop.xlane.xlu0 %1975
      %1977 = vadd.xlane.f32.xlu0 %v1946
      %v1978 = vpop.xlane.xlu0 %1977
      %v1979 = vmul.f32 %v1948, 0.03125
      %v1980 = vmul.f32 %v1950, 0.03125
      %v1981 = vmul.f32 %v1952, 0.03125
      %v1982 = vmul.f32 %v1954, 0.03125
      %v1983 = vmul.f32 %v1956, 0.03125
      %v1984 = vmul.f32 %v1958, 0.03125
      %v1985 = vmul.f32 %v1960, 0.03125
      %v1986 = vmul.f32 %v1962, 0.03125
      %v1987 = vmul.f32 %v1964, 0.03125
      %v1988 = vmul.f32 %v1966, 0.03125
      %v1989 = vmul.f32 %v1968, 0.03125
      %v1990 = vmul.f32 %v1970, 0.03125
      %v1991 = vmul.f32 %v1972, 0.03125
      %v1992 = vmul.f32 %v1974, 0.03125
      %v1993 = vmul.f32 %v1976, 0.03125
      %v1994 = vmul.f32 %v1978, 0.03125
      %v1995 = vsub.f32 %v1848, %v1979
      %v1996 = vsub.f32 %v1853, %v1980
      %v1997 = vsub.f32 %v1858, %v1981
      %v1998 = vsub.f32 %v1863, %v1982
      %v1999 = vsub.f32 %v1868, %v1983
      %v2000 = vsub.f32 %v1873, %v1984
      %v2001 = vsub.f32 %v1878, %v1985
      %v2002 = vsub.f32 %v1883, %v1986
      %v2003 = vsub.f32 %v1888, %v1987
      %v2004 = vsub.f32 %v1893, %v1988
      %v2005 = vsub.f32 %v1898, %v1989
      %v2006 = vsub.f32 %v1903, %v1990
      %v2007 = vsub.f32 %v1908, %v1991
      %v2008 = vsub.f32 %v1913, %v1992
      %v2009 = vsub.f32 %v1918, %v1993
      %v2010 = vsub.f32 %v1923, %v1994
      %v2011 = vmul.f32 %v1995, %v1930
      %v2012 = vmul.f32 %v1996, %v1930
      %v2013 = vmul.f32 %v1997, %v1930
      %v2014 = vmul.f32 %v1998, %v1930
      %v2015 = vmul.f32 %v1999, %v1930
      %v2016 = vmul.f32 %v2000, %v1930
      %v2017 = vmul.f32 %v2001, %v1930
      %v2018 = vmul.f32 %v2002, %v1930
      %v2019 = vmul.f32 %v2003, %v1930
      %v2020 = vmul.f32 %v2004, %v1930
      %v2021 = vmul.f32 %v2005, %v1930
      %v2022 = vmul.f32 %v2006, %v1930
      %v2023 = vmul.f32 %v2007, %v1930
      %v2024 = vmul.f32 %v2008, %v1930
      %v2025 = vmul.f32 %v2009, %v1930
      %v2026 = vmul.f32 %v2010, %v1930
      %v2027 = vmul.f32 %v2011, %v2011
      %v2028 = vmul.f32 %v2012, %v2012
      %v2029 = vmul.f32 %v2013, %v2013
      %v2030 = vmul.f32 %v2014, %v2014
      %v2031 = vmul.f32 %v2015, %v2015
      %v2032 = vmul.f32 %v2016, %v2016
      %v2033 = vmul.f32 %v2017, %v2017
      %v2034 = vmul.f32 %v2018, %v2018
      %v2035 = vmul.f32 %v2019, %v2019
      %v2036 = vmul.f32 %v2020, %v2020
      %v2037 = vmul.f32 %v2021, %v2021
      %v2038 = vmul.f32 %v2022, %v2022
      %v2039 = vmul.f32 %v2023, %v2023
      %v2040 = vmul.f32 %v2024, %v2024
      %v2041 = vmul.f32 %v2025, %v2025
      %v2042 = vmul.f32 %v2026, %v2026
      %2043 = vadd.xlane.f32.xlu0 %v2027
      %v2044 = vpop.xlane.xlu0 %2043
      %2045 = vadd.xlane.f32.xlu0 %v2028
      %v2046 = vpop.xlane.xlu0 %2045
      %2047 = vadd.xlane.f32.xlu0 %v2029
      %v2048 = vpop.xlane.xlu0 %2047
      %2049 = vadd.xlane.f32.xlu0 %v2030
      %v2050 = vpop.xlane.xlu0 %2049
      %2051 = vadd.xlane.f32.xlu0 %v2031
      %v2052 = vpop.xlane.xlu0 %2051
      %2053 = vadd.xlane.f32.xlu0 %v2032
      %v2054 = vpop.xlane.xlu0 %2053
      %2055 = vadd.xlane.f32.xlu0 %v2033
      %v2056 = vpop.xlane.xlu0 %2055
      %2057 = vadd.xlane.f32.xlu0 %v2034
      %v2058 = vpop.xlane.xlu0 %2057
      %2059 = vadd.xlane.f32.xlu0 %v2035
      %v2060 = vpop.xlane.xlu0 %2059
      %2061 = vadd.xlane.f32.xlu0 %v2036
      %v2062 = vpop.xlane.xlu0 %2061
      %2063 = vadd.xlane.f32.xlu0 %v2037
      %v2064 = vpop.xlane.xlu0 %2063
      %2065 = vadd.xlane.f32.xlu0 %v2038
      %v2066 = vpop.xlane.xlu0 %2065
      %2067 = vadd.xlane.f32.xlu0 %v2039
      %v2068 = vpop.xlane.xlu0 %2067
      %2069 = vadd.xlane.f32.xlu0 %v2040
      %v2070 = vpop.xlane.xlu0 %2069
      %2071 = vadd.xlane.f32.xlu0 %v2041
      %v2072 = vpop.xlane.xlu0 %2071
      %2073 = vadd.xlane.f32.xlu0 %v2042
      %v2074 = vpop.xlane.xlu0 %2073
      %v2075 = vmul.f32 %v2044, 0.03125
      %v2076 = vmul.f32 %v2046, 0.03125
      %v2077 = vmul.f32 %v2048, 0.03125
      %v2078 = vmul.f32 %v2050, 0.03125
      %v2079 = vmul.f32 %v2052, 0.03125
      %v2080 = vmul.f32 %v2054, 0.03125
      %v2081 = vmul.f32 %v2056, 0.03125
      %v2082 = vmul.f32 %v2058, 0.03125
      %v2083 = vmul.f32 %v2060, 0.03125
      %v2084 = vmul.f32 %v2062, 0.03125
      %v2085 = vmul.f32 %v2064, 0.03125
      %v2086 = vmul.f32 %v2066, 0.03125
      %v2087 = vmul.f32 %v2068, 0.03125
      %v2088 = vmul.f32 %v2070, 0.03125
      %v2089 = vmul.f32 %v2072, 0.03125
      %v2090 = vmul.f32 %v2074, 0.03125
      %v2091 = vadd.f32 %v2075, 1e-05
      %v2092 = vadd.f32 %v2076, 1e-05
      %v2093 = vadd.f32 %v2077, 1e-05
      %v2094 = vadd.f32 %v2078, 1e-05
      %v2095 = vadd.f32 %v2079, 1e-05
      %v2096 = vadd.f32 %v2080, 1e-05
      %v2097 = vadd.f32 %v2081, 1e-05
      %v2098 = vadd.f32 %v2082, 1e-05
      %v2099 = vadd.f32 %v2083, 1e-05
      %v2100 = vadd.f32 %v2084, 1e-05
      %v2101 = vadd.f32 %v2085, 1e-05
      %v2102 = vadd.f32 %v2086, 1e-05
      %v2103 = vadd.f32 %v2087, 1e-05
      %v2104 = vadd.f32 %v2088, 1e-05
      %v2105 = vadd.f32 %v2089, 1e-05
      %v2106 = vadd.f32 %v2090, 1e-05
      %v2107 = vrsqrt.pop %v2091
      %v2108 = vrsqrt.pop %v2092
      %v2109 = vrsqrt.pop %v2093
      %v2110 = vrsqrt.pop %v2094
      %v2111 = vrsqrt.pop %v2095
      %v2112 = vrsqrt.pop %v2096
      %v2113 = vrsqrt.pop %v2097
      %v2114 = vrsqrt.pop %v2098
      %v2115 = vrsqrt.pop %v2099
      %v2116 = vrsqrt.pop %v2100
      %v2117 = vrsqrt.pop %v2101
      %v2118 = vrsqrt.pop %v2102
      %v2119 = vrsqrt.pop %v2103
      %v2120 = vrsqrt.pop %v2104
      %v2121 = vrsqrt.pop %v2105
      %v2122 = vrsqrt.pop %v2106
      %v2123 = vmul.f32 %v2011, %v2107
      %v2124 = vmul.f32 %v2012, %v2108
      %v2125 = vmul.f32 %v2013, %v2109
      %v2126 = vmul.f32 %v2014, %v2110
      %v2127 = vmul.f32 %v2015, %v2111
      %v2128 = vmul.f32 %v2016, %v2112
      %v2129 = vmul.f32 %v2017, %v2113
      %v2130 = vmul.f32 %v2018, %v2114
      %v2131 = vmul.f32 %v2019, %v2115
      %v2132 = vmul.f32 %v2020, %v2116
      %v2133 = vmul.f32 %v2021, %v2117
      %v2134 = vmul.f32 %v2022, %v2118
      %v2135 = vmul.f32 %v2023, %v2119
      %v2136 = vmul.f32 %v2024, %v2120
      %v2137 = vmul.f32 %v2025, %v2121
      %v2138 = vmul.f32 %v2026, %v2122
      %v2139 = vlaneseq
      %v2140 = vshrl.u32 %v2139, 7
      %v2141 = vsub.s32 0, %v2140
      %v2142 = vrot.slane %v1926, %v2141
      %v2143 = vmul.f32 %v2123, %v2142
      %v2144 = vmul.f32 %v2124, %v2142
      %v2145 = vmul.f32 %v2125, %v2142
      %v2146 = vmul.f32 %v2126, %v2142
      %v2147 = vmul.f32 %v2127, %v2142
      %v2148 = vmul.f32 %v2128, %v2142
      %v2149 = vmul.f32 %v2129, %v2142
      %v2150 = vmul.f32 %v2130, %v2142
      %v2151 = vmul.f32 %v2131, %v2142
      %v2152 = vmul.f32 %v2132, %v2142
      %v2153 = vmul.f32 %v2133, %v2142
      %v2154 = vmul.f32 %v2134, %v2142
      %v2155 = vmul.f32 %v2135, %v2142
      %v2156 = vmul.f32 %v2136, %v2142
      %v2157 = vmul.f32 %v2137, %v2142
      %v2158 = vmul.f32 %v2138, %v2142
      %v2159 = vlaneseq
      %v2160 = vshrl.u32 %v2159, 7
      %v2161 = vsub.s32 0, %v2160
      %v2162 = vrot.slane %v1927, %v2161
      %v2163 = vadd.f32 %v2143, %v2162
      %v2164 = vadd.f32 %v2144, %v2162
      %v2165 = vadd.f32 %v2145, %v2162
      %v2166 = vadd.f32 %v2146, %v2162
      %v2167 = vadd.f32 %v2147, %v2162
      %v2168 = vadd.f32 %v2148, %v2162
      %v2169 = vadd.f32 %v2149, %v2162
      %v2170 = vadd.f32 %v2150, %v2162
      %v2171 = vadd.f32 %v2151, %v2162
      %v2172 = vadd.f32 %v2152, %v2162
      %v2173 = vadd.f32 %v2153, %v2162
      %v2174 = vadd.f32 %v2154, %v2162
      %v2175 = vadd.f32 %v2155, %v2162
      %v2176 = vadd.f32 %v2156, %v2162
      %v2177 = vadd.f32 %v2157, %v2162
      %v2178 = vadd.f32 %v2158, %v2162
      %v2179 = vadd.f32 %v488, %v2163
      %v2180 = vadd.f32 %v489, %v2164
      %v2181 = vadd.f32 %v490, %v2165
      %v2182 = vadd.f32 %v491, %v2166
      %v2183 = vadd.f32 %v492, %v2167
      %v2184 = vadd.f32 %v493, %v2168
      %v2185 = vadd.f32 %v494, %v2169
      %v2186 = vadd.f32 %v495, %v2170
      %v2187 = vadd.f32 %v496, %v2171
      %v2188 = vadd.f32 %v497, %v2172
      %v2189 = vadd.f32 %v498, %v2173
      %v2190 = vadd.f32 %v499, %v2174
      %v2191 = vadd.f32 %v500, %v2175
      %v2192 = vadd.f32 %v501, %v2176
      %v2193 = vadd.f32 %v502, %v2177
      %v2194 = vadd.f32 %v503, %v2178
      %2195 = vmatprep.subr.mxu0 0.0
      %2196 = vmatpush1.msra.mxu0 %v2163
      %2197 = vmatprep.subr.mxu0 0.0
      %2198 = vmatpush1.msra.mxu0 %v2164
      %2199 = vmatprep.subr.mxu0 0.0
      %2200 = vmatpush1.msra.mxu0 %v2165
      %2201 = vmatprep.subr.mxu0 0.0
      %2202 = vmatpush1.msra.mxu0 %v2166
      %2203 = vmatprep.subr.mxu0 0.0
      %2204 = vmatpush1.msra.mxu0 %v2167
      %2205 = vmatprep.subr.mxu0 0.0
      %2206 = vmatpush1.msra.mxu0 %v2168
      %2207 = vmatprep.subr.mxu0 0.0
      %2208 = vmatpush1.msra.mxu0 %v2169
      %2209 = vmatprep.subr.mxu0 0.0
      %2210 = vmatpush1.msra.mxu0 %v2170
      %2211 = vmatprep.subr.mxu0 0.0
      %2212 = vmatpush1.msra.mxu0 %v2171
      %2213 = vmatprep.subr.mxu0 0.0
      %2214 = vmatpush1.msra.mxu0 %v2172
      %2215 = vmatprep.subr.mxu0 0.0
      %2216 = vmatpush1.msra.mxu0 %v2173
      %2217 = vmatprep.subr.mxu0 0.0
      %2218 = vmatpush1.msra.mxu0 %v2174
      %2219 = vmatprep.subr.mxu0 0.0
      %2220 = vmatpush1.msra.mxu0 %v2175
      %2221 = vmatprep.subr.mxu0 0.0
      %2222 = vmatpush1.msra.mxu0 %v2176
      %2223 = vmatprep.subr.mxu0 0.0
      %2224 = vmatpush1.msra.mxu0 %v2177
      %2225 = vmatprep.subr.mxu0 0.0
      %2226 = vmatpush1.msra.mxu0 %v2178
      %2227 = vmatprep.subr.mxu0 0.0
      %2228 = vmatpush1.msra.mxu0 0.0
      %2229 = vmatprep.subr.mxu0 0.0
      %2230 = vmatpush1.msra.mxu0 0.0
      %2231 = vmatprep.subr.mxu0 0.0
      %2232 = vmatpush1.msra.mxu0 0.0
      %2233 = vmatprep.subr.mxu0 0.0
      %2234 = vmatpush1.msra.mxu0 0.0
      %2235 = vmatprep.subr.mxu0 0.0
      %2236 = vmatpush1.msra.mxu0 0.0
      %2237 = vmatprep.subr.mxu0 0.0
      %2238 = vmatpush1.msra.mxu0 0.0
      %2239 = vmatprep.subr.mxu0 0.0
      %2240 = vmatpush1.msra.mxu0 0.0
      %2241 = vmatprep.subr.mxu0 0.0
      %2242 = vmatpush1.msra.mxu0 0.0
      %2243 = vmatprep.subr.mxu0 0.0
      %2244 = vmatpush1.msra.mxu0 0.0
      %2245 = vmatprep.subr.mxu0 0.0
      %2246 = vmatpush1.msra.mxu0 0.0
      %2247 = vmatprep.subr.mxu0 0.0
      %2248 = vmatpush1.msra.mxu0 0.0
      %2249 = vmatprep.subr.mxu0 0.0
      %2250 = vmatpush1.msra.mxu0 0.0
      %2251 = vmatprep.subr.mxu0 0.0
      %2252 = vmatpush1.msra.mxu0 0.0
      %2253 = vmatprep.subr.mxu0 0.0
      %2254 = vmatpush1.msra.mxu0 0.0
      %2255 = vmatprep.subr.mxu0 0.0
      %2256 = vmatpush1.msra.mxu0 0.0
      %2257 = vmatprep.subr.mxu0 0.0
      %2258 = vmatpush1.msra.mxu0 0.0
      %2259 = vmatprep.mubr.f32.mxu0 0.0
      %2260 = vmatmul.mubr.f32.gmra.mrb[0].mxu0 %v727
      %v2261 = vpop.f32.mrb[0].mxu0
      %v2262 = vadd.f32 0.0, %v2261
      %v2263 = vpop.f32.mrb[0].mxu0
      %2264 = vmatprep.mubr.f32.mxu0 0.0
      %2265 = vmatmul.mubr.f32.gmra.mrb[0].mxu0 %v728
      %v2266 = vpop.f32.mrb[0].mxu0
      %v2267 = vadd.f32 0.0, %v2266
      %v2268 = vpop.f32.mrb[0].mxu0
      %2269 = vmatprep.mubr.f32.mxu0 0.0
      %2270 = vmatmul.mubr.f32.gmra.mrb[0].mxu0 %v729
      %v2271 = vpop.f32.mrb[0].mxu0
      %v2272 = vadd.f32 0.0, %v2271
      %v2273 = vpop.f32.mrb[0].mxu0
      %2274 = vmatprep.mubr.f32.mxu0 0.0
      %2275 = vmatmul.mubr.f32.gmra.mrb[0].mxu0 %v730
      %v2276 = vpop.f32.mrb[0].mxu0
      %v2277 = vadd.f32 0.0, %v2276
      %v2278 = vpop.f32.mrb[0].mxu0
      %2279 = vmatprep.mubr.f32.mxu0 0.0
      %2280 = vmatmul.mubr.f32.gmra.mrb[0].mxu0 %v731
      %v2281 = vpop.f32.mrb[0].mxu0
      %v2282 = vadd.f32 0.0, %v2281
      %v2283 = vpop.f32.mrb[0].mxu0
      %2284 = vmatprep.mubr.f32.mxu0 0.0
      %2285 = vmatmul.mubr.f32.gmra.mrb[0].mxu0 %v732
      %v2286 = vpop.f32.mrb[0].mxu0
      %v2287 = vadd.f32 0.0, %v2286
      %v2288 = vpop.f32.mrb[0].mxu0
      %2289 = vmatprep.mubr.f32.mxu0 0.0
      %2290 = vmatmul.mubr.f32.gmra.mrb[0].mxu0 %v733
      %v2291 = vpop.f32.mrb[0].mxu0
      %v2292 = vadd.f32 0.0, %v2291
      %v2293 = vpop.f32.mrb[0].mxu0
      %2294 = vmatprep.mubr.f32.mxu0 0.0
      %2295 = vmatmul.mubr.f32.gmra.mrb[0].mxu0 %v734
      %v2296 = vpop.f32.mrb[0].mxu0
      %v2297 = vadd.f32 0.0, %v2296
      %v2298 = vpop.f32.mrb[0].mxu0
      %2299 = vdwg.mxu0
      %v2300 = vld [vmem:[%s7] sm:$0xff]
      %v2301 = vld [vmem:[%s7 + $0x8] sm:$0xff]
      %v2302 = vld [vmem:[%s7 + $0x10] sm:$0xff]
      %v2303 = vld [vmem:[%s7 + $0x18] sm:$0xff]
      %v2304 = vld [vmem:[%s7 + $0x20] sm:$0xff]
      %v2305 = vld [vmem:[%s7 + $0x28] sm:$0xff]
      %v2306 = vld [vmem:[%s7 + $0x30] sm:$0xff]
      %v2307 = vld [vmem:[%s7 + $0x38] sm:$0xff]
      %v2308 = vld [vmem:[%s7 + $0x40] sm:$0xff]
      %v2309 = vld [vmem:[%s7 + $0x48] sm:$0xff]
      %v2310 = vld [vmem:[%s7 + $0x50] sm:$0xff]
      %v2311 = vld [vmem:[%s7 + $0x58] sm:$0xff]
      %v2312 = vld [vmem:[%s7 + $0x60] sm:$0xff]
      %v2313 = vld [vmem:[%s7 + $0x68] sm:$0xff]
      %v2314 = vld [vmem:[%s7 + $0x70] sm:$0xff]
      %v2315 = vld [vmem:[%s7 + $0x78] sm:$0xff]
      %v2316 = vld [vmem:[%s7 + $0x80] sm:$0xff]
      %v2317 = vld [vmem:[%s7 + $0x88] sm:$0xff]
      %v2318 = vld [vmem:[%s7 + $0x90] sm:$0xff]
      %v2319 = vld [vmem:[%s7 + $0x98] sm:$0xff]
      %v2320 = vld [vmem:[%s7 + $0xa0] sm:$0xff]
      %v2321 = vld [vmem:[%s7 + $0xa8] sm:$0xff]
      %v2322 = vld [vmem:[%s7 + $0xb0] sm:$0xff]
      %v2323 = vld [vmem:[%s7 + $0xb8] sm:$0xff]
      %v2324 = vld [vmem:[%s7 + $0xc0] sm:$0xff]
      %v2325 = vld [vmem:[%s7 + $0xc8] sm:$0xff]
      %v2326 = vld [vmem:[%s7 + $0xd0] sm:$0xff]
      %v2327 = vld [vmem:[%s7 + $0xd8] sm:$0xff]
      %v2328 = vld [vmem:[%s7 + $0xe0] sm:$0xff]
      %v2329 = vld [vmem:[%s7 + $0xe8] sm:$0xff]
      %v2330 = vld [vmem:[%s7 + $0xf0] sm:$0xff]
      %v2331 = vld [vmem:[%s7 + $0xf8] sm:$0xff]
      %2332 = vmatprep.subr.mxu0 0.0
      %2333 = vmatpush1.msra.mxu0 %v2316
      %2334 = vmatprep.subr.mxu0 0.0
      %2335 = vmatpush1.msra.mxu0 %v2317
      %2336 = vmatprep.subr.mxu0 0.0
      %2337 = vmatpush1.msra.mxu0 %v2318
      %2338 = vmatprep.subr.mxu0 0.0
      %2339 = vmatpush1.msra.mxu0 %v2319
      %2340 = vmatprep.subr.mxu0 0.0
      %2341 = vmatpush1.msra.mxu0 %v2320
      %2342 = vmatprep.subr.mxu0 0.0
      %2343 = vmatpush1.msra.mxu0 %v2321
      %2344 = vmatprep.subr.mxu0 0.0
      %2345 = vmatpush1.msra.mxu0 %v2322
      %2346 = vmatprep.subr.mxu0 0.0
      %2347 = vmatpush1.msra.mxu0 %v2323
      %2348 = vmatprep.subr.mxu0 0.0
      %2349 = vmatpush1.msra.mxu0 %v2324
      %2350 = vmatprep.subr.mxu0 0.0
      %2351 = vmatpush1.msra.mxu0 %v2325
      %2352 = vmatprep.subr.mxu0 0.0
      %2353 = vmatpush1.msra.mxu0 %v2326
      %2354 = vmatprep.subr.mxu0 0.0
      %2355 = vmatpush1.msra.mxu0 %v2327
      %2356 = vmatprep.subr.mxu0 0.0
      %2357 = vmatpush1.msra.mxu0 %v2328
      %2358 = vmatprep.subr.mxu0 0.0
      %2359 = vmatpush1.msra.mxu0 %v2329
      %2360 = vmatprep.subr.mxu0 0.0
      %2361 = vmatpush1.msra.mxu0 %v2330
      %2362 = vmatprep.subr.mxu0 0.0
      %2363 = vmatpush1.msra.mxu0 %v2331
      %2364 = vmatprep.subr.mxu0 0.0
      %2365 = vmatpush1.msra.mxu0 0.0
      %2366 = vmatprep.subr.mxu0 0.0
      %2367 = vmatpush1.msra.mxu0 0.0
      %2368 = vmatprep.subr.mxu0 0.0
      %2369 = vmatpush1.msra.mxu0 0.0
      %2370 = vmatprep.subr.mxu0 0.0
      %2371 = vmatpush1.msra.mxu0 0.0
      %2372 = vmatprep.subr.mxu0 0.0
      %2373 = vmatpush1.msra.mxu0 0.0
      %2374 = vmatprep.subr.mxu0 0.0
      %2375 = vmatpush1.msra.mxu0 0.0
      %2376 = vmatprep.subr.mxu0 0.0
      %2377 = vmatpush1.msra.mxu0 0.0
      %2378 = vmatprep.subr.mxu0 0.0
      %2379 = vmatpush1.msra.mxu0 0.0
      %2380 = vmatprep.subr.mxu0 0.0
      %2381 = vmatpush1.msra.mxu0 0.0
      %2382 = vmatprep.subr.mxu0 0.0
      %2383 = vmatpush1.msra.mxu0 0.0
      %2384 = vmatprep.subr.mxu0 0.0
      %2385 = vmatpush1.msra.mxu0 0.0
      %2386 = vmatprep.subr.mxu0 0.0
      %2387 = vmatpush1.msra.mxu0 0.0
      %2388 = vmatprep.subr.mxu0 0.0
      %2389 = vmatpush1.msra.mxu0 0.0
      %2390 = vmatprep.subr.mxu0 0.0
      %2391 = vmatpush1.msra.mxu0 0.0
      %2392 = vmatprep.subr.mxu0 0.0
      %2393 = vmatpush1.msra.mxu0 0.0
      %2394 = vmatprep.subr.mxu0 0.0
      %2395 = vmatpush1.msra.mxu0 0.0
      %2396 = vmatprep.mubr.f32.mxu0 0.0
      %2397 = vmatmul.mubr.f32.gmra.mrb[0].mxu0 %v2262
      %v2398 = vpop.f32.mrb[0].mxu0
      %v2399 = vadd.f32 0.0, %v2398
      %v2400 = vpop.f32.mrb[0].mxu0
      %2401 = vmatprep.mubr.f32.mxu0 0.0
      %2402 = vmatmul.mubr.f32.gmra.mrb[0].mxu0 %v2267
      %v2403 = vpop.f32.mrb[0].mxu0
      %v2404 = vadd.f32 0.0, %v2403
      %v2405 = vpop.f32.mrb[0].mxu0
      %2406 = vmatprep.mubr.f32.mxu0 0.0
      %2407 = vmatmul.mubr.f32.gmra.mrb[0].mxu0 %v2272
      %v2408 = vpop.f32.mrb[0].mxu0
      %v2409 = vadd.f32 0.0, %v2408
      %v2410 = vpop.f32.mrb[0].mxu0
      %2411 = vmatprep.mubr.f32.mxu0 0.0
      %2412 = vmatmul.mubr.f32.gmra.mrb[0].mxu0 %v2277
      %v2413 = vpop.f32.mrb[0].mxu0
      %v2414 = vadd.f32 0.0, %v2413
      %v2415 = vpop.f32.mrb[0].mxu0
      %2416 = vmatprep.mubr.f32.mxu0 0.0
      %2417 = vmatmul.mubr.f32.gmra.mrb[0].mxu0 %v2282
      %v2418 = vpop.f32.mrb[0].mxu0
      %v2419 = vadd.f32 0.0, %v2418
      %v2420 = vpop.f32.mrb[0].mxu0
      %2421 = vmatprep.mubr.f32.mxu0 0.0
      %2422 = vmatmul.mubr.f32.gmra.mrb[0].mxu0 %v2287
      %v2423 = vpop.f32.mrb[0].mxu0
      %v2424 = vadd.f32 0.0, %v2423
      %v2425 = vpop.f32.mrb[0].mxu0
      %2426 = vmatprep.mubr.f32.mxu0 0.0
      %2427 = vmatmul.mubr.f32.gmra.mrb[0].mxu0 %v2292
      %v2428 = vpop.f32.mrb[0].mxu0
      %v2429 = vadd.f32 0.0, %v2428
      %v2430 = vpop.f32.mrb[0].mxu0
      %2431 = vmatprep.mubr.f32.mxu0 0.0
      %2432 = vmatmul.mubr.f32.gmra.mrb[0].mxu0 %v2297
      %v2433 = vpop.f32.mrb[0].mxu0
      %v2434 = vadd.f32 0.0, %v2433
      %v2435 = vpop.f32.mrb[0].mxu0
      %2436 = vdwg.mxu0
      %2437 = vmatprep.subr.mxu0 0.0
      %2438 = vmatpush1.msra.mxu0 %v2300
      %2439 = vmatprep.subr.mxu0 0.0
      %2440 = vmatpush1.msra.mxu0 %v2301
      %2441 = vmatprep.subr.mxu0 0.0
      %2442 = vmatpush1.msra.mxu0 %v2302
      %2443 = vmatprep.subr.mxu0 0.0
      %2444 = vmatpush1.msra.mxu0 %v2303
      %2445 = vmatprep.subr.mxu0 0.0
      %2446 = vmatpush1.msra.mxu0 %v2304
      %2447 = vmatprep.subr.mxu0 0.0
      %2448 = vmatpush1.msra.mxu0 %v2305
      %2449 = vmatprep.subr.mxu0 0.0
      %2450 = vmatpush1.msra.mxu0 %v2306
      %2451 = vmatprep.subr.mxu0 0.0
      %2452 = vmatpush1.msra.mxu0 %v2307
      %2453 = vmatprep.subr.mxu0 0.0
      %2454 = vmatpush1.msra.mxu0 %v2308
      %2455 = vmatprep.subr.mxu0 0.0
      %2456 = vmatpush1.msra.mxu0 %v2309
      %2457 = vmatprep.subr.mxu0 0.0
      %2458 = vmatpush1.msra.mxu0 %v2310
      %2459 = vmatprep.subr.mxu0 0.0
      %2460 = vmatpush1.msra.mxu0 %v2311
      %2461 = vmatprep.subr.mxu0 0.0
      %2462 = vmatpush1.msra.mxu0 %v2312
      %2463 = vmatprep.subr.mxu0 0.0
      %2464 = vmatpush1.msra.mxu0 %v2313
      %2465 = vmatprep.subr.mxu0 0.0
      %2466 = vmatpush1.msra.mxu0 %v2314
      %2467 = vmatprep.subr.mxu0 0.0
      %2468 = vmatpush1.msra.mxu0 %v2315
      %2469 = vmatprep.subr.mxu0 0.0
      %2470 = vmatpush1.msra.mxu0 0.0
      %2471 = vmatprep.subr.mxu0 0.0
      %2472 = vmatpush1.msra.mxu0 0.0
      %2473 = vmatprep.subr.mxu0 0.0
      %2474 = vmatpush1.msra.mxu0 0.0
      %2475 = vmatprep.subr.mxu0 0.0
      %2476 = vmatpush1.msra.mxu0 0.0
      %2477 = vmatprep.subr.mxu0 0.0
      %2478 = vmatpush1.msra.mxu0 0.0
      %2479 = vmatprep.subr.mxu0 0.0
      %2480 = vmatpush1.msra.mxu0 0.0
      %2481 = vmatprep.subr.mxu0 0.0
      %2482 = vmatpush1.msra.mxu0 0.0
      %2483 = vmatprep.subr.mxu0 0.0
      %2484 = vmatpush1.msra.mxu0 0.0
      %2485 = vmatprep.subr.mxu0 0.0
      %2486 = vmatpush1.msra.mxu0 0.0
      %2487 = vmatprep.subr.mxu0 0.0
      %2488 = vmatpush1.msra.mxu0 0.0
      %2489 = vmatprep.subr.mxu0 0.0
      %2490 = vmatpush1.msra.mxu0 0.0
      %2491 = vmatprep.subr.mxu0 0.0
      %2492 = vmatpush1.msra.mxu0 0.0
      %2493 = vmatprep.subr.mxu0 0.0
      %2494 = vmatpush1.msra.mxu0 0.0
      %2495 = vmatprep.subr.mxu0 0.0
      %2496 = vmatpush1.msra.mxu0 0.0
      %2497 = vmatprep.subr.mxu0 0.0
      %2498 = vmatpush1.msra.mxu0 0.0
      %2499 = vmatprep.subr.mxu0 0.0
      %2500 = vmatpush1.msra.mxu0 0.0
      %2501 = vmatprep.mubr.f32.mxu0 0.0
      %2502 = vmatmul.mubr.f32.gmra.mrb[0].mxu0 %v480
      %v2503 = vpop.f32.mrb[0].mxu0
      %v2504 = vadd.f32 %v2399, %v2503
      %v2505 = vpop.f32.mrb[0].mxu0
      %2506 = vmatprep.mubr.f32.mxu0 0.0
      %2507 = vmatmul.mubr.f32.gmra.mrb[0].mxu0 %v481
      %v2508 = vpop.f32.mrb[0].mxu0
      %v2509 = vadd.f32 %v2404, %v2508
      %v2510 = vpop.f32.mrb[0].mxu0
      %2511 = vmatprep.mubr.f32.mxu0 0.0
      %2512 = vmatmul.mubr.f32.gmra.mrb[0].mxu0 %v482
      %v2513 = vpop.f32.mrb[0].mxu0
      %v2514 = vadd.f32 %v2409, %v2513
      %v2515 = vpop.f32.mrb[0].mxu0
      %2516 = vmatprep.mubr.f32.mxu0 0.0
      %2517 = vmatmul.mubr.f32.gmra.mrb[0].mxu0 %v483
      %v2518 = vpop.f32.mrb[0].mxu0
      %v2519 = vadd.f32 %v2414, %v2518
      %v2520 = vpop.f32.mrb[0].mxu0
      %2521 = vmatprep.mubr.f32.mxu0 0.0
      %2522 = vmatmul.mubr.f32.gmra.mrb[0].mxu0 %v484
      %v2523 = vpop.f32.mrb[0].mxu0
      %v2524 = vadd.f32 %v2419, %v2523
      %v2525 = vpop.f32.mrb[0].mxu0
      %2526 = vmatprep.mubr.f32.mxu0 0.0
      %2527 = vmatmul.mubr.f32.gmra.mrb[0].mxu0 %v485
      %v2528 = vpop.f32.mrb[0].mxu0
      %v2529 = vadd.f32 %v2424, %v2528
      %v2530 = vpop.f32.mrb[0].mxu0
      %2531 = vmatprep.mubr.f32.mxu0 0.0
      %2532 = vmatmul.mubr.f32.gmra.mrb[0].mxu0 %v486
      %v2533 = vpop.f32.mrb[0].mxu0
      %v2534 = vadd.f32 %v2429, %v2533
      %v2535 = vpop.f32.mrb[0].mxu0
      %2536 = vmatprep.mubr.f32.mxu0 0.0
      %2537 = vmatmul.mubr.f32.gmra.mrb[0].mxu0 %v487
      %v2538 = vpop.f32.mrb[0].mxu0
      %v2539 = vadd.f32 %v2434, %v2538
      %v2540 = vpop.f32.mrb[0].mxu0
      %2541 = vdwg.mxu0
      %v2542 = vld [vmem:[%s8] sm:$0x1]
      %v2543 = vlaneseq
      %v2544 = vshrl.u32 %v2543, 7
      %v2545 = vsub.s32 0, %v2544
      %v2546 = vrot.slane %v2542, %v2545
      %v2547 = vadd.f32 %v2504, %v2546
      %v2548 = vadd.f32 %v2509, %v2546
      %v2549 = vadd.f32 %v2514, %v2546
      %v2550 = vadd.f32 %v2519, %v2546
      %v2551 = vadd.f32 %v2524, %v2546
      %v2552 = vadd.f32 %v2529, %v2546
      %v2553 = vadd.f32 %v2534, %v2546
      %v2554 = vadd.f32 %v2539, %v2546
      %v2555 = vmax.f32 %v2547, 0.0
      %v2556 = vmax.f32 %v2548, 0.0
      %v2557 = vmax.f32 %v2549, 0.0
      %v2558 = vmax.f32 %v2550, 0.0
      %v2559 = vmax.f32 %v2551, 0.0
      %v2560 = vmax.f32 %v2552, 0.0
      %v2561 = vmax.f32 %v2553, 0.0
      %v2562 = vmax.f32 %v2554, 0.0
      %v2563 = vld [vmem:[%s7 + $0x100] sm:$0xff]
      %v2564 = vld [vmem:[%s7 + $0x108] sm:$0xff]
      %v2565 = vld [vmem:[%s7 + $0x110] sm:$0xff]
      %v2566 = vld [vmem:[%s7 + $0x118] sm:$0xff]
      %v2567 = vld [vmem:[%s7 + $0x120] sm:$0xff]
      %v2568 = vld [vmem:[%s7 + $0x128] sm:$0xff]
      %v2569 = vld [vmem:[%s7 + $0x130] sm:$0xff]
      %v2570 = vld [vmem:[%s7 + $0x138] sm:$0xff]
      %v2571 = vld [vmem:[%s7 + $0x140] sm:$0xff]
      %v2572 = vld [vmem:[%s7 + $0x148] sm:$0xff]
      %v2573 = vld [vmem:[%s7 + $0x150] sm:$0xff]
      %v2574 = vld [vmem:[%s7 + $0x158] sm:$0xff]
      %v2575 = vld [vmem:[%s7 + $0x160] sm:$0xff]
      %v2576 = vld [vmem:[%s7 + $0x168] sm:$0xff]
      %v2577 = vld [vmem:[%s7 + $0x170] sm:$0xff]
      %v2578 = vld [vmem:[%s7 + $0x178] sm:$0xff]
      %v2579 = vld [vmem:[%s8 + $0x1] sm:$0x1]
      %v2580 = vlaneseq
      %v2581 = vshrl.u32 %v2580, 7
      %v2582 = vsub.s32 0, %v2581
      %v2583 = vrot.slane %v2579, %v2582
      %2584 = vmatprep.subr.mxu0 0.0
      %2585 = vmatpush1.msra.mxu0 %v2563
      %2586 = vmatprep.subr.mxu0 0.0
      %2587 = vmatpush1.msra.mxu0 %v2564
      %2588 = vmatprep.subr.mxu0 0.0
      %2589 = vmatpush1.msra.mxu0 %v2565
      %2590 = vmatprep.subr.mxu0 0.0
      %2591 = vmatpush1.msra.mxu0 %v2566
      %2592 = vmatprep.subr.mxu0 0.0
      %2593 = vmatpush1.msra.mxu0 %v2567
      %2594 = vmatprep.subr.mxu0 0.0
      %2595 = vmatpush1.msra.mxu0 %v2568
      %2596 = vmatprep.subr.mxu0 0.0
      %2597 = vmatpush1.msra.mxu0 %v2569
      %2598 = vmatprep.subr.mxu0 0.0
      %2599 = vmatpush1.msra.mxu0 %v2570
      %2600 = vmatprep.subr.mxu0 0.0
      %2601 = vmatpush1.msra.mxu0 %v2571
      %2602 = vmatprep.subr.mxu0 0.0
      %2603 = vmatpush1.msra.mxu0 %v2572
      %2604 = vmatprep.subr.mxu0 0.0
      %2605 = vmatpush1.msra.mxu0 %v2573
      %2606 = vmatprep.subr.mxu0 0.0
      %2607 = vmatpush1.msra.mxu0 %v2574
      %2608 = vmatprep.subr.mxu0 0.0
      %2609 = vmatpush1.msra.mxu0 %v2575
      %2610 = vmatprep.subr.mxu0 0.0
      %2611 = vmatpush1.msra.mxu0 %v2576
      %2612 = vmatprep.subr.mxu0 0.0
      %2613 = vmatpush1.msra.mxu0 %v2577
      %2614 = vmatprep.subr.mxu0 0.0
      %2615 = vmatpush1.msra.mxu0 %v2578
      %2616 = vmatprep.subr.mxu0 0.0
      %2617 = vmatpush1.msra.mxu0 0.0
      %2618 = vmatprep.subr.mxu0 0.0
      %2619 = vmatpush1.msra.mxu0 0.0
      %2620 = vmatprep.subr.mxu0 0.0
      %2621 = vmatpush1.msra.mxu0 0.0
      %2622 = vmatprep.subr.mxu0 0.0
      %2623 = vmatpush1.msra.mxu0 0.0
      %2624 = vmatprep.subr.mxu0 0.0
      %2625 = vmatpush1.msra.mxu0 0.0
      %2626 = vmatprep.subr.mxu0 0.0
      %2627 = vmatpush1.msra.mxu0 0.0
      %2628 = vmatprep.subr.mxu0 0.0
      %2629 = vmatpush1.msra.mxu0 0.0
      %2630 = vmatprep.subr.mxu0 0.0
      %2631 = vmatpush1.msra.mxu0 0.0
      %2632 = vmatprep.subr.mxu0 0.0
      %2633 = vmatpush1.msra.mxu0 0.0
      %2634 = vmatprep.subr.mxu0 0.0
      %2635 = vmatpush1.msra.mxu0 0.0
      %2636 = vmatprep.subr.mxu0 0.0
      %2637 = vmatpush1.msra.mxu0 0.0
      %2638 = vmatprep.subr.mxu0 0.0
      %2639 = vmatpush1.msra.mxu0 0.0
      %2640 = vmatprep.subr.mxu0 0.0
      %2641 = vmatpush1.msra.mxu0 0.0
      %2642 = vmatprep.subr.mxu0 0.0
      %2643 = vmatpush1.msra.mxu0 0.0
      %2644 = vmatprep.subr.mxu0 0.0
      %2645 = vmatpush1.msra.mxu0 0.0
      %2646 = vmatprep.subr.mxu0 0.0
      %2647 = vmatpush1.msra.mxu0 0.0
      %2648 = vmatprep.mubr.f32.mxu0 0.0
      %2649 = vmatmul.mubr.f32.gmra.mrb[0].mxu0 %v2555
      %v2650 = vpop.f32.mrb[0].mxu0
      %v2651 = vadd.f32 %v2583, %v2650
      %v2652 = vpop.f32.mrb[0].mxu0
      %2653 = vmatprep.mubr.f32.mxu0 0.0
      %2654 = vmatmul.mubr.f32.gmra.mrb[0].mxu0 %v2556
      %v2655 = vpop.f32.mrb[0].mxu0
      %v2656 = vadd.f32 %v2583, %v2655
      %v2657 = vpop.f32.mrb[0].mxu0
      %2658 = vmatprep.mubr.f32.mxu0 0.0
      %2659 = vmatmul.mubr.f32.gmra.mrb[0].mxu0 %v2557
      %v2660 = vpop.f32.mrb[0].mxu0
      %v2661 = vadd.f32 %v2583, %v2660
      %v2662 = vpop.f32.mrb[0].mxu0
      %2663 = vmatprep.mubr.f32.mxu0 0.0
      %2664 = vmatmul.mubr.f32.gmra.mrb[0].mxu0 %v2558
      %v2665 = vpop.f32.mrb[0].mxu0
      %v2666 = vadd.f32 %v2583, %v2665
      %v2667 = vpop.f32.mrb[0].mxu0
      %2668 = vmatprep.mubr.f32.mxu0 0.0
      %2669 = vmatmul.mubr.f32.gmra.mrb[0].mxu0 %v2559
      %v2670 = vpop.f32.mrb[0].mxu0
      %v2671 = vadd.f32 %v2583, %v2670
      %v2672 = vpop.f32.mrb[0].mxu0
      %2673 = vmatprep.mubr.f32.mxu0 0.0
      %2674 = vmatmul.mubr.f32.gmra.mrb[0].mxu0 %v2560
      %v2675 = vpop.f32.mrb[0].mxu0
      %v2676 = vadd.f32 %v2583, %v2675
      %v2677 = vpop.f32.mrb[0].mxu0
      %2678 = vmatprep.mubr.f32.mxu0 0.0
      %2679 = vmatmul.mubr.f32.gmra.mrb[0].mxu0 %v2561
      %v2680 = vpop.f32.mrb[0].mxu0
      %v2681 = vadd.f32 %v2583, %v2680
      %v2682 = vpop.f32.mrb[0].mxu0
      %2683 = vmatprep.mubr.f32.mxu0 0.0
      %2684 = vmatmul.mubr.f32.gmra.mrb[0].mxu0 %v2562
      %v2685 = vpop.f32.mrb[0].mxu0
      %v2686 = vadd.f32 %v2583, %v2685
      %v2687 = vpop.f32.mrb[0].mxu0
      %2688 = vdwg.mxu0
      %v2689 = vmax.f32 %v2651, 0.0
      %v2690 = vmax.f32 %v2656, 0.0
      %v2691 = vmax.f32 %v2661, 0.0
      %v2692 = vmax.f32 %v2666, 0.0
      %v2693 = vmax.f32 %v2671, 0.0
      %v2694 = vmax.f32 %v2676, 0.0
      %v2695 = vmax.f32 %v2681, 0.0
      %v2696 = vmax.f32 %v2686, 0.0
      %v2697 = vld [vmem:[%s7 + $0x180] sm:$0xff]
      %v2698 = vld [vmem:[%s7 + $0x188] sm:$0xff]
      %v2699 = vld [vmem:[%s7 + $0x190] sm:$0xff]
      %v2700 = vld [vmem:[%s7 + $0x198] sm:$0xff]
      %v2701 = vld [vmem:[%s7 + $0x1a0] sm:$0xff]
      %v2702 = vld [vmem:[%s7 + $0x1a8] sm:$0xff]
      %v2703 = vld [vmem:[%s7 + $0x1b0] sm:$0xff]
      %v2704 = vld [vmem:[%s7 + $0x1b8] sm:$0xff]
      %v2705 = vld [vmem:[%s7 + $0x1c0] sm:$0xff]
      %v2706 = vld [vmem:[%s7 + $0x1c8] sm:$0xff]
      %v2707 = vld [vmem:[%s7 + $0x1d0] sm:$0xff]
      %v2708 = vld [vmem:[%s7 + $0x1d8] sm:$0xff]
      %v2709 = vld [vmem:[%s7 + $0x1e0] sm:$0xff]
      %v2710 = vld [vmem:[%s7 + $0x1e8] sm:$0xff]
      %v2711 = vld [vmem:[%s7 + $0x1f0] sm:$0xff]
      %v2712 = vld [vmem:[%s7 + $0x1f8] sm:$0xff]
      %v2713 = vld [vmem:[%s8 + $0x2] sm:$0x1]
      %v2714 = vlaneseq
      %v2715 = vshrl.u32 %v2714, 7
      %v2716 = vsub.s32 0, %v2715
      %v2717 = vrot.slane %v2713, %v2716
      %2718 = vmatprep.subr.mxu0 0.0
      %2719 = vmatpush1.msra.mxu0 %v2697
      %2720 = vmatprep.subr.mxu0 0.0
      %2721 = vmatpush1.msra.mxu0 %v2698
      %2722 = vmatprep.subr.mxu0 0.0
      %2723 = vmatpush1.msra.mxu0 %v2699
      %2724 = vmatprep.subr.mxu0 0.0
      %2725 = vmatpush1.msra.mxu0 %v2700
      %2726 = vmatprep.subr.mxu0 0.0
      %2727 = vmatpush1.msra.mxu0 %v2701
      %2728 = vmatprep.subr.mxu0 0.0
      %2729 = vmatpush1.msra.mxu0 %v2702
      %2730 = vmatprep.subr.mxu0 0.0
      %2731 = vmatpush1.msra.mxu0 %v2703
      %2732 = vmatprep.subr.mxu0 0.0
      %2733 = vmatpush1.msra.mxu0 %v2704
      %2734 = vmatprep.subr.mxu0 0.0
      %2735 = vmatpush1.msra.mxu0 %v2705
      %2736 = vmatprep.subr.mxu0 0.0
      %2737 = vmatpush1.msra.mxu0 %v2706
      %2738 = vmatprep.subr.mxu0 0.0
      %2739 = vmatpush1.msra.mxu0 %v2707
      %2740 = vmatprep.subr.mxu0 0.0
      %2741 = vmatpush1.msra.mxu0 %v2708
      %2742 = vmatprep.subr.mxu0 0.0
      %2743 = vmatpush1.msra.mxu0 %v2709
      %2744 = vmatprep.subr.mxu0 0.0
      %2745 = vmatpush1.msra.mxu0 %v2710
      %2746 = vmatprep.subr.mxu0 0.0
      %2747 = vmatpush1.msra.mxu0 %v2711
      %2748 = vmatprep.subr.mxu0 0.0
      %2749 = vmatpush1.msra.mxu0 %v2712
      %2750 = vmatprep.subr.mxu0 0.0
      %2751 = vmatpush1.msra.mxu0 0.0
      %2752 = vmatprep.subr.mxu0 0.0
      %2753 = vmatpush1.msra.mxu0 0.0
      %2754 = vmatprep.subr.mxu0 0.0
      %2755 = vmatpush1.msra.mxu0 0.0
      %2756 = vmatprep.subr.mxu0 0.0
      %2757 = vmatpush1.msra.mxu0 0.0
      %2758 = vmatprep.subr.mxu0 0.0
      %2759 = vmatpush1.msra.mxu0 0.0
      %2760 = vmatprep.subr.mxu0 0.0
      %2761 = vmatpush1.msra.mxu0 0.0
      %2762 = vmatprep.subr.mxu0 0.0
      %2763 = vmatpush1.msra.mxu0 0.0
      %2764 = vmatprep.subr.mxu0 0.0
      %2765 = vmatpush1.msra.mxu0 0.0
      %2766 = vmatprep.subr.mxu0 0.0
      %2767 = vmatpush1.msra.mxu0 0.0
      %2768 = vmatprep.subr.mxu0 0.0
      %2769 = vmatpush1.msra.mxu0 0.0
      %2770 = vmatprep.subr.mxu0 0.0
      %2771 = vmatpush1.msra.mxu0 0.0
      %2772 = vmatprep.subr.mxu0 0.0
      %2773 = vmatpush1.msra.mxu0 0.0
      %2774 = vmatprep.subr.mxu0 0.0
      %2775 = vmatpush1.msra.mxu0 0.0
      %2776 = vmatprep.subr.mxu0 0.0
      %2777 = vmatpush1.msra.mxu0 0.0
      %2778 = vmatprep.subr.mxu0 0.0
      %2779 = vmatpush1.msra.mxu0 0.0
      %2780 = vmatprep.subr.mxu0 0.0
      %2781 = vmatpush1.msra.mxu0 0.0
      %2782 = vmatprep.mubr.f32.mxu0 0.0
      %2783 = vmatmul.mubr.f32.gmra.mrb[0].mxu0 %v2689
      %v2784 = vpop.f32.mrb[0].mxu0
      %v2785 = vadd.f32 %v2717, %v2784
      %v2786 = vpop.f32.mrb[0].mxu0
      %2787 = vmatprep.mubr.f32.mxu0 0.0
      %2788 = vmatmul.mubr.f32.gmra.mrb[0].mxu0 %v2690
      %v2789 = vpop.f32.mrb[0].mxu0
      %v2790 = vadd.f32 %v2717, %v2789
      %v2791 = vpop.f32.mrb[0].mxu0
      %2792 = vmatprep.mubr.f32.mxu0 0.0
      %2793 = vmatmul.mubr.f32.gmra.mrb[0].mxu0 %v2691
      %v2794 = vpop.f32.mrb[0].mxu0
      %v2795 = vadd.f32 %v2717, %v2794
      %v2796 = vpop.f32.mrb[0].mxu0
      %2797 = vmatprep.mubr.f32.mxu0 0.0
      %2798 = vmatmul.mubr.f32.gmra.mrb[0].mxu0 %v2692
      %v2799 = vpop.f32.mrb[0].mxu0
      %v2800 = vadd.f32 %v2717, %v2799
      %v2801 = vpop.f32.mrb[0].mxu0
      %2802 = vmatprep.mubr.f32.mxu0 0.0
      %2803 = vmatmul.mubr.f32.gmra.mrb[0].mxu0 %v2693
      %v2804 = vpop.f32.mrb[0].mxu0
      %v2805 = vadd.f32 %v2717, %v2804
      %v2806 = vpop.f32.mrb[0].mxu0
      %2807 = vmatprep.mubr.f32.mxu0 0.0
      %2808 = vmatmul.mubr.f32.gmra.mrb[0].mxu0 %v2694
      %v2809 = vpop.f32.mrb[0].mxu0
      %v2810 = vadd.f32 %v2717, %v2809
      %v2811 = vpop.f32.mrb[0].mxu0
      %2812 = vmatprep.mubr.f32.mxu0 0.0
      %2813 = vmatmul.mubr.f32.gmra.mrb[0].mxu0 %v2695
      %v2814 = vpop.f32.mrb[0].mxu0
      %v2815 = vadd.f32 %v2717, %v2814
      %v2816 = vpop.f32.mrb[0].mxu0
      %2817 = vmatprep.mubr.f32.mxu0 0.0
      %2818 = vmatmul.mubr.f32.gmra.mrb[0].mxu0 %v2696
      %v2819 = vpop.f32.mrb[0].mxu0
      %v2820 = vadd.f32 %v2717, %v2819
      %v2821 = vpop.f32.mrb[0].mxu0
      %2822 = vdwg.mxu0
      %v2823 = vld [vmem:[%s8 + $0x3] sm:$0x1]
      %v2824 = vld [vmem:[%s8 + $0x4] sm:$0x1]
      %v2825 = vmul.f32 %v2785, %v1930
      %v2826 = vmul.f32 %v2790, %v1930
      %v2827 = vmul.f32 %v2795, %v1930
      %v2828 = vmul.f32 %v2800, %v1930
      %v2829 = vmul.f32 %v2805, %v1930
      %v2830 = vmul.f32 %v2810, %v1930
      %v2831 = vmul.f32 %v2815, %v1930
      %v2832 = vmul.f32 %v2820, %v1930
      %2833 = vadd.xlane.f32.xlu0 %v2825
      %v2834 = vpop.xlane.xlu0 %2833
      %2835 = vadd.xlane.f32.xlu0 %v2826
      %v2836 = vpop.xlane.xlu0 %2835
      %2837 = vadd.xlane.f32.xlu0 %v2827
      %v2838 = vpop.xlane.xlu0 %2837
      %2839 = vadd.xlane.f32.xlu0 %v2828
      %v2840 = vpop.xlane.xlu0 %2839
      %2841 = vadd.xlane.f32.xlu0 %v2829
      %v2842 = vpop.xlane.xlu0 %2841
      %2843 = vadd.xlane.f32.xlu0 %v2830
      %v2844 = vpop.xlane.xlu0 %2843
      %2845 = vadd.xlane.f32.xlu0 %v2831
      %v2846 = vpop.xlane.xlu0 %2845
      %2847 = vadd.xlane.f32.xlu0 %v2832
      %v2848 = vpop.xlane.xlu0 %2847
      %v2849 = vmul.f32 %v2834, 0.03125
      %v2850 = vmul.f32 %v2836, 0.03125
      %v2851 = vmul.f32 %v2838, 0.03125
      %v2852 = vmul.f32 %v2840, 0.03125
      %v2853 = vmul.f32 %v2842, 0.03125
      %v2854 = vmul.f32 %v2844, 0.03125
      %v2855 = vmul.f32 %v2846, 0.03125
      %v2856 = vmul.f32 %v2848, 0.03125
      %v2857 = vsub.f32 %v2785, %v2849
      %v2858 = vsub.f32 %v2790, %v2850
      %v2859 = vsub.f32 %v2795, %v2851
      %v2860 = vsub.f32 %v2800, %v2852
      %v2861 = vsub.f32 %v2805, %v2853
      %v2862 = vsub.f32 %v2810, %v2854
      %v2863 = vsub.f32 %v2815, %v2855
      %v2864 = vsub.f32 %v2820, %v2856
      %v2865 = vmul.f32 %v2857, %v1930
      %v2866 = vmul.f32 %v2858, %v1930
      %v2867 = vmul.f32 %v2859, %v1930
      %v2868 = vmul.f32 %v2860, %v1930
      %v2869 = vmul.f32 %v2861, %v1930
      %v2870 = vmul.f32 %v2862, %v1930
      %v2871 = vmul.f32 %v2863, %v1930
      %v2872 = vmul.f32 %v2864, %v1930
      %v2873 = vmul.f32 %v2865, %v2865
      %v2874 = vmul.f32 %v2866, %v2866
      %v2875 = vmul.f32 %v2867, %v2867
      %v2876 = vmul.f32 %v2868, %v2868
      %v2877 = vmul.f32 %v2869, %v2869
      %v2878 = vmul.f32 %v2870, %v2870
      %v2879 = vmul.f32 %v2871, %v2871
      %v2880 = vmul.f32 %v2872, %v2872
      %2881 = vadd.xlane.f32.xlu0 %v2873
      %v2882 = vpop.xlane.xlu0 %2881
      %2883 = vadd.xlane.f32.xlu0 %v2874
      %v2884 = vpop.xlane.xlu0 %2883
      %2885 = vadd.xlane.f32.xlu0 %v2875
      %v2886 = vpop.xlane.xlu0 %2885
      %2887 = vadd.xlane.f32.xlu0 %v2876
      %v2888 = vpop.xlane.xlu0 %2887
      %2889 = vadd.xlane.f32.xlu0 %v2877
      %v2890 = vpop.xlane.xlu0 %2889
      %2891 = vadd.xlane.f32.xlu0 %v2878
      %v2892 = vpop.xlane.xlu0 %2891
      %2893 = vadd.xlane.f32.xlu0 %v2879
      %v2894 = vpop.xlane.xlu0 %2893
      %2895 = vadd.xlane.f32.xlu0 %v2880
      %v2896 = vpop.xlane.xlu0 %2895
      %v2897 = vmul.f32 %v2882, 0.03125
      %v2898 = vmul.f32 %v2884, 0.03125
      %v2899 = vmul.f32 %v2886, 0.03125
      %v2900 = vmul.f32 %v2888, 0.03125
      %v2901 = vmul.f32 %v2890, 0.03125
      %v2902 = vmul.f32 %v2892, 0.03125
      %v2903 = vmul.f32 %v2894, 0.03125
      %v2904 = vmul.f32 %v2896, 0.03125
      %v2905 = vadd.f32 %v2897, 1e-05
      %v2906 = vadd.f32 %v2898, 1e-05
      %v2907 = vadd.f32 %v2899, 1e-05
      %v2908 = vadd.f32 %v2900, 1e-05
      %v2909 = vadd.f32 %v2901, 1e-05
      %v2910 = vadd.f32 %v2902, 1e-05
      %v2911 = vadd.f32 %v2903, 1e-05
      %v2912 = vadd.f32 %v2904, 1e-05
      %v2913 = vrsqrt.pop %v2905
      %v2914 = vrsqrt.pop %v2906
      %v2915 = vrsqrt.pop %v2907
      %v2916 = vrsqrt.pop %v2908
      %v2917 = vrsqrt.pop %v2909
      %v2918 = vrsqrt.pop %v2910
      %v2919 = vrsqrt.pop %v2911
      %v2920 = vrsqrt.pop %v2912
      %v2921 = vmul.f32 %v2865, %v2913
      %v2922 = vmul.f32 %v2866, %v2914
      %v2923 = vmul.f32 %v2867, %v2915
      %v2924 = vmul.f32 %v2868, %v2916
      %v2925 = vmul.f32 %v2869, %v2917
      %v2926 = vmul.f32 %v2870, %v2918
      %v2927 = vmul.f32 %v2871, %v2919
      %v2928 = vmul.f32 %v2872, %v2920
      %v2929 = vlaneseq
      %v2930 = vshrl.u32 %v2929, 7
      %v2931 = vsub.s32 0, %v2930
      %v2932 = vrot.slane %v2823, %v2931
      %v2933 = vmul.f32 %v2921, %v2932
      %v2934 = vmul.f32 %v2922, %v2932
      %v2935 = vmul.f32 %v2923, %v2932
      %v2936 = vmul.f32 %v2924, %v2932
      %v2937 = vmul.f32 %v2925, %v2932
      %v2938 = vmul.f32 %v2926, %v2932
      %v2939 = vmul.f32 %v2927, %v2932
      %v2940 = vmul.f32 %v2928, %v2932
      %v2941 = vlaneseq
      %v2942 = vshrl.u32 %v2941, 7
      %v2943 = vsub.s32 0, %v2942
      %v2944 = vrot.slane %v2824, %v2943
      %v2945 = vadd.f32 %v2933, %v2944
      %v2946 = vadd.f32 %v2934, %v2944
      %v2947 = vadd.f32 %v2935, %v2944
      %v2948 = vadd.f32 %v2936, %v2944
      %v2949 = vadd.f32 %v2937, %v2944
      %v2950 = vadd.f32 %v2938, %v2944
      %v2951 = vadd.f32 %v2939, %v2944
      %v2952 = vadd.f32 %v2940, %v2944
      %v2953 = vadd.f32 %v480, %v2945
      %v2954 = vadd.f32 %v481, %v2946
      %v2955 = vadd.f32 %v482, %v2947
      %v2956 = vadd.f32 %v483, %v2948
      %v2957 = vadd.f32 %v484, %v2949
      %v2958 = vadd.f32 %v485, %v2950
      %v2959 = vadd.f32 %v486, %v2951
      %v2960 = vadd.f32 %v487, %v2952
      %2961 = vst [vmem:[%s441] sm:$0xff] %v2953
      %2962 = vst [vmem:[%s441 + $0x8] sm:$0xff] %v2954
      %2963 = vst [vmem:[%s441 + $0x10] sm:$0xff] %v2955
      %2964 = vst [vmem:[%s441 + $0x18] sm:$0xff] %v2956
      %2965 = vst [vmem:[%s441 + $0x20] sm:$0xff] %v2957
      %2966 = vst [vmem:[%s441 + $0x28] sm:$0xff] %v2958
      %2967 = vst [vmem:[%s441 + $0x30] sm:$0xff] %v2959
      %2968 = vst [vmem:[%s441 + $0x38] sm:$0xff] %v2960
      %2969 = vst [vmem:[%s446] sm:$0xff] %v2179
      %2970 = vst [vmem:[%s446 + $0x8] sm:$0xff] %v2180
      %2971 = vst [vmem:[%s446 + $0x10] sm:$0xff] %v2181
      %2972 = vst [vmem:[%s446 + $0x18] sm:$0xff] %v2182
      %2973 = vst [vmem:[%s446 + $0x20] sm:$0xff] %v2183
      %2974 = vst [vmem:[%s446 + $0x28] sm:$0xff] %v2184
      %2975 = vst [vmem:[%s446 + $0x30] sm:$0xff] %v2185
      %2976 = vst [vmem:[%s446 + $0x38] sm:$0xff] %v2186
      %2977 = vst [vmem:[%s446 + $0x40] sm:$0xff] %v2187
      %2978 = vst [vmem:[%s446 + $0x48] sm:$0xff] %v2188
      %2979 = vst [vmem:[%s446 + $0x50] sm:$0xff] %v2189
      %2980 = vst [vmem:[%s446 + $0x58] sm:$0xff] %v2190
      %2981 = vst [vmem:[%s446 + $0x60] sm:$0xff] %v2191
      %2982 = vst [vmem:[%s446 + $0x68] sm:$0xff] %v2192
      %2983 = vst [vmem:[%s446 + $0x70] sm:$0xff] %v2193
      %2984 = vst [vmem:[%s446 + $0x78] sm:$0xff] %v2194
      %p2985 = scmp.lt.s32.totalorder %s22, 1
      %s2986 = scalar_select %p2985, %s22, 1
      %s2987 = smul.addr %s2986, 8
      %s2988 = smul.addr %s2987, 8
      %s2989 = scalar_lea.vmem %s9, %s2988
      %p2990 = scmp.lt.s32.totalorder %s22, 1
      %s2991 = scalar_select %p2990, %s22, 1
      %s2992 = smul.addr %s2991, 16
      %s2993 = smul.addr %s2992, 8
      %s2994 = scalar_lea.vmem %s10, %s2993
      // Predicated region
      $region57: #{encode_process_decode.6} parent=55 // pred_check
        %p2995 = pneg %p254
      $region58: #{encode_process_decode.6} parent=55 // pred_check_branch
        %2997 = sbr.rel (%p2995) target = $region60
      $region59: #{encode_process_decode.6} parent=55 // pred_region
        _
      $region60: #{encode_process_decode.6} parent=55 // pred_fallthru
        _
      // Predicated region
      $region61: #{encode_process_decode.6} parent=55 // pred_check
        %p2998 = pneg %p280
      $region62: #{encode_process_decode.6} parent=55 // pred_check_branch
        %3000 = sbr.rel (%p2998) target = $region64
      $region63: #{encode_process_decode.6} parent=55 // pred_region
        _
      $region64: #{encode_process_decode.6} parent=55 // pred_fallthru
        _
    $region56: #{encode_process_decode.6} parent=5 // pred_fallthru
      _
    %p3001 = scmp.le.s32.totalorder 2, %s17
    // Predicated region
    $region65: #{encode_process_decode.6} parent=5 // pred_check
      %p3002 = pneg %p3001
    $region66: #{encode_process_decode.6} parent=5 // pred_check_branch
      %3004 = sbr.rel (%p3002) target = $region68
    $region67: #{encode_process_decode.6} parent=5 // pred_region
      %s3005 = ssub.s32 %s17, 2
      // Predicated region
      $region69: #{encode_process_decode.6} parent=67 // pred_check
        %p3006 = pneg %p260
      $region70: #{encode_process_decode.6} parent=67 // pred_check_branch
        %3008 = sbr.rel (%p3006) target = $region72
      $region71: #{encode_process_decode.6} parent=67 // pred_region
        %p3009 = scmp.lt.s32.totalorder %s23, 1
        %s3010 = scalar_select %p3009, %s23, 1
        %s3011 = smul.addr %s3010, 8
        %s3012 = smul.addr %s3011, 8
        %s3013 = scalar_lea.vmem %s9, %s3012
      $region72: #{encode_process_decode.6} parent=67 // pred_fallthru
        _
      // Predicated region
      $region73: #{encode_process_decode.6} parent=67 // pred_check
        %p3014 = pneg %p286
      $region74: #{encode_process_decode.6} parent=67 // pred_check_branch
        %3016 = sbr.rel (%p3014) target = $region76
      $region75: #{encode_process_decode.6} parent=67 // pred_region
        %p3017 = scmp.lt.s32.totalorder %s23, 1
        %s3018 = scalar_select %p3017, %s23, 1
        %s3019 = smul.addr %s3018, 16
        %s3020 = smul.addr %s3019, 8
        %s3021 = scalar_lea.vmem %s10, %s3020
      $region76: #{encode_process_decode.6} parent=67 // pred_fallthru
        _
    $region68: #{encode_process_decode.6} parent=5 // pred_fallthru
      _
  $region6: #{encode_process_decode.6} parent=0 // loop_footer
    %s21 = sadd.s32 1, %s17
  $region7: #{encode_process_decode.6} parent=0 // loop_footer_branch
    %16 = sbr.rel target = $region3
  $region8: #{encode_process_decode.6} parent=0 // loop_exit
    _

// kernel: encode_process_decode.7
$region0: #{encode_process_decode.7}
  #allocation0 [shape = 'u32[]', space=smem, size = 0x4, offset = 0x4, fixed_abs, tag = 'smem constant byte address 0x4 - core index']
  #allocation1 [shape = 'u32[144,128]{1,0:T(1,128)}', space=vmem, size = 0x12000, scoped, tag = 'internal scratch']
  %s0 = inlined_call_operand.vmem [shape: s32[2,128,1], index: 0, kind: input, shape index: {}]
  %s1 = inlined_call_operand.vmem [shape: s32[2,128,1], index: 1, kind: input, shape index: {}]
  %s2 = inlined_call_operand.vmem [shape: s32[2,1,128], index: 2, kind: input, shape index: {}]
  %s3 = inlined_call_operand.vmem [shape: f32[2,64,128], index: 3, kind: input, shape index: {}]
  %s4 = inlined_call_operand.vmem [shape: f32[2,128,128], index: 4, kind: input, shape index: {}]
  %s5 = inlined_call_operand.vmem [shape: f32[640,128], index: 5, kind: input, shape index: {}]
  %s6 = inlined_call_operand.vmem [shape: f32[5,128], index: 6, kind: input, shape index: {}]
  %s7 = inlined_call_operand.vmem [shape: f32[512,128], index: 7, kind: input, shape index: {}]
  %s8 = inlined_call_operand.vmem [shape: f32[5,128], index: 8, kind: input, shape index: {}]
  %s9 = inlined_call_operand.vmem [shape: f32[384,128], index: 9, kind: input, shape index: {}]
  %s10 = inlined_call_operand.vmem [shape: f32[5,128], index: 10, kind: input, shape index: {}]
  %s11 = inlined_call_operand.vmem [shape: f32[2,64,128], index: 11, kind: output, shape index: {}]
  %s12 = sld [smem:[#allocation0]]
  $region77: #{encode_process_decode.7} parent=0
    _
  %s14 = ssub.s32 1, %s12
  %s15 = scalar_select 0, %s14, %s12
  loop: start=0, step=1, limit=4
  $region2: #{encode_process_decode.7} parent=0 // loop_pre_header
    _
  $region3: #{encode_process_decode.7} parent=0 // loop_header
    %s17 = sphi 0, %s21
    %p18 = scmp.ge.s32.totalorder %s17, 4
    %s27 = sphi 0, %s29
    %s30 = sphi 0, %s27
    %s31 = sphi 0, %s30
    %s47 = sphi 0, %s31
    %s53 = sphi 0, %s55
    %s56 = sphi 0, %s53
    %s57 = sphi 0, %s56
    %s73 = sphi 0, %s57
    %s79 = sphi 0, %s81
    %s82 = sphi 0, %s79
    %s83 = sphi 0, %s82
    %s99 = sphi 0, %s83
    %s105 = sphi 0, %s107
    %s108 = sphi 0, %s105
    %s109 = sphi 0, %s108
    %s125 = sphi 0, %s109
    %s131 = sphi 0, %s133
    %s134 = sphi 0, %s131
    %s135 = sphi 0, %s134
    %s151 = sphi 0, %s135
    %s155 = sphi 0, %s155
    %s157 = sphi 0, %s155
    %s158 = sphi 0, %s157
    %s172 = sphi 0, %s158
    %s176 = sphi 0, %s176
    %s178 = sphi 0, %s176
    %s179 = sphi 0, %s178
    %s193 = sphi 0, %s179
    %s197 = sphi 0, %s197
    %s199 = sphi 0, %s197
    %s200 = sphi 0, %s199
    %s214 = sphi 0, %s200
    %s218 = sphi 0, %s218
    %s220 = sphi 0, %s218
    %s221 = sphi 0, %s220
    %s235 = sphi 0, %s221
    %s239 = sphi 0, %s239
    %s241 = sphi 0, %s239
    %s242 = sphi 0, %s241
    %s256 = sphi 0, %s242
    %s260 = sphi 0, %s260
    %s262 = sphi 0, %s260
    %s263 = sphi 0, %s262
    %s277 = sphi 0, %s263
    %s283 = sphi 0, %s285
    %s286 = sphi 0, %s283
    %s287 = sphi 0, %s286
    %s303 = sphi 0, %s287
  $region4: #{encode_process_decode.7} parent=0 // loop_header_branch
    %20 = sbr.rel (%p18) target = $region8
  $region5: #{encode_process_decode.7} parent=0 // loop_body
    %s22 = ssub.s32 %s17, 1
    %s23 = ssub.s32 %s17, 2
    %s24 = sadd.s32 %s17, 1
    %s25 = ssub.s32 %s17, %s24
    %p26 = scmp.eq.s32.totalorder %s25, 0
    %s28 = sadd.s32 %s27, 1
    %s29 = scalar_select %p26, %s27, %s28
    %p32 = pneg %p26
    %p33 = scmp.eq.s32.totalorder %s17, 1
    %p34 = por %p32, %p33
    %p35 = scmp.ne.s32.totalorder %s27, %s30
    %p36 = scmp.eq.s32.totalorder %s17, 0
    %p37 = por %p35, %p36
    %p38 = scmp.ne.s32.totalorder %s27, %s30
    %p39 = scmp.eq.s32.totalorder %s22, 1
    %p40 = por %p38, %p39
    %p41 = scmp.ne.s32.totalorder %s30, %s31
    %p42 = scmp.eq.s32.totalorder %s22, 0
    %p43 = por %p41, %p42
    %p44 = scmp.ne.s32.totalorder %s30, %s31
    %p45 = scmp.eq.s32.totalorder %s23, 1
    %p46 = por %p44, %p45
    %p48 = scmp.ne.s32.totalorder %s31, %s47
    %p49 = scmp.eq.s32.totalorder %s23, 0
    %p50 = por %p48, %p49
    %s51 = ssub.s32 %s17, %s24
    %p52 = scmp.eq.s32.totalorder %s51, 0
    %s54 = sadd.s32 %s53, 1
    %s55 = scalar_select %p52, %s53, %s54
    %p58 = pneg %p52
    %p59 = scmp.eq.s32.totalorder %s17, 1
    %p60 = por %p58, %p59
    %p61 = scmp.ne.s32.totalorder %s53, %s56
    %p62 = scmp.eq.s32.totalorder %s17, 0
    %p63 = por %p61, %p62
    %p64 = scmp.ne.s32.totalorder %s53, %s56
    %p65 = scmp.eq.s32.totalorder %s22, 1
    %p66 = por %p64, %p65
    %p67 = scmp.ne.s32.totalorder %s56, %s57
    %p68 = scmp.eq.s32.totalorder %s22, 0
    %p69 = por %p67, %p68
    %p70 = scmp.ne.s32.totalorder %s56, %s57
    %p71 = scmp.eq.s32.totalorder %s23, 1
    %p72 = por %p70, %p71
    %p74 = scmp.ne.s32.totalorder %s57, %s73
    %p75 = scmp.eq.s32.totalorder %s23, 0
    %p76 = por %p74, %p75
    %s77 = ssub.s32 %s17, %s24
    %p78 = scmp.eq.s32.totalorder %s77, 0
    %s80 = sadd.s32 %s79, 1
    %s81 = scalar_select %p78, %s79, %s80
    %p84 = pneg %p78
    %p85 = scmp.eq.s32.totalorder %s17, 1
    %p86 = por %p84, %p85
    %p87 = scmp.ne.s32.totalorder %s79, %s82
    %p88 = scmp.eq.s32.totalorder %s17, 0
    %p89 = por %p87, %p88
    %p90 = scmp.ne.s32.totalorder %s79, %s82
    %p91 = scmp.eq.s32.totalorder %s22, 1
    %p92 = por %p90, %p91
    %p93 = scmp.ne.s32.totalorder %s82, %s83
    %p94 = scmp.eq.s32.totalorder %s22, 0
    %p95 = por %p93, %p94
    %p96 = scmp.ne.s32.totalorder %s82, %s83
    %p97 = scmp.eq.s32.totalorder %s23, 1
    %p98 = por %p96, %p97
    %p100 = scmp.ne.s32.totalorder %s83, %s99
    %p101 = scmp.eq.s32.totalorder %s23, 0
    %p102 = por %p100, %p101
    %s103 = ssub.s32 %s17, %s24
    %p104 = scmp.eq.s32.totalorder %s103, 0
    %s106 = sadd.s32 %s105, 1
    %s107 = scalar_select %p104, %s105, %s106
    %p110 = pneg %p104
    %p111 = scmp.eq.s32.totalorder %s17, 1
    %p112 = por %p110, %p111
    %p113 = scmp.ne.s32.totalorder %s105, %s108
    %p114 = scmp.eq.s32.totalorder %s17, 0
    %p115 = por %p113, %p114
    %p116 = scmp.ne.s32.totalorder %s105, %s108
    %p117 = scmp.eq.s32.totalorder %s22, 1
    %p118 = por %p116, %p117
    %p119 = scmp.ne.s32.totalorder %s108, %s109
    %p120 = scmp.eq.s32.totalorder %s22, 0
    %p121 = por %p119, %p120
    %p122 = scmp.ne.s32.totalorder %s108, %s109
    %p123 = scmp.eq.s32.totalorder %s23, 1
    %p124 = por %p122, %p123
    %p126 = scmp.ne.s32.totalorder %s109, %s125
    %p127 = scmp.eq.s32.totalorder %s23, 0
    %p128 = por %p126, %p127
    %s129 = ssub.s32 %s17, %s24
    %p130 = scmp.eq.s32.totalorder %s129, 0
    %s132 = sadd.s32 %s131, 1
    %s133 = scalar_select %p130, %s131, %s132
    %p136 = pneg %p130
    %p137 = scmp.eq.s32.totalorder %s17, 1
    %p138 = por %p136, %p137
    %p139 = scmp.ne.s32.totalorder %s131, %s134
    %p140 = scmp.eq.s32.totalorder %s17, 0
    %p141 = por %p139, %p140
    %p142 = scmp.ne.s32.totalorder %s131, %s134
    %p143 = scmp.eq.s32.totalorder %s22, 1
    %p144 = por %p142, %p143
    %p145 = scmp.ne.s32.totalorder %s134, %s135
    %p146 = scmp.eq.s32.totalorder %s22, 0
    %p147 = por %p145, %p146
    %p148 = scmp.ne.s32.totalorder %s134, %s135
    %p149 = scmp.eq.s32.totalorder %s23, 1
    %p150 = por %p148, %p149
    %p152 = scmp.ne.s32.totalorder %s135, %s151
    %p153 = scmp.eq.s32.totalorder %s23, 0
    %p154 = por %p152, %p153
    %s156 = sadd.s32 %s155, 1
    %p159 = scmp.eq.s32.totalorder %s17, 1
    %p160 = scmp.ne.s32.totalorder %s155, %s157
    %p161 = scmp.eq.s32.totalorder %s17, 0
    %p162 = por %p160, %p161
    %p163 = scmp.ne.s32.totalorder %s155, %s157
    %p164 = scmp.eq.s32.totalorder %s22, 1
    %p165 = por %p163, %p164
    %p166 = scmp.ne.s32.totalorder %s157, %s158
    %p167 = scmp.eq.s32.totalorder %s22, 0
    %p168 = por %p166, %p167
    %p169 = scmp.ne.s32.totalorder %s157, %s158
    %p170 = scmp.eq.s32.totalorder %s23, 1
    %p171 = por %p169, %p170
    %p173 = scmp.ne.s32.totalorder %s158, %s172
    %p174 = scmp.eq.s32.totalorder %s23, 0
    %p175 = por %p173, %p174
    %s177 = sadd.s32 %s176, 1
    %p180 = scmp.eq.s32.totalorder %s17, 1
    %p181 = scmp.ne.s32.totalorder %s176, %s178
    %p182 = scmp.eq.s32.totalorder %s17, 0
    %p183 = por %p181, %p182
    %p184 = scmp.ne.s32.totalorder %s176, %s178
    %p185 = scmp.eq.s32.totalorder %s22, 1
    %p186 = por %p184, %p185
    %p187 = scmp.ne.s32.totalorder %s178, %s179
    %p188 = scmp.eq.s32.totalorder %s22, 0
    %p189 = por %p187, %p188
    %p190 = scmp.ne.s32.totalorder %s178, %s179
    %p191 = scmp.eq.s32.totalorder %s23, 1
    %p192 = por %p190, %p191
    %p194 = scmp.ne.s32.totalorder %s179, %s193
    %p195 = scmp.eq.s32.totalorder %s23, 0
    %p196 = por %p194, %p195
    %s198 = sadd.s32 %s197, 1
    %p201 = scmp.eq.s32.totalorder %s17, 1
    %p202 = scmp.ne.s32.totalorder %s197, %s199
    %p203 = scmp.eq.s32.totalorder %s17, 0
    %p204 = por %p202, %p203
    %p205 = scmp.ne.s32.totalorder %s197, %s199
    %p206 = scmp.eq.s32.totalorder %s22, 1
    %p207 = por %p205, %p206
    %p208 = scmp.ne.s32.totalorder %s199, %s200
    %p209 = scmp.eq.s32.totalorder %s22, 0
    %p210 = por %p208, %p209
    %p211 = scmp.ne.s32.totalorder %s199, %s200
    %p212 = scmp.eq.s32.totalorder %s23, 1
    %p213 = por %p211, %p212
    %p215 = scmp.ne.s32.totalorder %s200, %s214
    %p216 = scmp.eq.s32.totalorder %s23, 0
    %p217 = por %p215, %p216
    %s219 = sadd.s32 %s218, 1
    %p222 = scmp.eq.s32.totalorder %s17, 1
    %p223 = scmp.ne.s32.totalorder %s218, %s220
    %p224 = scmp.eq.s32.totalorder %s17, 0
    %p225 = por %p223, %p224
    %p226 = scmp.ne.s32.totalorder %s218, %s220
    %p227 = scmp.eq.s32.totalorder %s22, 1
    %p228 = por %p226, %p227
    %p229 = scmp.ne.s32.totalorder %s220, %s221
    %p230 = scmp.eq.s32.totalorder %s22, 0
    %p231 = por %p229, %p230
    %p232 = scmp.ne.s32.totalorder %s220, %s221
    %p233 = scmp.eq.s32.totalorder %s23, 1
    %p234 = por %p232, %p233
    %p236 = scmp.ne.s32.totalorder %s221, %s235
    %p237 = scmp.eq.s32.totalorder %s23, 0
    %p238 = por %p236, %p237
    %s240 = sadd.s32 %s239, 1
    %p243 = scmp.eq.s32.totalorder %s17, 1
    %p244 = scmp.ne.s32.totalorder %s239, %s241
    %p245 = scmp.eq.s32.totalorder %s17, 0
    %p246 = por %p244, %p245
    %p247 = scmp.ne.s32.totalorder %s239, %s241
    %p248 = scmp.eq.s32.totalorder %s22, 1
    %p249 = por %p247, %p248
    %p250 = scmp.ne.s32.totalorder %s241, %s242
    %p251 = scmp.eq.s32.totalorder %s22, 0
    %p252 = por %p250, %p251
    %p253 = scmp.ne.s32.totalorder %s241, %s242
    %p254 = scmp.eq.s32.totalorder %s23, 1
    %p255 = por %p253, %p254
    %p257 = scmp.ne.s32.totalorder %s242, %s256
    %p258 = scmp.eq.s32.totalorder %s23, 0
    %p259 = por %p257, %p258
    %s261 = sadd.s32 %s260, 1
    %p264 = scmp.eq.s32.totalorder %s17, 1
    %p265 = scmp.ne.s32.totalorder %s260, %s262
    %p266 = scmp.eq.s32.totalorder %s17, 0
    %p267 = por %p265, %p266
    %p268 = scmp.ne.s32.totalorder %s260, %s262
    %p269 = scmp.eq.s32.totalorder %s22, 1
    %p270 = por %p268, %p269
    %p271 = scmp.ne.s32.totalorder %s262, %s263
    %p272 = scmp.eq.s32.totalorder %s22, 0
    %p273 = por %p271, %p272
    %p274 = scmp.ne.s32.totalorder %s262, %s263
    %p275 = scmp.eq.s32.totalorder %s23, 1
    %p276 = por %p274, %p275
    %p278 = scmp.ne.s32.totalorder %s263, %s277
    %p279 = scmp.eq.s32.totalorder %s23, 0
    %p280 = por %p278, %p279
    %s281 = ssub.s32 %s17, %s24
    %p282 = scmp.eq.s32.totalorder %s281, 0
    %s284 = sadd.s32 %s283, 1
    %s285 = scalar_select %p282, %s283, %s284
    %p288 = pneg %p282
    %p289 = scmp.eq.s32.totalorder %s17, 1
    %p290 = por %p288, %p289
    %p291 = scmp.ne.s32.totalorder %s283, %s286
    %p292 = scmp.eq.s32.totalorder %s17, 0
    %p293 = por %p291, %p292
    %p294 = scmp.ne.s32.totalorder %s283, %s286
    %p295 = scmp.eq.s32.totalorder %s22, 1
    %p296 = por %p294, %p295
    %p297 = scmp.ne.s32.totalorder %s286, %s287
    %p298 = scmp.eq.s32.totalorder %s22, 0
    %p299 = por %p297, %p298
    %p300 = scmp.ne.s32.totalorder %s286, %s287
    %p301 = scmp.eq.s32.totalorder %s23, 1
    %p302 = por %p300, %p301
    %p304 = scmp.ne.s32.totalorder %s287, %s303
    %p305 = scmp.eq.s32.totalorder %s23, 0
    %p306 = por %p304, %p305
    %p307 = scmp.le.s32.totalorder 1, %s17
    %p308 = scmp.lt.s32.totalorder %s17, 3
    %p309 = pnand %p307, %p308
    %p310 = pneg %p309
    // Predicated region
    $region9: #{encode_process_decode.7} parent=5 // pred_check
      _
    $region10: #{encode_process_decode.7} parent=5 // pred_check_branch
      %312 = sbr.rel (%p309) target = $region12
    $region11: #{encode_process_decode.7} parent=5 // pred_region
      %s313 = ssub.s32 %s17, 1
      // Predicated region
      $region13: #{encode_process_decode.7} parent=11 // pred_check
        %p314 = pneg %p168
      $region14: #{encode_process_decode.7} parent=11 // pred_check_branch
        %316 = sbr.rel (%p314) target = $region16
      $region15: #{encode_process_decode.7} parent=11 // pred_region
        _
      $region16: #{encode_process_decode.7} parent=11 // pred_fallthru
        _
      // Predicated region
      $region17: #{encode_process_decode.7} parent=11 // pred_check
        %p317 = pneg %p189
      $region18: #{encode_process_decode.7} parent=11 // pred_check_branch
        %319 = sbr.rel (%p317) target = $region20
      $region19: #{encode_process_decode.7} parent=11 // pred_region
        _
      $region20: #{encode_process_decode.7} parent=11 // pred_fallthru
        _
      // Predicated region
      $region21: #{encode_process_decode.7} parent=11 // pred_check
        %p320 = pneg %p210
      $region22: #{encode_process_decode.7} parent=11 // pred_check_branch
        %322 = sbr.rel (%p320) target = $region24
      $region23: #{encode_process_decode.7} parent=11 // pred_region
        _
      $region24: #{encode_process_decode.7} parent=11 // pred_fallthru
        _
      // Predicated region
      $region25: #{encode_process_decode.7} parent=11 // pred_check
        %p323 = pneg %p231
      $region26: #{encode_process_decode.7} parent=11 // pred_check_branch
        %325 = sbr.rel (%p323) target = $region28
      $region27: #{encode_process_decode.7} parent=11 // pred_region
        _
      $region28: #{encode_process_decode.7} parent=11 // pred_fallthru
        _
      // Predicated region
      $region29: #{encode_process_decode.7} parent=11 // pred_check
        %p326 = pneg %p252
      $region30: #{encode_process_decode.7} parent=11 // pred_check_branch
        %328 = sbr.rel (%p326) target = $region32
      $region31: #{encode_process_decode.7} parent=11 // pred_region
        _
      $region32: #{encode_process_decode.7} parent=11 // pred_fallthru
        _
      // Predicated region
      $region33: #{encode_process_decode.7} parent=11 // pred_check
        %p329 = pneg %p273
      $region34: #{encode_process_decode.7} parent=11 // pred_check_branch
        %331 = sbr.rel (%p329) target = $region36
      $region35: #{encode_process_decode.7} parent=11 // pred_region
        _
      $region36: #{encode_process_decode.7} parent=11 // pred_fallthru
        _
    $region12: #{encode_process_decode.7} parent=5 // pred_fallthru
      _
    %p332 = scmp.lt.s32.totalorder %s17, 2
    // Predicated region
    $region37: #{encode_process_decode.7} parent=5 // pred_check
      %p333 = pneg %p332
    $region38: #{encode_process_decode.7} parent=5 // pred_check_branch
      %335 = sbr.rel (%p333) target = $region40
    $region39: #{encode_process_decode.7} parent=5 // pred_region
      // Predicated region
      $region41: #{encode_process_decode.7} parent=39 // pred_check
        %p336 = pneg %p37
      $region42: #{encode_process_decode.7} parent=39 // pred_check_branch
        %338 = sbr.rel (%p336) target = $region44
      $region43: #{encode_process_decode.7} parent=39 // pred_region
        %p339 = scmp.lt.s32.totalorder %s17, 1
        %s340 = scalar_select %p339, %s17, 1
        %s341 = smul.addr %s340, 16
        %s342 = smul.addr %s341, 8
        %s343 = scalar_lea.vmem %s0, %s342
      $region44: #{encode_process_decode.7} parent=39 // pred_fallthru
        _
      // Predicated region
      $region45: #{encode_process_decode.7} parent=39 // pred_check
        %p344 = pneg %p63
      $region46: #{encode_process_decode.7} parent=39 // pred_check_branch
        %346 = sbr.rel (%p344) target = $region48
      $region47: #{encode_process_decode.7} parent=39 // pred_region
        %p347 = scmp.lt.s32.totalorder %s17, 1
        %s348 = scalar_select %p347, %s17, 1
        %s349 = smul.addr %s348, 16
        %s350 = smul.addr %s349, 8
        %s351 = scalar_lea.vmem %s1, %s350
      $region48: #{encode_process_decode.7} parent=39 // pred_fallthru
        _
      // Predicated region
      $region49: #{encode_process_decode.7} parent=39 // pred_check
        %p352 = pneg %p89
      $region50: #{encode_process_decode.7} parent=39 // pred_check_branch
        %354 = sbr.rel (%p352) target = $region52
      $region51: #{encode_process_decode.7} parent=39 // pred_region
        %p355 = scmp.lt.s32.totalorder %s17, 1
        %s356 = scalar_select %p355, %s17, 1
        %s357 = scalar_lea.vmem %s2, %s356
      $region52: #{encode_process_decode.7} parent=39 // pred_fallthru
        _
      // Predicated region
      $region53: #{encode_process_decode.7} parent=39 // pred_check
        %p358 = pneg %p115
      $region54: #{encode_process_decode.7} parent=39 // pred_check_branch
        %360 = sbr.rel (%p358) target = $region56
      $region55: #{encode_process_decode.7} parent=39 // pred_region
        %p361 = scmp.lt.s32.totalorder %s17, 1
        %s362 = scalar_select %p361, %s17, 1
        %s363 = smul.addr %s362, 8
        %s364 = smul.addr %s363, 8
        %s365 = scalar_lea.vmem %s3, %s364
      $region56: #{encode_process_decode.7} parent=39 // pred_fallthru
        _
      // Predicated region
      $region57: #{encode_process_decode.7} parent=39 // pred_check
        %p366 = pneg %p141
      $region58: #{encode_process_decode.7} parent=39 // pred_check_branch
        %368 = sbr.rel (%p366) target = $region60
      $region59: #{encode_process_decode.7} parent=39 // pred_region
        %p369 = scmp.lt.s32.totalorder %s17, 1
        %s370 = scalar_select %p369, %s17, 1
        %s371 = smul.addr %s370, 16
        %s372 = smul.addr %s371, 8
        %s373 = scalar_lea.vmem %s4, %s372
      $region60: #{encode_process_decode.7} parent=39 // pred_fallthru
        _
    $region40: #{encode_process_decode.7} parent=5 // pred_fallthru
      _
    %p374 = scmp.le.s32.totalorder 1, %s17
    %p375 = scmp.lt.s32.totalorder %s17, 3
    %p376 = pnand %p374, %p375
    %p377 = pneg %p376
    // Predicated region
    $region61: #{encode_process_decode.7} parent=5 // pred_check
      _
    $region62: #{encode_process_decode.7} parent=5 // pred_check_branch
      %379 = sbr.rel (%p376) target = $region64
    $region63: #{encode_process_decode.7} parent=5 // pred_region
      %s380 = ssub.s32 %s17, 1
      %p381 = scmp.lt.s32.totalorder %s22, 1
      %s382 = scalar_select %p381, %s22, 1
      %s383 = smul.addr %s382, 16
      %s384 = smul.addr %s383, 8
      %s385 = scalar_lea.vmem %s0, %s384
      %p386 = pneg %p43
      %p387 = pneg %p40
      %p388 = scmp.lt.s32.totalorder %s22, 1
      %s389 = scalar_select %p388, %s22, 1
      %s390 = smul.addr %s389, 16
      %s391 = smul.addr %s390, 8
      %s392 = scalar_lea.vmem %s1, %s391
      %p393 = pneg %p69
      %p394 = pneg %p66
      %p395 = scmp.lt.s32.totalorder %s22, 1
      %s396 = scalar_select %p395, %s22, 1
      %s397 = scalar_lea.vmem %s2, %s396
      %p398 = pneg %p95
      %p399 = pneg %p92
      %p400 = scmp.lt.s32.totalorder %s22, 1
      %s401 = scalar_select %p400, %s22, 1
      %s402 = smul.addr %s401, 8
      %s403 = smul.addr %s402, 8
      %s404 = scalar_lea.vmem %s3, %s403
      %p405 = pneg %p121
      %p406 = pneg %p118
      %p407 = scmp.lt.s32.totalorder %s22, 1
      %s408 = scalar_select %p407, %s22, 1
      %s409 = smul.addr %s408, 16
      %s410 = smul.addr %s409, 8
      %s411 = scalar_lea.vmem %s4, %s410
      %p412 = pneg %p147
      %p413 = pneg %p144
      %p414 = pneg %p168
      %p415 = pneg %p165
      %p416 = pneg %p189
      %p417 = pneg %p186
      %p418 = pneg %p210
      %p419 = pneg %p207
      %p420 = pneg %p231
      %p421 = pneg %p228
      %p422 = pneg %p252
      %p423 = pneg %p249
      %p424 = pneg %p273
      %p425 = pneg %p270
      %p426 = pneg %p299
      %p427 = pneg %p296
      %p428 = scmp.lt.s32.totalorder %s22, 1
      %s429 = scalar_select %p428, %s22, 1
      %s430 = smul.addr %s429, 8
      %s431 = smul.addr %s430, 8
      %s432 = scalar_lea.vmem %s11, %s431
      %p433 = scmp.lt.s32.totalorder %s22, 1
      %s434 = scalar_select %p433, %s22, 1
      %s435 = smul.addr %s434, 16
      %s436 = smul.addr %s435, 8
      %s437 = scalar_lea.vmem %s0, %s436
      %p438 = scmp.lt.s32.totalorder %s22, 1
      %s439 = scalar_select %p438, %s22, 1
      %s440 = smul.addr %s439, 16
      %s441 = smul.addr %s440, 8
      %s442 = scalar_lea.vmem %s1, %s441
      %p443 = scmp.lt.s32.totalorder %s22, 1
      %s444 = scalar_select %p443, %s22, 1
      %s445 = scalar_lea.vmem %s2, %s444
      %p446 = scmp.lt.s32.totalorder %s22, 1
      %s447 = scalar_select %p446, %s22, 1
      %s448 = smul.addr %s447, 8
      %s449 = smul.addr %s448, 8
      %s450 = scalar_lea.vmem %s3, %s449
      %p451 = scmp.lt.s32.totalorder %s22, 1
      %s452 = scalar_select %p451, %s22, 1
      %s453 = smul.addr %s452, 16
      %s454 = smul.addr %s453, 8
      %s455 = scalar_lea.vmem %s4, %s454
      %p456 = scmp.lt.s32.totalorder %s22, 1
      %s457 = scalar_select %p456, %s22, 1
      %s458 = smul.addr %s457, 8
      %s459 = smul.addr %s458, 8
      %s460 = scalar_lea.vmem %s11, %s459
      %v461 = vld [vmem:[%s437] sm:$0xff]
      %v462 = vld [vmem:[%s437 + $0x8] sm:$0xff]
      %v463 = vld [vmem:[%s437 + $0x10] sm:$0xff]
      %v464 = vld [vmem:[%s437 + $0x18] sm:$0xff]
      %v465 = vld [vmem:[%s437 + $0x20] sm:$0xff]
      %v466 = vld [vmem:[%s437 + $0x28] sm:$0xff]
      %v467 = vld [vmem:[%s437 + $0x30] sm:$0xff]
      %v468 = vld [vmem:[%s437 + $0x38] sm:$0xff]
      %v469 = vld [vmem:[%s437 + $0x40] sm:$0xff]
      %v470 = vld [vmem:[%s437 + $0x48] sm:$0xff]
      %v471 = vld [vmem:[%s437 + $0x50] sm:$0xff]
      %v472 = vld [vmem:[%s437 + $0x58] sm:$0xff]
      %v473 = vld [vmem:[%s437 + $0x60] sm:$0xff]
      %v474 = vld [vmem:[%s437 + $0x68] sm:$0xff]
      %v475 = vld [vmem:[%s437 + $0x70] sm:$0xff]
      %v476 = vld [vmem:[%s437 + $0x78] sm:$0xff]
      %v477 = vld [vmem:[%s442] sm:$0xff]
      %v478 = vld [vmem:[%s442 + $0x8] sm:$0xff]
      %v479 = vld [vmem:[%s442 + $0x10] sm:$0xff]
      %v480 = vld [vmem:[%s442 + $0x18] sm:$0xff]
      %v481 = vld [vmem:[%s442 + $0x20] sm:$0xff]
      %v482 = vld [vmem:[%s442 + $0x28] sm:$0xff]
      %v483 = vld [vmem:[%s442 + $0x30] sm:$0xff]
      %v484 = vld [vmem:[%s442 + $0x38] sm:$0xff]
      %v485 = vld [vmem:[%s442 + $0x40] sm:$0xff]
      %v486 = vld [vmem:[%s442 + $0x48] sm:$0xff]
      %v487 = vld [vmem:[%s442 + $0x50] sm:$0xff]
      %v488 = vld [vmem:[%s442 + $0x58] sm:$0xff]
      %v489 = vld [vmem:[%s442 + $0x60] sm:$0xff]
      %v490 = vld [vmem:[%s442 + $0x68] sm:$0xff]
      %v491 = vld [vmem:[%s442 + $0x70] sm:$0xff]
      %v492 = vld [vmem:[%s442 + $0x78] sm:$0xff]
      %v493 = vld [vmem:[%s445] sm:$0x1]
      %v494 = vld [vmem:[%s450] sm:$0xff]
      %v495 = vld [vmem:[%s450 + $0x8] sm:$0xff]
      %v496 = vld [vmem:[%s450 + $0x10] sm:$0xff]
      %v497 = vld [vmem:[%s450 + $0x18] sm:$0xff]
      %v498 = vld [vmem:[%s450 + $0x20] sm:$0xff]
      %v499 = vld [vmem:[%s450 + $0x28] sm:$0xff]
      %v500 = vld [vmem:[%s450 + $0x30] sm:$0xff]
      %v501 = vld [vmem:[%s450 + $0x38] sm:$0xff]
      %v502 = vld [vmem:[%s455] sm:$0xff]
      %v503 = vld [vmem:[%s455 + $0x8] sm:$0xff]
      %v504 = vld [vmem:[%s455 + $0x10] sm:$0xff]
      %v505 = vld [vmem:[%s455 + $0x18] sm:$0xff]
      %v506 = vld [vmem:[%s455 + $0x20] sm:$0xff]
      %v507 = vld [vmem:[%s455 + $0x28] sm:$0xff]
      %v508 = vld [vmem:[%s455 + $0x30] sm:$0xff]
      %v509 = vld [vmem:[%s455 + $0x38] sm:$0xff]
      %v510 = vld [vmem:[%s455 + $0x40] sm:$0xff]
      %v511 = vld [vmem:[%s455 + $0x48] sm:$0xff]
      %v512 = vld [vmem:[%s455 + $0x50] sm:$0xff]
      %v513 = vld [vmem:[%s455 + $0x58] sm:$0xff]
      %v514 = vld [vmem:[%s455 + $0x60] sm:$0xff]
      %v515 = vld [vmem:[%s455 + $0x68] sm:$0xff]
      %v516 = vld [vmem:[%s455 + $0x70] sm:$0xff]
      %v517 = vld [vmem:[%s455 + $0x78] sm:$0xff]
      %v518 = vlaneseq
      %v519 = vand.u32 %v518, 127
      %520 = vset.pattern.permute.xlu0 0
      %521 = vperm.xlu0 %520, %v461
      %v522 = vpop.permute.xlu0 %521
      %523 = vset.pattern.permute.xlu0 0
      %524 = vperm.xlu0 %523, %v462
      %v525 = vpop.permute.xlu0 %524
      %526 = vset.pattern.permute.xlu0 0
      %527 = vperm.xlu0 %526, %v463
      %v528 = vpop.permute.xlu0 %527
      %529 = vset.pattern.permute.xlu0 0
      %530 = vperm.xlu0 %529, %v464
      %v531 = vpop.permute.xlu0 %530
      %532 = vset.pattern.permute.xlu0 0
      %533 = vperm.xlu0 %532, %v465
      %v534 = vpop.permute.xlu0 %533
      %535 = vset.pattern.permute.xlu0 0
      %536 = vperm.xlu0 %535, %v466
      %v537 = vpop.permute.xlu0 %536
      %538 = vset.pattern.permute.xlu0 0
      %539 = vperm.xlu0 %538, %v467
      %v540 = vpop.permute.xlu0 %539
      %541 = vset.pattern.permute.xlu0 0
      %542 = vperm.xlu0 %541, %v468
      %v543 = vpop.permute.xlu0 %542
      %544 = vset.pattern.permute.xlu0 0
      %545 = vperm.xlu0 %544, %v469
      %v546 = vpop.permute.xlu0 %545
      %547 = vset.pattern.permute.xlu0 0
      %548 = vperm.xlu0 %547, %v470
      %v549 = vpop.permute.xlu0 %548
      %550 = vset.pattern.permute.xlu0 0
      %551 = vperm.xlu0 %550, %v471
      %v552 = vpop.permute.xlu0 %551
      %553 = vset.pattern.permute.xlu0 0
      %554 = vperm.xlu0 %553, %v472
      %v555 = vpop.permute.xlu0 %554
      %556 = vset.pattern.permute.xlu0 0
      %557 = vperm.xlu0 %556, %v473
      %v558 = vpop.permute.xlu0 %557
      %559 = vset.pattern.permute.xlu0 0
      %560 = vperm.xlu0 %559, %v474
      %v561 = vpop.permute.xlu0 %560
      %562 = vset.pattern.permute.xlu0 0
      %563 = vperm.xlu0 %562, %v475
      %v564 = vpop.permute.xlu0 %563
      %565 = vset.pattern.permute.xlu0 0
      %566 = vperm.xlu0 %565, %v476
      %v567 = vpop.permute.xlu0 %566
      %vm568 = vcmp.eq.s32.totalorder %v522, %v519
      %vm569 = vcmp.eq.s32.totalorder %v525, %v519
      %vm570 = vcmp.eq.s32.totalorder %v528, %v519
      %vm571 = vcmp.eq.s32.totalorder %v531, %v519
      %vm572 = vcmp.eq.s32.totalorder %v534, %v519
      %vm573 = vcmp.eq.s32.totalorder %v537, %v519
      %vm574 = vcmp.eq.s32.totalorder %v540, %v519
      %vm575 = vcmp.eq.s32.totalorder %v543, %v519
      %vm576 = vcmp.eq.s32.totalorder %v546, %v519
      %vm577 = vcmp.eq.s32.totalorder %v549, %v519
      %vm578 = vcmp.eq.s32.totalorder %v552, %v519
      %vm579 = vcmp.eq.s32.totalorder %v555, %v519
      %vm580 = vcmp.eq.s32.totalorder %v558, %v519
      %vm581 = vcmp.eq.s32.totalorder %v561, %v519
      %vm582 = vcmp.eq.s32.totalorder %v564, %v519
      %vm583 = vcmp.eq.s32.totalorder %v567, %v519
      %v584 = vsel %vm568, 1, 0
      %v585 = vsel %vm569, 1, 0
      %v586 = vsel %vm570, 1, 0
      %v587 = vsel %vm571, 1, 0
      %v588 = vsel %vm572, 1, 0
      %v589 = vsel %vm573, 1, 0
      %v590 = vsel %vm574, 1, 0
      %v591 = vsel %vm575, 1, 0
      %v592 = vsel %vm576, 1, 0
      %v593 = vsel %vm577, 1, 0
      %v594 = vsel %vm578, 1, 0
      %v595 = vsel %vm579, 1, 0
      %v596 = vsel %vm580, 1, 0
      %v597 = vsel %vm581, 1, 0
      %v598 = vsel %vm582, 1, 0
      %v599 = vsel %vm583, 1, 0
      %v600 = vcvt.s32.f32 %v584
      %v601 = vcvt.s32.f32 %v585
      %v602 = vcvt.s32.f32 %v586
      %v603 = vcvt.s32.f32 %v587
      %v604 = vcvt.s32.f32 %v588
      %v605 = vcvt.s32.f32 %v589
      %v606 = vcvt.s32.f32 %v590
      %v607 = vcvt.s32.f32 %v591
      %v608 = vcvt.s32.f32 %v592
      %v609 = vcvt.s32.f32 %v593
      %v610 = vcvt.s32.f32 %v594
      %v611 = vcvt.s32.f32 %v595
      %v612 = vcvt.s32.f32 %v596
      %v613 = vcvt.s32.f32 %v597
      %v614 = vcvt.s32.f32 %v598
      %v615 = vcvt.s32.f32 %v599
      %616 = vset.pattern.permute.xlu0 0
      %617 = vperm.xlu0 %616, %v477
      %v618 = vpop.permute.xlu0 %617
      %619 = vset.pattern.permute.xlu0 0
      %620 = vperm.xlu0 %619, %v478
      %v621 = vpop.permute.xlu0 %620
      %622 = vset.pattern.permute.xlu0 0
      %623 = vperm.xlu0 %622, %v479
      %v624 = vpop.permute.xlu0 %623
      %625 = vset.pattern.permute.xlu0 0
      %626 = vperm.xlu0 %625, %v480
      %v627 = vpop.permute.xlu0 %626
      %628 = vset.pattern.permute.xlu0 0
      %629 = vperm.xlu0 %628, %v481
      %v630 = vpop.permute.xlu0 %629
      %631 = vset.pattern.permute.xlu0 0
      %632 = vperm.xlu0 %631, %v482
      %v633 = vpop.permute.xlu0 %632
      %634 = vset.pattern.permute.xlu0 0
      %635 = vperm.xlu0 %634, %v483
      %v636 = vpop.permute.xlu0 %635
      %637 = vset.pattern.permute.xlu0 0
      %638 = vperm.xlu0 %637, %v484
      %v639 = vpop.permute.xlu0 %638
      %640 = vset.pattern.permute.xlu0 0
      %641 = vperm.xlu0 %640, %v485
      %v642 = vpop.permute.xlu0 %641
      %643 = vset.pattern.permute.xlu0 0
      %644 = vperm.xlu0 %643, %v486
      %v645 = vpop.permute.xlu0 %644
      %646 = vset.pattern.permute.xlu0 0
      %647 = vperm.xlu0 %646, %v487
      %v648 = vpop.permute.xlu0 %647
      %649 = vset.pattern.permute.xlu0 0
      %650 = vperm.xlu0 %649, %v488
      %v651 = vpop.permute.xlu0 %650
      %652 = vset.pattern.permute.xlu0 0
      %653 = vperm.xlu0 %652, %v489
      %v654 = vpop.permute.xlu0 %653
      %655 = vset.pattern.permute.xlu0 0
      %656 = vperm.xlu0 %655, %v490
      %v657 = vpop.permute.xlu0 %656
      %658 = vset.pattern.permute.xlu0 0
      %659 = vperm.xlu0 %658, %v491
      %v660 = vpop.permute.xlu0 %659
      %661 = vset.pattern.permute.xlu0 0
      %662 = vperm.xlu0 %661, %v492
      %v663 = vpop.permute.xlu0 %662
      %vm664 = vcmp.eq.s32.totalorder %v618, %v519
      %vm665 = vcmp.eq.s32.totalorder %v621, %v519
      %vm666 = vcmp.eq.s32.totalorder %v624, %v519
      %vm667 = vcmp.eq.s32.totalorder %v627, %v519
      %vm668 = vcmp.eq.s32.totalorder %v630, %v519
      %vm669 = vcmp.eq.s32.totalorder %v633, %v519
      %vm670 = vcmp.eq.s32.totalorder %v636, %v519
      %vm671 = vcmp.eq.s32.totalorder %v639, %v519
      %vm672 = vcmp.eq.s32.totalorder %v642, %v519
      %vm673 = vcmp.eq.s32.totalorder %v645, %v519
      %vm674 = vcmp.eq.s32.totalorder %v648, %v519
      %vm675 = vcmp.eq.s32.totalorder %v651, %v519
      %vm676 = vcmp.eq.s32.totalorder %v654, %v519
      %vm677 = vcmp.eq.s32.totalorder %v657, %v519
      %vm678 = vcmp.eq.s32.totalorder %v660, %v519
      %vm679 = vcmp.eq.s32.totalorder %v663, %v519
      %v680 = vsel %vm664, 1, 0
      %v681 = vsel %vm665, 1, 0
      %v682 = vsel %vm666, 1, 0
      %v683 = vsel %vm667, 1, 0
      %v684 = vsel %vm668, 1, 0
      %v685 = vsel %vm669, 1, 0
      %v686 = vsel %vm670, 1, 0
      %v687 = vsel %vm671, 1, 0
      %v688 = vsel %vm672, 1, 0
      %v689 = vsel %vm673, 1, 0
      %v690 = vsel %vm674, 1, 0
      %v691 = vsel %vm675, 1, 0
      %v692 = vsel %vm676, 1, 0
      %v693 = vsel %vm677, 1, 0
      %v694 = vsel %vm678, 1, 0
      %v695 = vsel %vm679, 1, 0
      %v696 = vcvt.s32.f32 %v680
      %v697 = vcvt.s32.f32 %v681
      %v698 = vcvt.s32.f32 %v682
      %v699 = vcvt.s32.f32 %v683
      %v700 = vcvt.s32.f32 %v684
      %v701 = vcvt.s32.f32 %v685
      %v702 = vcvt.s32.f32 %v686
      %v703 = vcvt.s32.f32 %v687
      %v704 = vcvt.s32.f32 %v688
      %v705 = vcvt.s32.f32 %v689
      %v706 = vcvt.s32.f32 %v690
      %v707 = vcvt.s32.f32 %v691
      %v708 = vcvt.s32.f32 %v692
      %v709 = vcvt.s32.f32 %v693
      %v710 = vcvt.s32.f32 %v694
      %v711 = vcvt.s32.f32 %v695
      %v712 = vlaneseq
      %v713 = vshrl.u32 %v712, 7
      %v714 = vadd.s32 %v713, 8
      %v715 = vadd.s32 %v713, 16
      %v716 = vadd.s32 %v713, 24
      %v717 = vadd.s32 %v713, 32
      %v718 = vadd.s32 %v713, 40
      %v719 = vadd.s32 %v713, 48
      %v720 = vadd.s32 %v713, 56
      %v721 = vlaneseq
      %v722 = vshrl.u32 %v721, 7
      %v723 = vsub.s32 0, %v722
      %v724 = vrot.slane %v493, %v723
      %vm725 = vcmp.eq.s32.totalorder %v724, %v713
      %vm726 = vcmp.eq.s32.totalorder %v724, %v714
      %vm727 = vcmp.eq.s32.totalorder %v724, %v715
      %vm728 = vcmp.eq.s32.totalorder %v724, %v716
      %vm729 = vcmp.eq.s32.totalorder %v724, %v717
      %vm730 = vcmp.eq.s32.totalorder %v724, %v718
      %vm731 = vcmp.eq.s32.totalorder %v724, %v719
      %vm732 = vcmp.eq.s32.totalorder %v724, %v720
      %v733 = vsel %vm725, 1, 0
      %v734 = vsel %vm726, 1, 0
      %v735 = vsel %vm727, 1, 0
      %v736 = vsel %vm728, 1, 0
      %v737 = vsel %vm729, 1, 0
      %v738 = vsel %vm730, 1, 0
      %v739 = vsel %vm731, 1, 0
      %v740 = vsel %vm732, 1, 0
      %v741 = vcvt.s32.f32 %v733
      %v742 = vcvt.s32.f32 %v734
      %v743 = vcvt.s32.f32 %v735
      %v744 = vcvt.s32.f32 %v736
      %v745 = vcvt.s32.f32 %v737
      %v746 = vcvt.s32.f32 %v738
      %v747 = vcvt.s32.f32 %v739
      %v748 = vcvt.s32.f32 %v740
      %v749 = vld [vmem:[%s5] sm:$0xff]
      %v750 = vld [vmem:[%s5 + $0x8] sm:$0xff]
      %v751 = vld [vmem:[%s5 + $0x10] sm:$0xff]
      %v752 = vld [vmem:[%s5 + $0x18] sm:$0xff]
      %v753 = vld [vmem:[%s5 + $0x20] sm:$0xff]
      %v754 = vld [vmem:[%s5 + $0x28] sm:$0xff]
      %v755 = vld [vmem:[%s5 + $0x30] sm:$0xff]
      %v756 = vld [vmem:[%s5 + $0x38] sm:$0xff]
      %v757 = vld [vmem:[%s5 + $0x40] sm:$0xff]
      %v758 = vld [vmem:[%s5 + $0x48] sm:$0xff]
      %v759 = vld [vmem:[%s5 + $0x50] sm:$0xff]
      %v760 = vld [vmem:[%s5 + $0x58] sm:$0xff]
      %v761 = vld [vmem:[%s5 + $0x60] sm:$0xff]
      %v762 = vld [vmem:[%s5 + $0x68] sm:$0xff]
      %v763 = vld [vmem:[%s5 + $0x70] sm:$0xff]
      %v764 = vld [vmem:[%s5 + $0x78] sm:$0xff]
      %765 = vmatprep.subr.mxu0 0.0
      %766 = vmatpush1.msra.mxu0 %v749
      %767 = vmatprep.subr.mxu0 0.0
      %768 = vmatpush1.msra.mxu0 %v750
      %769 = vmatprep.subr.mxu0 0.0
      %770 = vmatpush1.msra.mxu0 %v751
      %771 = vmatprep.subr.mxu0 0.0
      %772 = vmatpush1.msra.mxu0 %v752
      %773 = vmatprep.subr.mxu0 0.0
      %774 = vmatpush1.msra.mxu0 %v753
      %775 = vmatprep.subr.mxu0 0.0
      %776 = vmatpush1.msra.mxu0 %v754
      %777 = vmatprep.subr.mxu0 0.0
      %778 = vmatpush1.msra.mxu0 %v755
      %779 = vmatprep.subr.mxu0 0.0
      %780 = vmatpush1.msra.mxu0 %v756
      %781 = vmatprep.subr.mxu0 0.0
      %782 = vmatpush1.msra.mxu0 %v757
      %783 = vmatprep.subr.mxu0 0.0
      %784 = vmatpush1.msra.mxu0 %v758
      %785 = vmatprep.subr.mxu0 0.0
      %786 = vmatpush1.msra.mxu0 %v759
      %787 = vmatprep.subr.mxu0 0.0
      %788 = vmatpush1.msra.mxu0 %v760
      %789 = vmatprep.subr.mxu0 0.0
      %790 = vmatpush1.msra.mxu0 %v761
      %791 = vmatprep.subr.mxu0 0.0
      %792 = vmatpush1.msra.mxu0 %v762
      %793 = vmatprep.subr.mxu0 0.0
      %794 = vmatpush1.msra.mxu0 %v763
      %795 = vmatprep.subr.mxu0 0.0
      %796 = vmatpush1.msra.mxu0 %v764
      %797 = vmatprep.subr.mxu0 0.0
      %798 = vmatpush1.msra.mxu0 0.0
      %799 = vmatprep.subr.mxu0 0.0
      %800 = vmatpush1.msra.mxu0 0.0
      %801 = vmatprep.subr.mxu0 0.0
      %802 = vmatpush1.msra.mxu0 0.0
      %803 = vmatprep.subr.mxu0 0.0
      %804 = vmatpush1.msra.mxu0 0.0
      %805 = vmatprep.subr.mxu0 0.0
      %806 = vmatpush1.msra.mxu0 0.0
      %807 = vmatprep.subr.mxu0 0.0
      %808 = vmatpush1.msra.mxu0 0.0
      %809 = vmatprep.subr.mxu0 0.0
      %810 = vmatpush1.msra.mxu0 0.0
      %811 = vmatprep.subr.mxu0 0.0
      %812 = vmatpush1.msra.mxu0 0.0
      %813 = vmatprep.subr.mxu0 0.0
      %814 = vmatpush1.msra.mxu0 0.0
      %815 = vmatprep.subr.mxu0 0.0
      %816 = vmatpush1.msra.mxu0 0.0
      %817 = vmatprep.subr.mxu0 0.0
      %818 = vmatpush1.msra.mxu0 0.0
      %819 = vmatprep.subr.mxu0 0.0
      %820 = vmatpush1.msra.mxu0 0.0
      %821 = vmatprep.subr.mxu0 0.0
      %822 = vmatpush1.msra.mxu0 0.0
      %823 = vmatprep.subr.mxu0 0.0
      %824 = vmatpush1.msra.mxu0 0.0
      %825 = vmatprep.subr.mxu0 0.0
      %826 = vmatpush1.msra.mxu0 0.0
      %827 = vmatprep.subr.mxu0 0.0
      %828 = vmatpush1.msra.mxu0 0.0
      %829 = vmatprep.mubr.f32.mxu0 0.0
      %830 = vmatmul.mubr.f32.gmra.mrb[0].mxu0 %v494
      %v831 = vpop.f32.mrb[0].mxu0
      %v832 = vadd.f32 0.0, %v831
      %v833 = vpop.f32.mrb[0].mxu0
      %834 = vmatprep.mubr.f32.mxu0 0.0
      %835 = vmatmul.mubr.f32.gmra.mrb[0].mxu0 %v495
      %v836 = vpop.f32.mrb[0].mxu0
      %v837 = vadd.f32 0.0, %v836
      %v838 = vpop.f32.mrb[0].mxu0
      %839 = vmatprep.mubr.f32.mxu0 0.0
      %840 = vmatmul.mubr.f32.gmra.mrb[0].mxu0 %v496
      %v841 = vpop.f32.mrb[0].mxu0
      %v842 = vadd.f32 0.0, %v841
      %v843 = vpop.f32.mrb[0].mxu0
      %844 = vmatprep.mubr.f32.mxu0 0.0
      %845 = vmatmul.mubr.f32.gmra.mrb[0].mxu0 %v497
      %v846 = vpop.f32.mrb[0].mxu0
      %v847 = vadd.f32 0.0, %v846
      %v848 = vpop.f32.mrb[0].mxu0
      %849 = vmatprep.mubr.f32.mxu0 0.0
      %850 = vmatmul.mubr.f32.gmra.mrb[0].mxu0 %v498
      %v851 = vpop.f32.mrb[0].mxu0
      %v852 = vadd.f32 0.0, %v851
      %v853 = vpop.f32.mrb[0].mxu0
      %854 = vmatprep.mubr.f32.mxu0 0.0
      %855 = vmatmul.mubr.f32.gmra.mrb[0].mxu0 %v499
      %v856 = vpop.f32.mrb[0].mxu0
      %v857 = vadd.f32 0.0, %v856
      %v858 = vpop.f32.mrb[0].mxu0
      %859 = vmatprep.mubr.f32.mxu0 0.0
      %860 = vmatmul.mubr.f32.gmra.mrb[0].mxu0 %v500
      %v861 = vpop.f32.mrb[0].mxu0
      %v862 = vadd.f32 0.0, %v861
      %v863 = vpop.f32.mrb[0].mxu0
      %864 = vmatprep.mubr.f32.mxu0 0.0
      %865 = vmatmul.mubr.f32.gmra.mrb[0].mxu0 %v501
      %v866 = vpop.f32.mrb[0].mxu0
      %v867 = vadd.f32 0.0, %v866
      %v868 = vpop.f32.mrb[0].mxu0
      %869 = vdwg.mxu0
      %v870 = vld [vmem:[%s5 + $0x80] sm:$0xff]
      %v871 = vld [vmem:[%s5 + $0x88] sm:$0xff]
      %v872 = vld [vmem:[%s5 + $0x90] sm:$0xff]
      %v873 = vld [vmem:[%s5 + $0x98] sm:$0xff]
      %v874 = vld [vmem:[%s5 + $0xa0] sm:$0xff]
      %v875 = vld [vmem:[%s5 + $0xa8] sm:$0xff]
      %v876 = vld [vmem:[%s5 + $0xb0] sm:$0xff]
      %v877 = vld [vmem:[%s5 + $0xb8] sm:$0xff]
      %v878 = vld [vmem:[%s5 + $0xc0] sm:$0xff]
      %v879 = vld [vmem:[%s5 + $0xc8] sm:$0xff]
      %v880 = vld [vmem:[%s5 + $0xd0] sm:$0xff]
      %v881 = vld [vmem:[%s5 + $0xd8] sm:$0xff]
      %v882 = vld [vmem:[%s5 + $0xe0] sm:$0xff]
      %v883 = vld [vmem:[%s5 + $0xe8] sm:$0xff]
      %v884 = vld [vmem:[%s5 + $0xf0] sm:$0xff]
      %v885 = vld [vmem:[%s5 + $0xf8] sm:$0xff]
      %886 = vmatprep.subr.mxu0 0.0
      %887 = vmatpush1.msra.mxu0 %v870
      %888 = vmatprep.subr.mxu0 0.0
      %889 = vmatpush1.msra.mxu0 %v871
      %890 = vmatprep.subr.mxu0 0.0
      %891 = vmatpush1.msra.mxu0 %v872
      %892 = vmatprep.subr.mxu0 0.0
      %893 = vmatpush1.msra.mxu0 %v873
      %894 = vmatprep.subr.mxu0 0.0
      %895 = vmatpush1.msra.mxu0 %v874
      %896 = vmatprep.subr.mxu0 0.0
      %897 = vmatpush1.msra.mxu0 %v875
      %898 = vmatprep.subr.mxu0 0.0
      %899 = vmatpush1.msra.mxu0 %v876
      %900 = vmatprep.subr.mxu0 0.0
      %901 = vmatpush1.msra.mxu0 %v877
      %902 = vmatprep.subr.mxu0 0.0
      %903 = vmatpush1.msra.mxu0 %v878
      %904 = vmatprep.subr.mxu0 0.0
      %905 = vmatpush1.msra.mxu0 %v879
      %906 = vmatprep.subr.mxu0 0.0
      %907 = vmatpush1.msra.mxu0 %v880
      %908 = vmatprep.subr.mxu0 0.0
      %909 = vmatpush1.msra.mxu0 %v881
      %910 = vmatprep.subr.mxu0 0.0
      %911 = vmatpush1.msra.mxu0 %v882
      %912 = vmatprep.subr.mxu0 0.0
      %913 = vmatpush1.msra.mxu0 %v883
      %914 = vmatprep.subr.mxu0 0.0
      %915 = vmatpush1.msra.mxu0 %v884
      %916 = vmatprep.subr.mxu0 0.0
      %917 = vmatpush1.msra.mxu0 %v885
      %918 = vmatprep.subr.mxu0 0.0
      %919 = vmatpush1.msra.mxu0 0.0
      %920 = vmatprep.subr.mxu0 0.0
      %921 = vmatpush1.msra.mxu0 0.0
      %922 = vmatprep.subr.mxu0 0.0
      %923 = vmatpush1.msra.mxu0 0.0
      %924 = vmatprep.subr.mxu0 0.0
      %925 = vmatpush1.msra.mxu0 0.0
      %926 = vmatprep.subr.mxu0 0.0
      %927 = vmatpush1.msra.mxu0 0.0
      %928 = vmatprep.subr.mxu0 0.0
      %929 = vmatpush1.msra.mxu0 0.0
      %930 = vmatprep.subr.mxu0 0.0
      %931 = vmatpush1.msra.mxu0 0.0
      %932 = vmatprep.subr.mxu0 0.0
      %933 = vmatpush1.msra.mxu0 0.0
      %934 = vmatprep.subr.mxu0 0.0
      %935 = vmatpush1.msra.mxu0 0.0
      %936 = vmatprep.subr.mxu0 0.0
      %937 = vmatpush1.msra.mxu0 0.0
      %938 = vmatprep.subr.mxu0 0.0
      %939 = vmatpush1.msra.mxu0 0.0
      %940 = vmatprep.subr.mxu0 0.0
      %941 = vmatpush1.msra.mxu0 0.0
      %942 = vmatprep.subr.mxu0 0.0
      %943 = vmatpush1.msra.mxu0 0.0
      %944 = vmatprep.subr.mxu0 0.0
      %945 = vmatpush1.msra.mxu0 0.0
      %946 = vmatprep.subr.mxu0 0.0
      %947 = vmatpush1.msra.mxu0 0.0
      %948 = vmatprep.subr.mxu0 0.0
      %949 = vmatpush1.msra.mxu0 0.0
      %950 = vmatprep.mubr.f32.mxu0 0.0
      %951 = vmatmul.mubr.f32.gmra.mrb[0].mxu0 %v494
      %v952 = vpop.f32.mrb[0].mxu0
      %v953 = vadd.f32 0.0, %v952
      %v954 = vpop.f32.mrb[0].mxu0
      %955 = vmatprep.mubr.f32.mxu0 0.0
      %956 = vmatmul.mubr.f32.gmra.mrb[0].mxu0 %v495
      %v957 = vpop.f32.mrb[0].mxu0
      %v958 = vadd.f32 0.0, %v957
      %v959 = vpop.f32.mrb[0].mxu0
      %960 = vmatprep.mubr.f32.mxu0 0.0
      %961 = vmatmul.mubr.f32.gmra.mrb[0].mxu0 %v496
      %v962 = vpop.f32.mrb[0].mxu0
      %v963 = vadd.f32 0.0, %v962
      %v964 = vpop.f32.mrb[0].mxu0
      %965 = vmatprep.mubr.f32.mxu0 0.0
      %966 = vmatmul.mubr.f32.gmra.mrb[0].mxu0 %v497
      %v967 = vpop.f32.mrb[0].mxu0
      %v968 = vadd.f32 0.0, %v967
      %v969 = vpop.f32.mrb[0].mxu0
      %970 = vmatprep.mubr.f32.mxu0 0.0
      %971 = vmatmul.mubr.f32.gmra.mrb[0].mxu0 %v498
      %v972 = vpop.f32.mrb[0].mxu0
      %v973 = vadd.f32 0.0, %v972
      %v974 = vpop.f32.mrb[0].mxu0
      %975 = vmatprep.mubr.f32.mxu0 0.0
      %976 = vmatmul.mubr.f32.gmra.mrb[0].mxu0 %v499
      %v977 = vpop.f32.mrb[0].mxu0
      %v978 = vadd.f32 0.0, %v977
      %v979 = vpop.f32.mrb[0].mxu0
      %980 = vmatprep.mubr.f32.mxu0 0.0
      %981 = vmatmul.mubr.f32.gmra.mrb[0].mxu0 %v500
      %v982 = vpop.f32.mrb[0].mxu0
      %v983 = vadd.f32 0.0, %v982
      %v984 = vpop.f32.mrb[0].mxu0
      %985 = vmatprep.mubr.f32.mxu0 0.0
      %986 = vmatmul.mubr.f32.gmra.mrb[0].mxu0 %v501
      %v987 = vpop.f32.mrb[0].mxu0
      %v988 = vadd.f32 0.0, %v987
      %v989 = vpop.f32.mrb[0].mxu0
      %990 = vdwg.mxu0
      %vm991 = vcmask 523264
      %v993 = vsel %vm991, %v696, 0
      %v996 = vsel %vm991, %v697, 0
      %v999 = vsel %vm991, %v698, 0
      %v1002 = vsel %vm991, %v699, 0
      %v1005 = vsel %vm991, %v700, 0
      %v1008 = vsel %vm991, %v701, 0
      %v1011 = vsel %vm991, %v702, 0
      %v1014 = vsel %vm991, %v703, 0
      %v1017 = vsel %vm991, %v704, 0
      %v1020 = vsel %vm991, %v705, 0
      %v1023 = vsel %vm991, %v706, 0
      %v1026 = vsel %vm991, %v707, 0
      %v1029 = vsel %vm991, %v708, 0
      %v1032 = vsel %vm991, %v709, 0
      %v1035 = vsel %vm991, %v710, 0
      %v1038 = vsel %vm991, %v711, 0
      %1040 = vmatprep.subr.mxu0 0.0
      %1041 = vmatpush1.msra.mxu0 %v953
      %1042 = vmatprep.subr.mxu0 0.0
      %1043 = vmatpush1.msra.mxu0 %v958
      %1044 = vmatprep.subr.mxu0 0.0
      %1045 = vmatpush1.msra.mxu0 %v963
      %1046 = vmatprep.subr.mxu0 0.0
      %1047 = vmatpush1.msra.mxu0 %v968
      %1048 = vmatprep.subr.mxu0 0.0
      %1049 = vmatpush1.msra.mxu0 %v973
      %1050 = vmatprep.subr.mxu0 0.0
      %1051 = vmatpush1.msra.mxu0 %v978
      %1052 = vmatprep.subr.mxu0 0.0
      %1053 = vmatpush1.msra.mxu0 %v983
      %1054 = vmatprep.subr.mxu0 0.0
      %1055 = vmatpush1.msra.mxu0 %v988
      %1056 = vmatprep.subr.mxu0 0.0
      %1057 = vmatpush1.msra.mxu0 0.0
      %1058 = vmatprep.subr.mxu0 0.0
      %1059 = vmatpush1.msra.mxu0 0.0
      %1060 = vmatprep.subr.mxu0 0.0
      %1061 = vmatpush1.msra.mxu0 0.0
      %1062 = vmatprep.subr.mxu0 0.0
      %1063 = vmatpush1.msra.mxu0 0.0
      %1064 = vmatprep.subr.mxu0 0.0
      %1065 = vmatpush1.msra.mxu0 0.0
      %1066 = vmatprep.subr.mxu0 0.0
      %1067 = vmatpush1.msra.mxu0 0.0
      %1068 = vmatprep.subr.mxu0 0.0
      %1069 = vmatpush1.msra.mxu0 0.0
      %1070 = vmatprep.subr.mxu0 0.0
      %1071 = vmatpush1.msra.mxu0 0.0
      %1072 = vmatprep.subr.mxu0 0.0
      %1073 = vmatpush1.msra.mxu0 0.0
      %1074 = vmatprep.subr.mxu0 0.0
      %1075 = vmatpush1.msra.mxu0 0.0
      %1076 = vmatprep.subr.mxu0 0.0
      %1077 = vmatpush1.msra.mxu0 0.0
      %1078 = vmatprep.subr.mxu0 0.0
      %1079 = vmatpush1.msra.mxu0 0.0
      %1080 = vmatprep.subr.mxu0 0.0
      %1081 = vmatpush1.msra.mxu0 0.0
      %1082 = vmatprep.subr.mxu0 0.0
      %1083 = vmatpush1.msra.mxu0 0.0
      %1084 = vmatprep.subr.mxu0 0.0
      %1085 = vmatpush1.msra.mxu0 0.0
      %1086 = vmatprep.subr.mxu0 0.0
      %1087 = vmatpush1.msra.mxu0 0.0
      %1088 = vmatprep.subr.mxu0 0.0
      %1089 = vmatpush1.msra.mxu0 0.0
      %1090 = vmatprep.subr.mxu0 0.0
      %1091 = vmatpush1.msra.mxu0 0.0
      %1092 = vmatprep.subr.mxu0 0.0
      %1093 = vmatpush1.msra.mxu0 0.0
      %1094 = vmatprep.subr.mxu0 0.0
      %1095 = vmatpush1.msra.mxu0 0.0
      %1096 = vmatprep.subr.mxu0 0.0
      %1097 = vmatpush1.msra.mxu0 0.0
      %1098 = vmatprep.subr.mxu0 0.0
      %1099 = vmatpush1.msra.mxu0 0.0
      %1100 = vmatprep.subr.mxu0 0.0
      %1101 = vmatpush1.msra.mxu0 0.0
      %1102 = vmatprep.subr.mxu0 0.0
      %1103 = vmatpush1.msra.mxu0 0.0
      %1104 = vmatprep.mubr.f32.mxu0 0.0
      %1105 = vmatmul.mubr.f32.gmra.mrb[0].mxu0 %v993
      %v1106 = vpop.f32.mrb[0].mxu0
      %v1107 = vadd.f32 0.0, %v1106
      %v1108 = vpop.f32.mrb[0].mxu0
      %1109 = vmatprep.mubr.f32.mxu0 0.0
      %1110 = vmatmul.mubr.f32.gmra.mrb[0].mxu0 %v996
      %v1111 = vpop.f32.mrb[0].mxu0
      %v1112 = vadd.f32 0.0, %v1111
      %v1113 = vpop.f32.mrb[0].mxu0
      %1114 = vmatprep.mubr.f32.mxu0 0.0
      %1115 = vmatmul.mubr.f32.gmra.mrb[0].mxu0 %v999
      %v1116 = vpop.f32.mrb[0].mxu0
      %v1117 = vadd.f32 0.0, %v1116
      %v1118 = vpop.f32.mrb[0].mxu0
      %1119 = vmatprep.mubr.f32.mxu0 0.0
      %1120 = vmatmul.mubr.f32.gmra.mrb[0].mxu0 %v1002
      %v1121 = vpop.f32.mrb[0].mxu0
      %v1122 = vadd.f32 0.0, %v1121
      %v1123 = vpop.f32.mrb[0].mxu0
      %1124 = vmatprep.mubr.f32.mxu0 0.0
      %1125 = vmatmul.mubr.f32.gmra.mrb[0].mxu0 %v1005
      %v1126 = vpop.f32.mrb[0].mxu0
      %v1127 = vadd.f32 0.0, %v1126
      %v1128 = vpop.f32.mrb[0].mxu0
      %1129 = vmatprep.mubr.f32.mxu0 0.0
      %1130 = vmatmul.mubr.f32.gmra.mrb[0].mxu0 %v1008
      %v1131 = vpop.f32.mrb[0].mxu0
      %v1132 = vadd.f32 0.0, %v1131
      %v1133 = vpop.f32.mrb[0].mxu0
      %1134 = vmatprep.mubr.f32.mxu0 0.0
      %1135 = vmatmul.mubr.f32.gmra.mrb[0].mxu0 %v1011
      %v1136 = vpop.f32.mrb[0].mxu0
      %v1137 = vadd.f32 0.0, %v1136
      %v1138 = vpop.f32.mrb[0].mxu0
      %1139 = vmatprep.mubr.f32.mxu0 0.0
      %1140 = vmatmul.mubr.f32.gmra.mrb[0].mxu0 %v1014
      %v1141 = vpop.f32.mrb[0].mxu0
      %v1142 = vadd.f32 0.0, %v1141
      %v1143 = vpop.f32.mrb[0].mxu0
      %1144 = vmatprep.mubr.f32.mxu0 0.0
      %1145 = vmatmul.mubr.f32.gmra.mrb[0].mxu0 %v1017
      %v1146 = vpop.f32.mrb[0].mxu0
      %v1147 = vadd.f32 0.0, %v1146
      %v1148 = vpop.f32.mrb[0].mxu0
      %1149 = vmatprep.mubr.f32.mxu0 0.0
      %1150 = vmatmul.mubr.f32.gmra.mrb[0].mxu0 %v1020
      %v1151 = vpop.f32.mrb[0].mxu0
      %v1152 = vadd.f32 0.0, %v1151
      %v1153 = vpop.f32.mrb[0].mxu0
      %1154 = vmatprep.mubr.f32.mxu0 0.0
      %1155 = vmatmul.mubr.f32.gmra.mrb[0].mxu0 %v1023
      %v1156 = vpop.f32.mrb[0].mxu0
      %v1157 = vadd.f32 0.0, %v1156
      %v1158 = vpop.f32.mrb[0].mxu0
      %1159 = vmatprep.mubr.f32.mxu0 0.0
      %1160 = vmatmul.mubr.f32.gmra.mrb[0].mxu0 %v1026
      %v1161 = vpop.f32.mrb[0].mxu0
      %v1162 = vadd.f32 0.0, %v1161
      %v1163 = vpop.f32.mrb[0].mxu0
      %1164 = vmatprep.mubr.f32.mxu0 0.0
      %1165 = vmatmul.mubr.f32.gmra.mrb[0].mxu0 %v1029
      %v1166 = vpop.f32.mrb[0].mxu0
      %v1167 = vadd.f32 0.0, %v1166
      %v1168 = vpop.f32.mrb[0].mxu0
      %1169 = vmatprep.mubr.f32.mxu0 0.0
      %1170 = vmatmul.mubr.f32.gmra.mrb[0].mxu0 %v1032
      %v1171 = vpop.f32.mrb[0].mxu0
      %v1172 = vadd.f32 0.0, %v1171
      %v1173 = vpop.f32.mrb[0].mxu0
      %1174 = vmatprep.mubr.f32.mxu0 0.0
      %1175 = vmatmul.mubr.f32.gmra.mrb[0].mxu0 %v1035
      %v1176 = vpop.f32.mrb[0].mxu0
      %v1177 = vadd.f32 0.0, %v1176
      %v1178 = vpop.f32.mrb[0].mxu0
      %1179 = vmatprep.mubr.f32.mxu0 0.0
      %1180 = vmatmul.mubr.f32.gmra.mrb[0].mxu0 %v1038
      %v1181 = vpop.f32.mrb[0].mxu0
      %v1182 = vadd.f32 0.0, %v1181
      %v1183 = vpop.f32.mrb[0].mxu0
      %1184 = vdwg.mxu0
      %v1186 = vsel %vm991, %v600, 0
      %v1189 = vsel %vm991, %v601, 0
      %v1192 = vsel %vm991, %v602, 0
      %v1195 = vsel %vm991, %v603, 0
      %v1198 = vsel %vm991, %v604, 0
      %v1201 = vsel %vm991, %v605, 0
      %v1204 = vsel %vm991, %v606, 0
      %v1207 = vsel %vm991, %v607, 0
      %v1210 = vsel %vm991, %v608, 0
      %v1213 = vsel %vm991, %v609, 0
      %v1216 = vsel %vm991, %v610, 0
      %v1219 = vsel %vm991, %v611, 0
      %v1222 = vsel %vm991, %v612, 0
      %v1225 = vsel %vm991, %v613, 0
      %v1228 = vsel %vm991, %v614, 0
      %v1231 = vsel %vm991, %v615, 0
      %1233 = vmatprep.subr.mxu0 0.0
      %1234 = vmatpush1.msra.mxu0 %v832
      %1235 = vmatprep.subr.mxu0 0.0
      %1236 = vmatpush1.msra.mxu0 %v837
      %1237 = vmatprep.subr.mxu0 0.0
      %1238 = vmatpush1.msra.mxu0 %v842
      %1239 = vmatprep.subr.mxu0 0.0
      %1240 = vmatpush1.msra.mxu0 %v847
      %1241 = vmatprep.subr.mxu0 0.0
      %1242 = vmatpush1.msra.mxu0 %v852
      %1243 = vmatprep.subr.mxu0 0.0
      %1244 = vmatpush1.msra.mxu0 %v857
      %1245 = vmatprep.subr.mxu0 0.0
      %1246 = vmatpush1.msra.mxu0 %v862
      %1247 = vmatprep.subr.mxu0 0.0
      %1248 = vmatpush1.msra.mxu0 %v867
      %1249 = vmatprep.subr.mxu0 0.0
      %1250 = vmatpush1.msra.mxu0 0.0
      %1251 = vmatprep.subr.mxu0 0.0
      %1252 = vmatpush1.msra.mxu0 0.0
      %1253 = vmatprep.subr.mxu0 0.0
      %1254 = vmatpush1.msra.mxu0 0.0
      %1255 = vmatprep.subr.mxu0 0.0
      %1256 = vmatpush1.msra.mxu0 0.0
      %1257 = vmatprep.subr.mxu0 0.0
      %1258 = vmatpush1.msra.mxu0 0.0
      %1259 = vmatprep.subr.mxu0 0.0
      %1260 = vmatpush1.msra.mxu0 0.0
      %1261 = vmatprep.subr.mxu0 0.0
      %1262 = vmatpush1.msra.mxu0 0.0
      %1263 = vmatprep.subr.mxu0 0.0
      %1264 = vmatpush1.msra.mxu0 0.0
      %1265 = vmatprep.subr.mxu0 0.0
      %1266 = vmatpush1.msra.mxu0 0.0
      %1267 = vmatprep.subr.mxu0 0.0
      %1268 = vmatpush1.msra.mxu0 0.0
      %1269 = vmatprep.subr.mxu0 0.0
      %1270 = vmatpush1.msra.mxu0 0.0
      %1271 = vmatprep.subr.mxu0 0.0
      %1272 = vmatpush1.msra.mxu0 0.0
      %1273 = vmatprep.subr.mxu0 0.0
      %1274 = vmatpush1.msra.mxu0 0.0
      %1275 = vmatprep.subr.mxu0 0.0
      %1276 = vmatpush1.msra.mxu0 0.0
      %1277 = vmatprep.subr.mxu0 0.0
      %1278 = vmatpush1.msra.mxu0 0.0
      %1279 = vmatprep.subr.mxu0 0.0
      %1280 = vmatpush1.msra.mxu0 0.0
      %1281 = vmatprep.subr.mxu0 0.0
      %1282 = vmatpush1.msra.mxu0 0.0
      %1283 = vmatprep.subr.mxu0 0.0
      %1284 = vmatpush1.msra.mxu0 0.0
      %1285 = vmatprep.subr.mxu0 0.0
      %1286 = vmatpush1.msra.mxu0 0.0
      %1287 = vmatprep.subr.mxu0 0.0
      %1288 = vmatpush1.msra.mxu0 0.0
      %1289 = vmatprep.subr.mxu0 0.0
      %1290 = vmatpush1.msra.mxu0 0.0
      %1291 = vmatprep.subr.mxu0 0.0
      %1292 = vmatpush1.msra.mxu0 0.0
      %1293 = vmatprep.subr.mxu0 0.0
      %1294 = vmatpush1.msra.mxu0 0.0
      %1295 = vmatprep.subr.mxu0 0.0
      %1296 = vmatpush1.msra.mxu0 0.0
      %1297 = vmatprep.mubr.f32.mxu0 0.0
      %1298 = vmatmul.mubr.f32.gmra.mrb[0].mxu0 %v1186
      %v1299 = vpop.f32.mrb[0].mxu0
      %v1300 = vadd.f32 %v1107, %v1299
      %v1301 = vpop.f32.mrb[0].mxu0
      %1302 = vmatprep.mubr.f32.mxu0 0.0
      %1303 = vmatmul.mubr.f32.gmra.mrb[0].mxu0 %v1189
      %v1304 = vpop.f32.mrb[0].mxu0
      %v1305 = vadd.f32 %v1112, %v1304
      %v1306 = vpop.f32.mrb[0].mxu0
      %1307 = vmatprep.mubr.f32.mxu0 0.0
      %1308 = vmatmul.mubr.f32.gmra.mrb[0].mxu0 %v1192
      %v1309 = vpop.f32.mrb[0].mxu0
      %v1310 = vadd.f32 %v1117, %v1309
      %v1311 = vpop.f32.mrb[0].mxu0
      %1312 = vmatprep.mubr.f32.mxu0 0.0
      %1313 = vmatmul.mubr.f32.gmra.mrb[0].mxu0 %v1195
      %v1314 = vpop.f32.mrb[0].mxu0
      %v1315 = vadd.f32 %v1122, %v1314
      %v1316 = vpop.f32.mrb[0].mxu0
      %1317 = vmatprep.mubr.f32.mxu0 0.0
      %1318 = vmatmul.mubr.f32.gmra.mrb[0].mxu0 %v1198
      %v1319 = vpop.f32.mrb[0].mxu0
      %v1320 = vadd.f32 %v1127, %v1319
      %v1321 = vpop.f32.mrb[0].mxu0
      %1322 = vmatprep.mubr.f32.mxu0 0.0
      %1323 = vmatmul.mubr.f32.gmra.mrb[0].mxu0 %v1201
      %v1324 = vpop.f32.mrb[0].mxu0
      %v1325 = vadd.f32 %v1132, %v1324
      %v1326 = vpop.f32.mrb[0].mxu0
      %1327 = vmatprep.mubr.f32.mxu0 0.0
      %1328 = vmatmul.mubr.f32.gmra.mrb[0].mxu0 %v1204
      %v1329 = vpop.f32.mrb[0].mxu0
      %v1330 = vadd.f32 %v1137, %v1329
      %v1331 = vpop.f32.mrb[0].mxu0
      %1332 = vmatprep.mubr.f32.mxu0 0.0
      %1333 = vmatmul.mubr.f32.gmra.mrb[0].mxu0 %v1207
      %v1334 = vpop.f32.mrb[0].mxu0
      %v1335 = vadd.f32 %v1142, %v1334
      %v1336 = vpop.f32.mrb[0].mxu0
      %1337 = vmatprep.mubr.f32.mxu0 0.0
      %1338 = vmatmul.mubr.f32.gmra.mrb[0].mxu0 %v1210
      %v1339 = vpop.f32.mrb[0].mxu0
      %v1340 = vadd.f32 %v1147, %v1339
      %v1341 = vpop.f32.mrb[0].mxu0
      %1342 = vmatprep.mubr.f32.mxu0 0.0
      %1343 = vmatmul.mubr.f32.gmra.mrb[0].mxu0 %v1213
      %v1344 = vpop.f32.mrb[0].mxu0
      %v1345 = vadd.f32 %v1152, %v1344
      %v1346 = vpop.f32.mrb[0].mxu0
      %1347 = vmatprep.mubr.f32.mxu0 0.0
      %1348 = vmatmul.mubr.f32.gmra.mrb[0].mxu0 %v1216
      %v1349 = vpop.f32.mrb[0].mxu0
      %v1350 = vadd.f32 %v1157, %v1349
      %v1351 = vpop.f32.mrb[0].mxu0
      %1352 = vmatprep.mubr.f32.mxu0 0.0
      %1353 = vmatmul.mubr.f32.gmra.mrb[0].mxu0 %v1219
      %v1354 = vpop.f32.mrb[0].mxu0
      %v1355 = vadd.f32 %v1162, %v1354
      %v1356 = vpop.f32.mrb[0].mxu0
      %1357 = vmatprep.mubr.f32.mxu0 0.0
      %1358 = vmatmul.mubr.f32.gmra.mrb[0].mxu0 %v1222
      %v1359 = vpop.f32.mrb[0].mxu0
      %v1360 = vadd.f32 %v1167, %v1359
      %v1361 = vpop.f32.mrb[0].mxu0
      %1362 = vmatprep.mubr.f32.mxu0 0.0
      %1363 = vmatmul.mubr.f32.gmra.mrb[0].mxu0 %v1225
      %v1364 = vpop.f32.mrb[0].mxu0
      %v1365 = vadd.f32 %v1172, %v1364
      %v1366 = vpop.f32.mrb[0].mxu0
      %1367 = vmatprep.mubr.f32.mxu0 0.0
      %1368 = vmatmul.mubr.f32.gmra.mrb[0].mxu0 %v1228
      %v1369 = vpop.f32.mrb[0].mxu0
      %v1370 = vadd.f32 %v1177, %v1369
      %v1371 = vpop.f32.mrb[0].mxu0
      %1372 = vmatprep.mubr.f32.mxu0 0.0
      %1373 = vmatmul.mubr.f32.gmra.mrb[0].mxu0 %v1231
      %v1374 = vpop.f32.mrb[0].mxu0
      %v1375 = vadd.f32 %v1182, %v1374
      %v1376 = vpop.f32.mrb[0].mxu0
      %1377 = vdwg.mxu0
      %v1378 = vld [vmem:[%s5 + $0x100] sm:$0xff]
      %v1379 = vld [vmem:[%s5 + $0x108] sm:$0xff]
      %v1380 = vld [vmem:[%s5 + $0x110] sm:$0xff]
      %v1381 = vld [vmem:[%s5 + $0x118] sm:$0xff]
      %v1382 = vld [vmem:[%s5 + $0x120] sm:$0xff]
      %v1383 = vld [vmem:[%s5 + $0x128] sm:$0xff]
      %v1384 = vld [vmem:[%s5 + $0x130] sm:$0xff]
      %v1385 = vld [vmem:[%s5 + $0x138] sm:$0xff]
      %v1386 = vld [vmem:[%s5 + $0x140] sm:$0xff]
      %v1387 = vld [vmem:[%s5 + $0x148] sm:$0xff]
      %v1388 = vld [vmem:[%s5 + $0x150] sm:$0xff]
      %v1389 = vld [vmem:[%s5 + $0x158] sm:$0xff]
      %v1390 = vld [vmem:[%s5 + $0x160] sm:$0xff]
      %v1391 = vld [vmem:[%s5 + $0x168] sm:$0xff]
      %v1392 = vld [vmem:[%s5 + $0x170] sm:$0xff]
      %v1393 = vld [vmem:[%s5 + $0x178] sm:$0xff]
      %1394 = vmatprep.subr.mxu0 0.0
      %1395 = vmatpush1.msra.mxu0 %v1378
      %1396 = vmatprep.subr.mxu0 0.0
      %1397 = vmatpush1.msra.mxu0 %v1379
      %1398 = vmatprep.subr.mxu0 0.0
      %1399 = vmatpush1.msra.mxu0 %v1380
      %1400 = vmatprep.subr.mxu0 0.0
      %1401 = vmatpush1.msra.mxu0 %v1381
      %1402 = vmatprep.subr.mxu0 0.0
      %1403 = vmatpush1.msra.mxu0 %v1382
      %1404 = vmatprep.subr.mxu0 0.0
      %1405 = vmatpush1.msra.mxu0 %v1383
      %1406 = vmatprep.subr.mxu0 0.0
      %1407 = vmatpush1.msra.mxu0 %v1384
      %1408 = vmatprep.subr.mxu0 0.0
      %1409 = vmatpush1.msra.mxu0 %v1385
      %1410 = vmatprep.subr.mxu0 0.0
      %1411 = vmatpush1.msra.mxu0 %v1386
      %1412 = vmatprep.subr.mxu0 0.0
      %1413 = vmatpush1.msra.mxu0 %v1387
      %1414 = vmatprep.subr.mxu0 0.0
      %1415 = vmatpush1.msra.mxu0 %v1388
      %1416 = vmatprep.subr.mxu0 0.0
      %1417 = vmatpush1.msra.mxu0 %v1389
      %1418 = vmatprep.subr.mxu0 0.0
      %1419 = vmatpush1.msra.mxu0 %v1390
      %1420 = vmatprep.subr.mxu0 0.0
      %1421 = vmatpush1.msra.mxu0 %v1391
      %1422 = vmatprep.subr.mxu0 0.0
      %1423 = vmatpush1.msra.mxu0 %v1392
      %1424 = vmatprep.subr.mxu0 0.0
      %1425 = vmatpush1.msra.mxu0 %v1393
      %1426 = vmatprep.subr.mxu0 0.0
      %1427 = vmatpush1.msra.mxu0 0.0
      %1428 = vmatprep.subr.mxu0 0.0
      %1429 = vmatpush1.msra.mxu0 0.0
      %1430 = vmatprep.subr.mxu0 0.0
      %1431 = vmatpush1.msra.mxu0 0.0
      %1432 = vmatprep.subr.mxu0 0.0
      %1433 = vmatpush1.msra.mxu0 0.0
      %1434 = vmatprep.subr.mxu0 0.0
      %1435 = vmatpush1.msra.mxu0 0.0
      %1436 = vmatprep.subr.mxu0 0.0
      %1437 = vmatpush1.msra.mxu0 0.0
      %1438 = vmatprep.subr.mxu0 0.0
      %1439 = vmatpush1.msra.mxu0 0.0
      %1440 = vmatprep.subr.mxu0 0.0
      %1441 = vmatpush1.msra.mxu0 0.0
      %1442 = vmatprep.subr.mxu0 0.0
      %1443 = vmatpush1.msra.mxu0 0.0
      %1444 = vmatprep.subr.mxu0 0.0
      %1445 = vmatpush1.msra.mxu0 0.0
      %1446 = vmatprep.subr.mxu0 0.0
      %1447 = vmatpush1.msra.mxu0 0.0
      %1448 = vmatprep.subr.mxu0 0.0
      %1449 = vmatpush1.msra.mxu0 0.0
      %1450 = vmatprep.subr.mxu0 0.0
      %1451 = vmatpush1.msra.mxu0 0.0
      %1452 = vmatprep.subr.mxu0 0.0
      %1453 = vmatpush1.msra.mxu0 0.0
      %1454 = vmatprep.subr.mxu0 0.0
      %1455 = vmatpush1.msra.mxu0 0.0
      %1456 = vmatprep.subr.mxu0 0.0
      %1457 = vmatpush1.msra.mxu0 0.0
      %1458 = vmatprep.mubr.f32.mxu0 0.0
      %1459 = vmatmul.mubr.f32.gmra.mrb[0].mxu0 %v502
      %v1460 = vpop.f32.mrb[0].mxu0
      %v1461 = vadd.f32 0.0, %v1460
      %v1462 = vpop.f32.mrb[0].mxu0
      %1463 = vmatprep.mubr.f32.mxu0 0.0
      %1464 = vmatmul.mubr.f32.gmra.mrb[0].mxu0 %v503
      %v1465 = vpop.f32.mrb[0].mxu0
      %v1466 = vadd.f32 0.0, %v1465
      %v1467 = vpop.f32.mrb[0].mxu0
      %1468 = vmatprep.mubr.f32.mxu0 0.0
      %1469 = vmatmul.mubr.f32.gmra.mrb[0].mxu0 %v504
      %v1470 = vpop.f32.mrb[0].mxu0
      %v1471 = vadd.f32 0.0, %v1470
      %v1472 = vpop.f32.mrb[0].mxu0
      %1473 = vmatprep.mubr.f32.mxu0 0.0
      %1474 = vmatmul.mubr.f32.gmra.mrb[0].mxu0 %v505
      %v1475 = vpop.f32.mrb[0].mxu0
      %v1476 = vadd.f32 0.0, %v1475
      %v1477 = vpop.f32.mrb[0].mxu0
      %1478 = vmatprep.mubr.f32.mxu0 0.0
      %1479 = vmatmul.mubr.f32.gmra.mrb[0].mxu0 %v506
      %v1480 = vpop.f32.mrb[0].mxu0
      %v1481 = vadd.f32 0.0, %v1480
      %v1482 = vpop.f32.mrb[0].mxu0
      %1483 = vmatprep.mubr.f32.mxu0 0.0
      %1484 = vmatmul.mubr.f32.gmra.mrb[0].mxu0 %v507
      %v1485 = vpop.f32.mrb[0].mxu0
      %v1486 = vadd.f32 0.0, %v1485
      %v1487 = vpop.f32.mrb[0].mxu0
      %1488 = vmatprep.mubr.f32.mxu0 0.0
      %1489 = vmatmul.mubr.f32.gmra.mrb[0].mxu0 %v508
      %v1490 = vpop.f32.mrb[0].mxu0
      %v1491 = vadd.f32 0.0, %v1490
      %v1492 = vpop.f32.mrb[0].mxu0
      %1493 = vmatprep.mubr.f32.mxu0 0.0
      %1494 = vmatmul.mubr.f32.gmra.mrb[0].mxu0 %v509
      %v1495 = vpop.f32.mrb[0].mxu0
      %v1496 = vadd.f32 0.0, %v1495
      %v1497 = vpop.f32.mrb[0].mxu0
      %1498 = vmatprep.mubr.f32.mxu0 0.0
      %1499 = vmatmul.mubr.f32.gmra.mrb[0].mxu0 %v510
      %v1500 = vpop.f32.mrb[0].mxu0
      %v1501 = vadd.f32 0.0, %v1500
      %v1502 = vpop.f32.mrb[0].mxu0
      %1503 = vmatprep.mubr.f32.mxu0 0.0
      %1504 = vmatmul.mubr.f32.gmra.mrb[0].mxu0 %v511
      %v1505 = vpop.f32.mrb[0].mxu0
      %v1506 = vadd.f32 0.0, %v1505
      %v1507 = vpop.f32.mrb[0].mxu0
      %1508 = vmatprep.mubr.f32.mxu0 0.0
      %1509 = vmatmul.mubr.f32.gmra.mrb[0].mxu0 %v512
      %v1510 = vpop.f32.mrb[0].mxu0
      %v1511 = vadd.f32 0.0, %v1510
      %v1512 = vpop.f32.mrb[0].mxu0
      %1513 = vmatprep.mubr.f32.mxu0 0.0
      %1514 = vmatmul.mubr.f32.gmra.mrb[0].mxu0 %v513
      %v1515 = vpop.f32.mrb[0].mxu0
      %v1516 = vadd.f32 0.0, %v1515
      %v1517 = vpop.f32.mrb[0].mxu0
      %1518 = vmatprep.mubr.f32.mxu0 0.0
      %1519 = vmatmul.mubr.f32.gmra.mrb[0].mxu0 %v514
      %v1520 = vpop.f32.mrb[0].mxu0
      %v1521 = vadd.f32 0.0, %v1520
      %v1522 = vpop.f32.mrb[0].mxu0
      %1523 = vmatprep.mubr.f32.mxu0 0.0
      %1524 = vmatmul.mubr.f32.gmra.mrb[0].mxu0 %v515
      %v1525 = vpop.f32.mrb[0].mxu0
      %v1526 = vadd.f32 0.0, %v1525
      %v1527 = vpop.f32.mrb[0].mxu0
      %1528 = vmatprep.mubr.f32.mxu0 0.0
      %1529 = vmatmul.mubr.f32.gmra.mrb[0].mxu0 %v516
      %v1530 = vpop.f32.mrb[0].mxu0
      %v1531 = vadd.f32 0.0, %v1530
      %v1532 = vpop.f32.mrb[0].mxu0
      %1533 = vmatprep.mubr.f32.mxu0 0.0
      %1534 = vmatmul.mubr.f32.gmra.mrb[0].mxu0 %v517
      %v1535 = vpop.f32.mrb[0].mxu0
      %v1536 = vadd.f32 0.0, %v1535
      %v1537 = vpop.f32.mrb[0].mxu0
      %1538 = vdwg.mxu0
      %v1539 = vadd.f32 %v1300, %v1461
      %v1540 = vadd.f32 %v1305, %v1466
      %v1541 = vadd.f32 %v1310, %v1471
      %v1542 = vadd.f32 %v1315, %v1476
      %v1543 = vadd.f32 %v1320, %v1481
      %v1544 = vadd.f32 %v1325, %v1486
      %v1545 = vadd.f32 %v1330, %v1491
      %v1546 = vadd.f32 %v1335, %v1496
      %v1547 = vadd.f32 %v1340, %v1501
      %v1548 = vadd.f32 %v1345, %v1506
      %v1549 = vadd.f32 %v1350, %v1511
      %v1550 = vadd.f32 %v1355, %v1516
      %v1551 = vadd.f32 %v1360, %v1521
      %v1552 = vadd.f32 %v1365, %v1526
      %v1553 = vadd.f32 %v1370, %v1531
      %v1554 = vadd.f32 %v1375, %v1536
      %v1555 = vld [vmem:[%s6] sm:$0x1]
      %v1556 = vlaneseq
      %v1557 = vshrl.u32 %v1556, 7
      %v1558 = vsub.s32 0, %v1557
      %v1559 = vrot.slane %v1555, %v1558
      %v1560 = vadd.f32 %v1539, %v1559
      %v1561 = vadd.f32 %v1540, %v1559
      %v1562 = vadd.f32 %v1541, %v1559
      %v1563 = vadd.f32 %v1542, %v1559
      %v1564 = vadd.f32 %v1543, %v1559
      %v1565 = vadd.f32 %v1544, %v1559
      %v1566 = vadd.f32 %v1545, %v1559
      %v1567 = vadd.f32 %v1546, %v1559
      %v1568 = vadd.f32 %v1547, %v1559
      %v1569 = vadd.f32 %v1548, %v1559
      %v1570 = vadd.f32 %v1549, %v1559
      %v1571 = vadd.f32 %v1550, %v1559
      %v1572 = vadd.f32 %v1551, %v1559
      %v1573 = vadd.f32 %v1552, %v1559
      %v1574 = vadd.f32 %v1553, %v1559
      %v1575 = vadd.f32 %v1554, %v1559
      %v1576 = vmax.f32 %v1560, 0.0
      %v1577 = vmax.f32 %v1561, 0.0
      %v1578 = vmax.f32 %v1562, 0.0
      %v1579 = vmax.f32 %v1563, 0.0
      %v1580 = vmax.f32 %v1564, 0.0
      %v1581 = vmax.f32 %v1565, 0.0
      %v1582 = vmax.f32 %v1566, 0.0
      %v1583 = vmax.f32 %v1567, 0.0
      %v1584 = vmax.f32 %v1568, 0.0
      %v1585 = vmax.f32 %v1569, 0.0
      %v1586 = vmax.f32 %v1570, 0.0
      %v1587 = vmax.f32 %v1571, 0.0
      %v1588 = vmax.f32 %v1572, 0.0
      %v1589 = vmax.f32 %v1573, 0.0
      %v1590 = vmax.f32 %v1574, 0.0
      %v1591 = vmax.f32 %v1575, 0.0
      %v1592 = vld [vmem:[%s5 + $0x180] sm:$0xff]
      %v1593 = vld [vmem:[%s5 + $0x188] sm:$0xff]
      %v1594 = vld [vmem:[%s5 + $0x190] sm:$0xff]
      %v1595 = vld [vmem:[%s5 + $0x198] sm:$0xff]
      %v1596 = vld [vmem:[%s5 + $0x1a0] sm:$0xff]
      %v1597 = vld [vmem:[%s5 + $0x1a8] sm:$0xff]
      %v1598 = vld [vmem:[%s5 + $0x1b0] sm:$0xff]
      %v1599 = vld [vmem:[%s5 + $0x1b8] sm:$0xff]
      %v1600 = vld [vmem:[%s5 + $0x1c0] sm:$0xff]
      %v1601 = vld [vmem:[%s5 + $0x1c8] sm:$0xff]
      %v1602 = vld [vmem:[%s5 + $0x1d0] sm:$0xff]
      %v1603 = vld [vmem:[%s5 + $0x1d8] sm:$0xff]
      %v1604 = vld [vmem:[%s5 + $0x1e0] sm:$0xff]
      %v1605 = vld [vmem:[%s5 + $0x1e8] sm:$0xff]
      %v1606 = vld [vmem:[%s5 + $0x1f0] sm:$0xff]
      %v1607 = vld [vmem:[%s5 + $0x1f8] sm:$0xff]
      %v1608 = vld [vmem:[%s6 + $0x1] sm:$0x1]
      %v1609 = vlaneseq
      %v1610 = vshrl.u32 %v1609, 7
      %v1611 = vsub.s32 0, %v1610
      %v1612 = vrot.slane %v1608, %v1611
      %1613 = vmatprep.subr.mxu0 0.0
      %1614 = vmatpush1.msra.mxu0 %v1592
      %1615 = vmatprep.subr.mxu0 0.0
      %1616 = vmatpush1.msra.mxu0 %v1593
      %1617 = vmatprep.subr.mxu0 0.0
      %1618 = vmatpush1.msra.mxu0 %v1594
      %1619 = vmatprep.subr.mxu0 0.0
      %1620 = vmatpush1.msra.mxu0 %v1595
      %1621 = vmatprep.subr.mxu0 0.0
      %1622 = vmatpush1.msra.mxu0 %v1596
      %1623 = vmatprep.subr.mxu0 0.0
      %1624 = vmatpush1.msra.mxu0 %v1597
      %1625 = vmatprep.subr.mxu0 0.0
      %1626 = vmatpush1.msra.mxu0 %v1598
      %1627 = vmatprep.subr.mxu0 0.0
      %1628 = vmatpush1.msra.mxu0 %v1599
      %1629 = vmatprep.subr.mxu0 0.0
      %1630 = vmatpush1.msra.mxu0 %v1600
      %1631 = vmatprep.subr.mxu0 0.0
      %1632 = vmatpush1.msra.mxu0 %v1601
      %1633 = vmatprep.subr.mxu0 0.0
      %1634 = vmatpush1.msra.mxu0 %v1602
      %1635 = vmatprep.subr.mxu0 0.0
      %1636 = vmatpush1.msra.mxu0 %v1603
      %1637 = vmatprep.subr.mxu0 0.0
      %1638 = vmatpush1.msra.mxu0 %v1604
      %1639 = vmatprep.subr.mxu0 0.0
      %1640 = vmatpush1.msra.mxu0 %v1605
      %1641 = vmatprep.subr.mxu0 0.0
      %1642 = vmatpush1.msra.mxu0 %v1606
      %1643 = vmatprep.subr.mxu0 0.0
      %1644 = vmatpush1.msra.mxu0 %v1607
      %1645 = vmatprep.subr.mxu0 0.0
      %1646 = vmatpush1.msra.mxu0 0.0
      %1647 = vmatprep.subr.mxu0 0.0
      %1648 = vmatpush1.msra.mxu0 0.0
      %1649 = vmatprep.subr.mxu0 0.0
      %1650 = vmatpush1.msra.mxu0 0.0
      %1651 = vmatprep.subr.mxu0 0.0
      %1652 = vmatpush1.msra.mxu0 0.0
      %1653 = vmatprep.subr.mxu0 0.0
      %1654 = vmatpush1.msra.mxu0 0.0
      %1655 = vmatprep.subr.mxu0 0.0
      %1656 = vmatpush1.msra.mxu0 0.0
      %1657 = vmatprep.subr.mxu0 0.0
      %1658 = vmatpush1.msra.mxu0 0.0
      %1659 = vmatprep.subr.mxu0 0.0
      %1660 = vmatpush1.msra.mxu0 0.0
      %1661 = vmatprep.subr.mxu0 0.0
      %1662 = vmatpush1.msra.mxu0 0.0
      %1663 = vmatprep.subr.mxu0 0.0
      %1664 = vmatpush1.msra.mxu0 0.0
      %1665 = vmatprep.subr.mxu0 0.0
      %1666 = vmatpush1.msra.mxu0 0.0
      %1667 = vmatprep.subr.mxu0 0.0
      %1668 = vmatpush1.msra.mxu0 0.0
      %1669 = vmatprep.subr.mxu0 0.0
      %1670 = vmatpush1.msra.mxu0 0.0
      %1671 = vmatprep.subr.mxu0 0.0
      %1672 = vmatpush1.msra.mxu0 0.0
      %1673 = vmatprep.subr.mxu0 0.0
      %1674 = vmatpush1.msra.mxu0 0.0
      %1675 = vmatprep.subr.mxu0 0.0
      %1676 = vmatpush1.msra.mxu0 0.0
      %1677 = vmatprep.mubr.f32.mxu0 0.0
      %1678 = vmatmul.mubr.f32.gmra.mrb[0].mxu0 %v1576
      %v1679 = vpop.f32.mrb[0].mxu0
      %v1680 = vadd.f32 %v1612, %v1679
      %v1681 = vpop.f32.mrb[0].mxu0
      %1682 = vmatprep.mubr.f32.mxu0 0.0
      %1683 = vmatmul.mubr.f32.gmra.mrb[0].mxu0 %v1577
      %v1684 = vpop.f32.mrb[0].mxu0
      %v1685 = vadd.f32 %v1612, %v1684
      %v1686 = vpop.f32.mrb[0].mxu0
      %1687 = vmatprep.mubr.f32.mxu0 0.0
      %1688 = vmatmul.mubr.f32.gmra.mrb[0].mxu0 %v1578
      %v1689 = vpop.f32.mrb[0].mxu0
      %v1690 = vadd.f32 %v1612, %v1689
      %v1691 = vpop.f32.mrb[0].mxu0
      %1692 = vmatprep.mubr.f32.mxu0 0.0
      %1693 = vmatmul.mubr.f32.gmra.mrb[0].mxu0 %v1579
      %v1694 = vpop.f32.mrb[0].mxu0
      %v1695 = vadd.f32 %v1612, %v1694
      %v1696 = vpop.f32.mrb[0].mxu0
      %1697 = vmatprep.mubr.f32.mxu0 0.0
      %1698 = vmatmul.mubr.f32.gmra.mrb[0].mxu0 %v1580
      %v1699 = vpop.f32.mrb[0].mxu0
      %v1700 = vadd.f32 %v1612, %v1699
      %v1701 = vpop.f32.mrb[0].mxu0
      %1702 = vmatprep.mubr.f32.mxu0 0.0
      %1703 = vmatmul.mubr.f32.gmra.mrb[0].mxu0 %v1581
      %v1704 = vpop.f32.mrb[0].mxu0
      %v1705 = vadd.f32 %v1612, %v1704
      %v1706 = vpop.f32.mrb[0].mxu0
      %1707 = vmatprep.mubr.f32.mxu0 0.0
      %1708 = vmatmul.mubr.f32.gmra.mrb[0].mxu0 %v1582
      %v1709 = vpop.f32.mrb[0].mxu0
      %v1710 = vadd.f32 %v1612, %v1709
      %v1711 = vpop.f32.mrb[0].mxu0
      %1712 = vmatprep.mubr.f32.mxu0 0.0
      %1713 = vmatmul.mubr.f32.gmra.mrb[0].mxu0 %v1583
      %v1714 = vpop.f32.mrb[0].mxu0
      %v1715 = vadd.f32 %v1612, %v1714
      %v1716 = vpop.f32.mrb[0].mxu0
      %1717 = vmatprep.mubr.f32.mxu0 0.0
      %1718 = vmatmul.mubr.f32.gmra.mrb[0].mxu0 %v1584
      %v1719 = vpop.f32.mrb[0].mxu0
      %v1720 = vadd.f32 %v1612, %v1719
      %v1721 = vpop.f32.mrb[0].mxu0
      %1722 = vmatprep.mubr.f32.mxu0 0.0
      %1723 = vmatmul.mubr.f32.gmra.mrb[0].mxu0 %v1585
      %v1724 = vpop.f32.mrb[0].mxu0
      %v1725 = vadd.f32 %v1612, %v1724
      %v1726 = vpop.f32.mrb[0].mxu0
      %1727 = vmatprep.mubr.f32.mxu0 0.0
      %1728 = vmatmul.mubr.f32.gmra.mrb[0].mxu0 %v1586
      %v1729 = vpop.f32.mrb[0].mxu0
      %v1730 = vadd.f32 %v1612, %v1729
      %v1731 = vpop.f32.mrb[0].mxu0
      %1732 = vmatprep.mubr.f32.mxu0 0.0
      %1733 = vmatmul.mubr.f32.gmra.mrb[0].mxu0 %v1587
      %v1734 = vpop.f32.mrb[0].mxu0
      %v1735 = vadd.f32 %v1612, %v1734
      %v1736 = vpop.f32.mrb[0].mxu0
      %1737 = vmatprep.mubr.f32.mxu0 0.0
      %1738 = vmatmul.mubr.f32.gmra.mrb[0].mxu0 %v1588
      %v1739 = vpop.f32.mrb[0].mxu0
      %v1740 = vadd.f32 %v1612, %v1739
      %v1741 = vpop.f32.mrb[0].mxu0
      %1742 = vmatprep.mubr.f32.mxu0 0.0
      %1743 = vmatmul.mubr.f32.gmra.mrb[0].mxu0 %v1589
      %v1744 = vpop.f32.mrb[0].mxu0
      %v1745 = vadd.f32 %v1612, %v1744
      %v1746 = vpop.f32.mrb[0].mxu0
      %1747 = vmatprep.mubr.f32.mxu0 0.0
      %1748 = vmatmul.mubr.f32.gmra.mrb[0].mxu0 %v1590
      %v1749 = vpop.f32.mrb[0].mxu0
      %v1750 = vadd.f32 %v1612, %v1749
      %v1751 = vpop.f32.mrb[0].mxu0
      %1752 = vmatprep.mubr.f32.mxu0 0.0
      %1753 = vmatmul.mubr.f32.gmra.mrb[0].mxu0 %v1591
      %v1754 = vpop.f32.mrb[0].mxu0
      %v1755 = vadd.f32 %v1612, %v1754
      %v1756 = vpop.f32.mrb[0].mxu0
      %1757 = vdwg.mxu0
      %v1758 = vmax.f32 %v1680, 0.0
      %v1759 = vmax.f32 %v1685, 0.0
      %v1760 = vmax.f32 %v1690, 0.0
      %v1761 = vmax.f32 %v1695, 0.0
      %v1762 = vmax.f32 %v1700, 0.0
      %v1763 = vmax.f32 %v1705, 0.0
      %v1764 = vmax.f32 %v1710, 0.0
      %v1765 = vmax.f32 %v1715, 0.0
      %v1766 = vmax.f32 %v1720, 0.0
      %v1767 = vmax.f32 %v1725, 0.0
      %v1768 = vmax.f32 %v1730, 0.0
      %v1769 = vmax.f32 %v1735, 0.0
      %v1770 = vmax.f32 %v1740, 0.0
      %v1771 = vmax.f32 %v1745, 0.0
      %v1772 = vmax.f32 %v1750, 0.0
      %v1773 = vmax.f32 %v1755, 0.0
      %v1774 = vld [vmem:[%s5 + $0x200] sm:$0xff]
      %v1775 = vld [vmem:[%s5 + $0x208] sm:$0xff]
      %v1776 = vld [vmem:[%s5 + $0x210] sm:$0xff]
      %v1777 = vld [vmem:[%s5 + $0x218] sm:$0xff]
      %v1778 = vld [vmem:[%s5 + $0x220] sm:$0xff]
      %v1779 = vld [vmem:[%s5 + $0x228] sm:$0xff]
      %v1780 = vld [vmem:[%s5 + $0x230] sm:$0xff]
      %v1781 = vld [vmem:[%s5 + $0x238] sm:$0xff]
      %v1782 = vld [vmem:[%s5 + $0x240] sm:$0xff]
      %v1783 = vld [vmem:[%s5 + $0x248] sm:$0xff]
      %v1784 = vld [vmem:[%s5 + $0x250] sm:$0xff]
      %v1785 = vld [vmem:[%s5 + $0x258] sm:$0xff]
      %v1786 = vld [vmem:[%s5 + $0x260] sm:$0xff]
      %v1787 = vld [vmem:[%s5 + $0x268] sm:$0xff]
      %v1788 = vld [vmem:[%s5 + $0x270] sm:$0xff]
      %v1789 = vld [vmem:[%s5 + $0x278] sm:$0xff]
      %v1790 = vld [vmem:[%s6 + $0x2] sm:$0x1]
      %v1791 = vlaneseq
      %v1792 = vshrl.u32 %v1791, 7
      %v1793 = vsub.s32 0, %v1792
      %v1794 = vrot.slane %v1790, %v1793
      %1795 = vmatprep.subr.mxu0 0.0
      %1796 = vmatpush1.msra.mxu0 %v1774
      %1797 = vmatprep.subr.mxu0 0.0
      %1798 = vmatpush1.msra.mxu0 %v1775
      %1799 = vmatprep.subr.mxu0 0.0
      %1800 = vmatpush1.msra.mxu0 %v1776
      %1801 = vmatprep.subr.mxu0 0.0
      %1802 = vmatpush1.msra.mxu0 %v1777
      %1803 = vmatprep.subr.mxu0 0.0
      %1804 = vmatpush1.msra.mxu0 %v1778
      %1805 = vmatprep.subr.mxu0 0.0
      %1806 = vmatpush1.msra.mxu0 %v1779
      %1807 = vmatprep.subr.mxu0 0.0
      %1808 = vmatpush1.msra.mxu0 %v1780
      %1809 = vmatprep.subr.mxu0 0.0
      %1810 = vmatpush1.msra.mxu0 %v1781
      %1811 = vmatprep.subr.mxu0 0.0
      %1812 = vmatpush1.msra.mxu0 %v1782
      %1813 = vmatprep.subr.mxu0 0.0
      %1814 = vmatpush1.msra.mxu0 %v1783
      %1815 = vmatprep.subr.mxu0 0.0
      %1816 = vmatpush1.msra.mxu0 %v1784
      %1817 = vmatprep.subr.mxu0 0.0
      %1818 = vmatpush1.msra.mxu0 %v1785
      %1819 = vmatprep.subr.mxu0 0.0
      %1820 = vmatpush1.msra.mxu0 %v1786
      %1821 = vmatprep.subr.mxu0 0.0
      %1822 = vmatpush1.msra.mxu0 %v1787
      %1823 = vmatprep.subr.mxu0 0.0
      %1824 = vmatpush1.msra.mxu0 %v1788
      %1825 = vmatprep.subr.mxu0 0.0
      %1826 = vmatpush1.msra.mxu0 %v1789
      %1827 = vmatprep.subr.mxu0 0.0
      %1828 = vmatpush1.msra.mxu0 0.0
      %1829 = vmatprep.subr.mxu0 0.0
      %1830 = vmatpush1.msra.mxu0 0.0
      %1831 = vmatprep.subr.mxu0 0.0
      %1832 = vmatpush1.msra.mxu0 0.0
      %1833 = vmatprep.subr.mxu0 0.0
      %1834 = vmatpush1.msra.mxu0 0.0
      %1835 = vmatprep.subr.mxu0 0.0
      %1836 = vmatpush1.msra.mxu0 0.0
      %1837 = vmatprep.subr.mxu0 0.0
      %1838 = vmatpush1.msra.mxu0 0.0
      %1839 = vmatprep.subr.mxu0 0.0
      %1840 = vmatpush1.msra.mxu0 0.0
      %1841 = vmatprep.subr.mxu0 0.0
      %1842 = vmatpush1.msra.mxu0 0.0
      %1843 = vmatprep.subr.mxu0 0.0
      %1844 = vmatpush1.msra.mxu0 0.0
      %1845 = vmatprep.subr.mxu0 0.0
      %1846 = vmatpush1.msra.mxu0 0.0
      %1847 = vmatprep.subr.mxu0 0.0
      %1848 = vmatpush1.msra.mxu0 0.0
      %1849 = vmatprep.subr.mxu0 0.0
      %1850 = vmatpush1.msra.mxu0 0.0
      %1851 = vmatprep.subr.mxu0 0.0
      %1852 = vmatpush1.msra.mxu0 0.0
      %1853 = vmatprep.subr.mxu0 0.0
      %1854 = vmatpush1.msra.mxu0 0.0
      %1855 = vmatprep.subr.mxu0 0.0
      %1856 = vmatpush1.msra.mxu0 0.0
      %1857 = vmatprep.subr.mxu0 0.0
      %1858 = vmatpush1.msra.mxu0 0.0
      %1859 = vmatprep.mubr.f32.mxu0 0.0
      %1860 = vmatmul.mubr.f32.gmra.mrb[0].mxu0 %v1758
      %v1861 = vpop.f32.mrb[0].mxu0
      %v1862 = vadd.f32 %v1794, %v1861
      %v1863 = vpop.f32.mrb[0].mxu0
      %1864 = vmatprep.mubr.f32.mxu0 0.0
      %1865 = vmatmul.mubr.f32.gmra.mrb[0].mxu0 %v1759
      %v1866 = vpop.f32.mrb[0].mxu0
      %v1867 = vadd.f32 %v1794, %v1866
      %v1868 = vpop.f32.mrb[0].mxu0
      %1869 = vmatprep.mubr.f32.mxu0 0.0
      %1870 = vmatmul.mubr.f32.gmra.mrb[0].mxu0 %v1760
      %v1871 = vpop.f32.mrb[0].mxu0
      %v1872 = vadd.f32 %v1794, %v1871
      %v1873 = vpop.f32.mrb[0].mxu0
      %1874 = vmatprep.mubr.f32.mxu0 0.0
      %1875 = vmatmul.mubr.f32.gmra.mrb[0].mxu0 %v1761
      %v1876 = vpop.f32.mrb[0].mxu0
      %v1877 = vadd.f32 %v1794, %v1876
      %v1878 = vpop.f32.mrb[0].mxu0
      %1879 = vmatprep.mubr.f32.mxu0 0.0
      %1880 = vmatmul.mubr.f32.gmra.mrb[0].mxu0 %v1762
      %v1881 = vpop.f32.mrb[0].mxu0
      %v1882 = vadd.f32 %v1794, %v1881
      %v1883 = vpop.f32.mrb[0].mxu0
      %1884 = vmatprep.mubr.f32.mxu0 0.0
      %1885 = vmatmul.mubr.f32.gmra.mrb[0].mxu0 %v1763
      %v1886 = vpop.f32.mrb[0].mxu0
      %v1887 = vadd.f32 %v1794, %v1886
      %v1888 = vpop.f32.mrb[0].mxu0
      %1889 = vmatprep.mubr.f32.mxu0 0.0
      %1890 = vmatmul.mubr.f32.gmra.mrb[0].mxu0 %v1764
      %v1891 = vpop.f32.mrb[0].mxu0
      %v1892 = vadd.f32 %v1794, %v1891
      %v1893 = vpop.f32.mrb[0].mxu0
      %1894 = vmatprep.mubr.f32.mxu0 0.0
      %1895 = vmatmul.mubr.f32.gmra.mrb[0].mxu0 %v1765
      %v1896 = vpop.f32.mrb[0].mxu0
      %v1897 = vadd.f32 %v1794, %v1896
      %v1898 = vpop.f32.mrb[0].mxu0
      %1899 = vmatprep.mubr.f32.mxu0 0.0
      %1900 = vmatmul.mubr.f32.gmra.mrb[0].mxu0 %v1766
      %v1901 = vpop.f32.mrb[0].mxu0
      %v1902 = vadd.f32 %v1794, %v1901
      %v1903 = vpop.f32.mrb[0].mxu0
      %1904 = vmatprep.mubr.f32.mxu0 0.0
      %1905 = vmatmul.mubr.f32.gmra.mrb[0].mxu0 %v1767
      %v1906 = vpop.f32.mrb[0].mxu0
      %v1907 = vadd.f32 %v1794, %v1906
      %v1908 = vpop.f32.mrb[0].mxu0
      %1909 = vmatprep.mubr.f32.mxu0 0.0
      %1910 = vmatmul.mubr.f32.gmra.mrb[0].mxu0 %v1768
      %v1911 = vpop.f32.mrb[0].mxu0
      %v1912 = vadd.f32 %v1794, %v1911
      %v1913 = vpop.f32.mrb[0].mxu0
      %1914 = vmatprep.mubr.f32.mxu0 0.0
      %1915 = vmatmul.mubr.f32.gmra.mrb[0].mxu0 %v1769
      %v1916 = vpop.f32.mrb[0].mxu0
      %v1917 = vadd.f32 %v1794, %v1916
      %v1918 = vpop.f32.mrb[0].mxu0
      %1919 = vmatprep.mubr.f32.mxu0 0.0
      %1920 = vmatmul.mubr.f32.gmra.mrb[0].mxu0 %v1770
      %v1921 = vpop.f32.mrb[0].mxu0
      %v1922 = vadd.f32 %v1794, %v1921
      %v1923 = vpop.f32.mrb[0].mxu0
      %1924 = vmatprep.mubr.f32.mxu0 0.0
      %1925 = vmatmul.mubr.f32.gmra.mrb[0].mxu0 %v1771
      %v1926 = vpop.f32.mrb[0].mxu0
      %v1927 = vadd.f32 %v1794, %v1926
      %v1928 = vpop.f32.mrb[0].mxu0
      %1929 = vmatprep.mubr.f32.mxu0 0.0
      %1930 = vmatmul.mubr.f32.gmra.mrb[0].mxu0 %v1772
      %v1931 = vpop.f32.mrb[0].mxu0
      %v1932 = vadd.f32 %v1794, %v1931
      %v1933 = vpop.f32.mrb[0].mxu0
      %1934 = vmatprep.mubr.f32.mxu0 0.0
      %1935 = vmatmul.mubr.f32.gmra.mrb[0].mxu0 %v1773
      %v1936 = vpop.f32.mrb[0].mxu0
      %v1937 = vadd.f32 %v1794, %v1936
      %v1938 = vpop.f32.mrb[0].mxu0
      %1939 = vdwg.mxu0
      %v1940 = vld [vmem:[%s6 + $0x3] sm:$0x1]
      %v1941 = vld [vmem:[%s6 + $0x4] sm:$0x1]
      %vm1942 = vcmp.lt.s32.totalorder %v519, 32
      %v1943 = vsel %vm1942, 1, 0
      %v1944 = vcvt.s32.f32 %v1943
      %v1945 = vmul.f32 %v1862, %v1944
      %v1946 = vmul.f32 %v1867, %v1944
      %v1947 = vmul.f32 %v1872, %v1944
      %v1948 = vmul.f32 %v1877, %v1944
      %v1949 = vmul.f32 %v1882, %v1944
      %v1950 = vmul.f32 %v1887, %v1944
      %v1951 = vmul.f32 %v1892, %v1944
      %v1952 = vmul.f32 %v1897, %v1944
      %v1953 = vmul.f32 %v1902, %v1944
      %v1954 = vmul.f32 %v1907, %v1944
      %v1955 = vmul.f32 %v1912, %v1944
      %v1956 = vmul.f32 %v1917, %v1944
      %v1957 = vmul.f32 %v1922, %v1944
      %v1958 = vmul.f32 %v1927, %v1944
      %v1959 = vmul.f32 %v1932, %v1944
      %v1960 = vmul.f32 %v1937, %v1944
      %1961 = vadd.xlane.f32.xlu0 %v1945
      %v1962 = vpop.xlane.xlu0 %1961
      %1963 = vadd.xlane.f32.xlu0 %v1946
      %v1964 = vpop.xlane.xlu0 %1963
      %1965 = vadd.xlane.f32.xlu0 %v1947
      %v1966 = vpop.xlane.xlu0 %1965
      %1967 = vadd.xlane.f32.xlu0 %v1948
      %v1968 = vpop.xlane.xlu0 %1967
      %1969 = vadd.xlane.f32.xlu0 %v1949
      %v1970 = vpop.xlane.xlu0 %1969
      %1971 = vadd.xlane.f32.xlu0 %v1950
      %v1972 = vpop.xlane.xlu0 %1971
      %1973 = vadd.xlane.f32.xlu0 %v1951
      %v1974 = vpop.xlane.xlu0 %1973
      %1975 = vadd.xlane.f32.xlu0 %v1952
      %v1976 = vpop.xlane.xlu0 %1975
      %1977 = vadd.xlane.f32.xlu0 %v1953
      %v1978 = vpop.xlane.xlu0 %1977
      %1979 = vadd.xlane.f32.xlu0 %v1954
      %v1980 = vpop.xlane.xlu0 %1979
      %1981 = vadd.xlane.f32.xlu0 %v1955
      %v1982 = vpop.xlane.xlu0 %1981
      %1983 = vadd.xlane.f32.xlu0 %v1956
      %v1984 = vpop.xlane.xlu0 %1983
      %1985 = vadd.xlane.f32.xlu0 %v1957
      %v1986 = vpop.xlane.xlu0 %1985
      %1987 = vadd.xlane.f32.xlu0 %v1958
      %v1988 = vpop.xlane.xlu0 %1987
      %1989 = vadd.xlane.f32.xlu0 %v1959
      %v1990 = vpop.xlane.xlu0 %1989
      %1991 = vadd.xlane.f32.xlu0 %v1960
      %v1992 = vpop.xlane.xlu0 %1991
      %v1993 = vmul.f32 %v1962, 0.03125
      %v1994 = vmul.f32 %v1964, 0.03125
      %v1995 = vmul.f32 %v1966, 0.03125
      %v1996 = vmul.f32 %v1968, 0.03125
      %v1997 = vmul.f32 %v1970, 0.03125
      %v1998 = vmul.f32 %v1972, 0.03125
      %v1999 = vmul.f32 %v1974, 0.03125
      %v2000 = vmul.f32 %v1976, 0.03125
      %v2001 = vmul.f32 %v1978, 0.03125
      %v2002 = vmul.f32 %v1980, 0.03125
      %v2003 = vmul.f32 %v1982, 0.03125
      %v2004 = vmul.f32 %v1984, 0.03125
      %v2005 = vmul.f32 %v1986, 0.03125
      %v2006 = vmul.f32 %v1988, 0.03125
      %v2007 = vmul.f32 %v1990, 0.03125
      %v2008 = vmul.f32 %v1992, 0.03125
      %v2009 = vsub.f32 %v1862, %v1993
      %v2010 = vsub.f32 %v1867, %v1994
      %v2011 = vsub.f32 %v1872, %v1995
      %v2012 = vsub.f32 %v1877, %v1996
      %v2013 = vsub.f32 %v1882, %v1997
      %v2014 = vsub.f32 %v1887, %v1998
      %v2015 = vsub.f32 %v1892, %v1999
      %v2016 = vsub.f32 %v1897, %v2000
      %v2017 = vsub.f32 %v1902, %v2001
      %v2018 = vsub.f32 %v1907, %v2002
      %v2019 = vsub.f32 %v1912, %v2003
      %v2020 = vsub.f32 %v1917, %v2004
      %v2021 = vsub.f32 %v1922, %v2005
      %v2022 = vsub.f32 %v1927, %v2006
      %v2023 = vsub.f32 %v1932, %v2007
      %v2024 = vsub.f32 %v1937, %v2008
      %v2025 = vmul.f32 %v2009, %v1944
      %v2026 = vmul.f32 %v2010, %v1944
      %v2027 = vmul.f32 %v2011, %v1944
      %v2028 = vmul.f32 %v2012, %v1944
      %v2029 = vmul.f32 %v2013, %v1944
      %v2030 = vmul.f32 %v2014, %v1944
      %v2031 = vmul.f32 %v2015, %v1944
      %v2032 = vmul.f32 %v2016, %v1944
      %v2033 = vmul.f32 %v2017, %v1944
      %v2034 = vmul.f32 %v2018, %v1944
      %v2035 = vmul.f32 %v2019, %v1944
      %v2036 = vmul.f32 %v2020, %v1944
      %v2037 = vmul.f32 %v2021, %v1944
      %v2038 = vmul.f32 %v2022, %v1944
      %v2039 = vmul.f32 %v2023, %v1944
      %v2040 = vmul.f32 %v2024, %v1944
      %v2041 = vmul.f32 %v2025, %v2025
      %v2042 = vmul.f32 %v2026, %v2026
      %v2043 = vmul.f32 %v2027, %v2027
      %v2044 = vmul.f32 %v2028, %v2028
      %v2045 = vmul.f32 %v2029, %v2029
      %v2046 = vmul.f32 %v2030, %v2030
      %v2047 = vmul.f32 %v2031, %v2031
      %v2048 = vmul.f32 %v2032, %v2032
      %v2049 = vmul.f32 %v2033, %v2033
      %v2050 = vmul.f32 %v2034, %v2034
      %v2051 = vmul.f32 %v2035, %v2035
      %v2052 = vmul.f32 %v2036, %v2036
      %v2053 = vmul.f32 %v2037, %v2037
      %v2054 = vmul.f32 %v2038, %v2038
      %v2055 = vmul.f32 %v2039, %v2039
      %v2056 = vmul.f32 %v2040, %v2040
      %2057 = vadd.xlane.f32.xlu0 %v2041
      %v2058 = vpop.xlane.xlu0 %2057
      %2059 = vadd.xlane.f32.xlu0 %v2042
      %v2060 = vpop.xlane.xlu0 %2059
      %2061 = vadd.xlane.f32.xlu0 %v2043
      %v2062 = vpop.xlane.xlu0 %2061
      %2063 = vadd.xlane.f32.xlu0 %v2044
      %v2064 = vpop.xlane.xlu0 %2063
      %2065 = vadd.xlane.f32.xlu0 %v2045
      %v2066 = vpop.xlane.xlu0 %2065
      %2067 = vadd.xlane.f32.xlu0 %v2046
      %v2068 = vpop.xlane.xlu0 %2067
      %2069 = vadd.xlane.f32.xlu0 %v2047
      %v2070 = vpop.xlane.xlu0 %2069
      %2071 = vadd.xlane.f32.xlu0 %v2048
      %v2072 = vpop.xlane.xlu0 %2071
      %2073 = vadd.xlane.f32.xlu0 %v2049
      %v2074 = vpop.xlane.xlu0 %2073
      %2075 = vadd.xlane.f32.xlu0 %v2050
      %v2076 = vpop.xlane.xlu0 %2075
      %2077 = vadd.xlane.f32.xlu0 %v2051
      %v2078 = vpop.xlane.xlu0 %2077
      %2079 = vadd.xlane.f32.xlu0 %v2052
      %v2080 = vpop.xlane.xlu0 %2079
      %2081 = vadd.xlane.f32.xlu0 %v2053
      %v2082 = vpop.xlane.xlu0 %2081
      %2083 = vadd.xlane.f32.xlu0 %v2054
      %v2084 = vpop.xlane.xlu0 %2083
      %2085 = vadd.xlane.f32.xlu0 %v2055
      %v2086 = vpop.xlane.xlu0 %2085
      %2087 = vadd.xlane.f32.xlu0 %v2056
      %v2088 = vpop.xlane.xlu0 %2087
      %v2089 = vmul.f32 %v2058, 0.03125
      %v2090 = vmul.f32 %v2060, 0.03125
      %v2091 = vmul.f32 %v2062, 0.03125
      %v2092 = vmul.f32 %v2064, 0.03125
      %v2093 = vmul.f32 %v2066, 0.03125
      %v2094 = vmul.f32 %v2068, 0.03125
      %v2095 = vmul.f32 %v2070, 0.03125
      %v2096 = vmul.f32 %v2072, 0.03125
      %v2097 = vmul.f32 %v2074, 0.03125
      %v2098 = vmul.f32 %v2076, 0.03125
      %v2099 = vmul.f32 %v2078, 0.03125
      %v2100 = vmul.f32 %v2080, 0.03125
      %v2101 = vmul.f32 %v2082, 0.03125
      %v2102 = vmul.f32 %v2084, 0.03125
      %v2103 = vmul.f32 %v2086, 0.03125
      %v2104 = vmul.f32 %v2088, 0.03125
      %v2105 = vadd.f32 %v2089, 1e-05
      %v2106 = vadd.f32 %v2090, 1e-05
      %v2107 = vadd.f32 %v2091, 1e-05
      %v2108 = vadd.f32 %v2092, 1e-05
      %v2109 = vadd.f32 %v2093, 1e-05
      %v2110 = vadd.f32 %v2094, 1e-05
      %v2111 = vadd.f32 %v2095, 1e-05
      %v2112 = vadd.f32 %v2096, 1e-05
      %v2113 = vadd.f32 %v2097, 1e-05
      %v2114 = vadd.f32 %v2098, 1e-05
      %v2115 = vadd.f32 %v2099, 1e-05
      %v2116 = vadd.f32 %v2100, 1e-05
      %v2117 = vadd.f32 %v2101, 1e-05
      %v2118 = vadd.f32 %v2102, 1e-05
      %v2119 = vadd.f32 %v2103, 1e-05
      %v2120 = vadd.f32 %v2104, 1e-05
      %v2121 = vrsqrt.pop %v2105
      %v2122 = vrsqrt.pop %v2106
      %v2123 = vrsqrt.pop %v2107
      %v2124 = vrsqrt.pop %v2108
      %v2125 = vrsqrt.pop %v2109
      %v2126 = vrsqrt.pop %v2110
      %v2127 = vrsqrt.pop %v2111
      %v2128 = vrsqrt.pop %v2112
      %v2129 = vrsqrt.pop %v2113
      %v2130 = vrsqrt.pop %v2114
      %v2131 = vrsqrt.pop %v2115
      %v2132 = vrsqrt.pop %v2116
      %v2133 = vrsqrt.pop %v2117
      %v2134 = vrsqrt.pop %v2118
      %v2135 = vrsqrt.pop %v2119
      %v2136 = vrsqrt.pop %v2120
      %v2137 = vmul.f32 %v2025, %v2121
      %v2138 = vmul.f32 %v2026, %v2122
      %v2139 = vmul.f32 %v2027, %v2123
      %v2140 = vmul.f32 %v2028, %v2124
      %v2141 = vmul.f32 %v2029, %v2125
      %v2142 = vmul.f32 %v2030, %v2126
      %v2143 = vmul.f32 %v2031, %v2127
      %v2144 = vmul.f32 %v2032, %v2128
      %v2145 = vmul.f32 %v2033, %v2129
      %v2146 = vmul.f32 %v2034, %v2130
      %v2147 = vmul.f32 %v2035, %v2131
      %v2148 = vmul.f32 %v2036, %v2132
      %v2149 = vmul.f32 %v2037, %v2133
      %v2150 = vmul.f32 %v2038, %v2134
      %v2151 = vmul.f32 %v2039, %v2135
      %v2152 = vmul.f32 %v2040, %v2136
      %v2153 = vlaneseq
      %v2154 = vshrl.u32 %v2153, 7
      %v2155 = vsub.s32 0, %v2154
      %v2156 = vrot.slane %v1940, %v2155
      %v2157 = vmul.f32 %v2137, %v2156
      %v2158 = vmul.f32 %v2138, %v2156
      %v2159 = vmul.f32 %v2139, %v2156
      %v2160 = vmul.f32 %v2140, %v2156
      %v2161 = vmul.f32 %v2141, %v2156
      %v2162 = vmul.f32 %v2142, %v2156
      %v2163 = vmul.f32 %v2143, %v2156
      %v2164 = vmul.f32 %v2144, %v2156
      %v2165 = vmul.f32 %v2145, %v2156
      %v2166 = vmul.f32 %v2146, %v2156
      %v2167 = vmul.f32 %v2147, %v2156
      %v2168 = vmul.f32 %v2148, %v2156
      %v2169 = vmul.f32 %v2149, %v2156
      %v2170 = vmul.f32 %v2150, %v2156
      %v2171 = vmul.f32 %v2151, %v2156
      %v2172 = vmul.f32 %v2152, %v2156
      %v2173 = vlaneseq
      %v2174 = vshrl.u32 %v2173, 7
      %v2175 = vsub.s32 0, %v2174
      %v2176 = vrot.slane %v1941, %v2175
      %v2177 = vadd.f32 %v2157, %v2176
      %v2178 = vadd.f32 %v2158, %v2176
      %v2179 = vadd.f32 %v2159, %v2176
      %v2180 = vadd.f32 %v2160, %v2176
      %v2181 = vadd.f32 %v2161, %v2176
      %v2182 = vadd.f32 %v2162, %v2176
      %v2183 = vadd.f32 %v2163, %v2176
      %v2184 = vadd.f32 %v2164, %v2176
      %v2185 = vadd.f32 %v2165, %v2176
      %v2186 = vadd.f32 %v2166, %v2176
      %v2187 = vadd.f32 %v2167, %v2176
      %v2188 = vadd.f32 %v2168, %v2176
      %v2189 = vadd.f32 %v2169, %v2176
      %v2190 = vadd.f32 %v2170, %v2176
      %v2191 = vadd.f32 %v2171, %v2176
      %v2192 = vadd.f32 %v2172, %v2176
      %2193 = vmatprep.subr.mxu0 0.0
      %2194 = vmatpush1.msra.mxu0 %v2177
      %2195 = vmatprep.subr.mxu0 0.0
      %2196 = vmatpush1.msra.mxu0 %v2178
      %2197 = vmatprep.subr.mxu0 0.0
      %2198 = vmatpush1.msra.mxu0 %v2179
      %2199 = vmatprep.subr.mxu0 0.0
      %2200 = vmatpush1.msra.mxu0 %v2180
      %2201 = vmatprep.subr.mxu0 0.0
      %2202 = vmatpush1.msra.mxu0 %v2181
      %2203 = vmatprep.subr.mxu0 0.0
      %2204 = vmatpush1.msra.mxu0 %v2182
      %2205 = vmatprep.subr.mxu0 0.0
      %2206 = vmatpush1.msra.mxu0 %v2183
      %2207 = vmatprep.subr.mxu0 0.0
      %2208 = vmatpush1.msra.mxu0 %v2184
      %2209 = vmatprep.subr.mxu0 0.0
      %2210 = vmatpush1.msra.mxu0 %v2185
      %2211 = vmatprep.subr.mxu0 0.0
      %2212 = vmatpush1.msra.mxu0 %v2186
      %2213 = vmatprep.subr.mxu0 0.0
      %2214 = vmatpush1.msra.mxu0 %v2187
      %2215 = vmatprep.subr.mxu0 0.0
      %2216 = vmatpush1.msra.mxu0 %v2188
      %2217 = vmatprep.subr.mxu0 0.0
      %2218 = vmatpush1.msra.mxu0 %v2189
      %2219 = vmatprep.subr.mxu0 0.0
      %2220 = vmatpush1.msra.mxu0 %v2190
      %2221 = vmatprep.subr.mxu0 0.0
      %2222 = vmatpush1.msra.mxu0 %v2191
      %2223 = vmatprep.subr.mxu0 0.0
      %2224 = vmatpush1.msra.mxu0 %v2192
      %2225 = vmatprep.subr.mxu0 0.0
      %2226 = vmatpush1.msra.mxu0 0.0
      %2227 = vmatprep.subr.mxu0 0.0
      %2228 = vmatpush1.msra.mxu0 0.0
      %2229 = vmatprep.subr.mxu0 0.0
      %2230 = vmatpush1.msra.mxu0 0.0
      %2231 = vmatprep.subr.mxu0 0.0
      %2232 = vmatpush1.msra.mxu0 0.0
      %2233 = vmatprep.subr.mxu0 0.0
      %2234 = vmatpush1.msra.mxu0 0.0
      %2235 = vmatprep.subr.mxu0 0.0
      %2236 = vmatpush1.msra.mxu0 0.0
      %2237 = vmatprep.subr.mxu0 0.0
      %2238 = vmatpush1.msra.mxu0 0.0
      %2239 = vmatprep.subr.mxu0 0.0
      %2240 = vmatpush1.msra.mxu0 0.0
      %2241 = vmatprep.subr.mxu0 0.0
      %2242 = vmatpush1.msra.mxu0 0.0
      %2243 = vmatprep.subr.mxu0 0.0
      %2244 = vmatpush1.msra.mxu0 0.0
      %2245 = vmatprep.subr.mxu0 0.0
      %2246 = vmatpush1.msra.mxu0 0.0
      %2247 = vmatprep.subr.mxu0 0.0
      %2248 = vmatpush1.msra.mxu0 0.0
      %2249 = vmatprep.subr.mxu0 0.0
      %2250 = vmatpush1.msra.mxu0 0.0
      %2251 = vmatprep.subr.mxu0 0.0
      %2252 = vmatpush1.msra.mxu0 0.0
      %2253 = vmatprep.subr.mxu0 0.0
      %2254 = vmatpush1.msra.mxu0 0.0
      %2255 = vmatprep.subr.mxu0 0.0
      %2256 = vmatpush1.msra.mxu0 0.0
      %2257 = vmatprep.mubr.f32.mxu0 0.0
      %2258 = vmatmul.mubr.f32.gmra.mrb[0].mxu0 %v741
      %v2259 = vpop.f32.mrb[0].mxu0
      %v2260 = vadd.f32 0.0, %v2259
      %v2261 = vpop.f32.mrb[0].mxu0
      %2262 = vmatprep.mubr.f32.mxu0 0.0
      %2263 = vmatmul.mubr.f32.gmra.mrb[0].mxu0 %v742
      %v2264 = vpop.f32.mrb[0].mxu0
      %v2265 = vadd.f32 0.0, %v2264
      %v2266 = vpop.f32.mrb[0].mxu0
      %2267 = vmatprep.mubr.f32.mxu0 0.0
      %2268 = vmatmul.mubr.f32.gmra.mrb[0].mxu0 %v743
      %v2269 = vpop.f32.mrb[0].mxu0
      %v2270 = vadd.f32 0.0, %v2269
      %v2271 = vpop.f32.mrb[0].mxu0
      %2272 = vmatprep.mubr.f32.mxu0 0.0
      %2273 = vmatmul.mubr.f32.gmra.mrb[0].mxu0 %v744
      %v2274 = vpop.f32.mrb[0].mxu0
      %v2275 = vadd.f32 0.0, %v2274
      %v2276 = vpop.f32.mrb[0].mxu0
      %2277 = vmatprep.mubr.f32.mxu0 0.0
      %2278 = vmatmul.mubr.f32.gmra.mrb[0].mxu0 %v745
      %v2279 = vpop.f32.mrb[0].mxu0
      %v2280 = vadd.f32 0.0, %v2279
      %v2281 = vpop.f32.mrb[0].mxu0
      %2282 = vmatprep.mubr.f32.mxu0 0.0
      %2283 = vmatmul.mubr.f32.gmra.mrb[0].mxu0 %v746
      %v2284 = vpop.f32.mrb[0].mxu0
      %v2285 = vadd.f32 0.0, %v2284
      %v2286 = vpop.f32.mrb[0].mxu0
      %2287 = vmatprep.mubr.f32.mxu0 0.0
      %2288 = vmatmul.mubr.f32.gmra.mrb[0].mxu0 %v747
      %v2289 = vpop.f32.mrb[0].mxu0
      %v2290 = vadd.f32 0.0, %v2289
      %v2291 = vpop.f32.mrb[0].mxu0
      %2292 = vmatprep.mubr.f32.mxu0 0.0
      %2293 = vmatmul.mubr.f32.gmra.mrb[0].mxu0 %v748
      %v2294 = vpop.f32.mrb[0].mxu0
      %v2295 = vadd.f32 0.0, %v2294
      %v2296 = vpop.f32.mrb[0].mxu0
      %2297 = vdwg.mxu0
      %v2298 = vld [vmem:[%s7] sm:$0xff]
      %v2299 = vld [vmem:[%s7 + $0x8] sm:$0xff]
      %v2300 = vld [vmem:[%s7 + $0x10] sm:$0xff]
      %v2301 = vld [vmem:[%s7 + $0x18] sm:$0xff]
      %v2302 = vld [vmem:[%s7 + $0x20] sm:$0xff]
      %v2303 = vld [vmem:[%s7 + $0x28] sm:$0xff]
      %v2304 = vld [vmem:[%s7 + $0x30] sm:$0xff]
      %v2305 = vld [vmem:[%s7 + $0x38] sm:$0xff]
      %v2306 = vld [vmem:[%s7 + $0x40] sm:$0xff]
      %v2307 = vld [vmem:[%s7 + $0x48] sm:$0xff]
      %v2308 = vld [vmem:[%s7 + $0x50] sm:$0xff]
      %v2309 = vld [vmem:[%s7 + $0x58] sm:$0xff]
      %v2310 = vld [vmem:[%s7 + $0x60] sm:$0xff]
      %v2311 = vld [vmem:[%s7 + $0x68] sm:$0xff]
      %v2312 = vld [vmem:[%s7 + $0x70] sm:$0xff]
      %v2313 = vld [vmem:[%s7 + $0x78] sm:$0xff]
      %v2314 = vld [vmem:[%s7 + $0x80] sm:$0xff]
      %v2315 = vld [vmem:[%s7 + $0x88] sm:$0xff]
      %v2316 = vld [vmem:[%s7 + $0x90] sm:$0xff]
      %v2317 = vld [vmem:[%s7 + $0x98] sm:$0xff]
      %v2318 = vld [vmem:[%s7 + $0xa0] sm:$0xff]
      %v2319 = vld [vmem:[%s7 + $0xa8] sm:$0xff]
      %v2320 = vld [vmem:[%s7 + $0xb0] sm:$0xff]
      %v2321 = vld [vmem:[%s7 + $0xb8] sm:$0xff]
      %v2322 = vld [vmem:[%s7 + $0xc0] sm:$0xff]
      %v2323 = vld [vmem:[%s7 + $0xc8] sm:$0xff]
      %v2324 = vld [vmem:[%s7 + $0xd0] sm:$0xff]
      %v2325 = vld [vmem:[%s7 + $0xd8] sm:$0xff]
      %v2326 = vld [vmem:[%s7 + $0xe0] sm:$0xff]
      %v2327 = vld [vmem:[%s7 + $0xe8] sm:$0xff]
      %v2328 = vld [vmem:[%s7 + $0xf0] sm:$0xff]
      %v2329 = vld [vmem:[%s7 + $0xf8] sm:$0xff]
      %2330 = vmatprep.subr.mxu0 0.0
      %2331 = vmatpush1.msra.mxu0 %v2314
      %2332 = vmatprep.subr.mxu0 0.0
      %2333 = vmatpush1.msra.mxu0 %v2315
      %2334 = vmatprep.subr.mxu0 0.0
      %2335 = vmatpush1.msra.mxu0 %v2316
      %2336 = vmatprep.subr.mxu0 0.0
      %2337 = vmatpush1.msra.mxu0 %v2317
      %2338 = vmatprep.subr.mxu0 0.0
      %2339 = vmatpush1.msra.mxu0 %v2318
      %2340 = vmatprep.subr.mxu0 0.0
      %2341 = vmatpush1.msra.mxu0 %v2319
      %2342 = vmatprep.subr.mxu0 0.0
      %2343 = vmatpush1.msra.mxu0 %v2320
      %2344 = vmatprep.subr.mxu0 0.0
      %2345 = vmatpush1.msra.mxu0 %v2321
      %2346 = vmatprep.subr.mxu0 0.0
      %2347 = vmatpush1.msra.mxu0 %v2322
      %2348 = vmatprep.subr.mxu0 0.0
      %2349 = vmatpush1.msra.mxu0 %v2323
      %2350 = vmatprep.subr.mxu0 0.0
      %2351 = vmatpush1.msra.mxu0 %v2324
      %2352 = vmatprep.subr.mxu0 0.0
      %2353 = vmatpush1.msra.mxu0 %v2325
      %2354 = vmatprep.subr.mxu0 0.0
      %2355 = vmatpush1.msra.mxu0 %v2326
      %2356 = vmatprep.subr.mxu0 0.0
      %2357 = vmatpush1.msra.mxu0 %v2327
      %2358 = vmatprep.subr.mxu0 0.0
      %2359 = vmatpush1.msra.mxu0 %v2328
      %2360 = vmatprep.subr.mxu0 0.0
      %2361 = vmatpush1.msra.mxu0 %v2329
      %2362 = vmatprep.subr.mxu0 0.0
      %2363 = vmatpush1.msra.mxu0 0.0
      %2364 = vmatprep.subr.mxu0 0.0
      %2365 = vmatpush1.msra.mxu0 0.0
      %2366 = vmatprep.subr.mxu0 0.0
      %2367 = vmatpush1.msra.mxu0 0.0
      %2368 = vmatprep.subr.mxu0 0.0
      %2369 = vmatpush1.msra.mxu0 0.0
      %2370 = vmatprep.subr.mxu0 0.0
      %2371 = vmatpush1.msra.mxu0 0.0
      %2372 = vmatprep.subr.mxu0 0.0
      %2373 = vmatpush1.msra.mxu0 0.0
      %2374 = vmatprep.subr.mxu0 0.0
      %2375 = vmatpush1.msra.mxu0 0.0
      %2376 = vmatprep.subr.mxu0 0.0
      %2377 = vmatpush1.msra.mxu0 0.0
      %2378 = vmatprep.subr.mxu0 0.0
      %2379 = vmatpush1.msra.mxu0 0.0
      %2380 = vmatprep.subr.mxu0 0.0
      %2381 = vmatpush1.msra.mxu0 0.0
      %2382 = vmatprep.subr.mxu0 0.0
      %2383 = vmatpush1.msra.mxu0 0.0
      %2384 = vmatprep.subr.mxu0 0.0
      %2385 = vmatpush1.msra.mxu0 0.0
      %2386 = vmatprep.subr.mxu0 0.0
      %2387 = vmatpush1.msra.mxu0 0.0
      %2388 = vmatprep.subr.mxu0 0.0
      %2389 = vmatpush1.msra.mxu0 0.0
      %2390 = vmatprep.subr.mxu0 0.0
      %2391 = vmatpush1.msra.mxu0 0.0
      %2392 = vmatprep.subr.mxu0 0.0
      %2393 = vmatpush1.msra.mxu0 0.0
      %2394 = vmatprep.mubr.f32.mxu0 0.0
      %2395 = vmatmul.mubr.f32.gmra.mrb[0].mxu0 %v2260
      %v2396 = vpop.f32.mrb[0].mxu0
      %v2397 = vadd.f32 0.0, %v2396
      %v2398 = vpop.f32.mrb[0].mxu0
      %2399 = vmatprep.mubr.f32.mxu0 0.0
      %2400 = vmatmul.mubr.f32.gmra.mrb[0].mxu0 %v2265
      %v2401 = vpop.f32.mrb[0].mxu0
      %v2402 = vadd.f32 0.0, %v2401
      %v2403 = vpop.f32.mrb[0].mxu0
      %2404 = vmatprep.mubr.f32.mxu0 0.0
      %2405 = vmatmul.mubr.f32.gmra.mrb[0].mxu0 %v2270
      %v2406 = vpop.f32.mrb[0].mxu0
      %v2407 = vadd.f32 0.0, %v2406
      %v2408 = vpop.f32.mrb[0].mxu0
      %2409 = vmatprep.mubr.f32.mxu0 0.0
      %2410 = vmatmul.mubr.f32.gmra.mrb[0].mxu0 %v2275
      %v2411 = vpop.f32.mrb[0].mxu0
      %v2412 = vadd.f32 0.0, %v2411
      %v2413 = vpop.f32.mrb[0].mxu0
      %2414 = vmatprep.mubr.f32.mxu0 0.0
      %2415 = vmatmul.mubr.f32.gmra.mrb[0].mxu0 %v2280
      %v2416 = vpop.f32.mrb[0].mxu0
      %v2417 = vadd.f32 0.0, %v2416
      %v2418 = vpop.f32.mrb[0].mxu0
      %2419 = vmatprep.mubr.f32.mxu0 0.0
      %2420 = vmatmul.mubr.f32.gmra.mrb[0].mxu0 %v2285
      %v2421 = vpop.f32.mrb[0].mxu0
      %v2422 = vadd.f32 0.0, %v2421
      %v2423 = vpop.f32.mrb[0].mxu0
      %2424 = vmatprep.mubr.f32.mxu0 0.0
      %2425 = vmatmul.mubr.f32.gmra.mrb[0].mxu0 %v2290
      %v2426 = vpop.f32.mrb[0].mxu0
      %v2427 = vadd.f32 0.0, %v2426
      %v2428 = vpop.f32.mrb[0].mxu0
      %2429 = vmatprep.mubr.f32.mxu0 0.0
      %2430 = vmatmul.mubr.f32.gmra.mrb[0].mxu0 %v2295
      %v2431 = vpop.f32.mrb[0].mxu0
      %v2432 = vadd.f32 0.0, %v2431
      %v2433 = vpop.f32.mrb[0].mxu0
      %2434 = vdwg.mxu0
      %2435 = vmatprep.subr.mxu0 0.0
      %2436 = vmatpush1.msra.mxu0 %v2298
      %2437 = vmatprep.subr.mxu0 0.0
      %2438 = vmatpush1.msra.mxu0 %v2299
      %2439 = vmatprep.subr.mxu0 0.0
      %2440 = vmatpush1.msra.mxu0 %v2300
      %2441 = vmatprep.subr.mxu0 0.0
      %2442 = vmatpush1.msra.mxu0 %v2301
      %2443 = vmatprep.subr.mxu0 0.0
      %2444 = vmatpush1.msra.mxu0 %v2302
      %2445 = vmatprep.subr.mxu0 0.0
      %2446 = vmatpush1.msra.mxu0 %v2303
      %2447 = vmatprep.subr.mxu0 0.0
      %2448 = vmatpush1.msra.mxu0 %v2304
      %2449 = vmatprep.subr.mxu0 0.0
      %2450 = vmatpush1.msra.mxu0 %v2305
      %2451 = vmatprep.subr.mxu0 0.0
      %2452 = vmatpush1.msra.mxu0 %v2306
      %2453 = vmatprep.subr.mxu0 0.0
      %2454 = vmatpush1.msra.mxu0 %v2307
      %2455 = vmatprep.subr.mxu0 0.0
      %2456 = vmatpush1.msra.mxu0 %v2308
      %2457 = vmatprep.subr.mxu0 0.0
      %2458 = vmatpush1.msra.mxu0 %v2309
      %2459 = vmatprep.subr.mxu0 0.0
      %2460 = vmatpush1.msra.mxu0 %v2310
      %2461 = vmatprep.subr.mxu0 0.0
      %2462 = vmatpush1.msra.mxu0 %v2311
      %2463 = vmatprep.subr.mxu0 0.0
      %2464 = vmatpush1.msra.mxu0 %v2312
      %2465 = vmatprep.subr.mxu0 0.0
      %2466 = vmatpush1.msra.mxu0 %v2313
      %2467 = vmatprep.subr.mxu0 0.0
      %2468 = vmatpush1.msra.mxu0 0.0
      %2469 = vmatprep.subr.mxu0 0.0
      %2470 = vmatpush1.msra.mxu0 0.0
      %2471 = vmatprep.subr.mxu0 0.0
      %2472 = vmatpush1.msra.mxu0 0.0
      %2473 = vmatprep.subr.mxu0 0.0
      %2474 = vmatpush1.msra.mxu0 0.0
      %2475 = vmatprep.subr.mxu0 0.0
      %2476 = vmatpush1.msra.mxu0 0.0
      %2477 = vmatprep.subr.mxu0 0.0
      %2478 = vmatpush1.msra.mxu0 0.0
      %2479 = vmatprep.subr.mxu0 0.0
      %2480 = vmatpush1.msra.mxu0 0.0
      %2481 = vmatprep.subr.mxu0 0.0
      %2482 = vmatpush1.msra.mxu0 0.0
      %2483 = vmatprep.subr.mxu0 0.0
      %2484 = vmatpush1.msra.mxu0 0.0
      %2485 = vmatprep.subr.mxu0 0.0
      %2486 = vmatpush1.msra.mxu0 0.0
      %2487 = vmatprep.subr.mxu0 0.0
      %2488 = vmatpush1.msra.mxu0 0.0
      %2489 = vmatprep.subr.mxu0 0.0
      %2490 = vmatpush1.msra.mxu0 0.0
      %2491 = vmatprep.subr.mxu0 0.0
      %2492 = vmatpush1.msra.mxu0 0.0
      %2493 = vmatprep.subr.mxu0 0.0
      %2494 = vmatpush1.msra.mxu0 0.0
      %2495 = vmatprep.subr.mxu0 0.0
      %2496 = vmatpush1.msra.mxu0 0.0
      %2497 = vmatprep.subr.mxu0 0.0
      %2498 = vmatpush1.msra.mxu0 0.0
      %2499 = vmatprep.mubr.f32.mxu0 0.0
      %2500 = vmatmul.mubr.f32.gmra.mrb[0].mxu0 %v494
      %v2501 = vpop.f32.mrb[0].mxu0
      %v2502 = vadd.f32 %v2397, %v2501
      %v2503 = vpop.f32.mrb[0].mxu0
      %2504 = vmatprep.mubr.f32.mxu0 0.0
      %2505 = vmatmul.mubr.f32.gmra.mrb[0].mxu0 %v495
      %v2506 = vpop.f32.mrb[0].mxu0
      %v2507 = vadd.f32 %v2402, %v2506
      %v2508 = vpop.f32.mrb[0].mxu0
      %2509 = vmatprep.mubr.f32.mxu0 0.0
      %2510 = vmatmul.mubr.f32.gmra.mrb[0].mxu0 %v496
      %v2511 = vpop.f32.mrb[0].mxu0
      %v2512 = vadd.f32 %v2407, %v2511
      %v2513 = vpop.f32.mrb[0].mxu0
      %2514 = vmatprep.mubr.f32.mxu0 0.0
      %2515 = vmatmul.mubr.f32.gmra.mrb[0].mxu0 %v497
      %v2516 = vpop.f32.mrb[0].mxu0
      %v2517 = vadd.f32 %v2412, %v2516
      %v2518 = vpop.f32.mrb[0].mxu0
      %2519 = vmatprep.mubr.f32.mxu0 0.0
      %2520 = vmatmul.mubr.f32.gmra.mrb[0].mxu0 %v498
      %v2521 = vpop.f32.mrb[0].mxu0
      %v2522 = vadd.f32 %v2417, %v2521
      %v2523 = vpop.f32.mrb[0].mxu0
      %2524 = vmatprep.mubr.f32.mxu0 0.0
      %2525 = vmatmul.mubr.f32.gmra.mrb[0].mxu0 %v499
      %v2526 = vpop.f32.mrb[0].mxu0
      %v2527 = vadd.f32 %v2422, %v2526
      %v2528 = vpop.f32.mrb[0].mxu0
      %2529 = vmatprep.mubr.f32.mxu0 0.0
      %2530 = vmatmul.mubr.f32.gmra.mrb[0].mxu0 %v500
      %v2531 = vpop.f32.mrb[0].mxu0
      %v2532 = vadd.f32 %v2427, %v2531
      %v2533 = vpop.f32.mrb[0].mxu0
      %2534 = vmatprep.mubr.f32.mxu0 0.0
      %2535 = vmatmul.mubr.f32.gmra.mrb[0].mxu0 %v501
      %v2536 = vpop.f32.mrb[0].mxu0
      %v2537 = vadd.f32 %v2432, %v2536
      %v2538 = vpop.f32.mrb[0].mxu0
      %2539 = vdwg.mxu0
      %v2540 = vld [vmem:[%s8] sm:$0x1]
      %v2541 = vlaneseq
      %v2542 = vshrl.u32 %v2541, 7
      %v2543 = vsub.s32 0, %v2542
      %v2544 = vrot.slane %v2540, %v2543
      %v2545 = vadd.f32 %v2502, %v2544
      %v2546 = vadd.f32 %v2507, %v2544
      %v2547 = vadd.f32 %v2512, %v2544
      %v2548 = vadd.f32 %v2517, %v2544
      %v2549 = vadd.f32 %v2522, %v2544
      %v2550 = vadd.f32 %v2527, %v2544
      %v2551 = vadd.f32 %v2532, %v2544
      %v2552 = vadd.f32 %v2537, %v2544
      %v2553 = vmax.f32 %v2545, 0.0
      %v2554 = vmax.f32 %v2546, 0.0
      %v2555 = vmax.f32 %v2547, 0.0
      %v2556 = vmax.f32 %v2548, 0.0
      %v2557 = vmax.f32 %v2549, 0.0
      %v2558 = vmax.f32 %v2550, 0.0
      %v2559 = vmax.f32 %v2551, 0.0
      %v2560 = vmax.f32 %v2552, 0.0
      %v2561 = vld [vmem:[%s7 + $0x100] sm:$0xff]
      %v2562 = vld [vmem:[%s7 + $0x108] sm:$0xff]
      %v2563 = vld [vmem:[%s7 + $0x110] sm:$0xff]
      %v2564 = vld [vmem:[%s7 + $0x118] sm:$0xff]
      %v2565 = vld [vmem:[%s7 + $0x120] sm:$0xff]
      %v2566 = vld [vmem:[%s7 + $0x128] sm:$0xff]
      %v2567 = vld [vmem:[%s7 + $0x130] sm:$0xff]
      %v2568 = vld [vmem:[%s7 + $0x138] sm:$0xff]
      %v2569 = vld [vmem:[%s7 + $0x140] sm:$0xff]
      %v2570 = vld [vmem:[%s7 + $0x148] sm:$0xff]
      %v2571 = vld [vmem:[%s7 + $0x150] sm:$0xff]
      %v2572 = vld [vmem:[%s7 + $0x158] sm:$0xff]
      %v2573 = vld [vmem:[%s7 + $0x160] sm:$0xff]
      %v2574 = vld [vmem:[%s7 + $0x168] sm:$0xff]
      %v2575 = vld [vmem:[%s7 + $0x170] sm:$0xff]
      %v2576 = vld [vmem:[%s7 + $0x178] sm:$0xff]
      %v2577 = vld [vmem:[%s8 + $0x1] sm:$0x1]
      %v2578 = vlaneseq
      %v2579 = vshrl.u32 %v2578, 7
      %v2580 = vsub.s32 0, %v2579
      %v2581 = vrot.slane %v2577, %v2580
      %2582 = vmatprep.subr.mxu0 0.0
      %2583 = vmatpush1.msra.mxu0 %v2561
      %2584 = vmatprep.subr.mxu0 0.0
      %2585 = vmatpush1.msra.mxu0 %v2562
      %2586 = vmatprep.subr.mxu0 0.0
      %2587 = vmatpush1.msra.mxu0 %v2563
      %2588 = vmatprep.subr.mxu0 0.0
      %2589 = vmatpush1.msra.mxu0 %v2564
      %2590 = vmatprep.subr.mxu0 0.0
      %2591 = vmatpush1.msra.mxu0 %v2565
      %2592 = vmatprep.subr.mxu0 0.0
      %2593 = vmatpush1.msra.mxu0 %v2566
      %2594 = vmatprep.subr.mxu0 0.0
      %2595 = vmatpush1.msra.mxu0 %v2567
      %2596 = vmatprep.subr.mxu0 0.0
      %2597 = vmatpush1.msra.mxu0 %v2568
      %2598 = vmatprep.subr.mxu0 0.0
      %2599 = vmatpush1.msra.mxu0 %v2569
      %2600 = vmatprep.subr.mxu0 0.0
      %2601 = vmatpush1.msra.mxu0 %v2570
      %2602 = vmatprep.subr.mxu0 0.0
      %2603 = vmatpush1.msra.mxu0 %v2571
      %2604 = vmatprep.subr.mxu0 0.0
      %2605 = vmatpush1.msra.mxu0 %v2572
      %2606 = vmatprep.subr.mxu0 0.0
      %2607 = vmatpush1.msra.mxu0 %v2573
      %2608 = vmatprep.subr.mxu0 0.0
      %2609 = vmatpush1.msra.mxu0 %v2574
      %2610 = vmatprep.subr.mxu0 0.0
      %2611 = vmatpush1.msra.mxu0 %v2575
      %2612 = vmatprep.subr.mxu0 0.0
      %2613 = vmatpush1.msra.mxu0 %v2576
      %2614 = vmatprep.subr.mxu0 0.0
      %2615 = vmatpush1.msra.mxu0 0.0
      %2616 = vmatprep.subr.mxu0 0.0
      %2617 = vmatpush1.msra.mxu0 0.0
      %2618 = vmatprep.subr.mxu0 0.0
      %2619 = vmatpush1.msra.mxu0 0.0
      %2620 = vmatprep.subr.mxu0 0.0
      %2621 = vmatpush1.msra.mxu0 0.0
      %2622 = vmatprep.subr.mxu0 0.0
      %2623 = vmatpush1.msra.mxu0 0.0
      %2624 = vmatprep.subr.mxu0 0.0
      %2625 = vmatpush1.msra.mxu0 0.0
      %2626 = vmatprep.subr.mxu0 0.0
      %2627 = vmatpush1.msra.mxu0 0.0
      %2628 = vmatprep.subr.mxu0 0.0
      %2629 = vmatpush1.msra.mxu0 0.0
      %2630 = vmatprep.subr.mxu0 0.0
      %2631 = vmatpush1.msra.mxu0 0.0
      %2632 = vmatprep.subr.mxu0 0.0
      %2633 = vmatpush1.msra.mxu0 0.0
      %2634 = vmatprep.subr.mxu0 0.0
      %2635 = vmatpush1.msra.mxu0 0.0
      %2636 = vmatprep.subr.mxu0 0.0
      %2637 = vmatpush1.msra.mxu0 0.0
      %2638 = vmatprep.subr.mxu0 0.0
      %2639 = vmatpush1.msra.mxu0 0.0
      %2640 = vmatprep.subr.mxu0 0.0
      %2641 = vmatpush1.msra.mxu0 0.0
      %2642 = vmatprep.subr.mxu0 0.0
      %2643 = vmatpush1.msra.mxu0 0.0
      %2644 = vmatprep.subr.mxu0 0.0
      %2645 = vmatpush1.msra.mxu0 0.0
      %2646 = vmatprep.mubr.f32.mxu0 0.0
      %2647 = vmatmul.mubr.f32.gmra.mrb[0].mxu0 %v2553
      %v2648 = vpop.f32.mrb[0].mxu0
      %v2649 = vadd.f32 %v2581, %v2648
      %v2650 = vpop.f32.mrb[0].mxu0
      %2651 = vmatprep.mubr.f32.mxu0 0.0
      %2652 = vmatmul.mubr.f32.gmra.mrb[0].mxu0 %v2554
      %v2653 = vpop.f32.mrb[0].mxu0
      %v2654 = vadd.f32 %v2581, %v2653
      %v2655 = vpop.f32.mrb[0].mxu0
      %2656 = vmatprep.mubr.f32.mxu0 0.0
      %2657 = vmatmul.mubr.f32.gmra.mrb[0].mxu0 %v2555
      %v2658 = vpop.f32.mrb[0].mxu0
      %v2659 = vadd.f32 %v2581, %v2658
      %v2660 = vpop.f32.mrb[0].mxu0
      %2661 = vmatprep.mubr.f32.mxu0 0.0
      %2662 = vmatmul.mubr.f32.gmra.mrb[0].mxu0 %v2556
      %v2663 = vpop.f32.mrb[0].mxu0
      %v2664 = vadd.f32 %v2581, %v2663
      %v2665 = vpop.f32.mrb[0].mxu0
      %2666 = vmatprep.mubr.f32.mxu0 0.0
      %2667 = vmatmul.mubr.f32.gmra.mrb[0].mxu0 %v2557
      %v2668 = vpop.f32.mrb[0].mxu0
      %v2669 = vadd.f32 %v2581, %v2668
      %v2670 = vpop.f32.mrb[0].mxu0
      %2671 = vmatprep.mubr.f32.mxu0 0.0
      %2672 = vmatmul.mubr.f32.gmra.mrb[0].mxu0 %v2558
      %v2673 = vpop.f32.mrb[0].mxu0
      %v2674 = vadd.f32 %v2581, %v2673
      %v2675 = vpop.f32.mrb[0].mxu0
      %2676 = vmatprep.mubr.f32.mxu0 0.0
      %2677 = vmatmul.mubr.f32.gmra.mrb[0].mxu0 %v2559
      %v2678 = vpop.f32.mrb[0].mxu0
      %v2679 = vadd.f32 %v2581, %v2678
      %v2680 = vpop.f32.mrb[0].mxu0
      %2681 = vmatprep.mubr.f32.mxu0 0.0
      %2682 = vmatmul.mubr.f32.gmra.mrb[0].mxu0 %v2560
      %v2683 = vpop.f32.mrb[0].mxu0
      %v2684 = vadd.f32 %v2581, %v2683
      %v2685 = vpop.f32.mrb[0].mxu0
      %2686 = vdwg.mxu0
      %v2687 = vmax.f32 %v2649, 0.0
      %v2688 = vmax.f32 %v2654, 0.0
      %v2689 = vmax.f32 %v2659, 0.0
      %v2690 = vmax.f32 %v2664, 0.0
      %v2691 = vmax.f32 %v2669, 0.0
      %v2692 = vmax.f32 %v2674, 0.0
      %v2693 = vmax.f32 %v2679, 0.0
      %v2694 = vmax.f32 %v2684, 0.0
      %v2695 = vld [vmem:[%s7 + $0x180] sm:$0xff]
      %v2696 = vld [vmem:[%s7 + $0x188] sm:$0xff]
      %v2697 = vld [vmem:[%s7 + $0x190] sm:$0xff]
      %v2698 = vld [vmem:[%s7 + $0x198] sm:$0xff]
      %v2699 = vld [vmem:[%s7 + $0x1a0] sm:$0xff]
      %v2700 = vld [vmem:[%s7 + $0x1a8] sm:$0xff]
      %v2701 = vld [vmem:[%s7 + $0x1b0] sm:$0xff]
      %v2702 = vld [vmem:[%s7 + $0x1b8] sm:$0xff]
      %v2703 = vld [vmem:[%s7 + $0x1c0] sm:$0xff]
      %v2704 = vld [vmem:[%s7 + $0x1c8] sm:$0xff]
      %v2705 = vld [vmem:[%s7 + $0x1d0] sm:$0xff]
      %v2706 = vld [vmem:[%s7 + $0x1d8] sm:$0xff]
      %v2707 = vld [vmem:[%s7 + $0x1e0] sm:$0xff]
      %v2708 = vld [vmem:[%s7 + $0x1e8] sm:$0xff]
      %v2709 = vld [vmem:[%s7 + $0x1f0] sm:$0xff]
      %v2710 = vld [vmem:[%s7 + $0x1f8] sm:$0xff]
      %v2711 = vld [vmem:[%s8 + $0x2] sm:$0x1]
      %v2712 = vlaneseq
      %v2713 = vshrl.u32 %v2712, 7
      %v2714 = vsub.s32 0, %v2713
      %v2715 = vrot.slane %v2711, %v2714
      %2716 = vmatprep.subr.mxu0 0.0
      %2717 = vmatpush1.msra.mxu0 %v2695
      %2718 = vmatprep.subr.mxu0 0.0
      %2719 = vmatpush1.msra.mxu0 %v2696
      %2720 = vmatprep.subr.mxu0 0.0
      %2721 = vmatpush1.msra.mxu0 %v2697
      %2722 = vmatprep.subr.mxu0 0.0
      %2723 = vmatpush1.msra.mxu0 %v2698
      %2724 = vmatprep.subr.mxu0 0.0
      %2725 = vmatpush1.msra.mxu0 %v2699
      %2726 = vmatprep.subr.mxu0 0.0
      %2727 = vmatpush1.msra.mxu0 %v2700
      %2728 = vmatprep.subr.mxu0 0.0
      %2729 = vmatpush1.msra.mxu0 %v2701
      %2730 = vmatprep.subr.mxu0 0.0
      %2731 = vmatpush1.msra.mxu0 %v2702
      %2732 = vmatprep.subr.mxu0 0.0
      %2733 = vmatpush1.msra.mxu0 %v2703
      %2734 = vmatprep.subr.mxu0 0.0
      %2735 = vmatpush1.msra.mxu0 %v2704
      %2736 = vmatprep.subr.mxu0 0.0
      %2737 = vmatpush1.msra.mxu0 %v2705
      %2738 = vmatprep.subr.mxu0 0.0
      %2739 = vmatpush1.msra.mxu0 %v2706
      %2740 = vmatprep.subr.mxu0 0.0
      %2741 = vmatpush1.msra.mxu0 %v2707
      %2742 = vmatprep.subr.mxu0 0.0
      %2743 = vmatpush1.msra.mxu0 %v2708
      %2744 = vmatprep.subr.mxu0 0.0
      %2745 = vmatpush1.msra.mxu0 %v2709
      %2746 = vmatprep.subr.mxu0 0.0
      %2747 = vmatpush1.msra.mxu0 %v2710
      %2748 = vmatprep.subr.mxu0 0.0
      %2749 = vmatpush1.msra.mxu0 0.0
      %2750 = vmatprep.subr.mxu0 0.0
      %2751 = vmatpush1.msra.mxu0 0.0
      %2752 = vmatprep.subr.mxu0 0.0
      %2753 = vmatpush1.msra.mxu0 0.0
      %2754 = vmatprep.subr.mxu0 0.0
      %2755 = vmatpush1.msra.mxu0 0.0
      %2756 = vmatprep.subr.mxu0 0.0
      %2757 = vmatpush1.msra.mxu0 0.0
      %2758 = vmatprep.subr.mxu0 0.0
      %2759 = vmatpush1.msra.mxu0 0.0
      %2760 = vmatprep.subr.mxu0 0.0
      %2761 = vmatpush1.msra.mxu0 0.0
      %2762 = vmatprep.subr.mxu0 0.0
      %2763 = vmatpush1.msra.mxu0 0.0
      %2764 = vmatprep.subr.mxu0 0.0
      %2765 = vmatpush1.msra.mxu0 0.0
      %2766 = vmatprep.subr.mxu0 0.0
      %2767 = vmatpush1.msra.mxu0 0.0
      %2768 = vmatprep.subr.mxu0 0.0
      %2769 = vmatpush1.msra.mxu0 0.0
      %2770 = vmatprep.subr.mxu0 0.0
      %2771 = vmatpush1.msra.mxu0 0.0
      %2772 = vmatprep.subr.mxu0 0.0
      %2773 = vmatpush1.msra.mxu0 0.0
      %2774 = vmatprep.subr.mxu0 0.0
      %2775 = vmatpush1.msra.mxu0 0.0
      %2776 = vmatprep.subr.mxu0 0.0
      %2777 = vmatpush1.msra.mxu0 0.0
      %2778 = vmatprep.subr.mxu0 0.0
      %2779 = vmatpush1.msra.mxu0 0.0
      %2780 = vmatprep.mubr.f32.mxu0 0.0
      %2781 = vmatmul.mubr.f32.gmra.mrb[0].mxu0 %v2687
      %v2782 = vpop.f32.mrb[0].mxu0
      %v2783 = vadd.f32 %v2715, %v2782
      %v2784 = vpop.f32.mrb[0].mxu0
      %2785 = vmatprep.mubr.f32.mxu0 0.0
      %2786 = vmatmul.mubr.f32.gmra.mrb[0].mxu0 %v2688
      %v2787 = vpop.f32.mrb[0].mxu0
      %v2788 = vadd.f32 %v2715, %v2787
      %v2789 = vpop.f32.mrb[0].mxu0
      %2790 = vmatprep.mubr.f32.mxu0 0.0
      %2791 = vmatmul.mubr.f32.gmra.mrb[0].mxu0 %v2689
      %v2792 = vpop.f32.mrb[0].mxu0
      %v2793 = vadd.f32 %v2715, %v2792
      %v2794 = vpop.f32.mrb[0].mxu0
      %2795 = vmatprep.mubr.f32.mxu0 0.0
      %2796 = vmatmul.mubr.f32.gmra.mrb[0].mxu0 %v2690
      %v2797 = vpop.f32.mrb[0].mxu0
      %v2798 = vadd.f32 %v2715, %v2797
      %v2799 = vpop.f32.mrb[0].mxu0
      %2800 = vmatprep.mubr.f32.mxu0 0.0
      %2801 = vmatmul.mubr.f32.gmra.mrb[0].mxu0 %v2691
      %v2802 = vpop.f32.mrb[0].mxu0
      %v2803 = vadd.f32 %v2715, %v2802
      %v2804 = vpop.f32.mrb[0].mxu0
      %2805 = vmatprep.mubr.f32.mxu0 0.0
      %2806 = vmatmul.mubr.f32.gmra.mrb[0].mxu0 %v2692
      %v2807 = vpop.f32.mrb[0].mxu0
      %v2808 = vadd.f32 %v2715, %v2807
      %v2809 = vpop.f32.mrb[0].mxu0
      %2810 = vmatprep.mubr.f32.mxu0 0.0
      %2811 = vmatmul.mubr.f32.gmra.mrb[0].mxu0 %v2693
      %v2812 = vpop.f32.mrb[0].mxu0
      %v2813 = vadd.f32 %v2715, %v2812
      %v2814 = vpop.f32.mrb[0].mxu0
      %2815 = vmatprep.mubr.f32.mxu0 0.0
      %2816 = vmatmul.mubr.f32.gmra.mrb[0].mxu0 %v2694
      %v2817 = vpop.f32.mrb[0].mxu0
      %v2818 = vadd.f32 %v2715, %v2817
      %v2819 = vpop.f32.mrb[0].mxu0
      %2820 = vdwg.mxu0
      %v2821 = vld [vmem:[%s8 + $0x3] sm:$0x1]
      %v2822 = vld [vmem:[%s8 + $0x4] sm:$0x1]
      %v2823 = vmul.f32 %v2783, %v1944
      %v2824 = vmul.f32 %v2788, %v1944
      %v2825 = vmul.f32 %v2793, %v1944
      %v2826 = vmul.f32 %v2798, %v1944
      %v2827 = vmul.f32 %v2803, %v1944
      %v2828 = vmul.f32 %v2808, %v1944
      %v2829 = vmul.f32 %v2813, %v1944
      %v2830 = vmul.f32 %v2818, %v1944
      %2831 = vadd.xlane.f32.xlu0 %v2823
      %v2832 = vpop.xlane.xlu0 %2831
      %2833 = vadd.xlane.f32.xlu0 %v2824
      %v2834 = vpop.xlane.xlu0 %2833
      %2835 = vadd.xlane.f32.xlu0 %v2825
      %v2836 = vpop.xlane.xlu0 %2835
      %2837 = vadd.xlane.f32.xlu0 %v2826
      %v2838 = vpop.xlane.xlu0 %2837
      %2839 = vadd.xlane.f32.xlu0 %v2827
      %v2840 = vpop.xlane.xlu0 %2839
      %2841 = vadd.xlane.f32.xlu0 %v2828
      %v2842 = vpop.xlane.xlu0 %2841
      %2843 = vadd.xlane.f32.xlu0 %v2829
      %v2844 = vpop.xlane.xlu0 %2843
      %2845 = vadd.xlane.f32.xlu0 %v2830
      %v2846 = vpop.xlane.xlu0 %2845
      %v2847 = vmul.f32 %v2832, 0.03125
      %v2848 = vmul.f32 %v2834, 0.03125
      %v2849 = vmul.f32 %v2836, 0.03125
      %v2850 = vmul.f32 %v2838, 0.03125
      %v2851 = vmul.f32 %v2840, 0.03125
      %v2852 = vmul.f32 %v2842, 0.03125
      %v2853 = vmul.f32 %v2844, 0.03125
      %v2854 = vmul.f32 %v2846, 0.03125
      %v2855 = vsub.f32 %v2783, %v2847
      %v2856 = vsub.f32 %v2788, %v2848
      %v2857 = vsub.f32 %v2793, %v2849
      %v2858 = vsub.f32 %v2798, %v2850
      %v2859 = vsub.f32 %v2803, %v2851
      %v2860 = vsub.f32 %v2808, %v2852
      %v2861 = vsub.f32 %v2813, %v2853
      %v2862 = vsub.f32 %v2818, %v2854
      %v2863 = vmul.f32 %v2855, %v1944
      %v2864 = vmul.f32 %v2856, %v1944
      %v2865 = vmul.f32 %v2857, %v1944
      %v2866 = vmul.f32 %v2858, %v1944
      %v2867 = vmul.f32 %v2859, %v1944
      %v2868 = vmul.f32 %v2860, %v1944
      %v2869 = vmul.f32 %v2861, %v1944
      %v2870 = vmul.f32 %v2862, %v1944
      %v2871 = vmul.f32 %v2863, %v2863
      %v2872 = vmul.f32 %v2864, %v2864
      %v2873 = vmul.f32 %v2865, %v2865
      %v2874 = vmul.f32 %v2866, %v2866
      %v2875 = vmul.f32 %v2867, %v2867
      %v2876 = vmul.f32 %v2868, %v2868
      %v2877 = vmul.f32 %v2869, %v2869
      %v2878 = vmul.f32 %v2870, %v2870
      %2879 = vadd.xlane.f32.xlu0 %v2871
      %v2880 = vpop.xlane.xlu0 %2879
      %2881 = vadd.xlane.f32.xlu0 %v2872
      %v2882 = vpop.xlane.xlu0 %2881
      %2883 = vadd.xlane.f32.xlu0 %v2873
      %v2884 = vpop.xlane.xlu0 %2883
      %2885 = vadd.xlane.f32.xlu0 %v2874
      %v2886 = vpop.xlane.xlu0 %2885
      %2887 = vadd.xlane.f32.xlu0 %v2875
      %v2888 = vpop.xlane.xlu0 %2887
      %2889 = vadd.xlane.f32.xlu0 %v2876
      %v2890 = vpop.xlane.xlu0 %2889
      %2891 = vadd.xlane.f32.xlu0 %v2877
      %v2892 = vpop.xlane.xlu0 %2891
      %2893 = vadd.xlane.f32.xlu0 %v2878
      %v2894 = vpop.xlane.xlu0 %2893
      %v2895 = vmul.f32 %v2880, 0.03125
      %v2896 = vmul.f32 %v2882, 0.03125
      %v2897 = vmul.f32 %v2884, 0.03125
      %v2898 = vmul.f32 %v2886, 0.03125
      %v2899 = vmul.f32 %v2888, 0.03125
      %v2900 = vmul.f32 %v2890, 0.03125
      %v2901 = vmul.f32 %v2892, 0.03125
      %v2902 = vmul.f32 %v2894, 0.03125
      %v2903 = vadd.f32 %v2895, 1e-05
      %v2904 = vadd.f32 %v2896, 1e-05
      %v2905 = vadd.f32 %v2897, 1e-05
      %v2906 = vadd.f32 %v2898, 1e-05
      %v2907 = vadd.f32 %v2899, 1e-05
      %v2908 = vadd.f32 %v2900, 1e-05
      %v2909 = vadd.f32 %v2901, 1e-05
      %v2910 = vadd.f32 %v2902, 1e-05
      %v2911 = vrsqrt.pop %v2903
      %v2912 = vrsqrt.pop %v2904
      %v2913 = vrsqrt.pop %v2905
      %v2914 = vrsqrt.pop %v2906
      %v2915 = vrsqrt.pop %v2907
      %v2916 = vrsqrt.pop %v2908
      %v2917 = vrsqrt.pop %v2909
      %v2918 = vrsqrt.pop %v2910
      %v2919 = vmul.f32 %v2863, %v2911
      %v2920 = vmul.f32 %v2864, %v2912
      %v2921 = vmul.f32 %v2865, %v2913
      %v2922 = vmul.f32 %v2866, %v2914
      %v2923 = vmul.f32 %v2867, %v2915
      %v2924 = vmul.f32 %v2868, %v2916
      %v2925 = vmul.f32 %v2869, %v2917
      %v2926 = vmul.f32 %v2870, %v2918
      %v2927 = vlaneseq
      %v2928 = vshrl.u32 %v2927, 7
      %v2929 = vsub.s32 0, %v2928
      %v2930 = vrot.slane %v2821, %v2929
      %v2931 = vmul.f32 %v2919, %v2930
      %v2932 = vmul.f32 %v2920, %v2930
      %v2933 = vmul.f32 %v2921, %v2930
      %v2934 = vmul.f32 %v2922, %v2930
      %v2935 = vmul.f32 %v2923, %v2930
      %v2936 = vmul.f32 %v2924, %v2930
      %v2937 = vmul.f32 %v2925, %v2930
      %v2938 = vmul.f32 %v2926, %v2930
      %v2939 = vlaneseq
      %v2940 = vshrl.u32 %v2939, 7
      %v2941 = vsub.s32 0, %v2940
      %v2942 = vrot.slane %v2822, %v2941
      %v2943 = vadd.f32 %v2931, %v2942
      %v2944 = vadd.f32 %v2932, %v2942
      %v2945 = vadd.f32 %v2933, %v2942
      %v2946 = vadd.f32 %v2934, %v2942
      %v2947 = vadd.f32 %v2935, %v2942
      %v2948 = vadd.f32 %v2936, %v2942
      %v2949 = vadd.f32 %v2937, %v2942
      %v2950 = vadd.f32 %v2938, %v2942
      %v2951 = vadd.f32 %v494, %v2943
      %v2952 = vadd.f32 %v495, %v2944
      %v2953 = vadd.f32 %v496, %v2945
      %v2954 = vadd.f32 %v497, %v2946
      %v2955 = vadd.f32 %v498, %v2947
      %v2956 = vadd.f32 %v499, %v2948
      %v2957 = vadd.f32 %v500, %v2949
      %v2958 = vadd.f32 %v501, %v2950
      %v2959 = vld [vmem:[%s9] sm:$0xff]
      %v2960 = vld [vmem:[%s9 + $0x8] sm:$0xff]
      %v2961 = vld [vmem:[%s9 + $0x10] sm:$0xff]
      %v2962 = vld [vmem:[%s9 + $0x18] sm:$0xff]
      %v2963 = vld [vmem:[%s9 + $0x20] sm:$0xff]
      %v2964 = vld [vmem:[%s9 + $0x28] sm:$0xff]
      %v2965 = vld [vmem:[%s9 + $0x30] sm:$0xff]
      %v2966 = vld [vmem:[%s9 + $0x38] sm:$0xff]
      %v2967 = vld [vmem:[%s9 + $0x40] sm:$0xff]
      %v2968 = vld [vmem:[%s9 + $0x48] sm:$0xff]
      %v2969 = vld [vmem:[%s9 + $0x50] sm:$0xff]
      %v2970 = vld [vmem:[%s9 + $0x58] sm:$0xff]
      %v2971 = vld [vmem:[%s9 + $0x60] sm:$0xff]
      %v2972 = vld [vmem:[%s9 + $0x68] sm:$0xff]
      %v2973 = vld [vmem:[%s9 + $0x70] sm:$0xff]
      %v2974 = vld [vmem:[%s9 + $0x78] sm:$0xff]
      %v2975 = vld [vmem:[%s10] sm:$0x1]
      %v2976 = vlaneseq
      %v2977 = vshrl.u32 %v2976, 7
      %v2978 = vsub.s32 0, %v2977
      %v2979 = vrot.slane %v2975, %v2978
      %2980 = vmatprep.subr.mxu0 0.0
      %2981 = vmatpush1.msra.mxu0 %v2959
      %2982 = vmatprep.subr.mxu0 0.0
      %2983 = vmatpush1.msra.mxu0 %v2960
      %2984 = vmatprep.subr.mxu0 0.0
      %2985 = vmatpush1.msra.mxu0 %v2961
      %2986 = vmatprep.subr.mxu0 0.0
      %2987 = vmatpush1.msra.mxu0 %v2962
      %2988 = vmatprep.subr.mxu0 0.0
      %2989 = vmatpush1.msra.mxu0 %v2963
      %2990 = vmatprep.subr.mxu0 0.0
      %2991 = vmatpush1.msra.mxu0 %v2964
      %2992 = vmatprep.subr.mxu0 0.0
      %2993 = vmatpush1.msra.mxu0 %v2965
      %2994 = vmatprep.subr.mxu0 0.0
      %2995 = vmatpush1.msra.mxu0 %v2966
      %2996 = vmatprep.subr.mxu0 0.0
      %2997 = vmatpush1.msra.mxu0 %v2967
      %2998 = vmatprep.subr.mxu0 0.0
      %2999 = vmatpush1.msra.mxu0 %v2968
      %3000 = vmatprep.subr.mxu0 0.0
      %3001 = vmatpush1.msra.mxu0 %v2969
      %3002 = vmatprep.subr.mxu0 0.0
      %3003 = vmatpush1.msra.mxu0 %v2970
      %3004 = vmatprep.subr.mxu0 0.0
      %3005 = vmatpush1.msra.mxu0 %v2971
      %3006 = vmatprep.subr.mxu0 0.0
      %3007 = vmatpush1.msra.mxu0 %v2972
      %3008 = vmatprep.subr.mxu0 0.0
      %3009 = vmatpush1.msra.mxu0 %v2973
      %3010 = vmatprep.subr.mxu0 0.0
      %3011 = vmatpush1.msra.mxu0 %v2974
      %3012 = vmatprep.subr.mxu0 0.0
      %3013 = vmatpush1.msra.mxu0 0.0
      %3014 = vmatprep.subr.mxu0 0.0
      %3015 = vmatpush1.msra.mxu0 0.0
      %3016 = vmatprep.subr.mxu0 0.0
      %3017 = vmatpush1.msra.mxu0 0.0
      %3018 = vmatprep.subr.mxu0 0.0
      %3019 = vmatpush1.msra.mxu0 0.0
      %3020 = vmatprep.subr.mxu0 0.0
      %3021 = vmatpush1.msra.mxu0 0.0
      %3022 = vmatprep.subr.mxu0 0.0
      %3023 = vmatpush1.msra.mxu0 0.0
      %3024 = vmatprep.subr.mxu0 0.0
      %3025 = vmatpush1.msra.mxu0 0.0
      %3026 = vmatprep.subr.mxu0 0.0
      %3027 = vmatpush1.msra.mxu0 0.0
      %3028 = vmatprep.subr.mxu0 0.0
      %3029 = vmatpush1.msra.mxu0 0.0
      %3030 = vmatprep.subr.mxu0 0.0
      %3031 = vmatpush1.msra.mxu0 0.0
      %3032 = vmatprep.subr.mxu0 0.0
      %3033 = vmatpush1.msra.mxu0 0.0
      %3034 = vmatprep.subr.mxu0 0.0
      %3035 = vmatpush1.msra.mxu0 0.0
      %3036 = vmatprep.subr.mxu0 0.0
      %3037 = vmatpush1.msra.mxu0 0.0
      %3038 = vmatprep.subr.mxu0 0.0
      %3039 = vmatpush1.msra.mxu0 0.0
      %3040 = vmatprep.subr.mxu0 0.0
      %3041 = vmatpush1.msra.mxu0 0.0
      %3042 = vmatprep.subr.mxu0 0.0
      %3043 = vmatpush1.msra.mxu0 0.0
      %3044 = vmatprep.mubr.f32.mxu0 0.0
      %3045 = vmatmul.mubr.f32.gmra.mrb[0].mxu0 %v2951
      %v3046 = vpop.f32.mrb[0].mxu0
      %v3047 = vadd.f32 %v2979, %v3046
      %v3048 = vpop.f32.mrb[0].mxu0
      %3049 = vmatprep.mubr.f32.mxu0 0.0
      %3050 = vmatmul.mubr.f32.gmra.mrb[0].mxu0 %v2952
      %v3051 = vpop.f32.mrb[0].mxu0
      %v3052 = vadd.f32 %v2979, %v3051
      %v3053 = vpop.f32.mrb[0].mxu0
      %3054 = vmatprep.mubr.f32.mxu0 0.0
      %3055 = vmatmul.mubr.f32.gmra.mrb[0].mxu0 %v2953
      %v3056 = vpop.f32.mrb[0].mxu0
      %v3057 = vadd.f32 %v2979, %v3056
      %v3058 = vpop.f32.mrb[0].mxu0
      %3059 = vmatprep.mubr.f32.mxu0 0.0
      %3060 = vmatmul.mubr.f32.gmra.mrb[0].mxu0 %v2954
      %v3061 = vpop.f32.mrb[0].mxu0
      %v3062 = vadd.f32 %v2979, %v3061
      %v3063 = vpop.f32.mrb[0].mxu0
      %3064 = vmatprep.mubr.f32.mxu0 0.0
      %3065 = vmatmul.mubr.f32.gmra.mrb[0].mxu0 %v2955
      %v3066 = vpop.f32.mrb[0].mxu0
      %v3067 = vadd.f32 %v2979, %v3066
      %v3068 = vpop.f32.mrb[0].mxu0
      %3069 = vmatprep.mubr.f32.mxu0 0.0
      %3070 = vmatmul.mubr.f32.gmra.mrb[0].mxu0 %v2956
      %v3071 = vpop.f32.mrb[0].mxu0
      %v3072 = vadd.f32 %v2979, %v3071
      %v3073 = vpop.f32.mrb[0].mxu0
      %3074 = vmatprep.mubr.f32.mxu0 0.0
      %3075 = vmatmul.mubr.f32.gmra.mrb[0].mxu0 %v2957
      %v3076 = vpop.f32.mrb[0].mxu0
      %v3077 = vadd.f32 %v2979, %v3076
      %v3078 = vpop.f32.mrb[0].mxu0
      %3079 = vmatprep.mubr.f32.mxu0 0.0
      %3080 = vmatmul.mubr.f32.gmra.mrb[0].mxu0 %v2958
      %v3081 = vpop.f32.mrb[0].mxu0
      %v3082 = vadd.f32 %v2979, %v3081
      %v3083 = vpop.f32.mrb[0].mxu0
      %3084 = vdwg.mxu0
      %v3085 = vmax.f32 %v3047, 0.0
      %v3086 = vmax.f32 %v3052, 0.0
      %v3087 = vmax.f32 %v3057, 0.0
      %v3088 = vmax.f32 %v3062, 0.0
      %v3089 = vmax.f32 %v3067, 0.0
      %v3090 = vmax.f32 %v3072, 0.0
      %v3091 = vmax.f32 %v3077, 0.0
      %v3092 = vmax.f32 %v3082, 0.0
      %v3093 = vld [vmem:[%s9 + $0x80] sm:$0xff]
      %v3094 = vld [vmem:[%s9 + $0x88] sm:$0xff]
      %v3095 = vld [vmem:[%s9 + $0x90] sm:$0xff]
      %v3096 = vld [vmem:[%s9 + $0x98] sm:$0xff]
      %v3097 = vld [vmem:[%s9 + $0xa0] sm:$0xff]
      %v3098 = vld [vmem:[%s9 + $0xa8] sm:$0xff]
      %v3099 = vld [vmem:[%s9 + $0xb0] sm:$0xff]
      %v3100 = vld [vmem:[%s9 + $0xb8] sm:$0xff]
      %v3101 = vld [vmem:[%s9 + $0xc0] sm:$0xff]
      %v3102 = vld [vmem:[%s9 + $0xc8] sm:$0xff]
      %v3103 = vld [vmem:[%s9 + $0xd0] sm:$0xff]
      %v3104 = vld [vmem:[%s9 + $0xd8] sm:$0xff]
      %v3105 = vld [vmem:[%s9 + $0xe0] sm:$0xff]
      %v3106 = vld [vmem:[%s9 + $0xe8] sm:$0xff]
      %v3107 = vld [vmem:[%s9 + $0xf0] sm:$0xff]
      %v3108 = vld [vmem:[%s9 + $0xf8] sm:$0xff]
      %v3109 = vld [vmem:[%s10 + $0x1] sm:$0x1]
      %v3110 = vlaneseq
      %v3111 = vshrl.u32 %v3110, 7
      %v3112 = vsub.s32 0, %v3111
      %v3113 = vrot.slane %v3109, %v3112
      %3114 = vmatprep.subr.mxu0 0.0
      %3115 = vmatpush1.msra.mxu0 %v3093
      %3116 = vmatprep.subr.mxu0 0.0
      %3117 = vmatpush1.msra.mxu0 %v3094
      %3118 = vmatprep.subr.mxu0 0.0
      %3119 = vmatpush1.msra.mxu0 %v3095
      %3120 = vmatprep.subr.mxu0 0.0
      %3121 = vmatpush1.msra.mxu0 %v3096
      %3122 = vmatprep.subr.mxu0 0.0
      %3123 = vmatpush1.msra.mxu0 %v3097
      %3124 = vmatprep.subr.mxu0 0.0
      %3125 = vmatpush1.msra.mxu0 %v3098
      %3126 = vmatprep.subr.mxu0 0.0
      %3127 = vmatpush1.msra.mxu0 %v3099
      %3128 = vmatprep.subr.mxu0 0.0
      %3129 = vmatpush1.msra.mxu0 %v3100
      %3130 = vmatprep.subr.mxu0 0.0
      %3131 = vmatpush1.msra.mxu0 %v3101
      %3132 = vmatprep.subr.mxu0 0.0
      %3133 = vmatpush1.msra.mxu0 %v3102
      %3134 = vmatprep.subr.mxu0 0.0
      %3135 = vmatpush1.msra.mxu0 %v3103
      %3136 = vmatprep.subr.mxu0 0.0
      %3137 = vmatpush1.msra.mxu0 %v3104
      %3138 = vmatprep.subr.mxu0 0.0
      %3139 = vmatpush1.msra.mxu0 %v3105
      %3140 = vmatprep.subr.mxu0 0.0
      %3141 = vmatpush1.msra.mxu0 %v3106
      %3142 = vmatprep.subr.mxu0 0.0
      %3143 = vmatpush1.msra.mxu0 %v3107
      %3144 = vmatprep.subr.mxu0 0.0
      %3145 = vmatpush1.msra.mxu0 %v3108
      %3146 = vmatprep.subr.mxu0 0.0
      %3147 = vmatpush1.msra.mxu0 0.0
      %3148 = vmatprep.subr.mxu0 0.0
      %3149 = vmatpush1.msra.mxu0 0.0
      %3150 = vmatprep.subr.mxu0 0.0
      %3151 = vmatpush1.msra.mxu0 0.0
      %3152 = vmatprep.subr.mxu0 0.0
      %3153 = vmatpush1.msra.mxu0 0.0
      %3154 = vmatprep.subr.mxu0 0.0
      %3155 = vmatpush1.msra.mxu0 0.0
      %3156 = vmatprep.subr.mxu0 0.0
      %3157 = vmatpush1.msra.mxu0 0.0
      %3158 = vmatprep.subr.mxu0 0.0
      %3159 = vmatpush1.msra.mxu0 0.0
      %3160 = vmatprep.subr.mxu0 0.0
      %3161 = vmatpush1.msra.mxu0 0.0
      %3162 = vmatprep.subr.mxu0 0.0
      %3163 = vmatpush1.msra.mxu0 0.0
      %3164 = vmatprep.subr.mxu0 0.0
      %3165 = vmatpush1.msra.mxu0 0.0
      %3166 = vmatprep.subr.mxu0 0.0
      %3167 = vmatpush1.msra.mxu0 0.0
      %3168 = vmatprep.subr.mxu0 0.0
      %3169 = vmatpush1.msra.mxu0 0.0
      %3170 = vmatprep.subr.mxu0 0.0
      %3171 = vmatpush1.msra.mxu0 0.0
      %3172 = vmatprep.subr.mxu0 0.0
      %3173 = vmatpush1.msra.mxu0 0.0
      %3174 = vmatprep.subr.mxu0 0.0
      %3175 = vmatpush1.msra.mxu0 0.0
      %3176 = vmatprep.subr.mxu0 0.0
      %3177 = vmatpush1.msra.mxu0 0.0
      %3178 = vmatprep.mubr.f32.mxu0 0.0
      %3179 = vmatmul.mubr.f32.gmra.mrb[0].mxu0 %v3085
      %v3180 = vpop.f32.mrb[0].mxu0
      %v3181 = vadd.f32 %v3113, %v3180
      %v3182 = vpop.f32.mrb[0].mxu0
      %3183 = vmatprep.mubr.f32.mxu0 0.0
      %3184 = vmatmul.mubr.f32.gmra.mrb[0].mxu0 %v3086
      %v3185 = vpop.f32.mrb[0].mxu0
      %v3186 = vadd.f32 %v3113, %v3185
      %v3187 = vpop.f32.mrb[0].mxu0
      %3188 = vmatprep.mubr.f32.mxu0 0.0
      %3189 = vmatmul.mubr.f32.gmra.mrb[0].mxu0 %v3087
      %v3190 = vpop.f32.mrb[0].mxu0
      %v3191 = vadd.f32 %v3113, %v3190
      %v3192 = vpop.f32.mrb[0].mxu0
      %3193 = vmatprep.mubr.f32.mxu0 0.0
      %3194 = vmatmul.mubr.f32.gmra.mrb[0].mxu0 %v3088
      %v3195 = vpop.f32.mrb[0].mxu0
      %v3196 = vadd.f32 %v3113, %v3195
      %v3197 = vpop.f32.mrb[0].mxu0
      %3198 = vmatprep.mubr.f32.mxu0 0.0
      %3199 = vmatmul.mubr.f32.gmra.mrb[0].mxu0 %v3089
      %v3200 = vpop.f32.mrb[0].mxu0
      %v3201 = vadd.f32 %v3113, %v3200
      %v3202 = vpop.f32.mrb[0].mxu0
      %3203 = vmatprep.mubr.f32.mxu0 0.0
      %3204 = vmatmul.mubr.f32.gmra.mrb[0].mxu0 %v3090
      %v3205 = vpop.f32.mrb[0].mxu0
      %v3206 = vadd.f32 %v3113, %v3205
      %v3207 = vpop.f32.mrb[0].mxu0
      %3208 = vmatprep.mubr.f32.mxu0 0.0
      %3209 = vmatmul.mubr.f32.gmra.mrb[0].mxu0 %v3091
      %v3210 = vpop.f32.mrb[0].mxu0
      %v3211 = vadd.f32 %v3113, %v3210
      %v3212 = vpop.f32.mrb[0].mxu0
      %3213 = vmatprep.mubr.f32.mxu0 0.0
      %3214 = vmatmul.mubr.f32.gmra.mrb[0].mxu0 %v3092
      %v3215 = vpop.f32.mrb[0].mxu0
      %v3216 = vadd.f32 %v3113, %v3215
      %v3217 = vpop.f32.mrb[0].mxu0
      %3218 = vdwg.mxu0
      %v3219 = vmax.f32 %v3181, 0.0
      %v3220 = vmax.f32 %v3186, 0.0
      %v3221 = vmax.f32 %v3191, 0.0
      %v3222 = vmax.f32 %v3196, 0.0
      %v3223 = vmax.f32 %v3201, 0.0
      %v3224 = vmax.f32 %v3206, 0.0
      %v3225 = vmax.f32 %v3211, 0.0
      %v3226 = vmax.f32 %v3216, 0.0
      %v3227 = vld [vmem:[%s9 + $0x100] sm:$0xff]
      %v3228 = vld [vmem:[%s9 + $0x108] sm:$0xff]
      %v3229 = vld [vmem:[%s9 + $0x110] sm:$0xff]
      %v3230 = vld [vmem:[%s9 + $0x118] sm:$0xff]
      %v3231 = vld [vmem:[%s9 + $0x120] sm:$0xff]
      %v3232 = vld [vmem:[%s9 + $0x128] sm:$0xff]
      %v3233 = vld [vmem:[%s9 + $0x130] sm:$0xff]
      %v3234 = vld [vmem:[%s9 + $0x138] sm:$0xff]
      %v3235 = vld [vmem:[%s9 + $0x140] sm:$0xff]
      %v3236 = vld [vmem:[%s9 + $0x148] sm:$0xff]
      %v3237 = vld [vmem:[%s9 + $0x150] sm:$0xff]
      %v3238 = vld [vmem:[%s9 + $0x158] sm:$0xff]
      %v3239 = vld [vmem:[%s9 + $0x160] sm:$0xff]
      %v3240 = vld [vmem:[%s9 + $0x168] sm:$0xff]
      %v3241 = vld [vmem:[%s9 + $0x170] sm:$0xff]
      %v3242 = vld [vmem:[%s9 + $0x178] sm:$0xff]
      %v3243 = vld [vmem:[%s10 + $0x2] sm:$0x1]
      %v3244 = vlaneseq
      %v3245 = vshrl.u32 %v3244, 7
      %v3246 = vsub.s32 0, %v3245
      %v3247 = vrot.slane %v3243, %v3246
      %3248 = vmatprep.subr.mxu0 0.0
      %3249 = vmatpush1.msra.mxu0 %v3227
      %3250 = vmatprep.subr.mxu0 0.0
      %3251 = vmatpush1.msra.mxu0 %v3228
      %3252 = vmatprep.subr.mxu0 0.0
      %3253 = vmatpush1.msra.mxu0 %v3229
      %3254 = vmatprep.subr.mxu0 0.0
      %3255 = vmatpush1.msra.mxu0 %v3230
      %3256 = vmatprep.subr.mxu0 0.0
      %3257 = vmatpush1.msra.mxu0 %v3231
      %3258 = vmatprep.subr.mxu0 0.0
      %3259 = vmatpush1.msra.mxu0 %v3232
      %3260 = vmatprep.subr.mxu0 0.0
      %3261 = vmatpush1.msra.mxu0 %v3233
      %3262 = vmatprep.subr.mxu0 0.0
      %3263 = vmatpush1.msra.mxu0 %v3234
      %3264 = vmatprep.subr.mxu0 0.0
      %3265 = vmatpush1.msra.mxu0 %v3235
      %3266 = vmatprep.subr.mxu0 0.0
      %3267 = vmatpush1.msra.mxu0 %v3236
      %3268 = vmatprep.subr.mxu0 0.0
      %3269 = vmatpush1.msra.mxu0 %v3237
      %3270 = vmatprep.subr.mxu0 0.0
      %3271 = vmatpush1.msra.mxu0 %v3238
      %3272 = vmatprep.subr.mxu0 0.0
      %3273 = vmatpush1.msra.mxu0 %v3239
      %3274 = vmatprep.subr.mxu0 0.0
      %3275 = vmatpush1.msra.mxu0 %v3240
      %3276 = vmatprep.subr.mxu0 0.0
      %3277 = vmatpush1.msra.mxu0 %v3241
      %3278 = vmatprep.subr.mxu0 0.0
      %3279 = vmatpush1.msra.mxu0 %v3242
      %3280 = vmatprep.subr.mxu0 0.0
      %3281 = vmatpush1.msra.mxu0 0.0
      %3282 = vmatprep.subr.mxu0 0.0
      %3283 = vmatpush1.msra.mxu0 0.0
      %3284 = vmatprep.subr.mxu0 0.0
      %3285 = vmatpush1.msra.mxu0 0.0
      %3286 = vmatprep.subr.mxu0 0.0
      %3287 = vmatpush1.msra.mxu0 0.0
      %3288 = vmatprep.subr.mxu0 0.0
      %3289 = vmatpush1.msra.mxu0 0.0
      %3290 = vmatprep.subr.mxu0 0.0
      %3291 = vmatpush1.msra.mxu0 0.0
      %3292 = vmatprep.subr.mxu0 0.0
      %3293 = vmatpush1.msra.mxu0 0.0
      %3294 = vmatprep.subr.mxu0 0.0
      %3295 = vmatpush1.msra.mxu0 0.0
      %3296 = vmatprep.subr.mxu0 0.0
      %3297 = vmatpush1.msra.mxu0 0.0
      %3298 = vmatprep.subr.mxu0 0.0
      %3299 = vmatpush1.msra.mxu0 0.0
      %3300 = vmatprep.subr.mxu0 0.0
      %3301 = vmatpush1.msra.mxu0 0.0
      %3302 = vmatprep.subr.mxu0 0.0
      %3303 = vmatpush1.msra.mxu0 0.0
      %3304 = vmatprep.subr.mxu0 0.0
      %3305 = vmatpush1.msra.mxu0 0.0
      %3306 = vmatprep.subr.mxu0 0.0
      %3307 = vmatpush1.msra.mxu0 0.0
      %3308 = vmatprep.subr.mxu0 0.0
      %3309 = vmatpush1.msra.mxu0 0.0
      %3310 = vmatprep.subr.mxu0 0.0
      %3311 = vmatpush1.msra.mxu0 0.0
      %3312 = vmatprep.mubr.f32.mxu0 0.0
      %3313 = vmatmul.mubr.f32.gmra.mrb[0].mxu0 %v3219
      %v3314 = vpop.f32.mrb[0].mxu0
      %v3315 = vadd.f32 %v3247, %v3314
      %v3316 = vpop.f32.mrb[0].mxu0
      %3317 = vmatprep.mubr.f32.mxu0 0.0
      %3318 = vmatmul.mubr.f32.gmra.mrb[0].mxu0 %v3220
      %v3319 = vpop.f32.mrb[0].mxu0
      %v3320 = vadd.f32 %v3247, %v3319
      %v3321 = vpop.f32.mrb[0].mxu0
      %3322 = vmatprep.mubr.f32.mxu0 0.0
      %3323 = vmatmul.mubr.f32.gmra.mrb[0].mxu0 %v3221
      %v3324 = vpop.f32.mrb[0].mxu0
      %v3325 = vadd.f32 %v3247, %v3324
      %v3326 = vpop.f32.mrb[0].mxu0
      %3327 = vmatprep.mubr.f32.mxu0 0.0
      %3328 = vmatmul.mubr.f32.gmra.mrb[0].mxu0 %v3222
      %v3329 = vpop.f32.mrb[0].mxu0
      %v3330 = vadd.f32 %v3247, %v3329
      %v3331 = vpop.f32.mrb[0].mxu0
      %3332 = vmatprep.mubr.f32.mxu0 0.0
      %3333 = vmatmul.mubr.f32.gmra.mrb[0].mxu0 %v3223
      %v3334 = vpop.f32.mrb[0].mxu0
      %v3335 = vadd.f32 %v3247, %v3334
      %v3336 = vpop.f32.mrb[0].mxu0
      %3337 = vmatprep.mubr.f32.mxu0 0.0
      %3338 = vmatmul.mubr.f32.gmra.mrb[0].mxu0 %v3224
      %v3339 = vpop.f32.mrb[0].mxu0
      %v3340 = vadd.f32 %v3247, %v3339
      %v3341 = vpop.f32.mrb[0].mxu0
      %3342 = vmatprep.mubr.f32.mxu0 0.0
      %3343 = vmatmul.mubr.f32.gmra.mrb[0].mxu0 %v3225
      %v3344 = vpop.f32.mrb[0].mxu0
      %v3345 = vadd.f32 %v3247, %v3344
      %v3346 = vpop.f32.mrb[0].mxu0
      %3347 = vmatprep.mubr.f32.mxu0 0.0
      %3348 = vmatmul.mubr.f32.gmra.mrb[0].mxu0 %v3226
      %v3349 = vpop.f32.mrb[0].mxu0
      %v3350 = vadd.f32 %v3247, %v3349
      %v3351 = vpop.f32.mrb[0].mxu0
      %3352 = vdwg.mxu0
      %3353 = vst [vmem:[%s460] sm:$0xff] %v3315
      %3354 = vst [vmem:[%s460 + $0x8] sm:$0xff] %v3320
      %3355 = vst [vmem:[%s460 + $0x10] sm:$0xff] %v3325
      %3356 = vst [vmem:[%s460 + $0x18] sm:$0xff] %v3330
      %3357 = vst [vmem:[%s460 + $0x20] sm:$0xff] %v3335
      %3358 = vst [vmem:[%s460 + $0x28] sm:$0xff] %v3340
      %3359 = vst [vmem:[%s460 + $0x30] sm:$0xff] %v3345
      %3360 = vst [vmem:[%s460 + $0x38] sm:$0xff] %v3350
      %p3361 = scmp.lt.s32.totalorder %s22, 1
      %s3362 = scalar_select %p3361, %s22, 1
      %s3363 = smul.addr %s3362, 8
      %s3364 = smul.addr %s3363, 8
      %s3365 = scalar_lea.vmem %s11, %s3364
      // Predicated region
      $region65: #{encode_process_decode.7} parent=63 // pred_check
        %p3366 = pneg %p296
      $region66: #{encode_process_decode.7} parent=63 // pred_check_branch
        %3368 = sbr.rel (%p3366) target = $region68
      $region67: #{encode_process_decode.7} parent=63 // pred_region
        _
      $region68: #{encode_process_decode.7} parent=63 // pred_fallthru
        _
    $region64: #{encode_process_decode.7} parent=5 // pred_fallthru
      _
    %p3369 = scmp.le.s32.totalorder 2, %s17
    // Predicated region
    $region69: #{encode_process_decode.7} parent=5 // pred_check
      %p3370 = pneg %p3369
    $region70: #{encode_process_decode.7} parent=5 // pred_check_branch
      %3372 = sbr.rel (%p3370) target = $region72
    $region71: #{encode_process_decode.7} parent=5 // pred_region
      %s3373 = ssub.s32 %s17, 2
      // Predicated region
      $region73: #{encode_process_decode.7} parent=71 // pred_check
        %p3374 = pneg %p302
      $region74: #{encode_process_decode.7} parent=71 // pred_check_branch
        %3376 = sbr.rel (%p3374) target = $region76
      $region75: #{encode_process_decode.7} parent=71 // pred_region
        %p3377 = scmp.lt.s32.totalorder %s23, 1
        %s3378 = scalar_select %p3377, %s23, 1
        %s3379 = smul.addr %s3378, 8
        %s3380 = smul.addr %s3379, 8
        %s3381 = scalar_lea.vmem %s11, %s3380
      $region76: #{encode_process_decode.7} parent=71 // pred_fallthru
        _
    $region72: #{encode_process_decode.7} parent=5 // pred_fallthru
      _
  $region6: #{encode_process_decode.7} parent=0 // loop_footer
    %s21 = sadd.s32 1, %s17
  $region7: #{encode_process_decode.7} parent=0 // loop_footer_branch
    %16 = sbr.rel target = $region3
  $region8: #{encode_process_decode.7} parent=0 // loop_exit
    _

</llo_original>
